<compile_context>
chip_gen: v7x
topology: tpu7x:2x2x1
jax: 0.10.0
libtpu: 0.0.40
codegen_flags: <defaults>
</compile_context>

<pallas_src>
import jax
import jax.numpy as jnp
from jax.experimental import pallas as pl
from jax.experimental.pallas import tpu as pltpu


def _full_spec(shape):
    """Whole-array block for a grid=(1,) launch."""
    nd = len(shape)
    return pl.BlockSpec(shape, lambda i: (0,) * nd)


# ----------------------------------------------------------------------------- #
# Kernel 1: bidirectional GRU (input_size=1), all B*C rows at once, fused fwd/bwd.
# gi6 (input-gate preactivations) is precomputed in glue (input size is 1, so it
# is a trivial elementwise scale); the sequential recurrent hot path runs here.
# Gate-major layout of the 6H axis: [r_f, r_b, z_f, z_b, n_f, n_b]; the backward
# half of gi6 is pre-reversed in time so step t serves fwd@t and bwd@(L-1-t).
# The time loop is fully unrolled (L is small & static): static load/store
# addresses, no scalar branch per step, scheduler sees the whole chain.
# ----------------------------------------------------------------------------- #
def make_bigru_kernel(L, N, H, trunc):
    H2, H4, H6 = 2 * H, 4 * H, 6 * H

    def kernel(gi_ref, whh_ref, bhh_ref, out_ref):
        # gi_ref:  (L, N, 6H)   whh_ref: (2H, 6H) block-diag   bhh_ref: (1, 6H)
        # out_ref: (Lm, N, 2H)  truncated, time-major, channels = [fwd H | bwd H]
        whh = whh_ref[...]
        bhh = bhh_ref[...]

        def sigmoid(v):  # EUP exp + approx reciprocal (off the VALU critical path)
            return pl.reciprocal(1.0 + jnp.exp(-v), approx=True)

        h = jnp.zeros((N, H2), jnp.float32)
        for t in range(L):                                                # unrolled
            gi = gi_ref[t]                                                # (N, 6H)
            gh = jnp.dot(h, whh, preferred_element_type=jnp.float32) + bhh  # fused fwd+bwd
            r = sigmoid(gi[:, 0:H2] + gh[:, 0:H2])
            z = sigmoid(gi[:, H2:H4] + gh[:, H2:H4])
            n = jnp.tanh(gi[:, H4:H6] + r * gh[:, H4:H6])
            h = (1.0 - z) * n + z * h                                     # (N, 2H)
            if trunc <= t < L - trunc:                                    # static guard
                out_ref[t - trunc, :, 0:H] = h[:, 0:H]                    # fwd @ time t
                out_ref[(L - 1 - t) - trunc, :, H:H2] = h[:, H:H2]        # bwd @ L-1-t

    return kernel


# ----------------------------------------------------------------------------- #
# Kernel 2: fused motif Conv1d + all filter gates + all per-cluster heads, whole
# batch.  All activations are (channels, B*Lm) lane-dense slabs; per-batch ops
# (means, conv windows, softmax, gate broadcast) use static lane slices of each
# batch's Lm-wide block.
# ----------------------------------------------------------------------------- #
def make_head_kernel(B, C, L, K1, Cin, F, SF, Kp, num_tasks, H):
    Lm = L - K1 + 1
    Lp = Lm - Kp + 1
    H2 = 2 * H

    def kernel(seq_ref, prof_ref, cw_ref, wconv_ref, bconv_ref, wg_ref,
               w1_ref, b1_ref, w2_ref, b2_ref, w3_ref, b3_ref, w4_ref, b4_ref,
               wc1_ref, wc2_ref, wc3_ref, wc4_ref, bc4_ref,
               profile_out_ref, counts_out_ref, gates_out_ref):

        def elu(v):
            return jnp.where(v > 0.0, v, jnp.exp(jnp.minimum(v, 0.0)) - 1.0)

        def sigmoid_exact(v):   # exact: gate outputs must stay in [0, 1]
            return 1.0 / (1.0 + jnp.exp(-v))

        def per_batch_mean(x2, width):
            # x2: (rows, B*width) -> (rows, B) per-batch means over lane blocks
            return jnp.concatenate(
                [jnp.mean(x2[:, b * width:(b + 1) * width], axis=1, keepdims=True)
                 for b in range(B)], axis=1)

        # ---- motif detector: Conv1d(4 -> F, K1, 'valid') as ONE im2col matmul ----
        xb = [seq_ref[b] for b in range(B)]                               # (Cin, L) each
        xc = jnp.concatenate(
            [jnp.concatenate([xb[b][:, k:k + Lm] for b in range(B)], axis=1)
             for k in range(K1)], axis=0)                                 # (K1*Cin, B*Lm)
        motifs = jnp.dot(wconv_ref[...], xc,
                         preferred_element_type=jnp.float32) + bconv_ref[...]   # (F, B*Lm)
        mgap = per_batch_mean(motifs, Lm)                                 # (F, B)

        # ---- ALL cluster filter gates in one matmul: sigmoid((C*F, F) @ (F, B)) ----
        g_all = sigmoid_exact(jnp.dot(wg_ref[...], mgap,
                                      preferred_element_type=jnp.float32))       # (C*F, B)
        gates_out_ref[...] = g_all

        # ---- GRU profiles: time-major (Lm, N*2H) -> channel-major (N*2H, Lm) ----
        profT = prof_ref[...].T                                           # (N*2H, Lm)

        for c in range(C):  # static, small
            prof_c = jnp.concatenate(
                [profT[(b * C + c) * H2:(b * C + c + 1) * H2, :] for b in range(B)],
                axis=1)                                                   # (2H, B*Lm)

            g = g_all[c * F:(c + 1) * F, :]                               # (F, B)
            g_full = jnp.concatenate(
                [jnp.broadcast_to(g[:, b:b + 1], (F, Lm)) for b in range(B)], axis=1)
            filtered = motifs * g_full                                    # (F, B*Lm)

            # shape head: hstack([filtered, prof]) -> 3x (1x1 conv + ELU),
            # then valid conv (Kp) + softmax over length
            xin = jnp.concatenate([filtered, prof_c], axis=0)             # (F+2H, B*Lm)
            y = elu(jnp.dot(w1_ref[c], xin, preferred_element_type=jnp.float32) + b1_ref[c])
            y = elu(jnp.dot(w2_ref[c], y, preferred_element_type=jnp.float32) + b2_ref[c])
            y = elu(jnp.dot(w3_ref[c], y, preferred_element_type=jnp.float32) + b3_ref[c])

            yc = jnp.concatenate(
                [jnp.concatenate([y[:, b * Lm + k:b * Lm + k + Lp] for b in range(B)],
                                 axis=1)
                 for k in range(Kp)], axis=0)                             # (Kp*SF, B*Lp)
            logits = jnp.dot(w4_ref[c], yc,
                             preferred_element_type=jnp.float32) + b4_ref[c]     # (nt, B*Lp)

            probs = []
            for b in range(B):
                lg = logits[:, b * Lp:(b + 1) * Lp]
                m = jnp.max(lg, axis=1, keepdims=True)
                e = jnp.exp(lg - m)
                probs.append(e / jnp.sum(e, axis=1, keepdims=True))
            profile_out_ref[c] = jnp.concatenate(probs, axis=1)           # (nt, B*Lp)

            # counts head: hstack([gap(filtered), gap(prof)]) -> 3x (Linear no-bias
            # + ELU), Linear(+bias), softplus, * cw  ('late-ch' scale)
            seq_gap = per_batch_mean(filtered, Lm)                        # (F, B)
            prof_gap = per_batch_mean(prof_c, Lm)                         # (2H, B)
            gin = jnp.concatenate([seq_gap, prof_gap], axis=0)            # (F+2H, B)
            cc = elu(jnp.dot(wc1_ref[c], gin, preferred_element_type=jnp.float32))
            cc = elu(jnp.dot(wc2_ref[c], cc, preferred_element_type=jnp.float32))
            cc = elu(jnp.dot(wc3_ref[c], cc, preferred_element_type=jnp.float32))
            cc = jnp.dot(wc4_ref[c], cc, preferred_element_type=jnp.float32) + bc4_ref[c]
            sp = jnp.where(cc > 20.0, cc,
                           jnp.log(1.0 + jnp.exp(jnp.minimum(cc, 20.0))))
            counts_out_ref[c] = sp * cw_ref[c]

    return kernel


# ----------------------------------------------------------------------------- #
# Full Regressor forward (thin glue around the two fused kernels)
# ----------------------------------------------------------------------------- #
def regressor_forward(seq, atac, per_cluster_load, params):
    B, Cin, L = seq.shape
    C = atac.shape[1]
    F, KC = params["conv_w"].shape
    K1 = KC // Cin
    Lm = L - K1 + 1
    trunc = (L - Lm) // 2
    H = params["gru"]["whhT_f"].shape[0]
    N = B * C

    # --- build GRU input-gate preactivations + fused block-diag recurrent weight ---
    gp = params["gru"]
    x_rows = atac.reshape(N, L).astype(jnp.float32)           # row n = b*C + c
    xt = x_rows.T                                             # (L, N) forward time
    xt_rev = jnp.flip(x_rows, axis=1).T                       # (L, N) reversed time
    gi_f = xt[:, :, None] * gp["wih_f"] + gp["bih_f"]         # (L, N, 3H) order [r|z|n]
    gi_b = xt_rev[:, :, None] * gp["wih_b"] + gp["bih_b"]     # (L, N, 3H) pre-time-reversed
    gi6 = jnp.concatenate([gi_f[..., 0:H], gi_b[..., 0:H],
                           gi_f[..., H:2 * H], gi_b[..., H:2 * H],
                           gi_f[..., 2 * H:3 * H], gi_b[..., 2 * H:3 * H]], axis=-1)

    zH = jnp.zeros((H, H), jnp.float32)
    wf, wb = gp["whhT_f"], gp["whhT_b"]                       # (H, 3H) each
    whh_bd = jnp.concatenate([
        jnp.concatenate([wf[:, 0:H], zH, wf[:, H:2 * H], zH, wf[:, 2 * H:3 * H], zH],
                        axis=1),
        jnp.concatenate([zH, wb[:, 0:H], zH, wb[:, H:2 * H], zH, wb[:, 2 * H:3 * H]],
                        axis=1)], axis=0)                     # (2H, 6H)
    bf, bb = gp["bhh_f"], gp["bhh_b"]
    bhh6 = jnp.concatenate([bf[:, 0:H], bb[:, 0:H], bf[:, H:2 * H], bb[:, H:2 * H],
                            bf[:, 2 * H:3 * H], bb[:, 2 * H:3 * H]], axis=1)    # (1, 6H)

    gru_out = pl.pallas_call(
        make_bigru_kernel(L, N, H, trunc),
        out_shape=jax.ShapeDtypeStruct((Lm, N, 2 * H), jnp.float32),
        grid=(1,),
        in_specs=[_full_spec(gi6.shape), _full_spec(whh_bd.shape), _full_spec(bhh6.shape)],
        out_specs=_full_spec((Lm, N, 2 * H)),
        compiler_params=pltpu.CompilerParams(dimension_semantics=("arbitrary",)),
    )(gi6, whh_bd, bhh6)
    prof2 = gru_out.reshape(Lm, N * 2 * H)                    # free minor-dim merge

    cw_t = jnp.transpose(per_cluster_load).reshape(C, 1, B).astype(jnp.float32)

    cl = params["clusters"]
    SF = cl["w1"].shape[1]
    num_tasks = cl["w4"].shape[1]
    Kp = cl["w4"].shape[2] // SF
    Lp = Lm - Kp + 1
    wg_all = cl["wg"].reshape(C * F, F)                       # free leading-dim merge

    head_args = (seq.astype(jnp.float32), prof2, cw_t,
                 params["conv_w"], params["conv_b"], wg_all,
                 cl["w1"], cl["b1"], cl["w2"], cl["b2"], cl["w3"], cl["b3"],
                 cl["w4"], cl["b4"],
                 cl["wc1"], cl["wc2"], cl["wc3"], cl["wc4"], cl["bc4"])

    profile_flat, counts_flat, gates_flat = pl.pallas_call(
        make_head_kernel(B, C, L, K1, Cin, F, SF, Kp, num_tasks, H),
        out_shape=(jax.ShapeDtypeStruct((C, num_tasks, B * Lp), jnp.float32),
                   jax.ShapeDtypeStruct((C, num_tasks, B), jnp.float32),
                   jax.ShapeDtypeStruct((C * F, B), jnp.float32)),
        grid=(1,),
        in_specs=[_full_spec(a.shape) for a in head_args],
        out_specs=(_full_spec((C, num_tasks, B * Lp)),
                   _full_spec((C, num_tasks, B)),
                   _full_spec((C * F, B))),
        compiler_params=pltpu.CompilerParams(dimension_semantics=("arbitrary",)),
    )(*head_args)

    per_profiles = [jnp.transpose(profile_flat[c].reshape(num_tasks, B, Lp), (1, 0, 2))
                    for c in range(C)]                        # each (B, num_tasks, Lp)
    per_counts = [counts_flat[c].T for c in range(C)]         # each (B, num_tasks)
    per_gates = [gates_flat[c * F:(c + 1) * F].T for c in range(C)]   # each (B, F)
    return per_profiles, per_counts, per_cluster_load, per_gates


# ----------------------------------------------------------------------------- #
# Deterministic synthetic parameters
# ----------------------------------------------------------------------------- #
def init_params(key, *, F, K1, H, SF, C, Kp, num_tasks, Cin=4):
    keys = jax.random.split(key, 32)
    it = iter(keys)

    def nrm(shape, scale=0.1):
        return (scale * jax.random.normal(next(it), shape)).astype(jnp.float32)

    params = {
        # Conv1d weight flattened for im2col: conv_w[f, k*Cin + cin] = W_torch[f, cin, k]
        "conv_w": nrm((F, K1 * Cin)),
        "conv_b": nrm((F, 1), 0.01),
        "gru": {},
    }
    for d in ("f", "b"):
        params["gru"]["wih_" + d] = nrm((3 * H,), 0.3)        # W_ih (3H, 1) squeezed, [r|z|n]
        params["gru"]["bih_" + d] = nrm((3 * H,), 0.01)
        params["gru"]["whhT_" + d] = nrm((H, 3 * H), 0.1)     # W_hh^T, columns [r|z|n]
        params["gru"]["bhh_" + d] = nrm((1, 3 * H), 0.01)
    D = F + 2 * H                                             # hstack([filtered, profiles])
    params["clusters"] = {
        # all cluster weights stacked along a leading C axis
        "wg":  nrm((C, F, F)),
        "w1":  nrm((C, SF, D)), "b1": nrm((C, SF, 1), 0.01),  # first 1x1 conv on hstack
        "w2":  nrm((C, SF, SF)), "b2": nrm((C, SF, 1), 0.01),
        "w3":  nrm((C, SF, SF)), "b3": nrm((C, SF, 1), 0.01),
        # profile conv flattened for im2col: w4[t, k*SF + s] = W_torch[t, s, k]
        "w4":  nrm((C, num_tasks, Kp * SF)), "b4": nrm((C, num_tasks, 1), 0.01),
        "wc1": nrm((C, SF, D)),                               # first counts Linear (no bias)
        "wc2": nrm((C, SF, SF)), "wc3": nrm((C, SF, SF)),
        "wc4": nrm((C, num_tasks, SF)), "bc4": nrm((C, num_tasks, 1), 0.01),
    }
    return params


if __name__ == "__main__":
    B, C, L = 2, 2, 40           # batch, n_clusters, window_size
    F, K1 = 32, 9                # filters, conv1_kernel_size
    H = 16                       # n_profile_filters = filters / profile_shrinkage(=2)
    SF = F                       # shape_filters
    Kp = 9                       # profile_kernel_size
    num_tasks = 1

    key = jax.random.PRNGKey(0)
    kparam, kseq, katac, kload = jax.random.split(key, 4)
    params = init_params(kparam, F=F, K1=K1, H=H, SF=SF, C=C, Kp=Kp, num_tasks=num_tasks)

    seq = jax.random.normal(kseq, (B, 4, L), jnp.float32)
    atac = jax.random.normal(katac, (B, C, L), jnp.float32)
    per_cluster_load = jax.nn.softmax(jax.random.normal(kload, (B, C), jnp.float32), axis=-1)

    fwd = jax.jit(regressor_forward)
    profiles, counts, cw, gates = fwd(seq, atac, per_cluster_load, params)
    jax.block_until_ready((profiles, counts, cw, gates))

    Lp = L - K1 + 1 - Kp + 1
    assert len(profiles) == C and len(counts) == C and len(gates) == C
    for p in profiles:
        assert p.shape == (B, num_tasks, Lp)
        assert bool(jnp.allclose(p.sum(axis=-1), 1.0, atol=1e-4))   # softmax over length
    for c_ in counts:
        assert c_.shape == (B, num_tasks)
        assert bool(jnp.all(jnp.isfinite(c_))) and bool(jnp.all(c_ >= 0.0))
    for g in gates:
        assert g.shape == (B, F)
        assert bool(jnp.all((g >= 0.0) & (g <= 1.0)))
    assert cw.shape == (B, C)
    print("KERNEL_OK")
</pallas_src>

<mosaic_0001>
module attributes {stable_mosaic.version = 11 : i64} {
  func.func @kernel(%arg0: i32, %arg1: memref<2x4x40xf32, #tpu.memory_space<vmem>>, %arg2: memref<32x128xf32, #tpu.memory_space<vmem>>, %arg3: memref<2x1x2xf32, #tpu.memory_space<vmem>>, %arg4: memref<32x36xf32, #tpu.memory_space<vmem>>, %arg5: memref<32x1xf32, #tpu.memory_space<vmem>>, %arg6: memref<64x32xf32, #tpu.memory_space<vmem>>, %arg7: memref<2x32x64xf32, #tpu.memory_space<vmem>>, %arg8: memref<2x32x1xf32, #tpu.memory_space<vmem>>, %arg9: memref<2x32x32xf32, #tpu.memory_space<vmem>>, %arg10: memref<2x32x1xf32, #tpu.memory_space<vmem>>, %arg11: memref<2x32x32xf32, #tpu.memory_space<vmem>>, %arg12: memref<2x32x1xf32, #tpu.memory_space<vmem>>, %arg13: memref<2x1x288xf32, #tpu.memory_space<vmem>>, %arg14: memref<2x1x1xf32, #tpu.memory_space<vmem>>, %arg15: memref<2x32x64xf32, #tpu.memory_space<vmem>>, %arg16: memref<2x32x32xf32, #tpu.memory_space<vmem>>, %arg17: memref<2x32x32xf32, #tpu.memory_space<vmem>>, %arg18: memref<2x1x32xf32, #tpu.memory_space<vmem>>, %arg19: memref<2x1x1xf32, #tpu.memory_space<vmem>>, %arg20: memref<2x1x48xf32, #tpu.memory_space<vmem>>, %arg21: memref<2x1x2xf32, #tpu.memory_space<vmem>>, %arg22: memref<64x2xf32, #tpu.memory_space<vmem>>) attributes {dimension_semantics = [#tpu.dimension_semantics<arbitrary>], iteration_bounds = array<i64: 1>, scalar_prefetch = 0 : i64, scratch_operands = 0 : i64, tpu.core_type = #tpu.core_type<tc>, window_params = [{pipeline_mode = #tpu.pipeline_mode<synchronous>, transform_indices = @transform_0, window_bounds = array<i64: 2, 4, 40>}, {pipeline_mode = #tpu.pipeline_mode<synchronous>, transform_indices = @transform_1, window_bounds = array<i64: 32, 128>}, {pipeline_mode = #tpu.pipeline_mode<synchronous>, transform_indices = @transform_2, window_bounds = array<i64: 2, 1, 2>}, {pipeline_mode = #tpu.pipeline_mode<synchronous>, transform_indices = @transform_3, window_bounds = array<i64: 32, 36>}, {pipeline_mode = #tpu.pipeline_mode<synchronous>, transform_indices = @transform_4, window_bounds = array<i64: 32, 1>}, {pipeline_mode = #tpu.pipeline_mode<synchronous>, transform_indices = @transform_5, window_bounds = array<i64: 64, 32>}, {pipeline_mode = #tpu.pipeline_mode<synchronous>, transform_indices = @transform_6, window_bounds = array<i64: 2, 32, 64>}, {pipeline_mode = #tpu.pipeline_mode<synchronous>, transform_indices = @transform_7, window_bounds = array<i64: 2, 32, 1>}, {pipeline_mode = #tpu.pipeline_mode<synchronous>, transform_indices = @transform_8, window_bounds = array<i64: 2, 32, 32>}, {pipeline_mode = #tpu.pipeline_mode<synchronous>, transform_indices = @transform_9, window_bounds = array<i64: 2, 32, 1>}, {pipeline_mode = #tpu.pipeline_mode<synchronous>, transform_indices = @transform_10, window_bounds = array<i64: 2, 32, 32>}, {pipeline_mode = #tpu.pipeline_mode<synchronous>, transform_indices = @transform_11, window_bounds = array<i64: 2, 32, 1>}, {pipeline_mode = #tpu.pipeline_mode<synchronous>, transform_indices = @transform_12, window_bounds = array<i64: 2, 1, 288>}, {pipeline_mode = #tpu.pipeline_mode<synchronous>, transform_indices = @transform_13, window_bounds = array<i64: 2, 1, 1>}, {pipeline_mode = #tpu.pipeline_mode<synchronous>, transform_indices = @transform_14, window_bounds = array<i64: 2, 32, 64>}, {pipeline_mode = #tpu.pipeline_mode<synchronous>, transform_indices = @transform_15, window_bounds = array<i64: 2, 32, 32>}, {pipeline_mode = #tpu.pipeline_mode<synchronous>, transform_indices = @transform_16, window_bounds = array<i64: 2, 32, 32>}, {pipeline_mode = #tpu.pipeline_mode<synchronous>, transform_indices = @transform_17, window_bounds = array<i64: 2, 1, 32>}, {pipeline_mode = #tpu.pipeline_mode<synchronous>, transform_indices = @transform_18, window_bounds = array<i64: 2, 1, 1>}, {pipeline_mode = #tpu.pipeline_mode<synchronous>, transform_indices = @transform_19, window_bounds = array<i64: 2, 1, 48>}, {pipeline_mode = #tpu.pipeline_mode<synchronous>, transform_indices = @transform_20, window_bounds = array<i64: 2, 1, 2>}, {pipeline_mode = #tpu.pipeline_mode<synchronous>, transform_indices = @transform_21, window_bounds = array<i64: 64, 2>}]} {
    %c0 = arith.constant 0 : index
    %c0_0 = arith.constant 0 : index
    %c0_1 = arith.constant 0 : index
    %0 = vector.load %arg1[%c0, %c0_0, %c0_1] : memref<2x4x40xf32, #tpu.memory_space<vmem>>, vector<1x4x40xf32>
    %1 = vector.shape_cast %0 : vector<1x4x40xf32> to vector<4x40xf32>
    %c1 = arith.constant 1 : index
    %c0_2 = arith.constant 0 : index
    %c0_3 = arith.constant 0 : index
    %2 = vector.load %arg1[%c1, %c0_2, %c0_3] : memref<2x4x40xf32, #tpu.memory_space<vmem>>, vector<1x4x40xf32>
    %3 = vector.shape_cast %2 : vector<1x4x40xf32> to vector<4x40xf32>
    %4 = vector.extract_strided_slice %1 {offsets = [0, 0], sizes = [4, 32], strides = [1, 1]} : vector<4x40xf32> to vector<4x32xf32>
    %5 = vector.extract_strided_slice %3 {offsets = [0, 0], sizes = [4, 32], strides = [1, 1]} : vector<4x40xf32> to vector<4x32xf32>
    %6 = tpu.concatenate %4, %5 in 1 : vector<4x32xf32>, vector<4x32xf32> -> vector<4x64xf32>
    %7 = vector.extract_strided_slice %1 {offsets = [0, 1], sizes = [4, 32], strides = [1, 1]} : vector<4x40xf32> to vector<4x32xf32>
    %8 = vector.extract_strided_slice %3 {offsets = [0, 1], sizes = [4, 32], strides = [1, 1]} : vector<4x40xf32> to vector<4x32xf32>
    %9 = tpu.concatenate %7, %8 in 1 : vector<4x32xf32>, vector<4x32xf32> -> vector<4x64xf32>
    %10 = vector.extract_strided_slice %1 {offsets = [0, 2], sizes = [4, 32], strides = [1, 1]} : vector<4x40xf32> to vector<4x32xf32>
    %11 = vector.extract_strided_slice %3 {offsets = [0, 2], sizes = [4, 32], strides = [1, 1]} : vector<4x40xf32> to vector<4x32xf32>
    %12 = tpu.concatenate %10, %11 in 1 : vector<4x32xf32>, vector<4x32xf32> -> vector<4x64xf32>
    %13 = vector.extract_strided_slice %1 {offsets = [0, 3], sizes = [4, 32], strides = [1, 1]} : vector<4x40xf32> to vector<4x32xf32>
    %14 = vector.extract_strided_slice %3 {offsets = [0, 3], sizes = [4, 32], strides = [1, 1]} : vector<4x40xf32> to vector<4x32xf32>
    %15 = tpu.concatenate %13, %14 in 1 : vector<4x32xf32>, vector<4x32xf32> -> vector<4x64xf32>
    %16 = vector.extract_strided_slice %1 {offsets = [0, 4], sizes = [4, 32], strides = [1, 1]} : vector<4x40xf32> to vector<4x32xf32>
    %17 = vector.extract_strided_slice %3 {offsets = [0, 4], sizes = [4, 32], strides = [1, 1]} : vector<4x40xf32> to vector<4x32xf32>
    %18 = tpu.concatenate %16, %17 in 1 : vector<4x32xf32>, vector<4x32xf32> -> vector<4x64xf32>
    %19 = vector.extract_strided_slice %1 {offsets = [0, 5], sizes = [4, 32], strides = [1, 1]} : vector<4x40xf32> to vector<4x32xf32>
    %20 = vector.extract_strided_slice %3 {offsets = [0, 5], sizes = [4, 32], strides = [1, 1]} : vector<4x40xf32> to vector<4x32xf32>
    %21 = tpu.concatenate %19, %20 in 1 : vector<4x32xf32>, vector<4x32xf32> -> vector<4x64xf32>
    %22 = vector.extract_strided_slice %1 {offsets = [0, 6], sizes = [4, 32], strides = [1, 1]} : vector<4x40xf32> to vector<4x32xf32>
    %23 = vector.extract_strided_slice %3 {offsets = [0, 6], sizes = [4, 32], strides = [1, 1]} : vector<4x40xf32> to vector<4x32xf32>
    %24 = tpu.concatenate %22, %23 in 1 : vector<4x32xf32>, vector<4x32xf32> -> vector<4x64xf32>
    %25 = vector.extract_strided_slice %1 {offsets = [0, 7], sizes = [4, 32], strides = [1, 1]} : vector<4x40xf32> to vector<4x32xf32>
    %26 = vector.extract_strided_slice %3 {offsets = [0, 7], sizes = [4, 32], strides = [1, 1]} : vector<4x40xf32> to vector<4x32xf32>
    %27 = tpu.concatenate %25, %26 in 1 : vector<4x32xf32>, vector<4x32xf32> -> vector<4x64xf32>
    %28 = vector.extract_strided_slice %1 {offsets = [0, 8], sizes = [4, 32], strides = [1, 1]} : vector<4x40xf32> to vector<4x32xf32>
    %29 = vector.extract_strided_slice %3 {offsets = [0, 8], sizes = [4, 32], strides = [1, 1]} : vector<4x40xf32> to vector<4x32xf32>
    %30 = tpu.concatenate %28, %29 in 1 : vector<4x32xf32>, vector<4x32xf32> -> vector<4x64xf32>
    %31 = tpu.concatenate %6, %9, %12, %15, %18, %21, %24, %27, %30 in 0 : vector<4x64xf32>, vector<4x64xf32>, vector<4x64xf32>, vector<4x64xf32>, vector<4x64xf32>, vector<4x64xf32>, vector<4x64xf32>, vector<4x64xf32>, vector<4x64xf32> -> vector<36x64xf32>
    %c0_4 = arith.constant 0 : index
    %c0_5 = arith.constant 0 : index
    %32 = vector.load %arg4[%c0_4, %c0_5] : memref<32x36xf32, #tpu.memory_space<vmem>>, vector<32x36xf32>
    %cst = arith.constant dense<0.000000e+00> : vector<32x64xf32>
    %33 = tpu.matmul %32, %31, %cst {dimension_numbers = #tpu.dot_dimension_numbers<[1], [0], [0], [1], [0, 0, 1, 1], [], []>} : vector<32x36xf32>, vector<36x64xf32>, vector<32x64xf32> -> vector<32x64xf32>
    %c0_6 = arith.constant 0 : index
    %c0_7 = arith.constant 0 : index
    %34 = vector.load %arg5[%c0_6, %c0_7] : memref<32x1xf32, #tpu.memory_space<vmem>>, vector<32x1xf32>
    %35 = vector.broadcast %34 : vector<32x1xf32> to vector<32x64xf32>
    %36 = arith.addf %33, %35 : vector<32x64xf32>
    %37 = vector.extract_strided_slice %36 {offsets = [0, 0], sizes = [32, 32], strides = [1, 1]} : vector<32x64xf32> to vector<32x32xf32>
    %cst_8 = arith.constant dense<0.000000e+00> : vector<32xf32>
    %38 = vector.multi_reduction <add>, %37, %cst_8 [1] : vector<32x32xf32> to vector<32xf32>
    %39 = vector.shape_cast %38 : vector<32xf32> to vector<32x1xf32>
    %cst_9 = arith.constant 3.200000e+01 : f32
    %40 = vector.broadcast %cst_9 : f32 to vector<32x1xf32>
    %41 = arith.divf %39, %40 : vector<32x1xf32>
    %42 = vector.extract_strided_slice %36 {offsets = [0, 32], sizes = [32, 32], strides = [1, 1]} : vector<32x64xf32> to vector<32x32xf32>
    %cst_10 = arith.constant dense<0.000000e+00> : vector<32xf32>
    %43 = vector.multi_reduction <add>, %42, %cst_10 [1] : vector<32x32xf32> to vector<32xf32>
    %44 = vector.shape_cast %43 : vector<32xf32> to vector<32x1xf32>
    %cst_11 = arith.constant 3.200000e+01 : f32
    %45 = vector.broadcast %cst_11 : f32 to vector<32x1xf32>
    %46 = arith.divf %44, %45 : vector<32x1xf32>
    %47 = tpu.concatenate %41, %46 in 1 : vector<32x1xf32>, vector<32x1xf32> -> vector<32x2xf32>
    %c0_12 = arith.constant 0 : index
    %c0_13 = arith.constant 0 : index
    %48 = vector.load %arg6[%c0_12, %c0_13] : memref<64x32xf32, #tpu.memory_space<vmem>>, vector<64x32xf32>
    %cst_14 = arith.constant dense<0.000000e+00> : vector<64x2xf32>
    %49 = tpu.matmul %48, %47, %cst_14 {dimension_numbers = #tpu.dot_dimension_numbers<[1], [0], [0], [1], [0, 0, 1, 1], [], []>} : vector<64x32xf32>, vector<32x2xf32>, vector<64x2xf32> -> vector<64x2xf32>
    %cst_15 = arith.constant 0.000000e+00 : f32
    %50 = vector.broadcast %cst_15 : f32 to vector<64x2xf32>
    %51 = arith.subf %50, %49 : vector<64x2xf32>
    %52 = math.exp %51 : vector<64x2xf32>
    %cst_16 = arith.constant 1.000000e+00 : f32
    %53 = vector.broadcast %cst_16 : f32 to vector<64x2xf32>
    %54 = arith.addf %53, %52 : vector<64x2xf32>
    %cst_17 = arith.constant 1.000000e+00 : f32
    %55 = vector.broadcast %cst_17 : f32 to vector<64x2xf32>
    %56 = arith.divf %55, %54 : vector<64x2xf32>
    %c0_18 = arith.constant 0 : index
    %c0_19 = arith.constant 0 : index
    %57 = vector.load %arg22[%c0_18, %c0_19] : memref<64x2xf32, #tpu.memory_space<vmem>>, vector<64x2xf32>
    tpu.vector_store %arg22[%c0_18, %c0_19], %56 {strides = array<i32>} : memref<64x2xf32, #tpu.memory_space<vmem>>, vector<64x2xf32>,
    %c0_20 = arith.constant 0 : index
    %c0_21 = arith.constant 0 : index
    %58 = vector.load %arg2[%c0_20, %c0_21] : memref<32x128xf32, #tpu.memory_space<vmem>>, vector<32x128xf32>
    %59 = tpu.transpose %58, [1, 0] : vector<32x128xf32> -> vector<128x32xf32>
    %60 = vector.extract_strided_slice %59 {offsets = [0, 0], sizes = [32, 32], strides = [1, 1]} : vector<128x32xf32> to vector<32x32xf32>
    %61 = vector.extract_strided_slice %59 {offsets = [64, 0], sizes = [32, 32], strides = [1, 1]} : vector<128x32xf32> to vector<32x32xf32>
    %62 = tpu.concatenate %60, %61 in 1 : vector<32x32xf32>, vector<32x32xf32> -> vector<32x64xf32>
    %63 = vector.extract_strided_slice %56 {offsets = [0, 0], sizes = [32, 2], strides = [1, 1]} : vector<64x2xf32> to vector<32x2xf32>
    %64 = vector.extract_strided_slice %63 {offsets = [0, 0], sizes = [32, 1], strides = [1, 1]} : vector<32x2xf32> to vector<32x1xf32>
    %65 = vector.shape_cast %64 : vector<32x1xf32> to vector<32x1xf32>
    %66 = vector.broadcast %65 : vector<32x1xf32> to vector<32x32xf32>
    %67 = vector.extract_strided_slice %63 {offsets = [0, 1], sizes = [32, 1], strides = [1, 1]} : vector<32x2xf32> to vector<32x1xf32>
    %68 = vector.shape_cast %67 : vector<32x1xf32> to vector<32x1xf32>
    %69 = vector.broadcast %68 : vector<32x1xf32> to vector<32x32xf32>
    %70 = tpu.concatenate %66, %69 in 1 : vector<32x32xf32>, vector<32x32xf32> -> vector<32x64xf32>
    %71 = arith.mulf %36, %70 : vector<32x64xf32>
    %72 = tpu.concatenate %71, %62 in 0 : vector<32x64xf32>, vector<32x64xf32> -> vector<64x64xf32>
    %c0_22 = arith.constant 0 : index
    %c0_23 = arith.constant 0 : index
    %c0_24 = arith.constant 0 : index
    %73 = vector.load %arg7[%c0_22, %c0_23, %c0_24] : memref<2x32x64xf32, #tpu.memory_space<vmem>>, vector<1x32x64xf32>
    %74 = vector.shape_cast %73 : vector<1x32x64xf32> to vector<32x64xf32>
    %cst_25 = arith.constant dense<0.000000e+00> : vector<32x64xf32>
    %75 = tpu.matmul %74, %72, %cst_25 {dimension_numbers = #tpu.dot_dimension_numbers<[1], [0], [0], [1], [0, 0, 1, 1], [], []>} : vector<32x64xf32>, vector<64x64xf32>, vector<32x64xf32> -> vector<32x64xf32>
    %c0_26 = arith.constant 0 : index
    %c0_27 = arith.constant 0 : index
    %c0_28 = arith.constant 0 : index
    %76 = vector.load %arg8[%c0_26, %c0_27, %c0_28] : memref<2x32x1xf32, #tpu.memory_space<vmem>>, vector<1x32x1xf32>
    %77 = vector.shape_cast %76 : vector<1x32x1xf32> to vector<32x1xf32>
    %78 = vector.broadcast %77 : vector<32x1xf32> to vector<32x64xf32>
    %79 = arith.addf %75, %78 : vector<32x64xf32>
    %cst_29 = arith.constant 0.000000e+00 : f32
    %80 = vector.broadcast %cst_29 : f32 to vector<32x64xf32>
    %81 = arith.cmpf ogt, %79, %80 : vector<32x64xf32>
    %cst_30 = arith.constant 0.000000e+00 : f32
    %82 = vector.broadcast %cst_30 : f32 to vector<32x64xf32>
    %83 = arith.minimumf %79, %82 : vector<32x64xf32>
    %84 = math.exp %83 : vector<32x64xf32>
    %cst_31 = arith.constant 1.000000e+00 : f32
    %85 = vector.broadcast %cst_31 : f32 to vector<32x64xf32>
    %86 = arith.subf %84, %85 : vector<32x64xf32>
    %87 = arith.select %81, %79, %86 : vector<32x64xi1>, vector<32x64xf32>
    %c0_32 = arith.constant 0 : index
    %c0_33 = arith.constant 0 : index
    %c0_34 = arith.constant 0 : index
    %88 = vector.load %arg9[%c0_32, %c0_33, %c0_34] : memref<2x32x32xf32, #tpu.memory_space<vmem>>, vector<1x32x32xf32>
    %89 = vector.shape_cast %88 : vector<1x32x32xf32> to vector<32x32xf32>
    %cst_35 = arith.constant dense<0.000000e+00> : vector<32x64xf32>
    %90 = tpu.matmul %89, %87, %cst_35 {dimension_numbers = #tpu.dot_dimension_numbers<[1], [0], [0], [1], [0, 0, 1, 1], [], []>} : vector<32x32xf32>, vector<32x64xf32>, vector<32x64xf32> -> vector<32x64xf32>
    %c0_36 = arith.constant 0 : index
    %c0_37 = arith.constant 0 : index
    %c0_38 = arith.constant 0 : index
    %91 = vector.load %arg10[%c0_36, %c0_37, %c0_38] : memref<2x32x1xf32, #tpu.memory_space<vmem>>, vector<1x32x1xf32>
    %92 = vector.shape_cast %91 : vector<1x32x1xf32> to vector<32x1xf32>
    %93 = vector.broadcast %92 : vector<32x1xf32> to vector<32x64xf32>
    %94 = arith.addf %90, %93 : vector<32x64xf32>
    %cst_39 = arith.constant 0.000000e+00 : f32
    %95 = vector.broadcast %cst_39 : f32 to vector<32x64xf32>
    %96 = arith.cmpf ogt, %94, %95 : vector<32x64xf32>
    %cst_40 = arith.constant 0.000000e+00 : f32
    %97 = vector.broadcast %cst_40 : f32 to vector<32x64xf32>
    %98 = arith.minimumf %94, %97 : vector<32x64xf32>
    %99 = math.exp %98 : vector<32x64xf32>
    %cst_41 = arith.constant 1.000000e+00 : f32
    %100 = vector.broadcast %cst_41 : f32 to vector<32x64xf32>
    %101 = arith.subf %99, %100 : vector<32x64xf32>
    %102 = arith.select %96, %94, %101 : vector<32x64xi1>, vector<32x64xf32>
    %c0_42 = arith.constant 0 : index
    %c0_43 = arith.constant 0 : index
    %c0_44 = arith.constant 0 : index
    %103 = vector.load %arg11[%c0_42, %c0_43, %c0_44] : memref<2x32x32xf32, #tpu.memory_space<vmem>>, vector<1x32x32xf32>
    %104 = vector.shape_cast %103 : vector<1x32x32xf32> to vector<32x32xf32>
    %cst_45 = arith.constant dense<0.000000e+00> : vector<32x64xf32>
    %105 = tpu.matmul %104, %102, %cst_45 {dimension_numbers = #tpu.dot_dimension_numbers<[1], [0], [0], [1], [0, 0, 1, 1], [], []>} : vector<32x32xf32>, vector<32x64xf32>, vector<32x64xf32> -> vector<32x64xf32>
    %c0_46 = arith.constant 0 : index
    %c0_47 = arith.constant 0 : index
    %c0_48 = arith.constant 0 : index
    %106 = vector.load %arg12[%c0_46, %c0_47, %c0_48] : memref<2x32x1xf32, #tpu.memory_space<vmem>>, vector<1x32x1xf32>
    %107 = vector.shape_cast %106 : vector<1x32x1xf32> to vector<32x1xf32>
    %108 = vector.broadcast %107 : vector<32x1xf32> to vector<32x64xf32>
    %109 = arith.addf %105, %108 : vector<32x64xf32>
    %cst_49 = arith.constant 0.000000e+00 : f32
    %110 = vector.broadcast %cst_49 : f32 to vector<32x64xf32>
    %111 = arith.cmpf ogt, %109, %110 : vector<32x64xf32>
    %cst_50 = arith.constant 0.000000e+00 : f32
    %112 = vector.broadcast %cst_50 : f32 to vector<32x64xf32>
    %113 = arith.minimumf %109, %112 : vector<32x64xf32>
    %114 = math.exp %113 : vector<32x64xf32>
    %cst_51 = arith.constant 1.000000e+00 : f32
    %115 = vector.broadcast %cst_51 : f32 to vector<32x64xf32>
    %116 = arith.subf %114, %115 : vector<32x64xf32>
    %117 = arith.select %111, %109, %116 : vector<32x64xi1>, vector<32x64xf32>
    %118 = vector.extract_strided_slice %117 {offsets = [0, 0], sizes = [32, 24], strides = [1, 1]} : vector<32x64xf32> to vector<32x24xf32>
    %119 = vector.extract_strided_slice %117 {offsets = [0, 32], sizes = [32, 24], strides = [1, 1]} : vector<32x64xf32> to vector<32x24xf32>
    %120 = tpu.concatenate %118, %119 in 1 : vector<32x24xf32>, vector<32x24xf32> -> vector<32x48xf32>
    %121 = vector.extract_strided_slice %117 {offsets = [0, 1], sizes = [32, 24], strides = [1, 1]} : vector<32x64xf32> to vector<32x24xf32>
    %122 = vector.extract_strided_slice %117 {offsets = [0, 33], sizes = [32, 24], strides = [1, 1]} : vector<32x64xf32> to vector<32x24xf32>
    %123 = tpu.concatenate %121, %122 in 1 : vector<32x24xf32>, vector<32x24xf32> -> vector<32x48xf32>
    %124 = vector.extract_strided_slice %117 {offsets = [0, 2], sizes = [32, 24], strides = [1, 1]} : vector<32x64xf32> to vector<32x24xf32>
    %125 = vector.extract_strided_slice %117 {offsets = [0, 34], sizes = [32, 24], strides = [1, 1]} : vector<32x64xf32> to vector<32x24xf32>
    %126 = tpu.concatenate %124, %125 in 1 : vector<32x24xf32>, vector<32x24xf32> -> vector<32x48xf32>
    %127 = vector.extract_strided_slice %117 {offsets = [0, 3], sizes = [32, 24], strides = [1, 1]} : vector<32x64xf32> to vector<32x24xf32>
    %128 = vector.extract_strided_slice %117 {offsets = [0, 35], sizes = [32, 24], strides = [1, 1]} : vector<32x64xf32> to vector<32x24xf32>
    %129 = tpu.concatenate %127, %128 in 1 : vector<32x24xf32>, vector<32x24xf32> -> vector<32x48xf32>
    %130 = vector.extract_strided_slice %117 {offsets = [0, 4], sizes = [32, 24], strides = [1, 1]} : vector<32x64xf32> to vector<32x24xf32>
    %131 = vector.extract_strided_slice %117 {offsets = [0, 36], sizes = [32, 24], strides = [1, 1]} : vector<32x64xf32> to vector<32x24xf32>
    %132 = tpu.concatenate %130, %131 in 1 : vector<32x24xf32>, vector<32x24xf32> -> vector<32x48xf32>
    %133 = vector.extract_strided_slice %117 {offsets = [0, 5], sizes = [32, 24], strides = [1, 1]} : vector<32x64xf32> to vector<32x24xf32>
    %134 = vector.extract_strided_slice %117 {offsets = [0, 37], sizes = [32, 24], strides = [1, 1]} : vector<32x64xf32> to vector<32x24xf32>
    %135 = tpu.concatenate %133, %134 in 1 : vector<32x24xf32>, vector<32x24xf32> -> vector<32x48xf32>
    %136 = vector.extract_strided_slice %117 {offsets = [0, 6], sizes = [32, 24], strides = [1, 1]} : vector<32x64xf32> to vector<32x24xf32>
    %137 = vector.extract_strided_slice %117 {offsets = [0, 38], sizes = [32, 24], strides = [1, 1]} : vector<32x64xf32> to vector<32x24xf32>
    %138 = tpu.concatenate %136, %137 in 1 : vector<32x24xf32>, vector<32x24xf32> -> vector<32x48xf32>
    %139 = vector.extract_strided_slice %117 {offsets = [0, 7], sizes = [32, 24], strides = [1, 1]} : vector<32x64xf32> to vector<32x24xf32>
    %140 = vector.extract_strided_slice %117 {offsets = [0, 39], sizes = [32, 24], strides = [1, 1]} : vector<32x64xf32> to vector<32x24xf32>
    %141 = tpu.concatenate %139, %140 in 1 : vector<32x24xf32>, vector<32x24xf32> -> vector<32x48xf32>
    %142 = vector.extract_strided_slice %117 {offsets = [0, 8], sizes = [32, 24], strides = [1, 1]} : vector<32x64xf32> to vector<32x24xf32>
    %143 = vector.extract_strided_slice %117 {offsets = [0, 40], sizes = [32, 24], strides = [1, 1]} : vector<32x64xf32> to vector<32x24xf32>
    %144 = tpu.concatenate %142, %143 in 1 : vector<32x24xf32>, vector<32x24xf32> -> vector<32x48xf32>
    %145 = tpu.concatenate %120, %123, %126, %129, %132, %135, %138, %141, %144 in 0 : vector<32x48xf32>, vector<32x48xf32>, vector<32x48xf32>, vector<32x48xf32>, vector<32x48xf32>, vector<32x48xf32>, vector<32x48xf32>, vector<32x48xf32>, vector<32x48xf32> -> vector<288x48xf32>
    %c0_52 = arith.constant 0 : index
    %c0_53 = arith.constant 0 : index
    %c0_54 = arith.constant 0 : index
    %146 = vector.load %arg13[%c0_52, %c0_53, %c0_54] : memref<2x1x288xf32, #tpu.memory_space<vmem>>, vector<1x1x288xf32>
    %147 = vector.shape_cast %146 : vector<1x1x288xf32> to vector<1x288xf32>
    %cst_55 = arith.constant dense<0.000000e+00> : vector<1x48xf32>
    %148 = tpu.matmul %147, %145, %cst_55 {dimension_numbers = #tpu.dot_dimension_numbers<[1], [0], [0], [1], [0, 0, 1, 1], [], []>} : vector<1x288xf32>, vector<288x48xf32>, vector<1x48xf32> -> vector<1x48xf32>
    %c0_56 = arith.constant 0 : index
    %c0_57 = arith.constant 0 : index
    %c0_58 = arith.constant 0 : index
    %149 = vector.load %arg14[%c0_56, %c0_57, %c0_58] : memref<2x1x1xf32, #tpu.memory_space<vmem>>, vector<1x1x1xf32>
    %150 = vector.shape_cast %149 : vector<1x1x1xf32> to vector<1x1xf32>
    %151 = vector.broadcast %150 : vector<1x1xf32> to vector<1x48xf32>
    %152 = arith.addf %148, %151 : vector<1x48xf32>
    %153 = vector.extract_strided_slice %152 {offsets = [0, 0], sizes = [1, 24], strides = [1, 1]} : vector<1x48xf32> to vector<1x24xf32>
    %cst_59 = arith.constant dense<0xFF800000> : vector<1xf32>
    %154 = vector.multi_reduction <maximumf>, %153, %cst_59 [1] : vector<1x24xf32> to vector<1xf32>
    %155 = vector.shape_cast %154 : vector<1xf32> to vector<1x1xf32>
    %156 = vector.broadcast %155 : vector<1x1xf32> to vector<1x24xf32>
    %157 = arith.subf %153, %156 : vector<1x24xf32>
    %158 = math.exp %157 : vector<1x24xf32>
    %cst_60 = arith.constant dense<0.000000e+00> : vector<1xf32>
    %159 = vector.multi_reduction <add>, %158, %cst_60 [1] : vector<1x24xf32> to vector<1xf32>
    %160 = vector.shape_cast %159 : vector<1xf32> to vector<1x1xf32>
    %161 = vector.broadcast %160 : vector<1x1xf32> to vector<1x24xf32>
    %162 = arith.divf %158, %161 : vector<1x24xf32>
    %163 = vector.extract_strided_slice %152 {offsets = [0, 24], sizes = [1, 24], strides = [1, 1]} : vector<1x48xf32> to vector<1x24xf32>
    %cst_61 = arith.constant dense<0xFF800000> : vector<1xf32>
    %164 = vector.multi_reduction <maximumf>, %163, %cst_61 [1] : vector<1x24xf32> to vector<1xf32>
    %165 = vector.shape_cast %164 : vector<1xf32> to vector<1x1xf32>
    %166 = vector.broadcast %165 : vector<1x1xf32> to vector<1x24xf32>
    %167 = arith.subf %163, %166 : vector<1x24xf32>
    %168 = math.exp %167 : vector<1x24xf32>
    %cst_62 = arith.constant dense<0.000000e+00> : vector<1xf32>
    %169 = vector.multi_reduction <add>, %168, %cst_62 [1] : vector<1x24xf32> to vector<1xf32>
    %170 = vector.shape_cast %169 : vector<1xf32> to vector<1x1xf32>
    %171 = vector.broadcast %170 : vector<1x1xf32> to vector<1x24xf32>
    %172 = arith.divf %168, %171 : vector<1x24xf32>
    %173 = tpu.concatenate %162, %172 in 1 : vector<1x24xf32>, vector<1x24xf32> -> vector<1x48xf32>
    %c0_63 = arith.constant 0 : index
    %c0_64 = arith.constant 0 : index
    %c0_65 = arith.constant 0 : index
    %174 = vector.load %arg20[%c0_63, %c0_64, %c0_65] : memref<2x1x48xf32, #tpu.memory_space<vmem>>, vector<1x1x48xf32>
    %175 = vector.shape_cast %174 : vector<1x1x48xf32> to vector<1x48xf32>
    %176 = vector.shape_cast %173 : vector<1x48xf32> to vector<1x1x48xf32>
    tpu.vector_store %arg20[%c0_63, %c0_64, %c0_65], %176 {strides = array<i32>} : memref<2x1x48xf32, #tpu.memory_space<vmem>>, vector<1x1x48xf32>,
    %177 = vector.extract_strided_slice %71 {offsets = [0, 0], sizes = [32, 32], strides = [1, 1]} : vector<32x64xf32> to vector<32x32xf32>
    %cst_66 = arith.constant dense<0.000000e+00> : vector<32xf32>
    %178 = vector.multi_reduction <add>, %177, %cst_66 [1] : vector<32x32xf32> to vector<32xf32>
    %179 = vector.shape_cast %178 : vector<32xf32> to vector<32x1xf32>
    %cst_67 = arith.constant 3.200000e+01 : f32
    %180 = vector.broadcast %cst_67 : f32 to vector<32x1xf32>
    %181 = arith.divf %179, %180 : vector<32x1xf32>
    %182 = vector.extract_strided_slice %71 {offsets = [0, 32], sizes = [32, 32], strides = [1, 1]} : vector<32x64xf32> to vector<32x32xf32>
    %cst_68 = arith.constant dense<0.000000e+00> : vector<32xf32>
    %183 = vector.multi_reduction <add>, %182, %cst_68 [1] : vector<32x32xf32> to vector<32xf32>
    %184 = vector.shape_cast %183 : vector<32xf32> to vector<32x1xf32>
    %cst_69 = arith.constant 3.200000e+01 : f32
    %185 = vector.broadcast %cst_69 : f32 to vector<32x1xf32>
    %186 = arith.divf %184, %185 : vector<32x1xf32>
    %187 = tpu.concatenate %181, %186 in 1 : vector<32x1xf32>, vector<32x1xf32> -> vector<32x2xf32>
    %188 = vector.extract_strided_slice %62 {offsets = [0, 0], sizes = [32, 32], strides = [1, 1]} : vector<32x64xf32> to vector<32x32xf32>
    %cst_70 = arith.constant dense<0.000000e+00> : vector<32xf32>
    %189 = vector.multi_reduction <add>, %188, %cst_70 [1] : vector<32x32xf32> to vector<32xf32>
    %190 = vector.shape_cast %189 : vector<32xf32> to vector<32x1xf32>
    %cst_71 = arith.constant 3.200000e+01 : f32
    %191 = vector.broadcast %cst_71 : f32 to vector<32x1xf32>
    %192 = arith.divf %190, %191 : vector<32x1xf32>
    %193 = vector.extract_strided_slice %62 {offsets = [0, 32], sizes = [32, 32], strides = [1, 1]} : vector<32x64xf32> to vector<32x32xf32>
    %cst_72 = arith.constant dense<0.000000e+00> : vector<32xf32>
    %194 = vector.multi_reduction <add>, %193, %cst_72 [1] : vector<32x32xf32> to vector<32xf32>
    %195 = vector.shape_cast %194 : vector<32xf32> to vector<32x1xf32>
    %cst_73 = arith.constant 3.200000e+01 : f32
    %196 = vector.broadcast %cst_73 : f32 to vector<32x1xf32>
    %197 = arith.divf %195, %196 : vector<32x1xf32>
    %198 = tpu.concatenate %192, %197 in 1 : vector<32x1xf32>, vector<32x1xf32> -> vector<32x2xf32>
    %199 = tpu.concatenate %187, %198 in 0 : vector<32x2xf32>, vector<32x2xf32> -> vector<64x2xf32>
    %c0_74 = arith.constant 0 : index
    %c0_75 = arith.constant 0 : index
    %c0_76 = arith.constant 0 : index
    %200 = vector.load %arg15[%c0_74, %c0_75, %c0_76] : memref<2x32x64xf32, #tpu.memory_space<vmem>>, vector<1x32x64xf32>
    %201 = vector.shape_cast %200 : vector<1x32x64xf32> to vector<32x64xf32>
    %cst_77 = arith.constant dense<0.000000e+00> : vector<32x2xf32>
    %202 = tpu.matmul %201, %199, %cst_77 {dimension_numbers = #tpu.dot_dimension_numbers<[1], [0], [0], [1], [0, 0, 1, 1], [], []>} : vector<32x64xf32>, vector<64x2xf32>, vector<32x2xf32> -> vector<32x2xf32>
    %cst_78 = arith.constant 0.000000e+00 : f32
    %203 = vector.broadcast %cst_78 : f32 to vector<32x2xf32>
    %204 = arith.cmpf ogt, %202, %203 : vector<32x2xf32>
    %cst_79 = arith.constant 0.000000e+00 : f32
    %205 = vector.broadcast %cst_79 : f32 to vector<32x2xf32>
    %206 = arith.minimumf %202, %205 : vector<32x2xf32>
    %207 = math.exp %206 : vector<32x2xf32>
    %cst_80 = arith.constant 1.000000e+00 : f32
    %208 = vector.broadcast %cst_80 : f32 to vector<32x2xf32>
    %209 = arith.subf %207, %208 : vector<32x2xf32>
    %210 = arith.select %204, %202, %209 : vector<32x2xi1>, vector<32x2xf32>
    %c0_81 = arith.constant 0 : index
    %c0_82 = arith.constant 0 : index
    %c0_83 = arith.constant 0 : index
    %211 = vector.load %arg16[%c0_81, %c0_82, %c0_83] : memref<2x32x32xf32, #tpu.memory_space<vmem>>, vector<1x32x32xf32>
    %212 = vector.shape_cast %211 : vector<1x32x32xf32> to vector<32x32xf32>
    %cst_84 = arith.constant dense<0.000000e+00> : vector<32x2xf32>
    %213 = tpu.matmul %212, %210, %cst_84 {dimension_numbers = #tpu.dot_dimension_numbers<[1], [0], [0], [1], [0, 0, 1, 1], [], []>} : vector<32x32xf32>, vector<32x2xf32>, vector<32x2xf32> -> vector<32x2xf32>
    %cst_85 = arith.constant 0.000000e+00 : f32
    %214 = vector.broadcast %cst_85 : f32 to vector<32x2xf32>
    %215 = arith.cmpf ogt, %213, %214 : vector<32x2xf32>
    %cst_86 = arith.constant 0.000000e+00 : f32
    %216 = vector.broadcast %cst_86 : f32 to vector<32x2xf32>
    %217 = arith.minimumf %213, %216 : vector<32x2xf32>
    %218 = math.exp %217 : vector<32x2xf32>
    %cst_87 = arith.constant 1.000000e+00 : f32
    %219 = vector.broadcast %cst_87 : f32 to vector<32x2xf32>
    %220 = arith.subf %218, %219 : vector<32x2xf32>
    %221 = arith.select %215, %213, %220 : vector<32x2xi1>, vector<32x2xf32>
    %c0_88 = arith.constant 0 : index
    %c0_89 = arith.constant 0 : index
    %c0_90 = arith.constant 0 : index
    %222 = vector.load %arg17[%c0_88, %c0_89, %c0_90] : memref<2x32x32xf32, #tpu.memory_space<vmem>>, vector<1x32x32xf32>
    %223 = vector.shape_cast %222 : vector<1x32x32xf32> to vector<32x32xf32>
    %cst_91 = arith.constant dense<0.000000e+00> : vector<32x2xf32>
    %224 = tpu.matmul %223, %221, %cst_91 {dimension_numbers = #tpu.dot_dimension_numbers<[1], [0], [0], [1], [0, 0, 1, 1], [], []>} : vector<32x32xf32>, vector<32x2xf32>, vector<32x2xf32> -> vector<32x2xf32>
    %cst_92 = arith.constant 0.000000e+00 : f32
    %225 = vector.broadcast %cst_92 : f32 to vector<32x2xf32>
    %226 = arith.cmpf ogt, %224, %225 : vector<32x2xf32>
    %cst_93 = arith.constant 0.000000e+00 : f32
    %227 = vector.broadcast %cst_93 : f32 to vector<32x2xf32>
    %228 = arith.minimumf %224, %227 : vector<32x2xf32>
    %229 = math.exp %228 : vector<32x2xf32>
    %cst_94 = arith.constant 1.000000e+00 : f32
    %230 = vector.broadcast %cst_94 : f32 to vector<32x2xf32>
    %231 = arith.subf %229, %230 : vector<32x2xf32>
    %232 = arith.select %226, %224, %231 : vector<32x2xi1>, vector<32x2xf32>
    %c0_95 = arith.constant 0 : index
    %c0_96 = arith.constant 0 : index
    %c0_97 = arith.constant 0 : index
    %233 = vector.load %arg18[%c0_95, %c0_96, %c0_97] : memref<2x1x32xf32, #tpu.memory_space<vmem>>, vector<1x1x32xf32>
    %234 = vector.shape_cast %233 : vector<1x1x32xf32> to vector<1x32xf32>
    %cst_98 = arith.constant dense<0.000000e+00> : vector<1x2xf32>
    %235 = tpu.matmul %234, %232, %cst_98 {dimension_numbers = #tpu.dot_dimension_numbers<[1], [0], [0], [1], [0, 0, 1, 1], [], []>} : vector<1x32xf32>, vector<32x2xf32>, vector<1x2xf32> -> vector<1x2xf32>
    %c0_99 = arith.constant 0 : index
    %c0_100 = arith.constant 0 : index
    %c0_101 = arith.constant 0 : index
    %236 = vector.load %arg19[%c0_99, %c0_100, %c0_101] : memref<2x1x1xf32, #tpu.memory_space<vmem>>, vector<1x1x1xf32>
    %237 = vector.shape_cast %236 : vector<1x1x1xf32> to vector<1x1xf32>
    %238 = vector.broadcast %237 : vector<1x1xf32> to vector<1x2xf32>
    %239 = arith.addf %235, %238 : vector<1x2xf32>
    %cst_102 = arith.constant 2.000000e+01 : f32
    %240 = vector.broadcast %cst_102 : f32 to vector<1x2xf32>
    %241 = arith.cmpf ogt, %239, %240 : vector<1x2xf32>
    %cst_103 = arith.constant 2.000000e+01 : f32
    %242 = vector.broadcast %cst_103 : f32 to vector<1x2xf32>
    %243 = arith.minimumf %239, %242 : vector<1x2xf32>
    %244 = math.exp %243 : vector<1x2xf32>
    %cst_104 = arith.constant 1.000000e+00 : f32
    %245 = vector.broadcast %cst_104 : f32 to vector<1x2xf32>
    %246 = arith.addf %245, %244 : vector<1x2xf32>
    %247 = math.log %246 : vector<1x2xf32>
    %248 = arith.select %241, %239, %247 : vector<1x2xi1>, vector<1x2xf32>
    %c0_105 = arith.constant 0 : index
    %c0_106 = arith.constant 0 : index
    %c0_107 = arith.constant 0 : index
    %249 = vector.load %arg3[%c0_105, %c0_106, %c0_107] : memref<2x1x2xf32, #tpu.memory_space<vmem>>, vector<1x1x2xf32>
    %250 = vector.shape_cast %249 : vector<1x1x2xf32> to vector<1x2xf32>
    %251 = arith.mulf %248, %250 : vector<1x2xf32>
    %c0_108 = arith.constant 0 : index
    %c0_109 = arith.constant 0 : index
    %c0_110 = arith.constant 0 : index
    %252 = vector.load %arg21[%c0_108, %c0_109, %c0_110] : memref<2x1x2xf32, #tpu.memory_space<vmem>>, vector<1x1x2xf32>
    %253 = vector.shape_cast %252 : vector<1x1x2xf32> to vector<1x2xf32>
    %254 = vector.shape_cast %251 : vector<1x2xf32> to vector<1x1x2xf32>
    tpu.vector_store %arg21[%c0_108, %c0_109, %c0_110], %254 {strides = array<i32>} : memref<2x1x2xf32, #tpu.memory_space<vmem>>, vector<1x1x2xf32>,
    %255 = vector.extract_strided_slice %59 {offsets = [32, 0], sizes = [32, 32], strides = [1, 1]} : vector<128x32xf32> to vector<32x32xf32>
    %256 = vector.extract_strided_slice %59 {offsets = [96, 0], sizes = [32, 32], strides = [1, 1]} : vector<128x32xf32> to vector<32x32xf32>
    %257 = tpu.concatenate %255, %256 in 1 : vector<32x32xf32>, vector<32x32xf32> -> vector<32x64xf32>
    %258 = vector.extract_strided_slice %56 {offsets = [32, 0], sizes = [32, 2], strides = [1, 1]} : vector<64x2xf32> to vector<32x2xf32>
    %259 = vector.extract_strided_slice %258 {offsets = [0, 0], sizes = [32, 1], strides = [1, 1]} : vector<32x2xf32> to vector<32x1xf32>
    %260 = vector.shape_cast %259 : vector<32x1xf32> to vector<32x1xf32>
    %261 = vector.broadcast %260 : vector<32x1xf32> to vector<32x32xf32>
    %262 = vector.extract_strided_slice %258 {offsets = [0, 1], sizes = [32, 1], strides = [1, 1]} : vector<32x2xf32> to vector<32x1xf32>
    %263 = vector.shape_cast %262 : vector<32x1xf32> to vector<32x1xf32>
    %264 = vector.broadcast %263 : vector<32x1xf32> to vector<32x32xf32>
    %265 = tpu.concatenate %261, %264 in 1 : vector<32x32xf32>, vector<32x32xf32> -> vector<32x64xf32>
    %266 = arith.mulf %36, %265 : vector<32x64xf32>
    %267 = tpu.concatenate %266, %257 in 0 : vector<32x64xf32>, vector<32x64xf32> -> vector<64x64xf32>
    %c1_111 = arith.constant 1 : index
    %c0_112 = arith.constant 0 : index
    %c0_113 = arith.constant 0 : index
    %268 = vector.load %arg7[%c1_111, %c0_112, %c0_113] : memref<2x32x64xf32, #tpu.memory_space<vmem>>, vector<1x32x64xf32>
    %269 = vector.shape_cast %268 : vector<1x32x64xf32> to vector<32x64xf32>
    %cst_114 = arith.constant dense<0.000000e+00> : vector<32x64xf32>
    %270 = tpu.matmul %269, %267, %cst_114 {dimension_numbers = #tpu.dot_dimension_numbers<[1], [0], [0], [1], [0, 0, 1, 1], [], []>} : vector<32x64xf32>, vector<64x64xf32>, vector<32x64xf32> -> vector<32x64xf32>
    %c1_115 = arith.constant 1 : index
    %c0_116 = arith.constant 0 : index
    %c0_117 = arith.constant 0 : index
    %271 = vector.load %arg8[%c1_115, %c0_116, %c0_117] : memref<2x32x1xf32, #tpu.memory_space<vmem>>, vector<1x32x1xf32>
    %272 = vector.shape_cast %271 : vector<1x32x1xf32> to vector<32x1xf32>
    %273 = vector.broadcast %272 : vector<32x1xf32> to vector<32x64xf32>
    %274 = arith.addf %270, %273 : vector<32x64xf32>
    %cst_118 = arith.constant 0.000000e+00 : f32
    %275 = vector.broadcast %cst_118 : f32 to vector<32x64xf32>
    %276 = arith.cmpf ogt, %274, %275 : vector<32x64xf32>
    %cst_119 = arith.constant 0.000000e+00 : f32
    %277 = vector.broadcast %cst_119 : f32 to vector<32x64xf32>
    %278 = arith.minimumf %274, %277 : vector<32x64xf32>
    %279 = math.exp %278 : vector<32x64xf32>
    %cst_120 = arith.constant 1.000000e+00 : f32
    %280 = vector.broadcast %cst_120 : f32 to vector<32x64xf32>
    %281 = arith.subf %279, %280 : vector<32x64xf32>
    %282 = arith.select %276, %274, %281 : vector<32x64xi1>, vector<32x64xf32>
    %c1_121 = arith.constant 1 : index
    %c0_122 = arith.constant 0 : index
    %c0_123 = arith.constant 0 : index
    %283 = vector.load %arg9[%c1_121, %c0_122, %c0_123] : memref<2x32x32xf32, #tpu.memory_space<vmem>>, vector<1x32x32xf32>
    %284 = vector.shape_cast %283 : vector<1x32x32xf32> to vector<32x32xf32>
    %cst_124 = arith.constant dense<0.000000e+00> : vector<32x64xf32>
    %285 = tpu.matmul %284, %282, %cst_124 {dimension_numbers = #tpu.dot_dimension_numbers<[1], [0], [0], [1], [0, 0, 1, 1], [], []>} : vector<32x32xf32>, vector<32x64xf32>, vector<32x64xf32> -> vector<32x64xf32>
    %c1_125 = arith.constant 1 : index
    %c0_126 = arith.constant 0 : index
    %c0_127 = arith.constant 0 : index
    %286 = vector.load %arg10[%c1_125, %c0_126, %c0_127] : memref<2x32x1xf32, #tpu.memory_space<vmem>>, vector<1x32x1xf32>
    %287 = vector.shape_cast %286 : vector<1x32x1xf32> to vector<32x1xf32>
    %288 = vector.broadcast %287 : vector<32x1xf32> to vector<32x64xf32>
    %289 = arith.addf %285, %288 : vector<32x64xf32>
    %cst_128 = arith.constant 0.000000e+00 : f32
    %290 = vector.broadcast %cst_128 : f32 to vector<32x64xf32>
    %291 = arith.cmpf ogt, %289, %290 : vector<32x64xf32>
    %cst_129 = arith.constant 0.000000e+00 : f32
    %292 = vector.broadcast %cst_129 : f32 to vector<32x64xf32>
    %293 = arith.minimumf %289, %292 : vector<32x64xf32>
    %294 = math.exp %293 : vector<32x64xf32>
    %cst_130 = arith.constant 1.000000e+00 : f32
    %295 = vector.broadcast %cst_130 : f32 to vector<32x64xf32>
    %296 = arith.subf %294, %295 : vector<32x64xf32>
    %297 = arith.select %291, %289, %296 : vector<32x64xi1>, vector<32x64xf32>
    %c1_131 = arith.constant 1 : index
    %c0_132 = arith.constant 0 : index
    %c0_133 = arith.constant 0 : index
    %298 = vector.load %arg11[%c1_131, %c0_132, %c0_133] : memref<2x32x32xf32, #tpu.memory_space<vmem>>, vector<1x32x32xf32>
    %299 = vector.shape_cast %298 : vector<1x32x32xf32> to vector<32x32xf32>
    %cst_134 = arith.constant dense<0.000000e+00> : vector<32x64xf32>
    %300 = tpu.matmul %299, %297, %cst_134 {dimension_numbers = #tpu.dot_dimension_numbers<[1], [0], [0], [1], [0, 0, 1, 1], [], []>} : vector<32x32xf32>, vector<32x64xf32>, vector<32x64xf32> -> vector<32x64xf32>
    %c1_135 = arith.constant 1 : index
    %c0_136 = arith.constant 0 : index
    %c0_137 = arith.constant 0 : index
    %301 = vector.load %arg12[%c1_135, %c0_136, %c0_137] : memref<2x32x1xf32, #tpu.memory_space<vmem>>, vector<1x32x1xf32>
    %302 = vector.shape_cast %301 : vector<1x32x1xf32> to vector<32x1xf32>
    %303 = vector.broadcast %302 : vector<32x1xf32> to vector<32x64xf32>
    %304 = arith.addf %300, %303 : vector<32x64xf32>
    %cst_138 = arith.constant 0.000000e+00 : f32
    %305 = vector.broadcast %cst_138 : f32 to vector<32x64xf32>
    %306 = arith.cmpf ogt, %304, %305 : vector<32x64xf32>
    %cst_139 = arith.constant 0.000000e+00 : f32
    %307 = vector.broadcast %cst_139 : f32 to vector<32x64xf32>
    %308 = arith.minimumf %304, %307 : vector<32x64xf32>
    %309 = math.exp %308 : vector<32x64xf32>
    %cst_140 = arith.constant 1.000000e+00 : f32
    %310 = vector.broadcast %cst_140 : f32 to vector<32x64xf32>
    %311 = arith.subf %309, %310 : vector<32x64xf32>
    %312 = arith.select %306, %304, %311 : vector<32x64xi1>, vector<32x64xf32>
    %313 = vector.extract_strided_slice %312 {offsets = [0, 0], sizes = [32, 24], strides = [1, 1]} : vector<32x64xf32> to vector<32x24xf32>
    %314 = vector.extract_strided_slice %312 {offsets = [0, 32], sizes = [32, 24], strides = [1, 1]} : vector<32x64xf32> to vector<32x24xf32>
    %315 = tpu.concatenate %313, %314 in 1 : vector<32x24xf32>, vector<32x24xf32> -> vector<32x48xf32>
    %316 = vector.extract_strided_slice %312 {offsets = [0, 1], sizes = [32, 24], strides = [1, 1]} : vector<32x64xf32> to vector<32x24xf32>
    %317 = vector.extract_strided_slice %312 {offsets = [0, 33], sizes = [32, 24], strides = [1, 1]} : vector<32x64xf32> to vector<32x24xf32>
    %318 = tpu.concatenate %316, %317 in 1 : vector<32x24xf32>, vector<32x24xf32> -> vector<32x48xf32>
    %319 = vector.extract_strided_slice %312 {offsets = [0, 2], sizes = [32, 24], strides = [1, 1]} : vector<32x64xf32> to vector<32x24xf32>
    %320 = vector.extract_strided_slice %312 {offsets = [0, 34], sizes = [32, 24], strides = [1, 1]} : vector<32x64xf32> to vector<32x24xf32>
    %321 = tpu.concatenate %319, %320 in 1 : vector<32x24xf32>, vector<32x24xf32> -> vector<32x48xf32>
    %322 = vector.extract_strided_slice %312 {offsets = [0, 3], sizes = [32, 24], strides = [1, 1]} : vector<32x64xf32> to vector<32x24xf32>
    %323 = vector.extract_strided_slice %312 {offsets = [0, 35], sizes = [32, 24], strides = [1, 1]} : vector<32x64xf32> to vector<32x24xf32>
    %324 = tpu.concatenate %322, %323 in 1 : vector<32x24xf32>, vector<32x24xf32> -> vector<32x48xf32>
    %325 = vector.extract_strided_slice %312 {offsets = [0, 4], sizes = [32, 24], strides = [1, 1]} : vector<32x64xf32> to vector<32x24xf32>
    %326 = vector.extract_strided_slice %312 {offsets = [0, 36], sizes = [32, 24], strides = [1, 1]} : vector<32x64xf32> to vector<32x24xf32>
    %327 = tpu.concatenate %325, %326 in 1 : vector<32x24xf32>, vector<32x24xf32> -> vector<32x48xf32>
    %328 = vector.extract_strided_slice %312 {offsets = [0, 5], sizes = [32, 24], strides = [1, 1]} : vector<32x64xf32> to vector<32x24xf32>
    %329 = vector.extract_strided_slice %312 {offsets = [0, 37], sizes = [32, 24], strides = [1, 1]} : vector<32x64xf32> to vector<32x24xf32>
    %330 = tpu.concatenate %328, %329 in 1 : vector<32x24xf32>, vector<32x24xf32> -> vector<32x48xf32>
    %331 = vector.extract_strided_slice %312 {offsets = [0, 6], sizes = [32, 24], strides = [1, 1]} : vector<32x64xf32> to vector<32x24xf32>
    %332 = vector.extract_strided_slice %312 {offsets = [0, 38], sizes = [32, 24], strides = [1, 1]} : vector<32x64xf32> to vector<32x24xf32>
    %333 = tpu.concatenate %331, %332 in 1 : vector<32x24xf32>, vector<32x24xf32> -> vector<32x48xf32>
    %334 = vector.extract_strided_slice %312 {offsets = [0, 7], sizes = [32, 24], strides = [1, 1]} : vector<32x64xf32> to vector<32x24xf32>
    %335 = vector.extract_strided_slice %312 {offsets = [0, 39], sizes = [32, 24], strides = [1, 1]} : vector<32x64xf32> to vector<32x24xf32>
    %336 = tpu.concatenate %334, %335 in 1 : vector<32x24xf32>, vector<32x24xf32> -> vector<32x48xf32>
    %337 = vector.extract_strided_slice %312 {offsets = [0, 8], sizes = [32, 24], strides = [1, 1]} : vector<32x64xf32> to vector<32x24xf32>
    %338 = vector.extract_strided_slice %312 {offsets = [0, 40], sizes = [32, 24], strides = [1, 1]} : vector<32x64xf32> to vector<32x24xf32>
    %339 = tpu.concatenate %337, %338 in 1 : vector<32x24xf32>, vector<32x24xf32> -> vector<32x48xf32>
    %340 = tpu.concatenate %315, %318, %321, %324, %327, %330, %333, %336, %339 in 0 : vector<32x48xf32>, vector<32x48xf32>, vector<32x48xf32>, vector<32x48xf32>, vector<32x48xf32>, vector<32x48xf32>, vector<32x48xf32>, vector<32x48xf32>, vector<32x48xf32> -> vector<288x48xf32>
    %c1_141 = arith.constant 1 : index
    %c0_142 = arith.constant 0 : index
    %c0_143 = arith.constant 0 : index
    %341 = vector.load %arg13[%c1_141, %c0_142, %c0_143] : memref<2x1x288xf32, #tpu.memory_space<vmem>>, vector<1x1x288xf32>
    %342 = vector.shape_cast %341 : vector<1x1x288xf32> to vector<1x288xf32>
    %cst_144 = arith.constant dense<0.000000e+00> : vector<1x48xf32>
    %343 = tpu.matmul %342, %340, %cst_144 {dimension_numbers = #tpu.dot_dimension_numbers<[1], [0], [0], [1], [0, 0, 1, 1], [], []>} : vector<1x288xf32>, vector<288x48xf32>, vector<1x48xf32> -> vector<1x48xf32>
    %c1_145 = arith.constant 1 : index
    %c0_146 = arith.constant 0 : index
    %c0_147 = arith.constant 0 : index
    %344 = vector.load %arg14[%c1_145, %c0_146, %c0_147] : memref<2x1x1xf32, #tpu.memory_space<vmem>>, vector<1x1x1xf32>
    %345 = vector.shape_cast %344 : vector<1x1x1xf32> to vector<1x1xf32>
    %346 = vector.broadcast %345 : vector<1x1xf32> to vector<1x48xf32>
    %347 = arith.addf %343, %346 : vector<1x48xf32>
    %348 = vector.extract_strided_slice %347 {offsets = [0, 0], sizes = [1, 24], strides = [1, 1]} : vector<1x48xf32> to vector<1x24xf32>
    %cst_148 = arith.constant dense<0xFF800000> : vector<1xf32>
    %349 = vector.multi_reduction <maximumf>, %348, %cst_148 [1] : vector<1x24xf32> to vector<1xf32>
    %350 = vector.shape_cast %349 : vector<1xf32> to vector<1x1xf32>
    %351 = vector.broadcast %350 : vector<1x1xf32> to vector<1x24xf32>
    %352 = arith.subf %348, %351 : vector<1x24xf32>
    %353 = math.exp %352 : vector<1x24xf32>
    %cst_149 = arith.constant dense<0.000000e+00> : vector<1xf32>
    %354 = vector.multi_reduction <add>, %353, %cst_149 [1] : vector<1x24xf32> to vector<1xf32>
    %355 = vector.shape_cast %354 : vector<1xf32> to vector<1x1xf32>
    %356 = vector.broadcast %355 : vector<1x1xf32> to vector<1x24xf32>
    %357 = arith.divf %353, %356 : vector<1x24xf32>
    %358 = vector.extract_strided_slice %347 {offsets = [0, 24], sizes = [1, 24], strides = [1, 1]} : vector<1x48xf32> to vector<1x24xf32>
    %cst_150 = arith.constant dense<0xFF800000> : vector<1xf32>
    %359 = vector.multi_reduction <maximumf>, %358, %cst_150 [1] : vector<1x24xf32> to vector<1xf32>
    %360 = vector.shape_cast %359 : vector<1xf32> to vector<1x1xf32>
    %361 = vector.broadcast %360 : vector<1x1xf32> to vector<1x24xf32>
    %362 = arith.subf %358, %361 : vector<1x24xf32>
    %363 = math.exp %362 : vector<1x24xf32>
    %cst_151 = arith.constant dense<0.000000e+00> : vector<1xf32>
    %364 = vector.multi_reduction <add>, %363, %cst_151 [1] : vector<1x24xf32> to vector<1xf32>
    %365 = vector.shape_cast %364 : vector<1xf32> to vector<1x1xf32>
    %366 = vector.broadcast %365 : vector<1x1xf32> to vector<1x24xf32>
    %367 = arith.divf %363, %366 : vector<1x24xf32>
    %368 = tpu.concatenate %357, %367 in 1 : vector<1x24xf32>, vector<1x24xf32> -> vector<1x48xf32>
    %c1_152 = arith.constant 1 : index
    %c0_153 = arith.constant 0 : index
    %c0_154 = arith.constant 0 : index
    %369 = vector.load %arg20[%c1_152, %c0_153, %c0_154] : memref<2x1x48xf32, #tpu.memory_space<vmem>>, vector<1x1x48xf32>
    %370 = vector.shape_cast %369 : vector<1x1x48xf32> to vector<1x48xf32>
    %371 = vector.shape_cast %368 : vector<1x48xf32> to vector<1x1x48xf32>
    tpu.vector_store %arg20[%c1_152, %c0_153, %c0_154], %371 {strides = array<i32>} : memref<2x1x48xf32, #tpu.memory_space<vmem>>, vector<1x1x48xf32>,
    %372 = vector.extract_strided_slice %266 {offsets = [0, 0], sizes = [32, 32], strides = [1, 1]} : vector<32x64xf32> to vector<32x32xf32>
    %cst_155 = arith.constant dense<0.000000e+00> : vector<32xf32>
    %373 = vector.multi_reduction <add>, %372, %cst_155 [1] : vector<32x32xf32> to vector<32xf32>
    %374 = vector.shape_cast %373 : vector<32xf32> to vector<32x1xf32>
    %cst_156 = arith.constant 3.200000e+01 : f32
    %375 = vector.broadcast %cst_156 : f32 to vector<32x1xf32>
    %376 = arith.divf %374, %375 : vector<32x1xf32>
    %377 = vector.extract_strided_slice %266 {offsets = [0, 32], sizes = [32, 32], strides = [1, 1]} : vector<32x64xf32> to vector<32x32xf32>
    %cst_157 = arith.constant dense<0.000000e+00> : vector<32xf32>
    %378 = vector.multi_reduction <add>, %377, %cst_157 [1] : vector<32x32xf32> to vector<32xf32>
    %379 = vector.shape_cast %378 : vector<32xf32> to vector<32x1xf32>
    %cst_158 = arith.constant 3.200000e+01 : f32
    %380 = vector.broadcast %cst_158 : f32 to vector<32x1xf32>
    %381 = arith.divf %379, %380 : vector<32x1xf32>
    %382 = tpu.concatenate %376, %381 in 1 : vector<32x1xf32>, vector<32x1xf32> -> vector<32x2xf32>
    %383 = vector.extract_strided_slice %257 {offsets = [0, 0], sizes = [32, 32], strides = [1, 1]} : vector<32x64xf32> to vector<32x32xf32>
    %cst_159 = arith.constant dense<0.000000e+00> : vector<32xf32>
    %384 = vector.multi_reduction <add>, %383, %cst_159 [1] : vector<32x32xf32> to vector<32xf32>
    %385 = vector.shape_cast %384 : vector<32xf32> to vector<32x1xf32>
    %cst_160 = arith.constant 3.200000e+01 : f32
    %386 = vector.broadcast %cst_160 : f32 to vector<32x1xf32>
    %387 = arith.divf %385, %386 : vector<32x1xf32>
    %388 = vector.extract_strided_slice %257 {offsets = [0, 32], sizes = [32, 32], strides = [1, 1]} : vector<32x64xf32> to vector<32x32xf32>
    %cst_161 = arith.constant dense<0.000000e+00> : vector<32xf32>
    %389 = vector.multi_reduction <add>, %388, %cst_161 [1] : vector<32x32xf32> to vector<32xf32>
    %390 = vector.shape_cast %389 : vector<32xf32> to vector<32x1xf32>
    %cst_162 = arith.constant 3.200000e+01 : f32
    %391 = vector.broadcast %cst_162 : f32 to vector<32x1xf32>
    %392 = arith.divf %390, %391 : vector<32x1xf32>
    %393 = tpu.concatenate %387, %392 in 1 : vector<32x1xf32>, vector<32x1xf32> -> vector<32x2xf32>
    %394 = tpu.concatenate %382, %393 in 0 : vector<32x2xf32>, vector<32x2xf32> -> vector<64x2xf32>
    %c1_163 = arith.constant 1 : index
    %c0_164 = arith.constant 0 : index
    %c0_165 = arith.constant 0 : index
    %395 = vector.load %arg15[%c1_163, %c0_164, %c0_165] : memref<2x32x64xf32, #tpu.memory_space<vmem>>, vector<1x32x64xf32>
    %396 = vector.shape_cast %395 : vector<1x32x64xf32> to vector<32x64xf32>
    %cst_166 = arith.constant dense<0.000000e+00> : vector<32x2xf32>
    %397 = tpu.matmul %396, %394, %cst_166 {dimension_numbers = #tpu.dot_dimension_numbers<[1], [0], [0], [1], [0, 0, 1, 1], [], []>} : vector<32x64xf32>, vector<64x2xf32>, vector<32x2xf32> -> vector<32x2xf32>
    %cst_167 = arith.constant 0.000000e+00 : f32
    %398 = vector.broadcast %cst_167 : f32 to vector<32x2xf32>
    %399 = arith.cmpf ogt, %397, %398 : vector<32x2xf32>
    %cst_168 = arith.constant 0.000000e+00 : f32
    %400 = vector.broadcast %cst_168 : f32 to vector<32x2xf32>
    %401 = arith.minimumf %397, %400 : vector<32x2xf32>
    %402 = math.exp %401 : vector<32x2xf32>
    %cst_169 = arith.constant 1.000000e+00 : f32
    %403 = vector.broadcast %cst_169 : f32 to vector<32x2xf32>
    %404 = arith.subf %402, %403 : vector<32x2xf32>
    %405 = arith.select %399, %397, %404 : vector<32x2xi1>, vector<32x2xf32>
    %c1_170 = arith.constant 1 : index
    %c0_171 = arith.constant 0 : index
    %c0_172 = arith.constant 0 : index
    %406 = vector.load %arg16[%c1_170, %c0_171, %c0_172] : memref<2x32x32xf32, #tpu.memory_space<vmem>>, vector<1x32x32xf32>
    %407 = vector.shape_cast %406 : vector<1x32x32xf32> to vector<32x32xf32>
    %cst_173 = arith.constant dense<0.000000e+00> : vector<32x2xf32>
    %408 = tpu.matmul %407, %405, %cst_173 {dimension_numbers = #tpu.dot_dimension_numbers<[1], [0], [0], [1], [0, 0, 1, 1], [], []>} : vector<32x32xf32>, vector<32x2xf32>, vector<32x2xf32> -> vector<32x2xf32>
    %cst_174 = arith.constant 0.000000e+00 : f32
    %409 = vector.broadcast %cst_174 : f32 to vector<32x2xf32>
    %410 = arith.cmpf ogt, %408, %409 : vector<32x2xf32>
    %cst_175 = arith.constant 0.000000e+00 : f32
    %411 = vector.broadcast %cst_175 : f32 to vector<32x2xf32>
    %412 = arith.minimumf %408, %411 : vector<32x2xf32>
    %413 = math.exp %412 : vector<32x2xf32>
    %cst_176 = arith.constant 1.000000e+00 : f32
    %414 = vector.broadcast %cst_176 : f32 to vector<32x2xf32>
    %415 = arith.subf %413, %414 : vector<32x2xf32>
    %416 = arith.select %410, %408, %415 : vector<32x2xi1>, vector<32x2xf32>
    %c1_177 = arith.constant 1 : index
    %c0_178 = arith.constant 0 : index
    %c0_179 = arith.constant 0 : index
    %417 = vector.load %arg17[%c1_177, %c0_178, %c0_179] : memref<2x32x32xf32, #tpu.memory_space<vmem>>, vector<1x32x32xf32>
    %418 = vector.shape_cast %417 : vector<1x32x32xf32> to vector<32x32xf32>
    %cst_180 = arith.constant dense<0.000000e+00> : vector<32x2xf32>
    %419 = tpu.matmul %418, %416, %cst_180 {dimension_numbers = #tpu.dot_dimension_numbers<[1], [0], [0], [1], [0, 0, 1, 1], [], []>} : vector<32x32xf32>, vector<32x2xf32>, vector<32x2xf32> -> vector<32x2xf32>
    %cst_181 = arith.constant 0.000000e+00 : f32
    %420 = vector.broadcast %cst_181 : f32 to vector<32x2xf32>
    %421 = arith.cmpf ogt, %419, %420 : vector<32x2xf32>
    %cst_182 = arith.constant 0.000000e+00 : f32
    %422 = vector.broadcast %cst_182 : f32 to vector<32x2xf32>
    %423 = arith.minimumf %419, %422 : vector<32x2xf32>
    %424 = math.exp %423 : vector<32x2xf32>
    %cst_183 = arith.constant 1.000000e+00 : f32
    %425 = vector.broadcast %cst_183 : f32 to vector<32x2xf32>
    %426 = arith.subf %424, %425 : vector<32x2xf32>
    %427 = arith.select %421, %419, %426 : vector<32x2xi1>, vector<32x2xf32>
    %c1_184 = arith.constant 1 : index
    %c0_185 = arith.constant 0 : index
    %c0_186 = arith.constant 0 : index
    %428 = vector.load %arg18[%c1_184, %c0_185, %c0_186] : memref<2x1x32xf32, #tpu.memory_space<vmem>>, vector<1x1x32xf32>
    %429 = vector.shape_cast %428 : vector<1x1x32xf32> to vector<1x32xf32>
    %cst_187 = arith.constant dense<0.000000e+00> : vector<1x2xf32>
    %430 = tpu.matmul %429, %427, %cst_187 {dimension_numbers = #tpu.dot_dimension_numbers<[1], [0], [0], [1], [0, 0, 1, 1], [], []>} : vector<1x32xf32>, vector<32x2xf32>, vector<1x2xf32> -> vector<1x2xf32>
    %c1_188 = arith.constant 1 : index
    %c0_189 = arith.constant 0 : index
    %c0_190 = arith.constant 0 : index
    %431 = vector.load %arg19[%c1_188, %c0_189, %c0_190] : memref<2x1x1xf32, #tpu.memory_space<vmem>>, vector<1x1x1xf32>
    %432 = vector.shape_cast %431 : vector<1x1x1xf32> to vector<1x1xf32>
    %433 = vector.broadcast %432 : vector<1x1xf32> to vector<1x2xf32>
    %434 = arith.addf %430, %433 : vector<1x2xf32>
    %cst_191 = arith.constant 2.000000e+01 : f32
    %435 = vector.broadcast %cst_191 : f32 to vector<1x2xf32>
    %436 = arith.cmpf ogt, %434, %435 : vector<1x2xf32>
    %cst_192 = arith.constant 2.000000e+01 : f32
    %437 = vector.broadcast %cst_192 : f32 to vector<1x2xf32>
    %438 = arith.minimumf %434, %437 : vector<1x2xf32>
    %439 = math.exp %438 : vector<1x2xf32>
    %cst_193 = arith.constant 1.000000e+00 : f32
    %440 = vector.broadcast %cst_193 : f32 to vector<1x2xf32>
    %441 = arith.addf %440, %439 : vector<1x2xf32>
    %442 = math.log %441 : vector<1x2xf32>
    %443 = arith.select %436, %434, %442 : vector<1x2xi1>, vector<1x2xf32>
    %c1_194 = arith.constant 1 : index
    %c0_195 = arith.constant 0 : index
    %c0_196 = arith.constant 0 : index
    %444 = vector.load %arg3[%c1_194, %c0_195, %c0_196] : memref<2x1x2xf32, #tpu.memory_space<vmem>>, vector<1x1x2xf32>
    %445 = vector.shape_cast %444 : vector<1x1x2xf32> to vector<1x2xf32>
    %446 = arith.mulf %443, %445 : vector<1x2xf32>
    %c1_197 = arith.constant 1 : index
    %c0_198 = arith.constant 0 : index
    %c0_199 = arith.constant 0 : index
    %447 = vector.load %arg21[%c1_197, %c0_198, %c0_199] : memref<2x1x2xf32, #tpu.memory_space<vmem>>, vector<1x1x2xf32>
    %448 = vector.shape_cast %447 : vector<1x1x2xf32> to vector<1x2xf32>
    %449 = vector.shape_cast %446 : vector<1x2xf32> to vector<1x1x2xf32>
    tpu.vector_store %arg21[%c1_197, %c0_198, %c0_199], %449 {strides = array<i32>} : memref<2x1x2xf32, #tpu.memory_space<vmem>>, vector<1x1x2xf32>,
    return
  }
  func.func @transform_0(%arg0: i32) -> (i32, i32, i32) {
    %c0_i32 = arith.constant 0 : i32
    %c0_i32_0 = arith.constant 0 : i32
    %c0_i32_1 = arith.constant 0 : i32
    %c0_i32_2 = arith.constant 0 : i32
    return %c0_i32, %c0_i32_0, %c0_i32_1 : i32, i32, i32
  }
  func.func @transform_1(%arg0: i32) -> (i32, i32) {
    %c0_i32 = arith.constant 0 : i32
    %c0_i32_0 = arith.constant 0 : i32
    %c0_i32_1 = arith.constant 0 : i32
    return %c0_i32, %c0_i32_0 : i32, i32
  }
  func.func @transform_2(%arg0: i32) -> (i32, i32, i32) {
    %c0_i32 = arith.constant 0 : i32
    %c0_i32_0 = arith.constant 0 : i32
    %c0_i32_1 = arith.constant 0 : i32
    %c0_i32_2 = arith.constant 0 : i32
    return %c0_i32, %c0_i32_0, %c0_i32_1 : i32, i32, i32
  }
  func.func @transform_3(%arg0: i32) -> (i32, i32) {
    %c0_i32 = arith.constant 0 : i32
    %c0_i32_0 = arith.constant 0 : i32
    %c0_i32_1 = arith.constant 0 : i32
    return %c0_i32, %c0_i32_0 : i32, i32
  }
  func.func @transform_4(%arg0: i32) -> (i32, i32) {
    %c0_i32 = arith.constant 0 : i32
    %c0_i32_0 = arith.constant 0 : i32
    %c0_i32_1 = arith.constant 0 : i32
    return %c0_i32, %c0_i32_0 : i32, i32
  }
  func.func @transform_5(%arg0: i32) -> (i32, i32) {
    %c0_i32 = arith.constant 0 : i32
    %c0_i32_0 = arith.constant 0 : i32
    %c0_i32_1 = arith.constant 0 : i32
    return %c0_i32, %c0_i32_0 : i32, i32
  }
  func.func @transform_6(%arg0: i32) -> (i32, i32, i32) {
    %c0_i32 = arith.constant 0 : i32
    %c0_i32_0 = arith.constant 0 : i32
    %c0_i32_1 = arith.constant 0 : i32
    %c0_i32_2 = arith.constant 0 : i32
    return %c0_i32, %c0_i32_0, %c0_i32_1 : i32, i32, i32
  }
  func.func @transform_7(%arg0: i32) -> (i32, i32, i32) {
    %c0_i32 = arith.constant 0 : i32
    %c0_i32_0 = arith.constant 0 : i32
    %c0_i32_1 = arith.constant 0 : i32
    %c0_i32_2 = arith.constant 0 : i32
    return %c0_i32, %c0_i32_0, %c0_i32_1 : i32, i32, i32
  }
  func.func @transform_8(%arg0: i32) -> (i32, i32, i32) {
    %c0_i32 = arith.constant 0 : i32
    %c0_i32_0 = arith.constant 0 : i32
    %c0_i32_1 = arith.constant 0 : i32
    %c0_i32_2 = arith.constant 0 : i32
    return %c0_i32, %c0_i32_0, %c0_i32_1 : i32, i32, i32
  }
  func.func @transform_9(%arg0: i32) -> (i32, i32, i32) {
    %c0_i32 = arith.constant 0 : i32
    %c0_i32_0 = arith.constant 0 : i32
    %c0_i32_1 = arith.constant 0 : i32
    %c0_i32_2 = arith.constant 0 : i32
    return %c0_i32, %c0_i32_0, %c0_i32_1 : i32, i32, i32
  }
  func.func @transform_10(%arg0: i32) -> (i32, i32, i32) {
    %c0_i32 = arith.constant 0 : i32
    %c0_i32_0 = arith.constant 0 : i32
    %c0_i32_1 = arith.constant 0 : i32
    %c0_i32_2 = arith.constant 0 : i32
    return %c0_i32, %c0_i32_0, %c0_i32_1 : i32, i32, i32
  }
  func.func @transform_11(%arg0: i32) -> (i32, i32, i32) {
    %c0_i32 = arith.constant 0 : i32
    %c0_i32_0 = arith.constant 0 : i32
    %c0_i32_1 = arith.constant 0 : i32
    %c0_i32_2 = arith.constant 0 : i32
    return %c0_i32, %c0_i32_0, %c0_i32_1 : i32, i32, i32
  }
  func.func @transform_12(%arg0: i32) -> (i32, i32, i32) {
    %c0_i32 = arith.constant 0 : i32
    %c0_i32_0 = arith.constant 0 : i32
    %c0_i32_1 = arith.constant 0 : i32
    %c0_i32_2 = arith.constant 0 : i32
    return %c0_i32, %c0_i32_0, %c0_i32_1 : i32, i32, i32
  }
  func.func @transform_13(%arg0: i32) -> (i32, i32, i32) {
    %c0_i32 = arith.constant 0 : i32
    %c0_i32_0 = arith.constant 0 : i32
    %c0_i32_1 = arith.constant 0 : i32
    %c0_i32_2 = arith.constant 0 : i32
    return %c0_i32, %c0_i32_0, %c0_i32_1 : i32, i32, i32
  }
  func.func @transform_14(%arg0: i32) -> (i32, i32, i32) {
    %c0_i32 = arith.constant 0 : i32
    %c0_i32_0 = arith.constant 0 : i32
    %c0_i32_1 = arith.constant 0 : i32
    %c0_i32_2 = arith.constant 0 : i32
    return %c0_i32, %c0_i32_0, %c0_i32_1 : i32, i32, i32
  }
  func.func @transform_15(%arg0: i32) -> (i32, i32, i32) {
    %c0_i32 = arith.constant 0 : i32
    %c0_i32_0 = arith.constant 0 : i32
    %c0_i32_1 = arith.constant 0 : i32
    %c0_i32_2 = arith.constant 0 : i32
    return %c0_i32, %c0_i32_0, %c0_i32_1 : i32, i32, i32
  }
  func.func @transform_16(%arg0: i32) -> (i32, i32, i32) {
    %c0_i32 = arith.constant 0 : i32
    %c0_i32_0 = arith.constant 0 : i32
    %c0_i32_1 = arith.constant 0 : i32
    %c0_i32_2 = arith.constant 0 : i32
    return %c0_i32, %c0_i32_0, %c0_i32_1 : i32, i32, i32
  }
  func.func @transform_17(%arg0: i32) -> (i32, i32, i32) {
    %c0_i32 = arith.constant 0 : i32
    %c0_i32_0 = arith.constant 0 : i32
    %c0_i32_1 = arith.constant 0 : i32
    %c0_i32_2 = arith.constant 0 : i32
    return %c0_i32, %c0_i32_0, %c0_i32_1 : i32, i32, i32
  }
  func.func @transform_18(%arg0: i32) -> (i32, i32, i32) {
    %c0_i32 = arith.constant 0 : i32
    %c0_i32_0 = arith.constant 0 : i32
    %c0_i32_1 = arith.constant 0 : i32
    %c0_i32_2 = arith.constant 0 : i32
    return %c0_i32, %c0_i32_0, %c0_i32_1 : i32, i32, i32
  }
  func.func @transform_19(%arg0: i32) -> (i32, i32, i32) {
    %c0_i32 = arith.constant 0 : i32
    %c0_i32_0 = arith.constant 0 : i32
    %c0_i32_1 = arith.constant 0 : i32
    %c0_i32_2 = arith.constant 0 : i32
    return %c0_i32, %c0_i32_0, %c0_i32_1 : i32, i32, i32
  }
  func.func @transform_20(%arg0: i32) -> (i32, i32, i32) {
    %c0_i32 = arith.constant 0 : i32
    %c0_i32_0 = arith.constant 0 : i32
    %c0_i32_1 = arith.constant 0 : i32
    %c0_i32_2 = arith.constant 0 : i32
    return %c0_i32, %c0_i32_0, %c0_i32_1 : i32, i32, i32
  }
  func.func @transform_21(%arg0: i32) -> (i32, i32) {
    %c0_i32 = arith.constant 0 : i32
    %c0_i32_0 = arith.constant 0 : i32
    %c0_i32_1 = arith.constant 0 : i32
    return %c0_i32, %c0_i32_0 : i32, i32
  }
}

module attributes {stable_mosaic.version = 11 : i64} {
  func.func @kernel(%arg0: i32, %arg1: memref<40x4x96xf32, #tpu.memory_space<vmem>>, %arg2: memref<32x96xf32, #tpu.memory_space<vmem>>, %arg3: memref<1x96xf32, #tpu.memory_space<vmem>>, %arg4: memref<32x4x32xf32, #tpu.memory_space<vmem>>) attributes {dimension_semantics = [#tpu.dimension_semantics<arbitrary>], iteration_bounds = array<i64: 1>, scalar_prefetch = 0 : i64, scratch_operands = 0 : i64, tpu.core_type = #tpu.core_type<tc>, window_params = [{pipeline_mode = #tpu.pipeline_mode<synchronous>, transform_indices = @transform_0, window_bounds = array<i64: 40, 4, 96>}, {pipeline_mode = #tpu.pipeline_mode<synchronous>, transform_indices = @transform_1, window_bounds = array<i64: 32, 96>}, {pipeline_mode = #tpu.pipeline_mode<synchronous>, transform_indices = @transform_2, window_bounds = array<i64: 1, 96>}, {pipeline_mode = #tpu.pipeline_mode<synchronous>, transform_indices = @transform_3, window_bounds = array<i64: 32, 4, 32>}]} {
    %c0 = arith.constant 0 : index
    %c0_0 = arith.constant 0 : index
    %0 = vector.load %arg2[%c0, %c0_0] : memref<32x96xf32, #tpu.memory_space<vmem>>, vector<32x96xf32>
    %c0_1 = arith.constant 0 : index
    %c0_2 = arith.constant 0 : index
    %1 = vector.load %arg3[%c0_1, %c0_2] : memref<1x96xf32, #tpu.memory_space<vmem>>, vector<1x96xf32>
    %cst = arith.constant 0.000000e+00 : f32
    %2 = vector.broadcast %cst : f32 to vector<4x32xf32>
    %c0_3 = arith.constant 0 : index
    %c0_4 = arith.constant 0 : index
    %c0_5 = arith.constant 0 : index
    %3 = vector.load %arg1[%c0_3, %c0_4, %c0_5] : memref<40x4x96xf32, #tpu.memory_space<vmem>>, vector<1x4x96xf32>
    %4 = vector.shape_cast %3 : vector<1x4x96xf32> to vector<4x96xf32>
    %cst_6 = arith.constant dense<0.000000e+00> : vector<4x96xf32>
    %5 = tpu.matmul %2, %0, %cst_6 {dimension_numbers = #tpu.dot_dimension_numbers<[1], [0], [0], [1], [0, 0, 1, 1], [], []>} : vector<4x32xf32>, vector<32x96xf32>, vector<4x96xf32> -> vector<4x96xf32>
    %6 = vector.broadcast %1 : vector<1x96xf32> to vector<4x96xf32>
    %7 = arith.addf %5, %6 : vector<4x96xf32>
    %8 = vector.extract_strided_slice %4 {offsets = [0, 0], sizes = [4, 32], strides = [1, 1]} : vector<4x96xf32> to vector<4x32xf32>
    %9 = vector.extract_strided_slice %7 {offsets = [0, 0], sizes = [4, 32], strides = [1, 1]} : vector<4x96xf32> to vector<4x32xf32>
    %10 = arith.addf %8, %9 : vector<4x32xf32>
    %cst_7 = arith.constant 0.000000e+00 : f32
    %11 = vector.broadcast %cst_7 : f32 to vector<4x32xf32>
    %12 = arith.subf %11, %10 : vector<4x32xf32>
    %13 = math.exp %12 : vector<4x32xf32>
    %cst_8 = arith.constant 1.000000e+00 : f32
    %14 = vector.broadcast %cst_8 : f32 to vector<4x32xf32>
    %15 = arith.addf %14, %13 : vector<4x32xf32>
    %16 = tpu.reciprocal %15 {approx = true} : vector<4x32xf32> -> vector<4x32xf32>
    %17 = vector.extract_strided_slice %4 {offsets = [0, 32], sizes = [4, 32], strides = [1, 1]} : vector<4x96xf32> to vector<4x32xf32>
    %18 = vector.extract_strided_slice %7 {offsets = [0, 32], sizes = [4, 32], strides = [1, 1]} : vector<4x96xf32> to vector<4x32xf32>
    %19 = arith.addf %17, %18 : vector<4x32xf32>
    %cst_9 = arith.constant 0.000000e+00 : f32
    %20 = vector.broadcast %cst_9 : f32 to vector<4x32xf32>
    %21 = arith.subf %20, %19 : vector<4x32xf32>
    %22 = math.exp %21 : vector<4x32xf32>
    %cst_10 = arith.constant 1.000000e+00 : f32
    %23 = vector.broadcast %cst_10 : f32 to vector<4x32xf32>
    %24 = arith.addf %23, %22 : vector<4x32xf32>
    %25 = tpu.reciprocal %24 {approx = true} : vector<4x32xf32> -> vector<4x32xf32>
    %26 = vector.extract_strided_slice %4 {offsets = [0, 64], sizes = [4, 32], strides = [1, 1]} : vector<4x96xf32> to vector<4x32xf32>
    %27 = vector.extract_strided_slice %7 {offsets = [0, 64], sizes = [4, 32], strides = [1, 1]} : vector<4x96xf32> to vector<4x32xf32>
    %28 = arith.mulf %16, %27 : vector<4x32xf32>
    %29 = arith.addf %26, %28 : vector<4x32xf32>
    %30 = math.tanh %29 : vector<4x32xf32>
    %cst_11 = arith.constant 1.000000e+00 : f32
    %31 = vector.broadcast %cst_11 : f32 to vector<4x32xf32>
    %32 = arith.subf %31, %25 : vector<4x32xf32>
    %33 = arith.mulf %32, %30 : vector<4x32xf32>
    %34 = arith.mulf %25, %2 : vector<4x32xf32>
    %35 = arith.addf %33, %34 : vector<4x32xf32>
    %c1 = arith.constant 1 : index
    %c0_12 = arith.constant 0 : index
    %c0_13 = arith.constant 0 : index
    %36 = vector.load %arg1[%c1, %c0_12, %c0_13] : memref<40x4x96xf32, #tpu.memory_space<vmem>>, vector<1x4x96xf32>
    %37 = vector.shape_cast %36 : vector<1x4x96xf32> to vector<4x96xf32>
    %cst_14 = arith.constant dense<0.000000e+00> : vector<4x96xf32>
    %38 = tpu.matmul %35, %0, %cst_14 {dimension_numbers = #tpu.dot_dimension_numbers<[1], [0], [0], [1], [0, 0, 1, 1], [], []>} : vector<4x32xf32>, vector<32x96xf32>, vector<4x96xf32> -> vector<4x96xf32>
    %39 = vector.broadcast %1 : vector<1x96xf32> to vector<4x96xf32>
    %40 = arith.addf %38, %39 : vector<4x96xf32>
    %41 = vector.extract_strided_slice %37 {offsets = [0, 0], sizes = [4, 32], strides = [1, 1]} : vector<4x96xf32> to vector<4x32xf32>
    %42 = vector.extract_strided_slice %40 {offsets = [0, 0], sizes = [4, 32], strides = [1, 1]} : vector<4x96xf32> to vector<4x32xf32>
    %43 = arith.addf %41, %42 : vector<4x32xf32>
    %cst_15 = arith.constant 0.000000e+00 : f32
    %44 = vector.broadcast %cst_15 : f32 to vector<4x32xf32>
    %45 = arith.subf %44, %43 : vector<4x32xf32>
    %46 = math.exp %45 : vector<4x32xf32>
    %cst_16 = arith.constant 1.000000e+00 : f32
    %47 = vector.broadcast %cst_16 : f32 to vector<4x32xf32>
    %48 = arith.addf %47, %46 : vector<4x32xf32>
    %49 = tpu.reciprocal %48 {approx = true} : vector<4x32xf32> -> vector<4x32xf32>
    %50 = vector.extract_strided_slice %37 {offsets = [0, 32], sizes = [4, 32], strides = [1, 1]} : vector<4x96xf32> to vector<4x32xf32>
    %51 = vector.extract_strided_slice %40 {offsets = [0, 32], sizes = [4, 32], strides = [1, 1]} : vector<4x96xf32> to vector<4x32xf32>
    %52 = arith.addf %50, %51 : vector<4x32xf32>
    %cst_17 = arith.constant 0.000000e+00 : f32
    %53 = vector.broadcast %cst_17 : f32 to vector<4x32xf32>
    %54 = arith.subf %53, %52 : vector<4x32xf32>
    %55 = math.exp %54 : vector<4x32xf32>
    %cst_18 = arith.constant 1.000000e+00 : f32
    %56 = vector.broadcast %cst_18 : f32 to vector<4x32xf32>
    %57 = arith.addf %56, %55 : vector<4x32xf32>
    %58 = tpu.reciprocal %57 {approx = true} : vector<4x32xf32> -> vector<4x32xf32>
    %59 = vector.extract_strided_slice %37 {offsets = [0, 64], sizes = [4, 32], strides = [1, 1]} : vector<4x96xf32> to vector<4x32xf32>
    %60 = vector.extract_strided_slice %40 {offsets = [0, 64], sizes = [4, 32], strides = [1, 1]} : vector<4x96xf32> to vector<4x32xf32>
    %61 = arith.mulf %49, %60 : vector<4x32xf32>
    %62 = arith.addf %59, %61 : vector<4x32xf32>
    %63 = math.tanh %62 : vector<4x32xf32>
    %cst_19 = arith.constant 1.000000e+00 : f32
    %64 = vector.broadcast %cst_19 : f32 to vector<4x32xf32>
    %65 = arith.subf %64, %58 : vector<4x32xf32>
    %66 = arith.mulf %65, %63 : vector<4x32xf32>
    %67 = arith.mulf %58, %35 : vector<4x32xf32>
    %68 = arith.addf %66, %67 : vector<4x32xf32>
    %c2 = arith.constant 2 : index
    %c0_20 = arith.constant 0 : index
    %c0_21 = arith.constant 0 : index
    %69 = vector.load %arg1[%c2, %c0_20, %c0_21] : memref<40x4x96xf32, #tpu.memory_space<vmem>>, vector<1x4x96xf32>
    %70 = vector.shape_cast %69 : vector<1x4x96xf32> to vector<4x96xf32>
    %cst_22 = arith.constant dense<0.000000e+00> : vector<4x96xf32>
    %71 = tpu.matmul %68, %0, %cst_22 {dimension_numbers = #tpu.dot_dimension_numbers<[1], [0], [0], [1], [0, 0, 1, 1], [], []>} : vector<4x32xf32>, vector<32x96xf32>, vector<4x96xf32> -> vector<4x96xf32>
    %72 = vector.broadcast %1 : vector<1x96xf32> to vector<4x96xf32>
    %73 = arith.addf %71, %72 : vector<4x96xf32>
    %74 = vector.extract_strided_slice %70 {offsets = [0, 0], sizes = [4, 32], strides = [1, 1]} : vector<4x96xf32> to vector<4x32xf32>
    %75 = vector.extract_strided_slice %73 {offsets = [0, 0], sizes = [4, 32], strides = [1, 1]} : vector<4x96xf32> to vector<4x32xf32>
    %76 = arith.addf %74, %75 : vector<4x32xf32>
    %cst_23 = arith.constant 0.000000e+00 : f32
    %77 = vector.broadcast %cst_23 : f32 to vector<4x32xf32>
    %78 = arith.subf %77, %76 : vector<4x32xf32>
    %79 = math.exp %78 : vector<4x32xf32>
    %cst_24 = arith.constant 1.000000e+00 : f32
    %80 = vector.broadcast %cst_24 : f32 to vector<4x32xf32>
    %81 = arith.addf %80, %79 : vector<4x32xf32>
    %82 = tpu.reciprocal %81 {approx = true} : vector<4x32xf32> -> vector<4x32xf32>
    %83 = vector.extract_strided_slice %70 {offsets = [0, 32], sizes = [4, 32], strides = [1, 1]} : vector<4x96xf32> to vector<4x32xf32>
    %84 = vector.extract_strided_slice %73 {offsets = [0, 32], sizes = [4, 32], strides = [1, 1]} : vector<4x96xf32> to vector<4x32xf32>
    %85 = arith.addf %83, %84 : vector<4x32xf32>
    %cst_25 = arith.constant 0.000000e+00 : f32
    %86 = vector.broadcast %cst_25 : f32 to vector<4x32xf32>
    %87 = arith.subf %86, %85 : vector<4x32xf32>
    %88 = math.exp %87 : vector<4x32xf32>
    %cst_26 = arith.constant 1.000000e+00 : f32
    %89 = vector.broadcast %cst_26 : f32 to vector<4x32xf32>
    %90 = arith.addf %89, %88 : vector<4x32xf32>
    %91 = tpu.reciprocal %90 {approx = true} : vector<4x32xf32> -> vector<4x32xf32>
    %92 = vector.extract_strided_slice %70 {offsets = [0, 64], sizes = [4, 32], strides = [1, 1]} : vector<4x96xf32> to vector<4x32xf32>
    %93 = vector.extract_strided_slice %73 {offsets = [0, 64], sizes = [4, 32], strides = [1, 1]} : vector<4x96xf32> to vector<4x32xf32>
    %94 = arith.mulf %82, %93 : vector<4x32xf32>
    %95 = arith.addf %92, %94 : vector<4x32xf32>
    %96 = math.tanh %95 : vector<4x32xf32>
    %cst_27 = arith.constant 1.000000e+00 : f32
    %97 = vector.broadcast %cst_27 : f32 to vector<4x32xf32>
    %98 = arith.subf %97, %91 : vector<4x32xf32>
    %99 = arith.mulf %98, %96 : vector<4x32xf32>
    %100 = arith.mulf %91, %68 : vector<4x32xf32>
    %101 = arith.addf %99, %100 : vector<4x32xf32>
    %c3 = arith.constant 3 : index
    %c0_28 = arith.constant 0 : index
    %c0_29 = arith.constant 0 : index
    %102 = vector.load %arg1[%c3, %c0_28, %c0_29] : memref<40x4x96xf32, #tpu.memory_space<vmem>>, vector<1x4x96xf32>
    %103 = vector.shape_cast %102 : vector<1x4x96xf32> to vector<4x96xf32>
    %cst_30 = arith.constant dense<0.000000e+00> : vector<4x96xf32>
    %104 = tpu.matmul %101, %0, %cst_30 {dimension_numbers = #tpu.dot_dimension_numbers<[1], [0], [0], [1], [0, 0, 1, 1], [], []>} : vector<4x32xf32>, vector<32x96xf32>, vector<4x96xf32> -> vector<4x96xf32>
    %105 = vector.broadcast %1 : vector<1x96xf32> to vector<4x96xf32>
    %106 = arith.addf %104, %105 : vector<4x96xf32>
    %107 = vector.extract_strided_slice %103 {offsets = [0, 0], sizes = [4, 32], strides = [1, 1]} : vector<4x96xf32> to vector<4x32xf32>
    %108 = vector.extract_strided_slice %106 {offsets = [0, 0], sizes = [4, 32], strides = [1, 1]} : vector<4x96xf32> to vector<4x32xf32>
    %109 = arith.addf %107, %108 : vector<4x32xf32>
    %cst_31 = arith.constant 0.000000e+00 : f32
    %110 = vector.broadcast %cst_31 : f32 to vector<4x32xf32>
    %111 = arith.subf %110, %109 : vector<4x32xf32>
    %112 = math.exp %111 : vector<4x32xf32>
    %cst_32 = arith.constant 1.000000e+00 : f32
    %113 = vector.broadcast %cst_32 : f32 to vector<4x32xf32>
    %114 = arith.addf %113, %112 : vector<4x32xf32>
    %115 = tpu.reciprocal %114 {approx = true} : vector<4x32xf32> -> vector<4x32xf32>
    %116 = vector.extract_strided_slice %103 {offsets = [0, 32], sizes = [4, 32], strides = [1, 1]} : vector<4x96xf32> to vector<4x32xf32>
    %117 = vector.extract_strided_slice %106 {offsets = [0, 32], sizes = [4, 32], strides = [1, 1]} : vector<4x96xf32> to vector<4x32xf32>
    %118 = arith.addf %116, %117 : vector<4x32xf32>
    %cst_33 = arith.constant 0.000000e+00 : f32
    %119 = vector.broadcast %cst_33 : f32 to vector<4x32xf32>
    %120 = arith.subf %119, %118 : vector<4x32xf32>
    %121 = math.exp %120 : vector<4x32xf32>
    %cst_34 = arith.constant 1.000000e+00 : f32
    %122 = vector.broadcast %cst_34 : f32 to vector<4x32xf32>
    %123 = arith.addf %122, %121 : vector<4x32xf32>
    %124 = tpu.reciprocal %123 {approx = true} : vector<4x32xf32> -> vector<4x32xf32>
    %125 = vector.extract_strided_slice %103 {offsets = [0, 64], sizes = [4, 32], strides = [1, 1]} : vector<4x96xf32> to vector<4x32xf32>
    %126 = vector.extract_strided_slice %106 {offsets = [0, 64], sizes = [4, 32], strides = [1, 1]} : vector<4x96xf32> to vector<4x32xf32>
    %127 = arith.mulf %115, %126 : vector<4x32xf32>
    %128 = arith.addf %125, %127 : vector<4x32xf32>
    %129 = math.tanh %128 : vector<4x32xf32>
    %cst_35 = arith.constant 1.000000e+00 : f32
    %130 = vector.broadcast %cst_35 : f32 to vector<4x32xf32>
    %131 = arith.subf %130, %124 : vector<4x32xf32>
    %132 = arith.mulf %131, %129 : vector<4x32xf32>
    %133 = arith.mulf %124, %101 : vector<4x32xf32>
    %134 = arith.addf %132, %133 : vector<4x32xf32>
    %c4 = arith.constant 4 : index
    %c0_36 = arith.constant 0 : index
    %c0_37 = arith.constant 0 : index
    %135 = vector.load %arg1[%c4, %c0_36, %c0_37] : memref<40x4x96xf32, #tpu.memory_space<vmem>>, vector<1x4x96xf32>
    %136 = vector.shape_cast %135 : vector<1x4x96xf32> to vector<4x96xf32>
    %cst_38 = arith.constant dense<0.000000e+00> : vector<4x96xf32>
    %137 = tpu.matmul %134, %0, %cst_38 {dimension_numbers = #tpu.dot_dimension_numbers<[1], [0], [0], [1], [0, 0, 1, 1], [], []>} : vector<4x32xf32>, vector<32x96xf32>, vector<4x96xf32> -> vector<4x96xf32>
    %138 = vector.broadcast %1 : vector<1x96xf32> to vector<4x96xf32>
    %139 = arith.addf %137, %138 : vector<4x96xf32>
    %140 = vector.extract_strided_slice %136 {offsets = [0, 0], sizes = [4, 32], strides = [1, 1]} : vector<4x96xf32> to vector<4x32xf32>
    %141 = vector.extract_strided_slice %139 {offsets = [0, 0], sizes = [4, 32], strides = [1, 1]} : vector<4x96xf32> to vector<4x32xf32>
    %142 = arith.addf %140, %141 : vector<4x32xf32>
    %cst_39 = arith.constant 0.000000e+00 : f32
    %143 = vector.broadcast %cst_39 : f32 to vector<4x32xf32>
    %144 = arith.subf %143, %142 : vector<4x32xf32>
    %145 = math.exp %144 : vector<4x32xf32>
    %cst_40 = arith.constant 1.000000e+00 : f32
    %146 = vector.broadcast %cst_40 : f32 to vector<4x32xf32>
    %147 = arith.addf %146, %145 : vector<4x32xf32>
    %148 = tpu.reciprocal %147 {approx = true} : vector<4x32xf32> -> vector<4x32xf32>
    %149 = vector.extract_strided_slice %136 {offsets = [0, 32], sizes = [4, 32], strides = [1, 1]} : vector<4x96xf32> to vector<4x32xf32>
    %150 = vector.extract_strided_slice %139 {offsets = [0, 32], sizes = [4, 32], strides = [1, 1]} : vector<4x96xf32> to vector<4x32xf32>
    %151 = arith.addf %149, %150 : vector<4x32xf32>
    %cst_41 = arith.constant 0.000000e+00 : f32
    %152 = vector.broadcast %cst_41 : f32 to vector<4x32xf32>
    %153 = arith.subf %152, %151 : vector<4x32xf32>
    %154 = math.exp %153 : vector<4x32xf32>
    %cst_42 = arith.constant 1.000000e+00 : f32
    %155 = vector.broadcast %cst_42 : f32 to vector<4x32xf32>
    %156 = arith.addf %155, %154 : vector<4x32xf32>
    %157 = tpu.reciprocal %156 {approx = true} : vector<4x32xf32> -> vector<4x32xf32>
    %158 = vector.extract_strided_slice %136 {offsets = [0, 64], sizes = [4, 32], strides = [1, 1]} : vector<4x96xf32> to vector<4x32xf32>
    %159 = vector.extract_strided_slice %139 {offsets = [0, 64], sizes = [4, 32], strides = [1, 1]} : vector<4x96xf32> to vector<4x32xf32>
    %160 = arith.mulf %148, %159 : vector<4x32xf32>
    %161 = arith.addf %158, %160 : vector<4x32xf32>
    %162 = math.tanh %161 : vector<4x32xf32>
    %cst_43 = arith.constant 1.000000e+00 : f32
    %163 = vector.broadcast %cst_43 : f32 to vector<4x32xf32>
    %164 = arith.subf %163, %157 : vector<4x32xf32>
    %165 = arith.mulf %164, %162 : vector<4x32xf32>
    %166 = arith.mulf %157, %134 : vector<4x32xf32>
    %167 = arith.addf %165, %166 : vector<4x32xf32>
    %168 = vector.extract_strided_slice %167 {offsets = [0, 0], sizes = [4, 16], strides = [1, 1]} : vector<4x32xf32> to vector<4x16xf32>
    %c0_44 = arith.constant 0 : index
    %c0_45 = arith.constant 0 : index
    %c0_46 = arith.constant 0 : index
    %169 = vector.load %arg4[%c0_44, %c0_45, %c0_46] : memref<32x4x32xf32, #tpu.memory_space<vmem>>, vector<1x4x16xf32>
    %170 = vector.shape_cast %169 : vector<1x4x16xf32> to vector<4x16xf32>
    %171 = vector.shape_cast %168 : vector<4x16xf32> to vector<1x4x16xf32>
    tpu.vector_store %arg4[%c0_44, %c0_45, %c0_46], %171 {strides = array<i32>} : memref<32x4x32xf32, #tpu.memory_space<vmem>>, vector<1x4x16xf32>,
    %172 = vector.extract_strided_slice %167 {offsets = [0, 16], sizes = [4, 16], strides = [1, 1]} : vector<4x32xf32> to vector<4x16xf32>
    %c31 = arith.constant 31 : index
    %c0_47 = arith.constant 0 : index
    %c16 = arith.constant 16 : index
    %173 = vector.load %arg4[%c31, %c0_47, %c16] : memref<32x4x32xf32, #tpu.memory_space<vmem>>, vector<1x4x16xf32>
    %174 = vector.shape_cast %173 : vector<1x4x16xf32> to vector<4x16xf32>
    %175 = vector.shape_cast %172 : vector<4x16xf32> to vector<1x4x16xf32>
    tpu.vector_store %arg4[%c31, %c0_47, %c16], %175 {strides = array<i32>} : memref<32x4x32xf32, #tpu.memory_space<vmem>>, vector<1x4x16xf32>,
    %c5 = arith.constant 5 : index
    %c0_48 = arith.constant 0 : index
    %c0_49 = arith.constant 0 : index
    %176 = vector.load %arg1[%c5, %c0_48, %c0_49] : memref<40x4x96xf32, #tpu.memory_space<vmem>>, vector<1x4x96xf32>
    %177 = vector.shape_cast %176 : vector<1x4x96xf32> to vector<4x96xf32>
    %cst_50 = arith.constant dense<0.000000e+00> : vector<4x96xf32>
    %178 = tpu.matmul %167, %0, %cst_50 {dimension_numbers = #tpu.dot_dimension_numbers<[1], [0], [0], [1], [0, 0, 1, 1], [], []>} : vector<4x32xf32>, vector<32x96xf32>, vector<4x96xf32> -> vector<4x96xf32>
    %179 = vector.broadcast %1 : vector<1x96xf32> to vector<4x96xf32>
    %180 = arith.addf %178, %179 : vector<4x96xf32>
    %181 = vector.extract_strided_slice %177 {offsets = [0, 0], sizes = [4, 32], strides = [1, 1]} : vector<4x96xf32> to vector<4x32xf32>
    %182 = vector.extract_strided_slice %180 {offsets = [0, 0], sizes = [4, 32], strides = [1, 1]} : vector<4x96xf32> to vector<4x32xf32>
    %183 = arith.addf %181, %182 : vector<4x32xf32>
    %cst_51 = arith.constant 0.000000e+00 : f32
    %184 = vector.broadcast %cst_51 : f32 to vector<4x32xf32>
    %185 = arith.subf %184, %183 : vector<4x32xf32>
    %186 = math.exp %185 : vector<4x32xf32>
    %cst_52 = arith.constant 1.000000e+00 : f32
    %187 = vector.broadcast %cst_52 : f32 to vector<4x32xf32>
    %188 = arith.addf %187, %186 : vector<4x32xf32>
    %189 = tpu.reciprocal %188 {approx = true} : vector<4x32xf32> -> vector<4x32xf32>
    %190 = vector.extract_strided_slice %177 {offsets = [0, 32], sizes = [4, 32], strides = [1, 1]} : vector<4x96xf32> to vector<4x32xf32>
    %191 = vector.extract_strided_slice %180 {offsets = [0, 32], sizes = [4, 32], strides = [1, 1]} : vector<4x96xf32> to vector<4x32xf32>
    %192 = arith.addf %190, %191 : vector<4x32xf32>
    %cst_53 = arith.constant 0.000000e+00 : f32
    %193 = vector.broadcast %cst_53 : f32 to vector<4x32xf32>
    %194 = arith.subf %193, %192 : vector<4x32xf32>
    %195 = math.exp %194 : vector<4x32xf32>
    %cst_54 = arith.constant 1.000000e+00 : f32
    %196 = vector.broadcast %cst_54 : f32 to vector<4x32xf32>
    %197 = arith.addf %196, %195 : vector<4x32xf32>
    %198 = tpu.reciprocal %197 {approx = true} : vector<4x32xf32> -> vector<4x32xf32>
    %199 = vector.extract_strided_slice %177 {offsets = [0, 64], sizes = [4, 32], strides = [1, 1]} : vector<4x96xf32> to vector<4x32xf32>
    %200 = vector.extract_strided_slice %180 {offsets = [0, 64], sizes = [4, 32], strides = [1, 1]} : vector<4x96xf32> to vector<4x32xf32>
    %201 = arith.mulf %189, %200 : vector<4x32xf32>
    %202 = arith.addf %199, %201 : vector<4x32xf32>
    %203 = math.tanh %202 : vector<4x32xf32>
    %cst_55 = arith.constant 1.000000e+00 : f32
    %204 = vector.broadcast %cst_55 : f32 to vector<4x32xf32>
    %205 = arith.subf %204, %198 : vector<4x32xf32>
    %206 = arith.mulf %205, %203 : vector<4x32xf32>
    %207 = arith.mulf %198, %167 : vector<4x32xf32>
    %208 = arith.addf %206, %207 : vector<4x32xf32>
    %209 = vector.extract_strided_slice %208 {offsets = [0, 0], sizes = [4, 16], strides = [1, 1]} : vector<4x32xf32> to vector<4x16xf32>
    %c1_56 = arith.constant 1 : index
    %c0_57 = arith.constant 0 : index
    %c0_58 = arith.constant 0 : index
    %210 = vector.load %arg4[%c1_56, %c0_57, %c0_58] : memref<32x4x32xf32, #tpu.memory_space<vmem>>, vector<1x4x16xf32>
    %211 = vector.shape_cast %210 : vector<1x4x16xf32> to vector<4x16xf32>
    %212 = vector.shape_cast %209 : vector<4x16xf32> to vector<1x4x16xf32>
    tpu.vector_store %arg4[%c1_56, %c0_57, %c0_58], %212 {strides = array<i32>} : memref<32x4x32xf32, #tpu.memory_space<vmem>>, vector<1x4x16xf32>,
    %213 = vector.extract_strided_slice %208 {offsets = [0, 16], sizes = [4, 16], strides = [1, 1]} : vector<4x32xf32> to vector<4x16xf32>
    %c30 = arith.constant 30 : index
    %c0_59 = arith.constant 0 : index
    %c16_60 = arith.constant 16 : index
    %214 = vector.load %arg4[%c30, %c0_59, %c16_60] : memref<32x4x32xf32, #tpu.memory_space<vmem>>, vector<1x4x16xf32>
    %215 = vector.shape_cast %214 : vector<1x4x16xf32> to vector<4x16xf32>
    %216 = vector.shape_cast %213 : vector<4x16xf32> to vector<1x4x16xf32>
    tpu.vector_store %arg4[%c30, %c0_59, %c16_60], %216 {strides = array<i32>} : memref<32x4x32xf32, #tpu.memory_space<vmem>>, vector<1x4x16xf32>,
    %c6 = arith.constant 6 : index
    %c0_61 = arith.constant 0 : index
    %c0_62 = arith.constant 0 : index
    %217 = vector.load %arg1[%c6, %c0_61, %c0_62] : memref<40x4x96xf32, #tpu.memory_space<vmem>>, vector<1x4x96xf32>
    %218 = vector.shape_cast %217 : vector<1x4x96xf32> to vector<4x96xf32>
    %cst_63 = arith.constant dense<0.000000e+00> : vector<4x96xf32>
    %219 = tpu.matmul %208, %0, %cst_63 {dimension_numbers = #tpu.dot_dimension_numbers<[1], [0], [0], [1], [0, 0, 1, 1], [], []>} : vector<4x32xf32>, vector<32x96xf32>, vector<4x96xf32> -> vector<4x96xf32>
    %220 = vector.broadcast %1 : vector<1x96xf32> to vector<4x96xf32>
    %221 = arith.addf %219, %220 : vector<4x96xf32>
    %222 = vector.extract_strided_slice %218 {offsets = [0, 0], sizes = [4, 32], strides = [1, 1]} : vector<4x96xf32> to vector<4x32xf32>
    %223 = vector.extract_strided_slice %221 {offsets = [0, 0], sizes = [4, 32], strides = [1, 1]} : vector<4x96xf32> to vector<4x32xf32>
    %224 = arith.addf %222, %223 : vector<4x32xf32>
    %cst_64 = arith.constant 0.000000e+00 : f32
    %225 = vector.broadcast %cst_64 : f32 to vector<4x32xf32>
    %226 = arith.subf %225, %224 : vector<4x32xf32>
    %227 = math.exp %226 : vector<4x32xf32>
    %cst_65 = arith.constant 1.000000e+00 : f32
    %228 = vector.broadcast %cst_65 : f32 to vector<4x32xf32>
    %229 = arith.addf %228, %227 : vector<4x32xf32>
    %230 = tpu.reciprocal %229 {approx = true} : vector<4x32xf32> -> vector<4x32xf32>
    %231 = vector.extract_strided_slice %218 {offsets = [0, 32], sizes = [4, 32], strides = [1, 1]} : vector<4x96xf32> to vector<4x32xf32>
    %232 = vector.extract_strided_slice %221 {offsets = [0, 32], sizes = [4, 32], strides = [1, 1]} : vector<4x96xf32> to vector<4x32xf32>
    %233 = arith.addf %231, %232 : vector<4x32xf32>
    %cst_66 = arith.constant 0.000000e+00 : f32
    %234 = vector.broadcast %cst_66 : f32 to vector<4x32xf32>
    %235 = arith.subf %234, %233 : vector<4x32xf32>
    %236 = math.exp %235 : vector<4x32xf32>
    %cst_67 = arith.constant 1.000000e+00 : f32
    %237 = vector.broadcast %cst_67 : f32 to vector<4x32xf32>
    %238 = arith.addf %237, %236 : vector<4x32xf32>
    %239 = tpu.reciprocal %238 {approx = true} : vector<4x32xf32> -> vector<4x32xf32>
    %240 = vector.extract_strided_slice %218 {offsets = [0, 64], sizes = [4, 32], strides = [1, 1]} : vector<4x96xf32> to vector<4x32xf32>
    %241 = vector.extract_strided_slice %221 {offsets = [0, 64], sizes = [4, 32], strides = [1, 1]} : vector<4x96xf32> to vector<4x32xf32>
    %242 = arith.mulf %230, %241 : vector<4x32xf32>
    %243 = arith.addf %240, %242 : vector<4x32xf32>
    %244 = math.tanh %243 : vector<4x32xf32>
    %cst_68 = arith.constant 1.000000e+00 : f32
    %245 = vector.broadcast %cst_68 : f32 to vector<4x32xf32>
    %246 = arith.subf %245, %239 : vector<4x32xf32>
    %247 = arith.mulf %246, %244 : vector<4x32xf32>
    %248 = arith.mulf %239, %208 : vector<4x32xf32>
    %249 = arith.addf %247, %248 : vector<4x32xf32>
    %250 = vector.extract_strided_slice %249 {offsets = [0, 0], sizes = [4, 16], strides = [1, 1]} : vector<4x32xf32> to vector<4x16xf32>
    %c2_69 = arith.constant 2 : index
    %c0_70 = arith.constant 0 : index
    %c0_71 = arith.constant 0 : index
    %251 = vector.load %arg4[%c2_69, %c0_70, %c0_71] : memref<32x4x32xf32, #tpu.memory_space<vmem>>, vector<1x4x16xf32>
    %252 = vector.shape_cast %251 : vector<1x4x16xf32> to vector<4x16xf32>
    %253 = vector.shape_cast %250 : vector<4x16xf32> to vector<1x4x16xf32>
    tpu.vector_store %arg4[%c2_69, %c0_70, %c0_71], %253 {strides = array<i32>} : memref<32x4x32xf32, #tpu.memory_space<vmem>>, vector<1x4x16xf32>,
    %254 = vector.extract_strided_slice %249 {offsets = [0, 16], sizes = [4, 16], strides = [1, 1]} : vector<4x32xf32> to vector<4x16xf32>
    %c29 = arith.constant 29 : index
    %c0_72 = arith.constant 0 : index
    %c16_73 = arith.constant 16 : index
    %255 = vector.load %arg4[%c29, %c0_72, %c16_73] : memref<32x4x32xf32, #tpu.memory_space<vmem>>, vector<1x4x16xf32>
    %256 = vector.shape_cast %255 : vector<1x4x16xf32> to vector<4x16xf32>
    %257 = vector.shape_cast %254 : vector<4x16xf32> to vector<1x4x16xf32>
    tpu.vector_store %arg4[%c29, %c0_72, %c16_73], %257 {strides = array<i32>} : memref<32x4x32xf32, #tpu.memory_space<vmem>>, vector<1x4x16xf32>,
    %c7 = arith.constant 7 : index
    %c0_74 = arith.constant 0 : index
    %c0_75 = arith.constant 0 : index
    %258 = vector.load %arg1[%c7, %c0_74, %c0_75] : memref<40x4x96xf32, #tpu.memory_space<vmem>>, vector<1x4x96xf32>
    %259 = vector.shape_cast %258 : vector<1x4x96xf32> to vector<4x96xf32>
    %cst_76 = arith.constant dense<0.000000e+00> : vector<4x96xf32>
    %260 = tpu.matmul %249, %0, %cst_76 {dimension_numbers = #tpu.dot_dimension_numbers<[1], [0], [0], [1], [0, 0, 1, 1], [], []>} : vector<4x32xf32>, vector<32x96xf32>, vector<4x96xf32> -> vector<4x96xf32>
    %261 = vector.broadcast %1 : vector<1x96xf32> to vector<4x96xf32>
    %262 = arith.addf %260, %261 : vector<4x96xf32>
    %263 = vector.extract_strided_slice %259 {offsets = [0, 0], sizes = [4, 32], strides = [1, 1]} : vector<4x96xf32> to vector<4x32xf32>
    %264 = vector.extract_strided_slice %262 {offsets = [0, 0], sizes = [4, 32], strides = [1, 1]} : vector<4x96xf32> to vector<4x32xf32>
    %265 = arith.addf %263, %264 : vector<4x32xf32>
    %cst_77 = arith.constant 0.000000e+00 : f32
    %266 = vector.broadcast %cst_77 : f32 to vector<4x32xf32>
    %267 = arith.subf %266, %265 : vector<4x32xf32>
    %268 = math.exp %267 : vector<4x32xf32>
    %cst_78 = arith.constant 1.000000e+00 : f32
    %269 = vector.broadcast %cst_78 : f32 to vector<4x32xf32>
    %270 = arith.addf %269, %268 : vector<4x32xf32>
    %271 = tpu.reciprocal %270 {approx = true} : vector<4x32xf32> -> vector<4x32xf32>
    %272 = vector.extract_strided_slice %259 {offsets = [0, 32], sizes = [4, 32], strides = [1, 1]} : vector<4x96xf32> to vector<4x32xf32>
    %273 = vector.extract_strided_slice %262 {offsets = [0, 32], sizes = [4, 32], strides = [1, 1]} : vector<4x96xf32> to vector<4x32xf32>
    %274 = arith.addf %272, %273 : vector<4x32xf32>
    %cst_79 = arith.constant 0.000000e+00 : f32
    %275 = vector.broadcast %cst_79 : f32 to vector<4x32xf32>
    %276 = arith.subf %275, %274 : vector<4x32xf32>
    %277 = math.exp %276 : vector<4x32xf32>
    %cst_80 = arith.constant 1.000000e+00 : f32
    %278 = vector.broadcast %cst_80 : f32 to vector<4x32xf32>
    %279 = arith.addf %278, %277 : vector<4x32xf32>
    %280 = tpu.reciprocal %279 {approx = true} : vector<4x32xf32> -> vector<4x32xf32>
    %281 = vector.extract_strided_slice %259 {offsets = [0, 64], sizes = [4, 32], strides = [1, 1]} : vector<4x96xf32> to vector<4x32xf32>
    %282 = vector.extract_strided_slice %262 {offsets = [0, 64], sizes = [4, 32], strides = [1, 1]} : vector<4x96xf32> to vector<4x32xf32>
    %283 = arith.mulf %271, %282 : vector<4x32xf32>
    %284 = arith.addf %281, %283 : vector<4x32xf32>
    %285 = math.tanh %284 : vector<4x32xf32>
    %cst_81 = arith.constant 1.000000e+00 : f32
    %286 = vector.broadcast %cst_81 : f32 to vector<4x32xf32>
    %287 = arith.subf %286, %280 : vector<4x32xf32>
    %288 = arith.mulf %287, %285 : vector<4x32xf32>
    %289 = arith.mulf %280, %249 : vector<4x32xf32>
    %290 = arith.addf %288, %289 : vector<4x32xf32>
    %291 = vector.extract_strided_slice %290 {offsets = [0, 0], sizes = [4, 16], strides = [1, 1]} : vector<4x32xf32> to vector<4x16xf32>
    %c3_82 = arith.constant 3 : index
    %c0_83 = arith.constant 0 : index
    %c0_84 = arith.constant 0 : index
    %292 = vector.load %arg4[%c3_82, %c0_83, %c0_84] : memref<32x4x32xf32, #tpu.memory_space<vmem>>, vector<1x4x16xf32>
    %293 = vector.shape_cast %292 : vector<1x4x16xf32> to vector<4x16xf32>
    %294 = vector.shape_cast %291 : vector<4x16xf32> to vector<1x4x16xf32>
    tpu.vector_store %arg4[%c3_82, %c0_83, %c0_84], %294 {strides = array<i32>} : memref<32x4x32xf32, #tpu.memory_space<vmem>>, vector<1x4x16xf32>,
    %295 = vector.extract_strided_slice %290 {offsets = [0, 16], sizes = [4, 16], strides = [1, 1]} : vector<4x32xf32> to vector<4x16xf32>
    %c28 = arith.constant 28 : index
    %c0_85 = arith.constant 0 : index
    %c16_86 = arith.constant 16 : index
    %296 = vector.load %arg4[%c28, %c0_85, %c16_86] : memref<32x4x32xf32, #tpu.memory_space<vmem>>, vector<1x4x16xf32>
    %297 = vector.shape_cast %296 : vector<1x4x16xf32> to vector<4x16xf32>
    %298 = vector.shape_cast %295 : vector<4x16xf32> to vector<1x4x16xf32>
    tpu.vector_store %arg4[%c28, %c0_85, %c16_86], %298 {strides = array<i32>} : memref<32x4x32xf32, #tpu.memory_space<vmem>>, vector<1x4x16xf32>,
    %c8 = arith.constant 8 : index
    %c0_87 = arith.constant 0 : index
    %c0_88 = arith.constant 0 : index
    %299 = vector.load %arg1[%c8, %c0_87, %c0_88] : memref<40x4x96xf32, #tpu.memory_space<vmem>>, vector<1x4x96xf32>
    %300 = vector.shape_cast %299 : vector<1x4x96xf32> to vector<4x96xf32>
    %cst_89 = arith.constant dense<0.000000e+00> : vector<4x96xf32>
    %301 = tpu.matmul %290, %0, %cst_89 {dimension_numbers = #tpu.dot_dimension_numbers<[1], [0], [0], [1], [0, 0, 1, 1], [], []>} : vector<4x32xf32>, vector<32x96xf32>, vector<4x96xf32> -> vector<4x96xf32>
    %302 = vector.broadcast %1 : vector<1x96xf32> to vector<4x96xf32>
    %303 = arith.addf %301, %302 : vector<4x96xf32>
    %304 = vector.extract_strided_slice %300 {offsets = [0, 0], sizes = [4, 32], strides = [1, 1]} : vector<4x96xf32> to vector<4x32xf32>
    %305 = vector.extract_strided_slice %303 {offsets = [0, 0], sizes = [4, 32], strides = [1, 1]} : vector<4x96xf32> to vector<4x32xf32>
    %306 = arith.addf %304, %305 : vector<4x32xf32>
    %cst_90 = arith.constant 0.000000e+00 : f32
    %307 = vector.broadcast %cst_90 : f32 to vector<4x32xf32>
    %308 = arith.subf %307, %306 : vector<4x32xf32>
    %309 = math.exp %308 : vector<4x32xf32>
    %cst_91 = arith.constant 1.000000e+00 : f32
    %310 = vector.broadcast %cst_91 : f32 to vector<4x32xf32>
    %311 = arith.addf %310, %309 : vector<4x32xf32>
    %312 = tpu.reciprocal %311 {approx = true} : vector<4x32xf32> -> vector<4x32xf32>
    %313 = vector.extract_strided_slice %300 {offsets = [0, 32], sizes = [4, 32], strides = [1, 1]} : vector<4x96xf32> to vector<4x32xf32>
    %314 = vector.extract_strided_slice %303 {offsets = [0, 32], sizes = [4, 32], strides = [1, 1]} : vector<4x96xf32> to vector<4x32xf32>
    %315 = arith.addf %313, %314 : vector<4x32xf32>
    %cst_92 = arith.constant 0.000000e+00 : f32
    %316 = vector.broadcast %cst_92 : f32 to vector<4x32xf32>
    %317 = arith.subf %316, %315 : vector<4x32xf32>
    %318 = math.exp %317 : vector<4x32xf32>
    %cst_93 = arith.constant 1.000000e+00 : f32
    %319 = vector.broadcast %cst_93 : f32 to vector<4x32xf32>
    %320 = arith.addf %319, %318 : vector<4x32xf32>
    %321 = tpu.reciprocal %320 {approx = true} : vector<4x32xf32> -> vector<4x32xf32>
    %322 = vector.extract_strided_slice %300 {offsets = [0, 64], sizes = [4, 32], strides = [1, 1]} : vector<4x96xf32> to vector<4x32xf32>
    %323 = vector.extract_strided_slice %303 {offsets = [0, 64], sizes = [4, 32], strides = [1, 1]} : vector<4x96xf32> to vector<4x32xf32>
    %324 = arith.mulf %312, %323 : vector<4x32xf32>
    %325 = arith.addf %322, %324 : vector<4x32xf32>
    %326 = math.tanh %325 : vector<4x32xf32>
    %cst_94 = arith.constant 1.000000e+00 : f32
    %327 = vector.broadcast %cst_94 : f32 to vector<4x32xf32>
    %328 = arith.subf %327, %321 : vector<4x32xf32>
    %329 = arith.mulf %328, %326 : vector<4x32xf32>
    %330 = arith.mulf %321, %290 : vector<4x32xf32>
    %331 = arith.addf %329, %330 : vector<4x32xf32>
    %332 = vector.extract_strided_slice %331 {offsets = [0, 0], sizes = [4, 16], strides = [1, 1]} : vector<4x32xf32> to vector<4x16xf32>
    %c4_95 = arith.constant 4 : index
    %c0_96 = arith.constant 0 : index
    %c0_97 = arith.constant 0 : index
    %333 = vector.load %arg4[%c4_95, %c0_96, %c0_97] : memref<32x4x32xf32, #tpu.memory_space<vmem>>, vector<1x4x16xf32>
    %334 = vector.shape_cast %333 : vector<1x4x16xf32> to vector<4x16xf32>
    %335 = vector.shape_cast %332 : vector<4x16xf32> to vector<1x4x16xf32>
    tpu.vector_store %arg4[%c4_95, %c0_96, %c0_97], %335 {strides = array<i32>} : memref<32x4x32xf32, #tpu.memory_space<vmem>>, vector<1x4x16xf32>,
    %336 = vector.extract_strided_slice %331 {offsets = [0, 16], sizes = [4, 16], strides = [1, 1]} : vector<4x32xf32> to vector<4x16xf32>
    %c27 = arith.constant 27 : index
    %c0_98 = arith.constant 0 : index
    %c16_99 = arith.constant 16 : index
    %337 = vector.load %arg4[%c27, %c0_98, %c16_99] : memref<32x4x32xf32, #tpu.memory_space<vmem>>, vector<1x4x16xf32>
    %338 = vector.shape_cast %337 : vector<1x4x16xf32> to vector<4x16xf32>
    %339 = vector.shape_cast %336 : vector<4x16xf32> to vector<1x4x16xf32>
    tpu.vector_store %arg4[%c27, %c0_98, %c16_99], %339 {strides = array<i32>} : memref<32x4x32xf32, #tpu.memory_space<vmem>>, vector<1x4x16xf32>,
    %c9 = arith.constant 9 : index
    %c0_100 = arith.constant 0 : index
    %c0_101 = arith.constant 0 : index
    %340 = vector.load %arg1[%c9, %c0_100, %c0_101] : memref<40x4x96xf32, #tpu.memory_space<vmem>>, vector<1x4x96xf32>
    %341 = vector.shape_cast %340 : vector<1x4x96xf32> to vector<4x96xf32>
    %cst_102 = arith.constant dense<0.000000e+00> : vector<4x96xf32>
    %342 = tpu.matmul %331, %0, %cst_102 {dimension_numbers = #tpu.dot_dimension_numbers<[1], [0], [0], [1], [0, 0, 1, 1], [], []>} : vector<4x32xf32>, vector<32x96xf32>, vector<4x96xf32> -> vector<4x96xf32>
    %343 = vector.broadcast %1 : vector<1x96xf32> to vector<4x96xf32>
    %344 = arith.addf %342, %343 : vector<4x96xf32>
    %345 = vector.extract_strided_slice %341 {offsets = [0, 0], sizes = [4, 32], strides = [1, 1]} : vector<4x96xf32> to vector<4x32xf32>
    %346 = vector.extract_strided_slice %344 {offsets = [0, 0], sizes = [4, 32], strides = [1, 1]} : vector<4x96xf32> to vector<4x32xf32>
    %347 = arith.addf %345, %346 : vector<4x32xf32>
    %cst_103 = arith.constant 0.000000e+00 : f32
    %348 = vector.broadcast %cst_103 : f32 to vector<4x32xf32>
    %349 = arith.subf %348, %347 : vector<4x32xf32>
    %350 = math.exp %349 : vector<4x32xf32>
    %cst_104 = arith.constant 1.000000e+00 : f32
    %351 = vector.broadcast %cst_104 : f32 to vector<4x32xf32>
    %352 = arith.addf %351, %350 : vector<4x32xf32>
    %353 = tpu.reciprocal %352 {approx = true} : vector<4x32xf32> -> vector<4x32xf32>
    %354 = vector.extract_strided_slice %341 {offsets = [0, 32], sizes = [4, 32], strides = [1, 1]} : vector<4x96xf32> to vector<4x32xf32>
    %355 = vector.extract_strided_slice %344 {offsets = [0, 32], sizes = [4, 32], strides = [1, 1]} : vector<4x96xf32> to vector<4x32xf32>
    %356 = arith.addf %354, %355 : vector<4x32xf32>
    %cst_105 = arith.constant 0.000000e+00 : f32
    %357 = vector.broadcast %cst_105 : f32 to vector<4x32xf32>
    %358 = arith.subf %357, %356 : vector<4x32xf32>
    %359 = math.exp %358 : vector<4x32xf32>
    %cst_106 = arith.constant 1.000000e+00 : f32
    %360 = vector.broadcast %cst_106 : f32 to vector<4x32xf32>
    %361 = arith.addf %360, %359 : vector<4x32xf32>
    %362 = tpu.reciprocal %361 {approx = true} : vector<4x32xf32> -> vector<4x32xf32>
    %363 = vector.extract_strided_slice %341 {offsets = [0, 64], sizes = [4, 32], strides = [1, 1]} : vector<4x96xf32> to vector<4x32xf32>
    %364 = vector.extract_strided_slice %344 {offsets = [0, 64], sizes = [4, 32], strides = [1, 1]} : vector<4x96xf32> to vector<4x32xf32>
    %365 = arith.mulf %353, %364 : vector<4x32xf32>
    %366 = arith.addf %363, %365 : vector<4x32xf32>
    %367 = math.tanh %366 : vector<4x32xf32>
    %cst_107 = arith.constant 1.000000e+00 : f32
    %368 = vector.broadcast %cst_107 : f32 to vector<4x32xf32>
    %369 = arith.subf %368, %362 : vector<4x32xf32>
    %370 = arith.mulf %369, %367 : vector<4x32xf32>
    %371 = arith.mulf %362, %331 : vector<4x32xf32>
    %372 = arith.addf %370, %371 : vector<4x32xf32>
    %373 = vector.extract_strided_slice %372 {offsets = [0, 0], sizes = [4, 16], strides = [1, 1]} : vector<4x32xf32> to vector<4x16xf32>
    %c5_108 = arith.constant 5 : index
    %c0_109 = arith.constant 0 : index
    %c0_110 = arith.constant 0 : index
    %374 = vector.load %arg4[%c5_108, %c0_109, %c0_110] : memref<32x4x32xf32, #tpu.memory_space<vmem>>, vector<1x4x16xf32>
    %375 = vector.shape_cast %374 : vector<1x4x16xf32> to vector<4x16xf32>
    %376 = vector.shape_cast %373 : vector<4x16xf32> to vector<1x4x16xf32>
    tpu.vector_store %arg4[%c5_108, %c0_109, %c0_110], %376 {strides = array<i32>} : memref<32x4x32xf32, #tpu.memory_space<vmem>>, vector<1x4x16xf32>,
    %377 = vector.extract_strided_slice %372 {offsets = [0, 16], sizes = [4, 16], strides = [1, 1]} : vector<4x32xf32> to vector<4x16xf32>
    %c26 = arith.constant 26 : index
    %c0_111 = arith.constant 0 : index
    %c16_112 = arith.constant 16 : index
    %378 = vector.load %arg4[%c26, %c0_111, %c16_112] : memref<32x4x32xf32, #tpu.memory_space<vmem>>, vector<1x4x16xf32>
    %379 = vector.shape_cast %378 : vector<1x4x16xf32> to vector<4x16xf32>
    %380 = vector.shape_cast %377 : vector<4x16xf32> to vector<1x4x16xf32>
    tpu.vector_store %arg4[%c26, %c0_111, %c16_112], %380 {strides = array<i32>} : memref<32x4x32xf32, #tpu.memory_space<vmem>>, vector<1x4x16xf32>,
    %c10 = arith.constant 10 : index
    %c0_113 = arith.constant 0 : index
    %c0_114 = arith.constant 0 : index
    %381 = vector.load %arg1[%c10, %c0_113, %c0_114] : memref<40x4x96xf32, #tpu.memory_space<vmem>>, vector<1x4x96xf32>
    %382 = vector.shape_cast %381 : vector<1x4x96xf32> to vector<4x96xf32>
    %cst_115 = arith.constant dense<0.000000e+00> : vector<4x96xf32>
    %383 = tpu.matmul %372, %0, %cst_115 {dimension_numbers = #tpu.dot_dimension_numbers<[1], [0], [0], [1], [0, 0, 1, 1], [], []>} : vector<4x32xf32>, vector<32x96xf32>, vector<4x96xf32> -> vector<4x96xf32>
    %384 = vector.broadcast %1 : vector<1x96xf32> to vector<4x96xf32>
    %385 = arith.addf %383, %384 : vector<4x96xf32>
    %386 = vector.extract_strided_slice %382 {offsets = [0, 0], sizes = [4, 32], strides = [1, 1]} : vector<4x96xf32> to vector<4x32xf32>
    %387 = vector.extract_strided_slice %385 {offsets = [0, 0], sizes = [4, 32], strides = [1, 1]} : vector<4x96xf32> to vector<4x32xf32>
    %388 = arith.addf %386, %387 : vector<4x32xf32>
    %cst_116 = arith.constant 0.000000e+00 : f32
    %389 = vector.broadcast %cst_116 : f32 to vector<4x32xf32>
    %390 = arith.subf %389, %388 : vector<4x32xf32>
    %391 = math.exp %390 : vector<4x32xf32>
    %cst_117 = arith.constant 1.000000e+00 : f32
    %392 = vector.broadcast %cst_117 : f32 to vector<4x32xf32>
    %393 = arith.addf %392, %391 : vector<4x32xf32>
    %394 = tpu.reciprocal %393 {approx = true} : vector<4x32xf32> -> vector<4x32xf32>
    %395 = vector.extract_strided_slice %382 {offsets = [0, 32], sizes = [4, 32], strides = [1, 1]} : vector<4x96xf32> to vector<4x32xf32>
    %396 = vector.extract_strided_slice %385 {offsets = [0, 32], sizes = [4, 32], strides = [1, 1]} : vector<4x96xf32> to vector<4x32xf32>
    %397 = arith.addf %395, %396 : vector<4x32xf32>
    %cst_118 = arith.constant 0.000000e+00 : f32
    %398 = vector.broadcast %cst_118 : f32 to vector<4x32xf32>
    %399 = arith.subf %398, %397 : vector<4x32xf32>
    %400 = math.exp %399 : vector<4x32xf32>
    %cst_119 = arith.constant 1.000000e+00 : f32
    %401 = vector.broadcast %cst_119 : f32 to vector<4x32xf32>
    %402 = arith.addf %401, %400 : vector<4x32xf32>
    %403 = tpu.reciprocal %402 {approx = true} : vector<4x32xf32> -> vector<4x32xf32>
    %404 = vector.extract_strided_slice %382 {offsets = [0, 64], sizes = [4, 32], strides = [1, 1]} : vector<4x96xf32> to vector<4x32xf32>
    %405 = vector.extract_strided_slice %385 {offsets = [0, 64], sizes = [4, 32], strides = [1, 1]} : vector<4x96xf32> to vector<4x32xf32>
    %406 = arith.mulf %394, %405 : vector<4x32xf32>
    %407 = arith.addf %404, %406 : vector<4x32xf32>
    %408 = math.tanh %407 : vector<4x32xf32>
    %cst_120 = arith.constant 1.000000e+00 : f32
    %409 = vector.broadcast %cst_120 : f32 to vector<4x32xf32>
    %410 = arith.subf %409, %403 : vector<4x32xf32>
    %411 = arith.mulf %410, %408 : vector<4x32xf32>
    %412 = arith.mulf %403, %372 : vector<4x32xf32>
    %413 = arith.addf %411, %412 : vector<4x32xf32>
    %414 = vector.extract_strided_slice %413 {offsets = [0, 0], sizes = [4, 16], strides = [1, 1]} : vector<4x32xf32> to vector<4x16xf32>
    %c6_121 = arith.constant 6 : index
    %c0_122 = arith.constant 0 : index
    %c0_123 = arith.constant 0 : index
    %415 = vector.load %arg4[%c6_121, %c0_122, %c0_123] : memref<32x4x32xf32, #tpu.memory_space<vmem>>, vector<1x4x16xf32>
    %416 = vector.shape_cast %415 : vector<1x4x16xf32> to vector<4x16xf32>
    %417 = vector.shape_cast %414 : vector<4x16xf32> to vector<1x4x16xf32>
    tpu.vector_store %arg4[%c6_121, %c0_122, %c0_123], %417 {strides = array<i32>} : memref<32x4x32xf32, #tpu.memory_space<vmem>>, vector<1x4x16xf32>,
    %418 = vector.extract_strided_slice %413 {offsets = [0, 16], sizes = [4, 16], strides = [1, 1]} : vector<4x32xf32> to vector<4x16xf32>
    %c25 = arith.constant 25 : index
    %c0_124 = arith.constant 0 : index
    %c16_125 = arith.constant 16 : index
    %419 = vector.load %arg4[%c25, %c0_124, %c16_125] : memref<32x4x32xf32, #tpu.memory_space<vmem>>, vector<1x4x16xf32>
    %420 = vector.shape_cast %419 : vector<1x4x16xf32> to vector<4x16xf32>
    %421 = vector.shape_cast %418 : vector<4x16xf32> to vector<1x4x16xf32>
    tpu.vector_store %arg4[%c25, %c0_124, %c16_125], %421 {strides = array<i32>} : memref<32x4x32xf32, #tpu.memory_space<vmem>>, vector<1x4x16xf32>,
    %c11 = arith.constant 11 : index
    %c0_126 = arith.constant 0 : index
    %c0_127 = arith.constant 0 : index
    %422 = vector.load %arg1[%c11, %c0_126, %c0_127] : memref<40x4x96xf32, #tpu.memory_space<vmem>>, vector<1x4x96xf32>
    %423 = vector.shape_cast %422 : vector<1x4x96xf32> to vector<4x96xf32>
    %cst_128 = arith.constant dense<0.000000e+00> : vector<4x96xf32>
    %424 = tpu.matmul %413, %0, %cst_128 {dimension_numbers = #tpu.dot_dimension_numbers<[1], [0], [0], [1], [0, 0, 1, 1], [], []>} : vector<4x32xf32>, vector<32x96xf32>, vector<4x96xf32> -> vector<4x96xf32>
    %425 = vector.broadcast %1 : vector<1x96xf32> to vector<4x96xf32>
    %426 = arith.addf %424, %425 : vector<4x96xf32>
    %427 = vector.extract_strided_slice %423 {offsets = [0, 0], sizes = [4, 32], strides = [1, 1]} : vector<4x96xf32> to vector<4x32xf32>
    %428 = vector.extract_strided_slice %426 {offsets = [0, 0], sizes = [4, 32], strides = [1, 1]} : vector<4x96xf32> to vector<4x32xf32>
    %429 = arith.addf %427, %428 : vector<4x32xf32>
    %cst_129 = arith.constant 0.000000e+00 : f32
    %430 = vector.broadcast %cst_129 : f32 to vector<4x32xf32>
    %431 = arith.subf %430, %429 : vector<4x32xf32>
    %432 = math.exp %431 : vector<4x32xf32>
    %cst_130 = arith.constant 1.000000e+00 : f32
    %433 = vector.broadcast %cst_130 : f32 to vector<4x32xf32>
    %434 = arith.addf %433, %432 : vector<4x32xf32>
    %435 = tpu.reciprocal %434 {approx = true} : vector<4x32xf32> -> vector<4x32xf32>
    %436 = vector.extract_strided_slice %423 {offsets = [0, 32], sizes = [4, 32], strides = [1, 1]} : vector<4x96xf32> to vector<4x32xf32>
    %437 = vector.extract_strided_slice %426 {offsets = [0, 32], sizes = [4, 32], strides = [1, 1]} : vector<4x96xf32> to vector<4x32xf32>
    %438 = arith.addf %436, %437 : vector<4x32xf32>
    %cst_131 = arith.constant 0.000000e+00 : f32
    %439 = vector.broadcast %cst_131 : f32 to vector<4x32xf32>
    %440 = arith.subf %439, %438 : vector<4x32xf32>
    %441 = math.exp %440 : vector<4x32xf32>
    %cst_132 = arith.constant 1.000000e+00 : f32
    %442 = vector.broadcast %cst_132 : f32 to vector<4x32xf32>
    %443 = arith.addf %442, %441 : vector<4x32xf32>
    %444 = tpu.reciprocal %443 {approx = true} : vector<4x32xf32> -> vector<4x32xf32>
    %445 = vector.extract_strided_slice %423 {offsets = [0, 64], sizes = [4, 32], strides = [1, 1]} : vector<4x96xf32> to vector<4x32xf32>
    %446 = vector.extract_strided_slice %426 {offsets = [0, 64], sizes = [4, 32], strides = [1, 1]} : vector<4x96xf32> to vector<4x32xf32>
    %447 = arith.mulf %435, %446 : vector<4x32xf32>
    %448 = arith.addf %445, %447 : vector<4x32xf32>
    %449 = math.tanh %448 : vector<4x32xf32>
    %cst_133 = arith.constant 1.000000e+00 : f32
    %450 = vector.broadcast %cst_133 : f32 to vector<4x32xf32>
    %451 = arith.subf %450, %444 : vector<4x32xf32>
    %452 = arith.mulf %451, %449 : vector<4x32xf32>
    %453 = arith.mulf %444, %413 : vector<4x32xf32>
    %454 = arith.addf %452, %453 : vector<4x32xf32>
    %455 = vector.extract_strided_slice %454 {offsets = [0, 0], sizes = [4, 16], strides = [1, 1]} : vector<4x32xf32> to vector<4x16xf32>
    %c7_134 = arith.constant 7 : index
    %c0_135 = arith.constant 0 : index
    %c0_136 = arith.constant 0 : index
    %456 = vector.load %arg4[%c7_134, %c0_135, %c0_136] : memref<32x4x32xf32, #tpu.memory_space<vmem>>, vector<1x4x16xf32>
    %457 = vector.shape_cast %456 : vector<1x4x16xf32> to vector<4x16xf32>
    %458 = vector.shape_cast %455 : vector<4x16xf32> to vector<1x4x16xf32>
    tpu.vector_store %arg4[%c7_134, %c0_135, %c0_136], %458 {strides = array<i32>} : memref<32x4x32xf32, #tpu.memory_space<vmem>>, vector<1x4x16xf32>,
    %459 = vector.extract_strided_slice %454 {offsets = [0, 16], sizes = [4, 16], strides = [1, 1]} : vector<4x32xf32> to vector<4x16xf32>
    %c24 = arith.constant 24 : index
    %c0_137 = arith.constant 0 : index
    %c16_138 = arith.constant 16 : index
    %460 = vector.load %arg4[%c24, %c0_137, %c16_138] : memref<32x4x32xf32, #tpu.memory_space<vmem>>, vector<1x4x16xf32>
    %461 = vector.shape_cast %460 : vector<1x4x16xf32> to vector<4x16xf32>
    %462 = vector.shape_cast %459 : vector<4x16xf32> to vector<1x4x16xf32>
    tpu.vector_store %arg4[%c24, %c0_137, %c16_138], %462 {strides = array<i32>} : memref<32x4x32xf32, #tpu.memory_space<vmem>>, vector<1x4x16xf32>,
    %c12 = arith.constant 12 : index
    %c0_139 = arith.constant 0 : index
    %c0_140 = arith.constant 0 : index
    %463 = vector.load %arg1[%c12, %c0_139, %c0_140] : memref<40x4x96xf32, #tpu.memory_space<vmem>>, vector<1x4x96xf32>
    %464 = vector.shape_cast %463 : vector<1x4x96xf32> to vector<4x96xf32>
    %cst_141 = arith.constant dense<0.000000e+00> : vector<4x96xf32>
    %465 = tpu.matmul %454, %0, %cst_141 {dimension_numbers = #tpu.dot_dimension_numbers<[1], [0], [0], [1], [0, 0, 1, 1], [], []>} : vector<4x32xf32>, vector<32x96xf32>, vector<4x96xf32> -> vector<4x96xf32>
    %466 = vector.broadcast %1 : vector<1x96xf32> to vector<4x96xf32>
    %467 = arith.addf %465, %466 : vector<4x96xf32>
    %468 = vector.extract_strided_slice %464 {offsets = [0, 0], sizes = [4, 32], strides = [1, 1]} : vector<4x96xf32> to vector<4x32xf32>
    %469 = vector.extract_strided_slice %467 {offsets = [0, 0], sizes = [4, 32], strides = [1, 1]} : vector<4x96xf32> to vector<4x32xf32>
    %470 = arith.addf %468, %469 : vector<4x32xf32>
    %cst_142 = arith.constant 0.000000e+00 : f32
    %471 = vector.broadcast %cst_142 : f32 to vector<4x32xf32>
    %472 = arith.subf %471, %470 : vector<4x32xf32>
    %473 = math.exp %472 : vector<4x32xf32>
    %cst_143 = arith.constant 1.000000e+00 : f32
    %474 = vector.broadcast %cst_143 : f32 to vector<4x32xf32>
    %475 = arith.addf %474, %473 : vector<4x32xf32>
    %476 = tpu.reciprocal %475 {approx = true} : vector<4x32xf32> -> vector<4x32xf32>
    %477 = vector.extract_strided_slice %464 {offsets = [0, 32], sizes = [4, 32], strides = [1, 1]} : vector<4x96xf32> to vector<4x32xf32>
    %478 = vector.extract_strided_slice %467 {offsets = [0, 32], sizes = [4, 32], strides = [1, 1]} : vector<4x96xf32> to vector<4x32xf32>
    %479 = arith.addf %477, %478 : vector<4x32xf32>
    %cst_144 = arith.constant 0.000000e+00 : f32
    %480 = vector.broadcast %cst_144 : f32 to vector<4x32xf32>
    %481 = arith.subf %480, %479 : vector<4x32xf32>
    %482 = math.exp %481 : vector<4x32xf32>
    %cst_145 = arith.constant 1.000000e+00 : f32
    %483 = vector.broadcast %cst_145 : f32 to vector<4x32xf32>
    %484 = arith.addf %483, %482 : vector<4x32xf32>
    %485 = tpu.reciprocal %484 {approx = true} : vector<4x32xf32> -> vector<4x32xf32>
    %486 = vector.extract_strided_slice %464 {offsets = [0, 64], sizes = [4, 32], strides = [1, 1]} : vector<4x96xf32> to vector<4x32xf32>
    %487 = vector.extract_strided_slice %467 {offsets = [0, 64], sizes = [4, 32], strides = [1, 1]} : vector<4x96xf32> to vector<4x32xf32>
    %488 = arith.mulf %476, %487 : vector<4x32xf32>
    %489 = arith.addf %486, %488 : vector<4x32xf32>
    %490 = math.tanh %489 : vector<4x32xf32>
    %cst_146 = arith.constant 1.000000e+00 : f32
    %491 = vector.broadcast %cst_146 : f32 to vector<4x32xf32>
    %492 = arith.subf %491, %485 : vector<4x32xf32>
    %493 = arith.mulf %492, %490 : vector<4x32xf32>
    %494 = arith.mulf %485, %454 : vector<4x32xf32>
    %495 = arith.addf %493, %494 : vector<4x32xf32>
    %496 = vector.extract_strided_slice %495 {offsets = [0, 0], sizes = [4, 16], strides = [1, 1]} : vector<4x32xf32> to vector<4x16xf32>
    %c8_147 = arith.constant 8 : index
    %c0_148 = arith.constant 0 : index
    %c0_149 = arith.constant 0 : index
    %497 = vector.load %arg4[%c8_147, %c0_148, %c0_149] : memref<32x4x32xf32, #tpu.memory_space<vmem>>, vector<1x4x16xf32>
    %498 = vector.shape_cast %497 : vector<1x4x16xf32> to vector<4x16xf32>
    %499 = vector.shape_cast %496 : vector<4x16xf32> to vector<1x4x16xf32>
    tpu.vector_store %arg4[%c8_147, %c0_148, %c0_149], %499 {strides = array<i32>} : memref<32x4x32xf32, #tpu.memory_space<vmem>>, vector<1x4x16xf32>,
    %500 = vector.extract_strided_slice %495 {offsets = [0, 16], sizes = [4, 16], strides = [1, 1]} : vector<4x32xf32> to vector<4x16xf32>
    %c23 = arith.constant 23 : index
    %c0_150 = arith.constant 0 : index
    %c16_151 = arith.constant 16 : index
    %501 = vector.load %arg4[%c23, %c0_150, %c16_151] : memref<32x4x32xf32, #tpu.memory_space<vmem>>, vector<1x4x16xf32>
    %502 = vector.shape_cast %501 : vector<1x4x16xf32> to vector<4x16xf32>
    %503 = vector.shape_cast %500 : vector<4x16xf32> to vector<1x4x16xf32>
    tpu.vector_store %arg4[%c23, %c0_150, %c16_151], %503 {strides = array<i32>} : memref<32x4x32xf32, #tpu.memory_space<vmem>>, vector<1x4x16xf32>,
    %c13 = arith.constant 13 : index
    %c0_152 = arith.constant 0 : index
    %c0_153 = arith.constant 0 : index
    %504 = vector.load %arg1[%c13, %c0_152, %c0_153] : memref<40x4x96xf32, #tpu.memory_space<vmem>>, vector<1x4x96xf32>
    %505 = vector.shape_cast %504 : vector<1x4x96xf32> to vector<4x96xf32>
    %cst_154 = arith.constant dense<0.000000e+00> : vector<4x96xf32>
    %506 = tpu.matmul %495, %0, %cst_154 {dimension_numbers = #tpu.dot_dimension_numbers<[1], [0], [0], [1], [0, 0, 1, 1], [], []>} : vector<4x32xf32>, vector<32x96xf32>, vector<4x96xf32> -> vector<4x96xf32>
    %507 = vector.broadcast %1 : vector<1x96xf32> to vector<4x96xf32>
    %508 = arith.addf %506, %507 : vector<4x96xf32>
    %509 = vector.extract_strided_slice %505 {offsets = [0, 0], sizes = [4, 32], strides = [1, 1]} : vector<4x96xf32> to vector<4x32xf32>
    %510 = vector.extract_strided_slice %508 {offsets = [0, 0], sizes = [4, 32], strides = [1, 1]} : vector<4x96xf32> to vector<4x32xf32>
    %511 = arith.addf %509, %510 : vector<4x32xf32>
    %cst_155 = arith.constant 0.000000e+00 : f32
    %512 = vector.broadcast %cst_155 : f32 to vector<4x32xf32>
    %513 = arith.subf %512, %511 : vector<4x32xf32>
    %514 = math.exp %513 : vector<4x32xf32>
    %cst_156 = arith.constant 1.000000e+00 : f32
    %515 = vector.broadcast %cst_156 : f32 to vector<4x32xf32>
    %516 = arith.addf %515, %514 : vector<4x32xf32>
    %517 = tpu.reciprocal %516 {approx = true} : vector<4x32xf32> -> vector<4x32xf32>
    %518 = vector.extract_strided_slice %505 {offsets = [0, 32], sizes = [4, 32], strides = [1, 1]} : vector<4x96xf32> to vector<4x32xf32>
    %519 = vector.extract_strided_slice %508 {offsets = [0, 32], sizes = [4, 32], strides = [1, 1]} : vector<4x96xf32> to vector<4x32xf32>
    %520 = arith.addf %518, %519 : vector<4x32xf32>
    %cst_157 = arith.constant 0.000000e+00 : f32
    %521 = vector.broadcast %cst_157 : f32 to vector<4x32xf32>
    %522 = arith.subf %521, %520 : vector<4x32xf32>
    %523 = math.exp %522 : vector<4x32xf32>
    %cst_158 = arith.constant 1.000000e+00 : f32
    %524 = vector.broadcast %cst_158 : f32 to vector<4x32xf32>
    %525 = arith.addf %524, %523 : vector<4x32xf32>
    %526 = tpu.reciprocal %525 {approx = true} : vector<4x32xf32> -> vector<4x32xf32>
    %527 = vector.extract_strided_slice %505 {offsets = [0, 64], sizes = [4, 32], strides = [1, 1]} : vector<4x96xf32> to vector<4x32xf32>
    %528 = vector.extract_strided_slice %508 {offsets = [0, 64], sizes = [4, 32], strides = [1, 1]} : vector<4x96xf32> to vector<4x32xf32>
    %529 = arith.mulf %517, %528 : vector<4x32xf32>
    %530 = arith.addf %527, %529 : vector<4x32xf32>
    %531 = math.tanh %530 : vector<4x32xf32>
    %cst_159 = arith.constant 1.000000e+00 : f32
    %532 = vector.broadcast %cst_159 : f32 to vector<4x32xf32>
    %533 = arith.subf %532, %526 : vector<4x32xf32>
    %534 = arith.mulf %533, %531 : vector<4x32xf32>
    %535 = arith.mulf %526, %495 : vector<4x32xf32>
    %536 = arith.addf %534, %535 : vector<4x32xf32>
    %537 = vector.extract_strided_slice %536 {offsets = [0, 0], sizes = [4, 16], strides = [1, 1]} : vector<4x32xf32> to vector<4x16xf32>
    %c9_160 = arith.constant 9 : index
    %c0_161 = arith.constant 0 : index
    %c0_162 = arith.constant 0 : index
    %538 = vector.load %arg4[%c9_160, %c0_161, %c0_162] : memref<32x4x32xf32, #tpu.memory_space<vmem>>, vector<1x4x16xf32>
    %539 = vector.shape_cast %538 : vector<1x4x16xf32> to vector<4x16xf32>
    %540 = vector.shape_cast %537 : vector<4x16xf32> to vector<1x4x16xf32>
    tpu.vector_store %arg4[%c9_160, %c0_161, %c0_162], %540 {strides = array<i32>} : memref<32x4x32xf32, #tpu.memory_space<vmem>>, vector<1x4x16xf32>,
    %541 = vector.extract_strided_slice %536 {offsets = [0, 16], sizes = [4, 16], strides = [1, 1]} : vector<4x32xf32> to vector<4x16xf32>
    %c22 = arith.constant 22 : index
    %c0_163 = arith.constant 0 : index
    %c16_164 = arith.constant 16 : index
    %542 = vector.load %arg4[%c22, %c0_163, %c16_164] : memref<32x4x32xf32, #tpu.memory_space<vmem>>, vector<1x4x16xf32>
    %543 = vector.shape_cast %542 : vector<1x4x16xf32> to vector<4x16xf32>
    %544 = vector.shape_cast %541 : vector<4x16xf32> to vector<1x4x16xf32>
    tpu.vector_store %arg4[%c22, %c0_163, %c16_164], %544 {strides = array<i32>} : memref<32x4x32xf32, #tpu.memory_space<vmem>>, vector<1x4x16xf32>,
    %c14 = arith.constant 14 : index
    %c0_165 = arith.constant 0 : index
    %c0_166 = arith.constant 0 : index
    %545 = vector.load %arg1[%c14, %c0_165, %c0_166] : memref<40x4x96xf32, #tpu.memory_space<vmem>>, vector<1x4x96xf32>
    %546 = vector.shape_cast %545 : vector<1x4x96xf32> to vector<4x96xf32>
    %cst_167 = arith.constant dense<0.000000e+00> : vector<4x96xf32>
    %547 = tpu.matmul %536, %0, %cst_167 {dimension_numbers = #tpu.dot_dimension_numbers<[1], [0], [0], [1], [0, 0, 1, 1], [], []>} : vector<4x32xf32>, vector<32x96xf32>, vector<4x96xf32> -> vector<4x96xf32>
    %548 = vector.broadcast %1 : vector<1x96xf32> to vector<4x96xf32>
    %549 = arith.addf %547, %548 : vector<4x96xf32>
    %550 = vector.extract_strided_slice %546 {offsets = [0, 0], sizes = [4, 32], strides = [1, 1]} : vector<4x96xf32> to vector<4x32xf32>
    %551 = vector.extract_strided_slice %549 {offsets = [0, 0], sizes = [4, 32], strides = [1, 1]} : vector<4x96xf32> to vector<4x32xf32>
    %552 = arith.addf %550, %551 : vector<4x32xf32>
    %cst_168 = arith.constant 0.000000e+00 : f32
    %553 = vector.broadcast %cst_168 : f32 to vector<4x32xf32>
    %554 = arith.subf %553, %552 : vector<4x32xf32>
    %555 = math.exp %554 : vector<4x32xf32>
    %cst_169 = arith.constant 1.000000e+00 : f32
    %556 = vector.broadcast %cst_169 : f32 to vector<4x32xf32>
    %557 = arith.addf %556, %555 : vector<4x32xf32>
    %558 = tpu.reciprocal %557 {approx = true} : vector<4x32xf32> -> vector<4x32xf32>
    %559 = vector.extract_strided_slice %546 {offsets = [0, 32], sizes = [4, 32], strides = [1, 1]} : vector<4x96xf32> to vector<4x32xf32>
    %560 = vector.extract_strided_slice %549 {offsets = [0, 32], sizes = [4, 32], strides = [1, 1]} : vector<4x96xf32> to vector<4x32xf32>
    %561 = arith.addf %559, %560 : vector<4x32xf32>
    %cst_170 = arith.constant 0.000000e+00 : f32
    %562 = vector.broadcast %cst_170 : f32 to vector<4x32xf32>
    %563 = arith.subf %562, %561 : vector<4x32xf32>
    %564 = math.exp %563 : vector<4x32xf32>
    %cst_171 = arith.constant 1.000000e+00 : f32
    %565 = vector.broadcast %cst_171 : f32 to vector<4x32xf32>
    %566 = arith.addf %565, %564 : vector<4x32xf32>
    %567 = tpu.reciprocal %566 {approx = true} : vector<4x32xf32> -> vector<4x32xf32>
    %568 = vector.extract_strided_slice %546 {offsets = [0, 64], sizes = [4, 32], strides = [1, 1]} : vector<4x96xf32> to vector<4x32xf32>
    %569 = vector.extract_strided_slice %549 {offsets = [0, 64], sizes = [4, 32], strides = [1, 1]} : vector<4x96xf32> to vector<4x32xf32>
    %570 = arith.mulf %558, %569 : vector<4x32xf32>
    %571 = arith.addf %568, %570 : vector<4x32xf32>
    %572 = math.tanh %571 : vector<4x32xf32>
    %cst_172 = arith.constant 1.000000e+00 : f32
    %573 = vector.broadcast %cst_172 : f32 to vector<4x32xf32>
    %574 = arith.subf %573, %567 : vector<4x32xf32>
    %575 = arith.mulf %574, %572 : vector<4x32xf32>
    %576 = arith.mulf %567, %536 : vector<4x32xf32>
    %577 = arith.addf %575, %576 : vector<4x32xf32>
    %578 = vector.extract_strided_slice %577 {offsets = [0, 0], sizes = [4, 16], strides = [1, 1]} : vector<4x32xf32> to vector<4x16xf32>
    %c10_173 = arith.constant 10 : index
    %c0_174 = arith.constant 0 : index
    %c0_175 = arith.constant 0 : index
    %579 = vector.load %arg4[%c10_173, %c0_174, %c0_175] : memref<32x4x32xf32, #tpu.memory_space<vmem>>, vector<1x4x16xf32>
    %580 = vector.shape_cast %579 : vector<1x4x16xf32> to vector<4x16xf32>
    %581 = vector.shape_cast %578 : vector<4x16xf32> to vector<1x4x16xf32>
    tpu.vector_store %arg4[%c10_173, %c0_174, %c0_175], %581 {strides = array<i32>} : memref<32x4x32xf32, #tpu.memory_space<vmem>>, vector<1x4x16xf32>,
    %582 = vector.extract_strided_slice %577 {offsets = [0, 16], sizes = [4, 16], strides = [1, 1]} : vector<4x32xf32> to vector<4x16xf32>
    %c21 = arith.constant 21 : index
    %c0_176 = arith.constant 0 : index
    %c16_177 = arith.constant 16 : index
    %583 = vector.load %arg4[%c21, %c0_176, %c16_177] : memref<32x4x32xf32, #tpu.memory_space<vmem>>, vector<1x4x16xf32>
    %584 = vector.shape_cast %583 : vector<1x4x16xf32> to vector<4x16xf32>
    %585 = vector.shape_cast %582 : vector<4x16xf32> to vector<1x4x16xf32>
    tpu.vector_store %arg4[%c21, %c0_176, %c16_177], %585 {strides = array<i32>} : memref<32x4x32xf32, #tpu.memory_space<vmem>>, vector<1x4x16xf32>,
    %c15 = arith.constant 15 : index
    %c0_178 = arith.constant 0 : index
    %c0_179 = arith.constant 0 : index
    %586 = vector.load %arg1[%c15, %c0_178, %c0_179] : memref<40x4x96xf32, #tpu.memory_space<vmem>>, vector<1x4x96xf32>
    %587 = vector.shape_cast %586 : vector<1x4x96xf32> to vector<4x96xf32>
    %cst_180 = arith.constant dense<0.000000e+00> : vector<4x96xf32>
    %588 = tpu.matmul %577, %0, %cst_180 {dimension_numbers = #tpu.dot_dimension_numbers<[1], [0], [0], [1], [0, 0, 1, 1], [], []>} : vector<4x32xf32>, vector<32x96xf32>, vector<4x96xf32> -> vector<4x96xf32>
    %589 = vector.broadcast %1 : vector<1x96xf32> to vector<4x96xf32>
    %590 = arith.addf %588, %589 : vector<4x96xf32>
    %591 = vector.extract_strided_slice %587 {offsets = [0, 0], sizes = [4, 32], strides = [1, 1]} : vector<4x96xf32> to vector<4x32xf32>
    %592 = vector.extract_strided_slice %590 {offsets = [0, 0], sizes = [4, 32], strides = [1, 1]} : vector<4x96xf32> to vector<4x32xf32>
    %593 = arith.addf %591, %592 : vector<4x32xf32>
    %cst_181 = arith.constant 0.000000e+00 : f32
    %594 = vector.broadcast %cst_181 : f32 to vector<4x32xf32>
    %595 = arith.subf %594, %593 : vector<4x32xf32>
    %596 = math.exp %595 : vector<4x32xf32>
    %cst_182 = arith.constant 1.000000e+00 : f32
    %597 = vector.broadcast %cst_182 : f32 to vector<4x32xf32>
    %598 = arith.addf %597, %596 : vector<4x32xf32>
    %599 = tpu.reciprocal %598 {approx = true} : vector<4x32xf32> -> vector<4x32xf32>
    %600 = vector.extract_strided_slice %587 {offsets = [0, 32], sizes = [4, 32], strides = [1, 1]} : vector<4x96xf32> to vector<4x32xf32>
    %601 = vector.extract_strided_slice %590 {offsets = [0, 32], sizes = [4, 32], strides = [1, 1]} : vector<4x96xf32> to vector<4x32xf32>
    %602 = arith.addf %600, %601 : vector<4x32xf32>
    %cst_183 = arith.constant 0.000000e+00 : f32
    %603 = vector.broadcast %cst_183 : f32 to vector<4x32xf32>
    %604 = arith.subf %603, %602 : vector<4x32xf32>
    %605 = math.exp %604 : vector<4x32xf32>
    %cst_184 = arith.constant 1.000000e+00 : f32
    %606 = vector.broadcast %cst_184 : f32 to vector<4x32xf32>
    %607 = arith.addf %606, %605 : vector<4x32xf32>
    %608 = tpu.reciprocal %607 {approx = true} : vector<4x32xf32> -> vector<4x32xf32>
    %609 = vector.extract_strided_slice %587 {offsets = [0, 64], sizes = [4, 32], strides = [1, 1]} : vector<4x96xf32> to vector<4x32xf32>
    %610 = vector.extract_strided_slice %590 {offsets = [0, 64], sizes = [4, 32], strides = [1, 1]} : vector<4x96xf32> to vector<4x32xf32>
    %611 = arith.mulf %599, %610 : vector<4x32xf32>
    %612 = arith.addf %609, %611 : vector<4x32xf32>
    %613 = math.tanh %612 : vector<4x32xf32>
    %cst_185 = arith.constant 1.000000e+00 : f32
    %614 = vector.broadcast %cst_185 : f32 to vector<4x32xf32>
    %615 = arith.subf %614, %608 : vector<4x32xf32>
    %616 = arith.mulf %615, %613 : vector<4x32xf32>
    %617 = arith.mulf %608, %577 : vector<4x32xf32>
    %618 = arith.addf %616, %617 : vector<4x32xf32>
    %619 = vector.extract_strided_slice %618 {offsets = [0, 0], sizes = [4, 16], strides = [1, 1]} : vector<4x32xf32> to vector<4x16xf32>
    %c11_186 = arith.constant 11 : index
    %c0_187 = arith.constant 0 : index
    %c0_188 = arith.constant 0 : index
    %620 = vector.load %arg4[%c11_186, %c0_187, %c0_188] : memref<32x4x32xf32, #tpu.memory_space<vmem>>, vector<1x4x16xf32>
    %621 = vector.shape_cast %620 : vector<1x4x16xf32> to vector<4x16xf32>
    %622 = vector.shape_cast %619 : vector<4x16xf32> to vector<1x4x16xf32>
    tpu.vector_store %arg4[%c11_186, %c0_187, %c0_188], %622 {strides = array<i32>} : memref<32x4x32xf32, #tpu.memory_space<vmem>>, vector<1x4x16xf32>,
    %623 = vector.extract_strided_slice %618 {offsets = [0, 16], sizes = [4, 16], strides = [1, 1]} : vector<4x32xf32> to vector<4x16xf32>
    %c20 = arith.constant 20 : index
    %c0_189 = arith.constant 0 : index
    %c16_190 = arith.constant 16 : index
    %624 = vector.load %arg4[%c20, %c0_189, %c16_190] : memref<32x4x32xf32, #tpu.memory_space<vmem>>, vector<1x4x16xf32>
    %625 = vector.shape_cast %624 : vector<1x4x16xf32> to vector<4x16xf32>
    %626 = vector.shape_cast %623 : vector<4x16xf32> to vector<1x4x16xf32>
    tpu.vector_store %arg4[%c20, %c0_189, %c16_190], %626 {strides = array<i32>} : memref<32x4x32xf32, #tpu.memory_space<vmem>>, vector<1x4x16xf32>,
    %c16_191 = arith.constant 16 : index
    %c0_192 = arith.constant 0 : index
    %c0_193 = arith.constant 0 : index
    %627 = vector.load %arg1[%c16_191, %c0_192, %c0_193] : memref<40x4x96xf32, #tpu.memory_space<vmem>>, vector<1x4x96xf32>
    %628 = vector.shape_cast %627 : vector<1x4x96xf32> to vector<4x96xf32>
    %cst_194 = arith.constant dense<0.000000e+00> : vector<4x96xf32>
    %629 = tpu.matmul %618, %0, %cst_194 {dimension_numbers = #tpu.dot_dimension_numbers<[1], [0], [0], [1], [0, 0, 1, 1], [], []>} : vector<4x32xf32>, vector<32x96xf32>, vector<4x96xf32> -> vector<4x96xf32>
    %630 = vector.broadcast %1 : vector<1x96xf32> to vector<4x96xf32>
    %631 = arith.addf %629, %630 : vector<4x96xf32>
    %632 = vector.extract_strided_slice %628 {offsets = [0, 0], sizes = [4, 32], strides = [1, 1]} : vector<4x96xf32> to vector<4x32xf32>
    %633 = vector.extract_strided_slice %631 {offsets = [0, 0], sizes = [4, 32], strides = [1, 1]} : vector<4x96xf32> to vector<4x32xf32>
    %634 = arith.addf %632, %633 : vector<4x32xf32>
    %cst_195 = arith.constant 0.000000e+00 : f32
    %635 = vector.broadcast %cst_195 : f32 to vector<4x32xf32>
    %636 = arith.subf %635, %634 : vector<4x32xf32>
    %637 = math.exp %636 : vector<4x32xf32>
    %cst_196 = arith.constant 1.000000e+00 : f32
    %638 = vector.broadcast %cst_196 : f32 to vector<4x32xf32>
    %639 = arith.addf %638, %637 : vector<4x32xf32>
    %640 = tpu.reciprocal %639 {approx = true} : vector<4x32xf32> -> vector<4x32xf32>
    %641 = vector.extract_strided_slice %628 {offsets = [0, 32], sizes = [4, 32], strides = [1, 1]} : vector<4x96xf32> to vector<4x32xf32>
    %642 = vector.extract_strided_slice %631 {offsets = [0, 32], sizes = [4, 32], strides = [1, 1]} : vector<4x96xf32> to vector<4x32xf32>
    %643 = arith.addf %641, %642 : vector<4x32xf32>
    %cst_197 = arith.constant 0.000000e+00 : f32
    %644 = vector.broadcast %cst_197 : f32 to vector<4x32xf32>
    %645 = arith.subf %644, %643 : vector<4x32xf32>
    %646 = math.exp %645 : vector<4x32xf32>
    %cst_198 = arith.constant 1.000000e+00 : f32
    %647 = vector.broadcast %cst_198 : f32 to vector<4x32xf32>
    %648 = arith.addf %647, %646 : vector<4x32xf32>
    %649 = tpu.reciprocal %648 {approx = true} : vector<4x32xf32> -> vector<4x32xf32>
    %650 = vector.extract_strided_slice %628 {offsets = [0, 64], sizes = [4, 32], strides = [1, 1]} : vector<4x96xf32> to vector<4x32xf32>
    %651 = vector.extract_strided_slice %631 {offsets = [0, 64], sizes = [4, 32], strides = [1, 1]} : vector<4x96xf32> to vector<4x32xf32>
    %652 = arith.mulf %640, %651 : vector<4x32xf32>
    %653 = arith.addf %650, %652 : vector<4x32xf32>
    %654 = math.tanh %653 : vector<4x32xf32>
    %cst_199 = arith.constant 1.000000e+00 : f32
    %655 = vector.broadcast %cst_199 : f32 to vector<4x32xf32>
    %656 = arith.subf %655, %649 : vector<4x32xf32>
    %657 = arith.mulf %656, %654 : vector<4x32xf32>
    %658 = arith.mulf %649, %618 : vector<4x32xf32>
    %659 = arith.addf %657, %658 : vector<4x32xf32>
    %660 = vector.extract_strided_slice %659 {offsets = [0, 0], sizes = [4, 16], strides = [1, 1]} : vector<4x32xf32> to vector<4x16xf32>
    %c12_200 = arith.constant 12 : index
    %c0_201 = arith.constant 0 : index
    %c0_202 = arith.constant 0 : index
    %661 = vector.load %arg4[%c12_200, %c0_201, %c0_202] : memref<32x4x32xf32, #tpu.memory_space<vmem>>, vector<1x4x16xf32>
    %662 = vector.shape_cast %661 : vector<1x4x16xf32> to vector<4x16xf32>
    %663 = vector.shape_cast %660 : vector<4x16xf32> to vector<1x4x16xf32>
    tpu.vector_store %arg4[%c12_200, %c0_201, %c0_202], %663 {strides = array<i32>} : memref<32x4x32xf32, #tpu.memory_space<vmem>>, vector<1x4x16xf32>,
    %664 = vector.extract_strided_slice %659 {offsets = [0, 16], sizes = [4, 16], strides = [1, 1]} : vector<4x32xf32> to vector<4x16xf32>
    %c19 = arith.constant 19 : index
    %c0_203 = arith.constant 0 : index
    %c16_204 = arith.constant 16 : index
    %665 = vector.load %arg4[%c19, %c0_203, %c16_204] : memref<32x4x32xf32, #tpu.memory_space<vmem>>, vector<1x4x16xf32>
    %666 = vector.shape_cast %665 : vector<1x4x16xf32> to vector<4x16xf32>
    %667 = vector.shape_cast %664 : vector<4x16xf32> to vector<1x4x16xf32>
    tpu.vector_store %arg4[%c19, %c0_203, %c16_204], %667 {strides = array<i32>} : memref<32x4x32xf32, #tpu.memory_space<vmem>>, vector<1x4x16xf32>,
    %c17 = arith.constant 17 : index
    %c0_205 = arith.constant 0 : index
    %c0_206 = arith.constant 0 : index
    %668 = vector.load %arg1[%c17, %c0_205, %c0_206] : memref<40x4x96xf32, #tpu.memory_space<vmem>>, vector<1x4x96xf32>
    %669 = vector.shape_cast %668 : vector<1x4x96xf32> to vector<4x96xf32>
    %cst_207 = arith.constant dense<0.000000e+00> : vector<4x96xf32>
    %670 = tpu.matmul %659, %0, %cst_207 {dimension_numbers = #tpu.dot_dimension_numbers<[1], [0], [0], [1], [0, 0, 1, 1], [], []>} : vector<4x32xf32>, vector<32x96xf32>, vector<4x96xf32> -> vector<4x96xf32>
    %671 = vector.broadcast %1 : vector<1x96xf32> to vector<4x96xf32>
    %672 = arith.addf %670, %671 : vector<4x96xf32>
    %673 = vector.extract_strided_slice %669 {offsets = [0, 0], sizes = [4, 32], strides = [1, 1]} : vector<4x96xf32> to vector<4x32xf32>
    %674 = vector.extract_strided_slice %672 {offsets = [0, 0], sizes = [4, 32], strides = [1, 1]} : vector<4x96xf32> to vector<4x32xf32>
    %675 = arith.addf %673, %674 : vector<4x32xf32>
    %cst_208 = arith.constant 0.000000e+00 : f32
    %676 = vector.broadcast %cst_208 : f32 to vector<4x32xf32>
    %677 = arith.subf %676, %675 : vector<4x32xf32>
    %678 = math.exp %677 : vector<4x32xf32>
    %cst_209 = arith.constant 1.000000e+00 : f32
    %679 = vector.broadcast %cst_209 : f32 to vector<4x32xf32>
    %680 = arith.addf %679, %678 : vector<4x32xf32>
    %681 = tpu.reciprocal %680 {approx = true} : vector<4x32xf32> -> vector<4x32xf32>
    %682 = vector.extract_strided_slice %669 {offsets = [0, 32], sizes = [4, 32], strides = [1, 1]} : vector<4x96xf32> to vector<4x32xf32>
    %683 = vector.extract_strided_slice %672 {offsets = [0, 32], sizes = [4, 32], strides = [1, 1]} : vector<4x96xf32> to vector<4x32xf32>
    %684 = arith.addf %682, %683 : vector<4x32xf32>
    %cst_210 = arith.constant 0.000000e+00 : f32
    %685 = vector.broadcast %cst_210 : f32 to vector<4x32xf32>
    %686 = arith.subf %685, %684 : vector<4x32xf32>
    %687 = math.exp %686 : vector<4x32xf32>
    %cst_211 = arith.constant 1.000000e+00 : f32
    %688 = vector.broadcast %cst_211 : f32 to vector<4x32xf32>
    %689 = arith.addf %688, %687 : vector<4x32xf32>
    %690 = tpu.reciprocal %689 {approx = true} : vector<4x32xf32> -> vector<4x32xf32>
    %691 = vector.extract_strided_slice %669 {offsets = [0, 64], sizes = [4, 32], strides = [1, 1]} : vector<4x96xf32> to vector<4x32xf32>
    %692 = vector.extract_strided_slice %672 {offsets = [0, 64], sizes = [4, 32], strides = [1, 1]} : vector<4x96xf32> to vector<4x32xf32>
    %693 = arith.mulf %681, %692 : vector<4x32xf32>
    %694 = arith.addf %691, %693 : vector<4x32xf32>
    %695 = math.tanh %694 : vector<4x32xf32>
    %cst_212 = arith.constant 1.000000e+00 : f32
    %696 = vector.broadcast %cst_212 : f32 to vector<4x32xf32>
    %697 = arith.subf %696, %690 : vector<4x32xf32>
    %698 = arith.mulf %697, %695 : vector<4x32xf32>
    %699 = arith.mulf %690, %659 : vector<4x32xf32>
    %700 = arith.addf %698, %699 : vector<4x32xf32>
    %701 = vector.extract_strided_slice %700 {offsets = [0, 0], sizes = [4, 16], strides = [1, 1]} : vector<4x32xf32> to vector<4x16xf32>
    %c13_213 = arith.constant 13 : index
    %c0_214 = arith.constant 0 : index
    %c0_215 = arith.constant 0 : index
    %702 = vector.load %arg4[%c13_213, %c0_214, %c0_215] : memref<32x4x32xf32, #tpu.memory_space<vmem>>, vector<1x4x16xf32>
    %703 = vector.shape_cast %702 : vector<1x4x16xf32> to vector<4x16xf32>
    %704 = vector.shape_cast %701 : vector<4x16xf32> to vector<1x4x16xf32>
    tpu.vector_store %arg4[%c13_213, %c0_214, %c0_215], %704 {strides = array<i32>} : memref<32x4x32xf32, #tpu.memory_space<vmem>>, vector<1x4x16xf32>,
    %705 = vector.extract_strided_slice %700 {offsets = [0, 16], sizes = [4, 16], strides = [1, 1]} : vector<4x32xf32> to vector<4x16xf32>
    %c18 = arith.constant 18 : index
    %c0_216 = arith.constant 0 : index
    %c16_217 = arith.constant 16 : index
    %706 = vector.load %arg4[%c18, %c0_216, %c16_217] : memref<32x4x32xf32, #tpu.memory_space<vmem>>, vector<1x4x16xf32>
    %707 = vector.shape_cast %706 : vector<1x4x16xf32> to vector<4x16xf32>
    %708 = vector.shape_cast %705 : vector<4x16xf32> to vector<1x4x16xf32>
    tpu.vector_store %arg4[%c18, %c0_216, %c16_217], %708 {strides = array<i32>} : memref<32x4x32xf32, #tpu.memory_space<vmem>>, vector<1x4x16xf32>,
    %c18_218 = arith.constant 18 : index
    %c0_219 = arith.constant 0 : index
    %c0_220 = arith.constant 0 : index
    %709 = vector.load %arg1[%c18_218, %c0_219, %c0_220] : memref<40x4x96xf32, #tpu.memory_space<vmem>>, vector<1x4x96xf32>
    %710 = vector.shape_cast %709 : vector<1x4x96xf32> to vector<4x96xf32>
    %cst_221 = arith.constant dense<0.000000e+00> : vector<4x96xf32>
    %711 = tpu.matmul %700, %0, %cst_221 {dimension_numbers = #tpu.dot_dimension_numbers<[1], [0], [0], [1], [0, 0, 1, 1], [], []>} : vector<4x32xf32>, vector<32x96xf32>, vector<4x96xf32> -> vector<4x96xf32>
    %712 = vector.broadcast %1 : vector<1x96xf32> to vector<4x96xf32>
    %713 = arith.addf %711, %712 : vector<4x96xf32>
    %714 = vector.extract_strided_slice %710 {offsets = [0, 0], sizes = [4, 32], strides = [1, 1]} : vector<4x96xf32> to vector<4x32xf32>
    %715 = vector.extract_strided_slice %713 {offsets = [0, 0], sizes = [4, 32], strides = [1, 1]} : vector<4x96xf32> to vector<4x32xf32>
    %716 = arith.addf %714, %715 : vector<4x32xf32>
    %cst_222 = arith.constant 0.000000e+00 : f32
    %717 = vector.broadcast %cst_222 : f32 to vector<4x32xf32>
    %718 = arith.subf %717, %716 : vector<4x32xf32>
    %719 = math.exp %718 : vector<4x32xf32>
    %cst_223 = arith.constant 1.000000e+00 : f32
    %720 = vector.broadcast %cst_223 : f32 to vector<4x32xf32>
    %721 = arith.addf %720, %719 : vector<4x32xf32>
    %722 = tpu.reciprocal %721 {approx = true} : vector<4x32xf32> -> vector<4x32xf32>
    %723 = vector.extract_strided_slice %710 {offsets = [0, 32], sizes = [4, 32], strides = [1, 1]} : vector<4x96xf32> to vector<4x32xf32>
    %724 = vector.extract_strided_slice %713 {offsets = [0, 32], sizes = [4, 32], strides = [1, 1]} : vector<4x96xf32> to vector<4x32xf32>
    %725 = arith.addf %723, %724 : vector<4x32xf32>
    %cst_224 = arith.constant 0.000000e+00 : f32
    %726 = vector.broadcast %cst_224 : f32 to vector<4x32xf32>
    %727 = arith.subf %726, %725 : vector<4x32xf32>
    %728 = math.exp %727 : vector<4x32xf32>
    %cst_225 = arith.constant 1.000000e+00 : f32
    %729 = vector.broadcast %cst_225 : f32 to vector<4x32xf32>
    %730 = arith.addf %729, %728 : vector<4x32xf32>
    %731 = tpu.reciprocal %730 {approx = true} : vector<4x32xf32> -> vector<4x32xf32>
    %732 = vector.extract_strided_slice %710 {offsets = [0, 64], sizes = [4, 32], strides = [1, 1]} : vector<4x96xf32> to vector<4x32xf32>
    %733 = vector.extract_strided_slice %713 {offsets = [0, 64], sizes = [4, 32], strides = [1, 1]} : vector<4x96xf32> to vector<4x32xf32>
    %734 = arith.mulf %722, %733 : vector<4x32xf32>
    %735 = arith.addf %732, %734 : vector<4x32xf32>
    %736 = math.tanh %735 : vector<4x32xf32>
    %cst_226 = arith.constant 1.000000e+00 : f32
    %737 = vector.broadcast %cst_226 : f32 to vector<4x32xf32>
    %738 = arith.subf %737, %731 : vector<4x32xf32>
    %739 = arith.mulf %738, %736 : vector<4x32xf32>
    %740 = arith.mulf %731, %700 : vector<4x32xf32>
    %741 = arith.addf %739, %740 : vector<4x32xf32>
    %742 = vector.extract_strided_slice %741 {offsets = [0, 0], sizes = [4, 16], strides = [1, 1]} : vector<4x32xf32> to vector<4x16xf32>
    %c14_227 = arith.constant 14 : index
    %c0_228 = arith.constant 0 : index
    %c0_229 = arith.constant 0 : index
    %743 = vector.load %arg4[%c14_227, %c0_228, %c0_229] : memref<32x4x32xf32, #tpu.memory_space<vmem>>, vector<1x4x16xf32>
    %744 = vector.shape_cast %743 : vector<1x4x16xf32> to vector<4x16xf32>
    %745 = vector.shape_cast %742 : vector<4x16xf32> to vector<1x4x16xf32>
    tpu.vector_store %arg4[%c14_227, %c0_228, %c0_229], %745 {strides = array<i32>} : memref<32x4x32xf32, #tpu.memory_space<vmem>>, vector<1x4x16xf32>,
    %746 = vector.extract_strided_slice %741 {offsets = [0, 16], sizes = [4, 16], strides = [1, 1]} : vector<4x32xf32> to vector<4x16xf32>
    %c17_230 = arith.constant 17 : index
    %c0_231 = arith.constant 0 : index
    %c16_232 = arith.constant 16 : index
    %747 = vector.load %arg4[%c17_230, %c0_231, %c16_232] : memref<32x4x32xf32, #tpu.memory_space<vmem>>, vector<1x4x16xf32>
    %748 = vector.shape_cast %747 : vector<1x4x16xf32> to vector<4x16xf32>
    %749 = vector.shape_cast %746 : vector<4x16xf32> to vector<1x4x16xf32>
    tpu.vector_store %arg4[%c17_230, %c0_231, %c16_232], %749 {strides = array<i32>} : memref<32x4x32xf32, #tpu.memory_space<vmem>>, vector<1x4x16xf32>,
    %c19_233 = arith.constant 19 : index
    %c0_234 = arith.constant 0 : index
    %c0_235 = arith.constant 0 : index
    %750 = vector.load %arg1[%c19_233, %c0_234, %c0_235] : memref<40x4x96xf32, #tpu.memory_space<vmem>>, vector<1x4x96xf32>
    %751 = vector.shape_cast %750 : vector<1x4x96xf32> to vector<4x96xf32>
    %cst_236 = arith.constant dense<0.000000e+00> : vector<4x96xf32>
    %752 = tpu.matmul %741, %0, %cst_236 {dimension_numbers = #tpu.dot_dimension_numbers<[1], [0], [0], [1], [0, 0, 1, 1], [], []>} : vector<4x32xf32>, vector<32x96xf32>, vector<4x96xf32> -> vector<4x96xf32>
    %753 = vector.broadcast %1 : vector<1x96xf32> to vector<4x96xf32>
    %754 = arith.addf %752, %753 : vector<4x96xf32>
    %755 = vector.extract_strided_slice %751 {offsets = [0, 0], sizes = [4, 32], strides = [1, 1]} : vector<4x96xf32> to vector<4x32xf32>
    %756 = vector.extract_strided_slice %754 {offsets = [0, 0], sizes = [4, 32], strides = [1, 1]} : vector<4x96xf32> to vector<4x32xf32>
    %757 = arith.addf %755, %756 : vector<4x32xf32>
    %cst_237 = arith.constant 0.000000e+00 : f32
    %758 = vector.broadcast %cst_237 : f32 to vector<4x32xf32>
    %759 = arith.subf %758, %757 : vector<4x32xf32>
    %760 = math.exp %759 : vector<4x32xf32>
    %cst_238 = arith.constant 1.000000e+00 : f32
    %761 = vector.broadcast %cst_238 : f32 to vector<4x32xf32>
    %762 = arith.addf %761, %760 : vector<4x32xf32>
    %763 = tpu.reciprocal %762 {approx = true} : vector<4x32xf32> -> vector<4x32xf32>
    %764 = vector.extract_strided_slice %751 {offsets = [0, 32], sizes = [4, 32], strides = [1, 1]} : vector<4x96xf32> to vector<4x32xf32>
    %765 = vector.extract_strided_slice %754 {offsets = [0, 32], sizes = [4, 32], strides = [1, 1]} : vector<4x96xf32> to vector<4x32xf32>
    %766 = arith.addf %764, %765 : vector<4x32xf32>
    %cst_239 = arith.constant 0.000000e+00 : f32
    %767 = vector.broadcast %cst_239 : f32 to vector<4x32xf32>
    %768 = arith.subf %767, %766 : vector<4x32xf32>
    %769 = math.exp %768 : vector<4x32xf32>
    %cst_240 = arith.constant 1.000000e+00 : f32
    %770 = vector.broadcast %cst_240 : f32 to vector<4x32xf32>
    %771 = arith.addf %770, %769 : vector<4x32xf32>
    %772 = tpu.reciprocal %771 {approx = true} : vector<4x32xf32> -> vector<4x32xf32>
    %773 = vector.extract_strided_slice %751 {offsets = [0, 64], sizes = [4, 32], strides = [1, 1]} : vector<4x96xf32> to vector<4x32xf32>
    %774 = vector.extract_strided_slice %754 {offsets = [0, 64], sizes = [4, 32], strides = [1, 1]} : vector<4x96xf32> to vector<4x32xf32>
    %775 = arith.mulf %763, %774 : vector<4x32xf32>
    %776 = arith.addf %773, %775 : vector<4x32xf32>
    %777 = math.tanh %776 : vector<4x32xf32>
    %cst_241 = arith.constant 1.000000e+00 : f32
    %778 = vector.broadcast %cst_241 : f32 to vector<4x32xf32>
    %779 = arith.subf %778, %772 : vector<4x32xf32>
    %780 = arith.mulf %779, %777 : vector<4x32xf32>
    %781 = arith.mulf %772, %741 : vector<4x32xf32>
    %782 = arith.addf %780, %781 : vector<4x32xf32>
    %783 = vector.extract_strided_slice %782 {offsets = [0, 0], sizes = [4, 16], strides = [1, 1]} : vector<4x32xf32> to vector<4x16xf32>
    %c15_242 = arith.constant 15 : index
    %c0_243 = arith.constant 0 : index
    %c0_244 = arith.constant 0 : index
    %784 = vector.load %arg4[%c15_242, %c0_243, %c0_244] : memref<32x4x32xf32, #tpu.memory_space<vmem>>, vector<1x4x16xf32>
    %785 = vector.shape_cast %784 : vector<1x4x16xf32> to vector<4x16xf32>
    %786 = vector.shape_cast %783 : vector<4x16xf32> to vector<1x4x16xf32>
    tpu.vector_store %arg4[%c15_242, %c0_243, %c0_244], %786 {strides = array<i32>} : memref<32x4x32xf32, #tpu.memory_space<vmem>>, vector<1x4x16xf32>,
    %787 = vector.extract_strided_slice %782 {offsets = [0, 16], sizes = [4, 16], strides = [1, 1]} : vector<4x32xf32> to vector<4x16xf32>
    %c16_245 = arith.constant 16 : index
    %c0_246 = arith.constant 0 : index
    %c16_247 = arith.constant 16 : index
    %788 = vector.load %arg4[%c16_245, %c0_246, %c16_247] : memref<32x4x32xf32, #tpu.memory_space<vmem>>, vector<1x4x16xf32>
    %789 = vector.shape_cast %788 : vector<1x4x16xf32> to vector<4x16xf32>
    %790 = vector.shape_cast %787 : vector<4x16xf32> to vector<1x4x16xf32>
    tpu.vector_store %arg4[%c16_245, %c0_246, %c16_247], %790 {strides = array<i32>} : memref<32x4x32xf32, #tpu.memory_space<vmem>>, vector<1x4x16xf32>,
    %c20_248 = arith.constant 20 : index
    %c0_249 = arith.constant 0 : index
    %c0_250 = arith.constant 0 : index
    %791 = vector.load %arg1[%c20_248, %c0_249, %c0_250] : memref<40x4x96xf32, #tpu.memory_space<vmem>>, vector<1x4x96xf32>
    %792 = vector.shape_cast %791 : vector<1x4x96xf32> to vector<4x96xf32>
    %cst_251 = arith.constant dense<0.000000e+00> : vector<4x96xf32>
    %793 = tpu.matmul %782, %0, %cst_251 {dimension_numbers = #tpu.dot_dimension_numbers<[1], [0], [0], [1], [0, 0, 1, 1], [], []>} : vector<4x32xf32>, vector<32x96xf32>, vector<4x96xf32> -> vector<4x96xf32>
    %794 = vector.broadcast %1 : vector<1x96xf32> to vector<4x96xf32>
    %795 = arith.addf %793, %794 : vector<4x96xf32>
    %796 = vector.extract_strided_slice %792 {offsets = [0, 0], sizes = [4, 32], strides = [1, 1]} : vector<4x96xf32> to vector<4x32xf32>
    %797 = vector.extract_strided_slice %795 {offsets = [0, 0], sizes = [4, 32], strides = [1, 1]} : vector<4x96xf32> to vector<4x32xf32>
    %798 = arith.addf %796, %797 : vector<4x32xf32>
    %cst_252 = arith.constant 0.000000e+00 : f32
    %799 = vector.broadcast %cst_252 : f32 to vector<4x32xf32>
    %800 = arith.subf %799, %798 : vector<4x32xf32>
    %801 = math.exp %800 : vector<4x32xf32>
    %cst_253 = arith.constant 1.000000e+00 : f32
    %802 = vector.broadcast %cst_253 : f32 to vector<4x32xf32>
    %803 = arith.addf %802, %801 : vector<4x32xf32>
    %804 = tpu.reciprocal %803 {approx = true} : vector<4x32xf32> -> vector<4x32xf32>
    %805 = vector.extract_strided_slice %792 {offsets = [0, 32], sizes = [4, 32], strides = [1, 1]} : vector<4x96xf32> to vector<4x32xf32>
    %806 = vector.extract_strided_slice %795 {offsets = [0, 32], sizes = [4, 32], strides = [1, 1]} : vector<4x96xf32> to vector<4x32xf32>
    %807 = arith.addf %805, %806 : vector<4x32xf32>
    %cst_254 = arith.constant 0.000000e+00 : f32
    %808 = vector.broadcast %cst_254 : f32 to vector<4x32xf32>
    %809 = arith.subf %808, %807 : vector<4x32xf32>
    %810 = math.exp %809 : vector<4x32xf32>
    %cst_255 = arith.constant 1.000000e+00 : f32
    %811 = vector.broadcast %cst_255 : f32 to vector<4x32xf32>
    %812 = arith.addf %811, %810 : vector<4x32xf32>
    %813 = tpu.reciprocal %812 {approx = true} : vector<4x32xf32> -> vector<4x32xf32>
    %814 = vector.extract_strided_slice %792 {offsets = [0, 64], sizes = [4, 32], strides = [1, 1]} : vector<4x96xf32> to vector<4x32xf32>
    %815 = vector.extract_strided_slice %795 {offsets = [0, 64], sizes = [4, 32], strides = [1, 1]} : vector<4x96xf32> to vector<4x32xf32>
    %816 = arith.mulf %804, %815 : vector<4x32xf32>
    %817 = arith.addf %814, %816 : vector<4x32xf32>
    %818 = math.tanh %817 : vector<4x32xf32>
    %cst_256 = arith.constant 1.000000e+00 : f32
    %819 = vector.broadcast %cst_256 : f32 to vector<4x32xf32>
    %820 = arith.subf %819, %813 : vector<4x32xf32>
    %821 = arith.mulf %820, %818 : vector<4x32xf32>
    %822 = arith.mulf %813, %782 : vector<4x32xf32>
    %823 = arith.addf %821, %822 : vector<4x32xf32>
    %824 = vector.extract_strided_slice %823 {offsets = [0, 0], sizes = [4, 16], strides = [1, 1]} : vector<4x32xf32> to vector<4x16xf32>
    %c16_257 = arith.constant 16 : index
    %c0_258 = arith.constant 0 : index
    %c0_259 = arith.constant 0 : index
    %825 = vector.load %arg4[%c16_257, %c0_258, %c0_259] : memref<32x4x32xf32, #tpu.memory_space<vmem>>, vector<1x4x16xf32>
    %826 = vector.shape_cast %825 : vector<1x4x16xf32> to vector<4x16xf32>
    %827 = vector.shape_cast %824 : vector<4x16xf32> to vector<1x4x16xf32>
    tpu.vector_store %arg4[%c16_257, %c0_258, %c0_259], %827 {strides = array<i32>} : memref<32x4x32xf32, #tpu.memory_space<vmem>>, vector<1x4x16xf32>,
    %828 = vector.extract_strided_slice %823 {offsets = [0, 16], sizes = [4, 16], strides = [1, 1]} : vector<4x32xf32> to vector<4x16xf32>
    %c15_260 = arith.constant 15 : index
    %c0_261 = arith.constant 0 : index
    %c16_262 = arith.constant 16 : index
    %829 = vector.load %arg4[%c15_260, %c0_261, %c16_262] : memref<32x4x32xf32, #tpu.memory_space<vmem>>, vector<1x4x16xf32>
    %830 = vector.shape_cast %829 : vector<1x4x16xf32> to vector<4x16xf32>
    %831 = vector.shape_cast %828 : vector<4x16xf32> to vector<1x4x16xf32>
    tpu.vector_store %arg4[%c15_260, %c0_261, %c16_262], %831 {strides = array<i32>} : memref<32x4x32xf32, #tpu.memory_space<vmem>>, vector<1x4x16xf32>,
    %c21_263 = arith.constant 21 : index
    %c0_264 = arith.constant 0 : index
    %c0_265 = arith.constant 0 : index
    %832 = vector.load %arg1[%c21_263, %c0_264, %c0_265] : memref<40x4x96xf32, #tpu.memory_space<vmem>>, vector<1x4x96xf32>
    %833 = vector.shape_cast %832 : vector<1x4x96xf32> to vector<4x96xf32>
    %cst_266 = arith.constant dense<0.000000e+00> : vector<4x96xf32>
    %834 = tpu.matmul %823, %0, %cst_266 {dimension_numbers = #tpu.dot_dimension_numbers<[1], [0], [0], [1], [0, 0, 1, 1], [], []>} : vector<4x32xf32>, vector<32x96xf32>, vector<4x96xf32> -> vector<4x96xf32>
    %835 = vector.broadcast %1 : vector<1x96xf32> to vector<4x96xf32>
    %836 = arith.addf %834, %835 : vector<4x96xf32>
    %837 = vector.extract_strided_slice %833 {offsets = [0, 0], sizes = [4, 32], strides = [1, 1]} : vector<4x96xf32> to vector<4x32xf32>
    %838 = vector.extract_strided_slice %836 {offsets = [0, 0], sizes = [4, 32], strides = [1, 1]} : vector<4x96xf32> to vector<4x32xf32>
    %839 = arith.addf %837, %838 : vector<4x32xf32>
    %cst_267 = arith.constant 0.000000e+00 : f32
    %840 = vector.broadcast %cst_267 : f32 to vector<4x32xf32>
    %841 = arith.subf %840, %839 : vector<4x32xf32>
    %842 = math.exp %841 : vector<4x32xf32>
    %cst_268 = arith.constant 1.000000e+00 : f32
    %843 = vector.broadcast %cst_268 : f32 to vector<4x32xf32>
    %844 = arith.addf %843, %842 : vector<4x32xf32>
    %845 = tpu.reciprocal %844 {approx = true} : vector<4x32xf32> -> vector<4x32xf32>
    %846 = vector.extract_strided_slice %833 {offsets = [0, 32], sizes = [4, 32], strides = [1, 1]} : vector<4x96xf32> to vector<4x32xf32>
    %847 = vector.extract_strided_slice %836 {offsets = [0, 32], sizes = [4, 32], strides = [1, 1]} : vector<4x96xf32> to vector<4x32xf32>
    %848 = arith.addf %846, %847 : vector<4x32xf32>
    %cst_269 = arith.constant 0.000000e+00 : f32
    %849 = vector.broadcast %cst_269 : f32 to vector<4x32xf32>
    %850 = arith.subf %849, %848 : vector<4x32xf32>
    %851 = math.exp %850 : vector<4x32xf32>
    %cst_270 = arith.constant 1.000000e+00 : f32
    %852 = vector.broadcast %cst_270 : f32 to vector<4x32xf32>
    %853 = arith.addf %852, %851 : vector<4x32xf32>
    %854 = tpu.reciprocal %853 {approx = true} : vector<4x32xf32> -> vector<4x32xf32>
    %855 = vector.extract_strided_slice %833 {offsets = [0, 64], sizes = [4, 32], strides = [1, 1]} : vector<4x96xf32> to vector<4x32xf32>
    %856 = vector.extract_strided_slice %836 {offsets = [0, 64], sizes = [4, 32], strides = [1, 1]} : vector<4x96xf32> to vector<4x32xf32>
    %857 = arith.mulf %845, %856 : vector<4x32xf32>
    %858 = arith.addf %855, %857 : vector<4x32xf32>
    %859 = math.tanh %858 : vector<4x32xf32>
    %cst_271 = arith.constant 1.000000e+00 : f32
    %860 = vector.broadcast %cst_271 : f32 to vector<4x32xf32>
    %861 = arith.subf %860, %854 : vector<4x32xf32>
    %862 = arith.mulf %861, %859 : vector<4x32xf32>
    %863 = arith.mulf %854, %823 : vector<4x32xf32>
    %864 = arith.addf %862, %863 : vector<4x32xf32>
    %865 = vector.extract_strided_slice %864 {offsets = [0, 0], sizes = [4, 16], strides = [1, 1]} : vector<4x32xf32> to vector<4x16xf32>
    %c17_272 = arith.constant 17 : index
    %c0_273 = arith.constant 0 : index
    %c0_274 = arith.constant 0 : index
    %866 = vector.load %arg4[%c17_272, %c0_273, %c0_274] : memref<32x4x32xf32, #tpu.memory_space<vmem>>, vector<1x4x16xf32>
    %867 = vector.shape_cast %866 : vector<1x4x16xf32> to vector<4x16xf32>
    %868 = vector.shape_cast %865 : vector<4x16xf32> to vector<1x4x16xf32>
    tpu.vector_store %arg4[%c17_272, %c0_273, %c0_274], %868 {strides = array<i32>} : memref<32x4x32xf32, #tpu.memory_space<vmem>>, vector<1x4x16xf32>,
    %869 = vector.extract_strided_slice %864 {offsets = [0, 16], sizes = [4, 16], strides = [1, 1]} : vector<4x32xf32> to vector<4x16xf32>
    %c14_275 = arith.constant 14 : index
    %c0_276 = arith.constant 0 : index
    %c16_277 = arith.constant 16 : index
    %870 = vector.load %arg4[%c14_275, %c0_276, %c16_277] : memref<32x4x32xf32, #tpu.memory_space<vmem>>, vector<1x4x16xf32>
    %871 = vector.shape_cast %870 : vector<1x4x16xf32> to vector<4x16xf32>
    %872 = vector.shape_cast %869 : vector<4x16xf32> to vector<1x4x16xf32>
    tpu.vector_store %arg4[%c14_275, %c0_276, %c16_277], %872 {strides = array<i32>} : memref<32x4x32xf32, #tpu.memory_space<vmem>>, vector<1x4x16xf32>,
    %c22_278 = arith.constant 22 : index
    %c0_279 = arith.constant 0 : index
    %c0_280 = arith.constant 0 : index
    %873 = vector.load %arg1[%c22_278, %c0_279, %c0_280] : memref<40x4x96xf32, #tpu.memory_space<vmem>>, vector<1x4x96xf32>
    %874 = vector.shape_cast %873 : vector<1x4x96xf32> to vector<4x96xf32>
    %cst_281 = arith.constant dense<0.000000e+00> : vector<4x96xf32>
    %875 = tpu.matmul %864, %0, %cst_281 {dimension_numbers = #tpu.dot_dimension_numbers<[1], [0], [0], [1], [0, 0, 1, 1], [], []>} : vector<4x32xf32>, vector<32x96xf32>, vector<4x96xf32> -> vector<4x96xf32>
    %876 = vector.broadcast %1 : vector<1x96xf32> to vector<4x96xf32>
    %877 = arith.addf %875, %876 : vector<4x96xf32>
    %878 = vector.extract_strided_slice %874 {offsets = [0, 0], sizes = [4, 32], strides = [1, 1]} : vector<4x96xf32> to vector<4x32xf32>
    %879 = vector.extract_strided_slice %877 {offsets = [0, 0], sizes = [4, 32], strides = [1, 1]} : vector<4x96xf32> to vector<4x32xf32>
    %880 = arith.addf %878, %879 : vector<4x32xf32>
    %cst_282 = arith.constant 0.000000e+00 : f32
    %881 = vector.broadcast %cst_282 : f32 to vector<4x32xf32>
    %882 = arith.subf %881, %880 : vector<4x32xf32>
    %883 = math.exp %882 : vector<4x32xf32>
    %cst_283 = arith.constant 1.000000e+00 : f32
    %884 = vector.broadcast %cst_283 : f32 to vector<4x32xf32>
    %885 = arith.addf %884, %883 : vector<4x32xf32>
    %886 = tpu.reciprocal %885 {approx = true} : vector<4x32xf32> -> vector<4x32xf32>
    %887 = vector.extract_strided_slice %874 {offsets = [0, 32], sizes = [4, 32], strides = [1, 1]} : vector<4x96xf32> to vector<4x32xf32>
    %888 = vector.extract_strided_slice %877 {offsets = [0, 32], sizes = [4, 32], strides = [1, 1]} : vector<4x96xf32> to vector<4x32xf32>
    %889 = arith.addf %887, %888 : vector<4x32xf32>
    %cst_284 = arith.constant 0.000000e+00 : f32
    %890 = vector.broadcast %cst_284 : f32 to vector<4x32xf32>
    %891 = arith.subf %890, %889 : vector<4x32xf32>
    %892 = math.exp %891 : vector<4x32xf32>
    %cst_285 = arith.constant 1.000000e+00 : f32
    %893 = vector.broadcast %cst_285 : f32 to vector<4x32xf32>
    %894 = arith.addf %893, %892 : vector<4x32xf32>
    %895 = tpu.reciprocal %894 {approx = true} : vector<4x32xf32> -> vector<4x32xf32>
    %896 = vector.extract_strided_slice %874 {offsets = [0, 64], sizes = [4, 32], strides = [1, 1]} : vector<4x96xf32> to vector<4x32xf32>
    %897 = vector.extract_strided_slice %877 {offsets = [0, 64], sizes = [4, 32], strides = [1, 1]} : vector<4x96xf32> to vector<4x32xf32>
    %898 = arith.mulf %886, %897 : vector<4x32xf32>
    %899 = arith.addf %896, %898 : vector<4x32xf32>
    %900 = math.tanh %899 : vector<4x32xf32>
    %cst_286 = arith.constant 1.000000e+00 : f32
    %901 = vector.broadcast %cst_286 : f32 to vector<4x32xf32>
    %902 = arith.subf %901, %895 : vector<4x32xf32>
    %903 = arith.mulf %902, %900 : vector<4x32xf32>
    %904 = arith.mulf %895, %864 : vector<4x32xf32>
    %905 = arith.addf %903, %904 : vector<4x32xf32>
    %906 = vector.extract_strided_slice %905 {offsets = [0, 0], sizes = [4, 16], strides = [1, 1]} : vector<4x32xf32> to vector<4x16xf32>
    %c18_287 = arith.constant 18 : index
    %c0_288 = arith.constant 0 : index
    %c0_289 = arith.constant 0 : index
    %907 = vector.load %arg4[%c18_287, %c0_288, %c0_289] : memref<32x4x32xf32, #tpu.memory_space<vmem>>, vector<1x4x16xf32>
    %908 = vector.shape_cast %907 : vector<1x4x16xf32> to vector<4x16xf32>
    %909 = vector.shape_cast %906 : vector<4x16xf32> to vector<1x4x16xf32>
    tpu.vector_store %arg4[%c18_287, %c0_288, %c0_289], %909 {strides = array<i32>} : memref<32x4x32xf32, #tpu.memory_space<vmem>>, vector<1x4x16xf32>,
    %910 = vector.extract_strided_slice %905 {offsets = [0, 16], sizes = [4, 16], strides = [1, 1]} : vector<4x32xf32> to vector<4x16xf32>
    %c13_290 = arith.constant 13 : index
    %c0_291 = arith.constant 0 : index
    %c16_292 = arith.constant 16 : index
    %911 = vector.load %arg4[%c13_290, %c0_291, %c16_292] : memref<32x4x32xf32, #tpu.memory_space<vmem>>, vector<1x4x16xf32>
    %912 = vector.shape_cast %911 : vector<1x4x16xf32> to vector<4x16xf32>
    %913 = vector.shape_cast %910 : vector<4x16xf32> to vector<1x4x16xf32>
    tpu.vector_store %arg4[%c13_290, %c0_291, %c16_292], %913 {strides = array<i32>} : memref<32x4x32xf32, #tpu.memory_space<vmem>>, vector<1x4x16xf32>,
    %c23_293 = arith.constant 23 : index
    %c0_294 = arith.constant 0 : index
    %c0_295 = arith.constant 0 : index
    %914 = vector.load %arg1[%c23_293, %c0_294, %c0_295] : memref<40x4x96xf32, #tpu.memory_space<vmem>>, vector<1x4x96xf32>
    %915 = vector.shape_cast %914 : vector<1x4x96xf32> to vector<4x96xf32>
    %cst_296 = arith.constant dense<0.000000e+00> : vector<4x96xf32>
    %916 = tpu.matmul %905, %0, %cst_296 {dimension_numbers = #tpu.dot_dimension_numbers<[1], [0], [0], [1], [0, 0, 1, 1], [], []>} : vector<4x32xf32>, vector<32x96xf32>, vector<4x96xf32> -> vector<4x96xf32>
    %917 = vector.broadcast %1 : vector<1x96xf32> to vector<4x96xf32>
    %918 = arith.addf %916, %917 : vector<4x96xf32>
    %919 = vector.extract_strided_slice %915 {offsets = [0, 0], sizes = [4, 32], strides = [1, 1]} : vector<4x96xf32> to vector<4x32xf32>
    %920 = vector.extract_strided_slice %918 {offsets = [0, 0], sizes = [4, 32], strides = [1, 1]} : vector<4x96xf32> to vector<4x32xf32>
    %921 = arith.addf %919, %920 : vector<4x32xf32>
    %cst_297 = arith.constant 0.000000e+00 : f32
    %922 = vector.broadcast %cst_297 : f32 to vector<4x32xf32>
    %923 = arith.subf %922, %921 : vector<4x32xf32>
    %924 = math.exp %923 : vector<4x32xf32>
    %cst_298 = arith.constant 1.000000e+00 : f32
    %925 = vector.broadcast %cst_298 : f32 to vector<4x32xf32>
    %926 = arith.addf %925, %924 : vector<4x32xf32>
    %927 = tpu.reciprocal %926 {approx = true} : vector<4x32xf32> -> vector<4x32xf32>
    %928 = vector.extract_strided_slice %915 {offsets = [0, 32], sizes = [4, 32], strides = [1, 1]} : vector<4x96xf32> to vector<4x32xf32>
    %929 = vector.extract_strided_slice %918 {offsets = [0, 32], sizes = [4, 32], strides = [1, 1]} : vector<4x96xf32> to vector<4x32xf32>
    %930 = arith.addf %928, %929 : vector<4x32xf32>
    %cst_299 = arith.constant 0.000000e+00 : f32
    %931 = vector.broadcast %cst_299 : f32 to vector<4x32xf32>
    %932 = arith.subf %931, %930 : vector<4x32xf32>
    %933 = math.exp %932 : vector<4x32xf32>
    %cst_300 = arith.constant 1.000000e+00 : f32
    %934 = vector.broadcast %cst_300 : f32 to vector<4x32xf32>
    %935 = arith.addf %934, %933 : vector<4x32xf32>
    %936 = tpu.reciprocal %935 {approx = true} : vector<4x32xf32> -> vector<4x32xf32>
    %937 = vector.extract_strided_slice %915 {offsets = [0, 64], sizes = [4, 32], strides = [1, 1]} : vector<4x96xf32> to vector<4x32xf32>
    %938 = vector.extract_strided_slice %918 {offsets = [0, 64], sizes = [4, 32], strides = [1, 1]} : vector<4x96xf32> to vector<4x32xf32>
    %939 = arith.mulf %927, %938 : vector<4x32xf32>
    %940 = arith.addf %937, %939 : vector<4x32xf32>
    %941 = math.tanh %940 : vector<4x32xf32>
    %cst_301 = arith.constant 1.000000e+00 : f32
    %942 = vector.broadcast %cst_301 : f32 to vector<4x32xf32>
    %943 = arith.subf %942, %936 : vector<4x32xf32>
    %944 = arith.mulf %943, %941 : vector<4x32xf32>
    %945 = arith.mulf %936, %905 : vector<4x32xf32>
    %946 = arith.addf %944, %945 : vector<4x32xf32>
    %947 = vector.extract_strided_slice %946 {offsets = [0, 0], sizes = [4, 16], strides = [1, 1]} : vector<4x32xf32> to vector<4x16xf32>
    %c19_302 = arith.constant 19 : index
    %c0_303 = arith.constant 0 : index
    %c0_304 = arith.constant 0 : index
    %948 = vector.load %arg4[%c19_302, %c0_303, %c0_304] : memref<32x4x32xf32, #tpu.memory_space<vmem>>, vector<1x4x16xf32>
    %949 = vector.shape_cast %948 : vector<1x4x16xf32> to vector<4x16xf32>
    %950 = vector.shape_cast %947 : vector<4x16xf32> to vector<1x4x16xf32>
    tpu.vector_store %arg4[%c19_302, %c0_303, %c0_304], %950 {strides = array<i32>} : memref<32x4x32xf32, #tpu.memory_space<vmem>>, vector<1x4x16xf32>,
    %951 = vector.extract_strided_slice %946 {offsets = [0, 16], sizes = [4, 16], strides = [1, 1]} : vector<4x32xf32> to vector<4x16xf32>
    %c12_305 = arith.constant 12 : index
    %c0_306 = arith.constant 0 : index
    %c16_307 = arith.constant 16 : index
    %952 = vector.load %arg4[%c12_305, %c0_306, %c16_307] : memref<32x4x32xf32, #tpu.memory_space<vmem>>, vector<1x4x16xf32>
    %953 = vector.shape_cast %952 : vector<1x4x16xf32> to vector<4x16xf32>
    %954 = vector.shape_cast %951 : vector<4x16xf32> to vector<1x4x16xf32>
    tpu.vector_store %arg4[%c12_305, %c0_306, %c16_307], %954 {strides = array<i32>} : memref<32x4x32xf32, #tpu.memory_space<vmem>>, vector<1x4x16xf32>,
    %c24_308 = arith.constant 24 : index
    %c0_309 = arith.constant 0 : index
    %c0_310 = arith.constant 0 : index
    %955 = vector.load %arg1[%c24_308, %c0_309, %c0_310] : memref<40x4x96xf32, #tpu.memory_space<vmem>>, vector<1x4x96xf32>
    %956 = vector.shape_cast %955 : vector<1x4x96xf32> to vector<4x96xf32>
    %cst_311 = arith.constant dense<0.000000e+00> : vector<4x96xf32>
    %957 = tpu.matmul %946, %0, %cst_311 {dimension_numbers = #tpu.dot_dimension_numbers<[1], [0], [0], [1], [0, 0, 1, 1], [], []>} : vector<4x32xf32>, vector<32x96xf32>, vector<4x96xf32> -> vector<4x96xf32>
    %958 = vector.broadcast %1 : vector<1x96xf32> to vector<4x96xf32>
    %959 = arith.addf %957, %958 : vector<4x96xf32>
    %960 = vector.extract_strided_slice %956 {offsets = [0, 0], sizes = [4, 32], strides = [1, 1]} : vector<4x96xf32> to vector<4x32xf32>
    %961 = vector.extract_strided_slice %959 {offsets = [0, 0], sizes = [4, 32], strides = [1, 1]} : vector<4x96xf32> to vector<4x32xf32>
    %962 = arith.addf %960, %961 : vector<4x32xf32>
    %cst_312 = arith.constant 0.000000e+00 : f32
    %963 = vector.broadcast %cst_312 : f32 to vector<4x32xf32>
    %964 = arith.subf %963, %962 : vector<4x32xf32>
    %965 = math.exp %964 : vector<4x32xf32>
    %cst_313 = arith.constant 1.000000e+00 : f32
    %966 = vector.broadcast %cst_313 : f32 to vector<4x32xf32>
    %967 = arith.addf %966, %965 : vector<4x32xf32>
    %968 = tpu.reciprocal %967 {approx = true} : vector<4x32xf32> -> vector<4x32xf32>
    %969 = vector.extract_strided_slice %956 {offsets = [0, 32], sizes = [4, 32], strides = [1, 1]} : vector<4x96xf32> to vector<4x32xf32>
    %970 = vector.extract_strided_slice %959 {offsets = [0, 32], sizes = [4, 32], strides = [1, 1]} : vector<4x96xf32> to vector<4x32xf32>
    %971 = arith.addf %969, %970 : vector<4x32xf32>
    %cst_314 = arith.constant 0.000000e+00 : f32
    %972 = vector.broadcast %cst_314 : f32 to vector<4x32xf32>
    %973 = arith.subf %972, %971 : vector<4x32xf32>
    %974 = math.exp %973 : vector<4x32xf32>
    %cst_315 = arith.constant 1.000000e+00 : f32
    %975 = vector.broadcast %cst_315 : f32 to vector<4x32xf32>
    %976 = arith.addf %975, %974 : vector<4x32xf32>
    %977 = tpu.reciprocal %976 {approx = true} : vector<4x32xf32> -> vector<4x32xf32>
    %978 = vector.extract_strided_slice %956 {offsets = [0, 64], sizes = [4, 32], strides = [1, 1]} : vector<4x96xf32> to vector<4x32xf32>
    %979 = vector.extract_strided_slice %959 {offsets = [0, 64], sizes = [4, 32], strides = [1, 1]} : vector<4x96xf32> to vector<4x32xf32>
    %980 = arith.mulf %968, %979 : vector<4x32xf32>
    %981 = arith.addf %978, %980 : vector<4x32xf32>
    %982 = math.tanh %981 : vector<4x32xf32>
    %cst_316 = arith.constant 1.000000e+00 : f32
    %983 = vector.broadcast %cst_316 : f32 to vector<4x32xf32>
    %984 = arith.subf %983, %977 : vector<4x32xf32>
    %985 = arith.mulf %984, %982 : vector<4x32xf32>
    %986 = arith.mulf %977, %946 : vector<4x32xf32>
    %987 = arith.addf %985, %986 : vector<4x32xf32>
    %988 = vector.extract_strided_slice %987 {offsets = [0, 0], sizes = [4, 16], strides = [1, 1]} : vector<4x32xf32> to vector<4x16xf32>
    %c20_317 = arith.constant 20 : index
    %c0_318 = arith.constant 0 : index
    %c0_319 = arith.constant 0 : index
    %989 = vector.load %arg4[%c20_317, %c0_318, %c0_319] : memref<32x4x32xf32, #tpu.memory_space<vmem>>, vector<1x4x16xf32>
    %990 = vector.shape_cast %989 : vector<1x4x16xf32> to vector<4x16xf32>
    %991 = vector.shape_cast %988 : vector<4x16xf32> to vector<1x4x16xf32>
    tpu.vector_store %arg4[%c20_317, %c0_318, %c0_319], %991 {strides = array<i32>} : memref<32x4x32xf32, #tpu.memory_space<vmem>>, vector<1x4x16xf32>,
    %992 = vector.extract_strided_slice %987 {offsets = [0, 16], sizes = [4, 16], strides = [1, 1]} : vector<4x32xf32> to vector<4x16xf32>
    %c11_320 = arith.constant 11 : index
    %c0_321 = arith.constant 0 : index
    %c16_322 = arith.constant 16 : index
    %993 = vector.load %arg4[%c11_320, %c0_321, %c16_322] : memref<32x4x32xf32, #tpu.memory_space<vmem>>, vector<1x4x16xf32>
    %994 = vector.shape_cast %993 : vector<1x4x16xf32> to vector<4x16xf32>
    %995 = vector.shape_cast %992 : vector<4x16xf32> to vector<1x4x16xf32>
    tpu.vector_store %arg4[%c11_320, %c0_321, %c16_322], %995 {strides = array<i32>} : memref<32x4x32xf32, #tpu.memory_space<vmem>>, vector<1x4x16xf32>,
    %c25_323 = arith.constant 25 : index
    %c0_324 = arith.constant 0 : index
    %c0_325 = arith.constant 0 : index
    %996 = vector.load %arg1[%c25_323, %c0_324, %c0_325] : memref<40x4x96xf32, #tpu.memory_space<vmem>>, vector<1x4x96xf32>
    %997 = vector.shape_cast %996 : vector<1x4x96xf32> to vector<4x96xf32>
    %cst_326 = arith.constant dense<0.000000e+00> : vector<4x96xf32>
    %998 = tpu.matmul %987, %0, %cst_326 {dimension_numbers = #tpu.dot_dimension_numbers<[1], [0], [0], [1], [0, 0, 1, 1], [], []>} : vector<4x32xf32>, vector<32x96xf32>, vector<4x96xf32> -> vector<4x96xf32>
    %999 = vector.broadcast %1 : vector<1x96xf32> to vector<4x96xf32>
    %1000 = arith.addf %998, %999 : vector<4x96xf32>
    %1001 = vector.extract_strided_slice %997 {offsets = [0, 0], sizes = [4, 32], strides = [1, 1]} : vector<4x96xf32> to vector<4x32xf32>
    %1002 = vector.extract_strided_slice %1000 {offsets = [0, 0], sizes = [4, 32], strides = [1, 1]} : vector<4x96xf32> to vector<4x32xf32>
    %1003 = arith.addf %1001, %1002 : vector<4x32xf32>
    %cst_327 = arith.constant 0.000000e+00 : f32
    %1004 = vector.broadcast %cst_327 : f32 to vector<4x32xf32>
    %1005 = arith.subf %1004, %1003 : vector<4x32xf32>
    %1006 = math.exp %1005 : vector<4x32xf32>
    %cst_328 = arith.constant 1.000000e+00 : f32
    %1007 = vector.broadcast %cst_328 : f32 to vector<4x32xf32>
    %1008 = arith.addf %1007, %1006 : vector<4x32xf32>
    %1009 = tpu.reciprocal %1008 {approx = true} : vector<4x32xf32> -> vector<4x32xf32>
    %1010 = vector.extract_strided_slice %997 {offsets = [0, 32], sizes = [4, 32], strides = [1, 1]} : vector<4x96xf32> to vector<4x32xf32>
    %1011 = vector.extract_strided_slice %1000 {offsets = [0, 32], sizes = [4, 32], strides = [1, 1]} : vector<4x96xf32> to vector<4x32xf32>
    %1012 = arith.addf %1010, %1011 : vector<4x32xf32>
    %cst_329 = arith.constant 0.000000e+00 : f32
    %1013 = vector.broadcast %cst_329 : f32 to vector<4x32xf32>
    %1014 = arith.subf %1013, %1012 : vector<4x32xf32>
    %1015 = math.exp %1014 : vector<4x32xf32>
    %cst_330 = arith.constant 1.000000e+00 : f32
    %1016 = vector.broadcast %cst_330 : f32 to vector<4x32xf32>
    %1017 = arith.addf %1016, %1015 : vector<4x32xf32>
    %1018 = tpu.reciprocal %1017 {approx = true} : vector<4x32xf32> -> vector<4x32xf32>
    %1019 = vector.extract_strided_slice %997 {offsets = [0, 64], sizes = [4, 32], strides = [1, 1]} : vector<4x96xf32> to vector<4x32xf32>
    %1020 = vector.extract_strided_slice %1000 {offsets = [0, 64], sizes = [4, 32], strides = [1, 1]} : vector<4x96xf32> to vector<4x32xf32>
    %1021 = arith.mulf %1009, %1020 : vector<4x32xf32>
    %1022 = arith.addf %1019, %1021 : vector<4x32xf32>
    %1023 = math.tanh %1022 : vector<4x32xf32>
    %cst_331 = arith.constant 1.000000e+00 : f32
    %1024 = vector.broadcast %cst_331 : f32 to vector<4x32xf32>
    %1025 = arith.subf %1024, %1018 : vector<4x32xf32>
    %1026 = arith.mulf %1025, %1023 : vector<4x32xf32>
    %1027 = arith.mulf %1018, %987 : vector<4x32xf32>
    %1028 = arith.addf %1026, %1027 : vector<4x32xf32>
    %1029 = vector.extract_strided_slice %1028 {offsets = [0, 0], sizes = [4, 16], strides = [1, 1]} : vector<4x32xf32> to vector<4x16xf32>
    %c21_332 = arith.constant 21 : index
    %c0_333 = arith.constant 0 : index
    %c0_334 = arith.constant 0 : index
    %1030 = vector.load %arg4[%c21_332, %c0_333, %c0_334] : memref<32x4x32xf32, #tpu.memory_space<vmem>>, vector<1x4x16xf32>
    %1031 = vector.shape_cast %1030 : vector<1x4x16xf32> to vector<4x16xf32>
    %1032 = vector.shape_cast %1029 : vector<4x16xf32> to vector<1x4x16xf32>
    tpu.vector_store %arg4[%c21_332, %c0_333, %c0_334], %1032 {strides = array<i32>} : memref<32x4x32xf32, #tpu.memory_space<vmem>>, vector<1x4x16xf32>,
    %1033 = vector.extract_strided_slice %1028 {offsets = [0, 16], sizes = [4, 16], strides = [1, 1]} : vector<4x32xf32> to vector<4x16xf32>
    %c10_335 = arith.constant 10 : index
    %c0_336 = arith.constant 0 : index
    %c16_337 = arith.constant 16 : index
    %1034 = vector.load %arg4[%c10_335, %c0_336, %c16_337] : memref<32x4x32xf32, #tpu.memory_space<vmem>>, vector<1x4x16xf32>
    %1035 = vector.shape_cast %1034 : vector<1x4x16xf32> to vector<4x16xf32>
    %1036 = vector.shape_cast %1033 : vector<4x16xf32> to vector<1x4x16xf32>
    tpu.vector_store %arg4[%c10_335, %c0_336, %c16_337], %1036 {strides = array<i32>} : memref<32x4x32xf32, #tpu.memory_space<vmem>>, vector<1x4x16xf32>,
    %c26_338 = arith.constant 26 : index
    %c0_339 = arith.constant 0 : index
    %c0_340 = arith.constant 0 : index
    %1037 = vector.load %arg1[%c26_338, %c0_339, %c0_340] : memref<40x4x96xf32, #tpu.memory_space<vmem>>, vector<1x4x96xf32>
    %1038 = vector.shape_cast %1037 : vector<1x4x96xf32> to vector<4x96xf32>
    %cst_341 = arith.constant dense<0.000000e+00> : vector<4x96xf32>
    %1039 = tpu.matmul %1028, %0, %cst_341 {dimension_numbers = #tpu.dot_dimension_numbers<[1], [0], [0], [1], [0, 0, 1, 1], [], []>} : vector<4x32xf32>, vector<32x96xf32>, vector<4x96xf32> -> vector<4x96xf32>
    %1040 = vector.broadcast %1 : vector<1x96xf32> to vector<4x96xf32>
    %1041 = arith.addf %1039, %1040 : vector<4x96xf32>
    %1042 = vector.extract_strided_slice %1038 {offsets = [0, 0], sizes = [4, 32], strides = [1, 1]} : vector<4x96xf32> to vector<4x32xf32>
    %1043 = vector.extract_strided_slice %1041 {offsets = [0, 0], sizes = [4, 32], strides = [1, 1]} : vector<4x96xf32> to vector<4x32xf32>
    %1044 = arith.addf %1042, %1043 : vector<4x32xf32>
    %cst_342 = arith.constant 0.000000e+00 : f32
    %1045 = vector.broadcast %cst_342 : f32 to vector<4x32xf32>
    %1046 = arith.subf %1045, %1044 : vector<4x32xf32>
    %1047 = math.exp %1046 : vector<4x32xf32>
    %cst_343 = arith.constant 1.000000e+00 : f32
    %1048 = vector.broadcast %cst_343 : f32 to vector<4x32xf32>
    %1049 = arith.addf %1048, %1047 : vector<4x32xf32>
    %1050 = tpu.reciprocal %1049 {approx = true} : vector<4x32xf32> -> vector<4x32xf32>
    %1051 = vector.extract_strided_slice %1038 {offsets = [0, 32], sizes = [4, 32], strides = [1, 1]} : vector<4x96xf32> to vector<4x32xf32>
    %1052 = vector.extract_strided_slice %1041 {offsets = [0, 32], sizes = [4, 32], strides = [1, 1]} : vector<4x96xf32> to vector<4x32xf32>
    %1053 = arith.addf %1051, %1052 : vector<4x32xf32>
    %cst_344 = arith.constant 0.000000e+00 : f32
    %1054 = vector.broadcast %cst_344 : f32 to vector<4x32xf32>
    %1055 = arith.subf %1054, %1053 : vector<4x32xf32>
    %1056 = math.exp %1055 : vector<4x32xf32>
    %cst_345 = arith.constant 1.000000e+00 : f32
    %1057 = vector.broadcast %cst_345 : f32 to vector<4x32xf32>
    %1058 = arith.addf %1057, %1056 : vector<4x32xf32>
    %1059 = tpu.reciprocal %1058 {approx = true} : vector<4x32xf32> -> vector<4x32xf32>
    %1060 = vector.extract_strided_slice %1038 {offsets = [0, 64], sizes = [4, 32], strides = [1, 1]} : vector<4x96xf32> to vector<4x32xf32>
    %1061 = vector.extract_strided_slice %1041 {offsets = [0, 64], sizes = [4, 32], strides = [1, 1]} : vector<4x96xf32> to vector<4x32xf32>
    %1062 = arith.mulf %1050, %1061 : vector<4x32xf32>
    %1063 = arith.addf %1060, %1062 : vector<4x32xf32>
    %1064 = math.tanh %1063 : vector<4x32xf32>
    %cst_346 = arith.constant 1.000000e+00 : f32
    %1065 = vector.broadcast %cst_346 : f32 to vector<4x32xf32>
    %1066 = arith.subf %1065, %1059 : vector<4x32xf32>
    %1067 = arith.mulf %1066, %1064 : vector<4x32xf32>
    %1068 = arith.mulf %1059, %1028 : vector<4x32xf32>
    %1069 = arith.addf %1067, %1068 : vector<4x32xf32>
    %1070 = vector.extract_strided_slice %1069 {offsets = [0, 0], sizes = [4, 16], strides = [1, 1]} : vector<4x32xf32> to vector<4x16xf32>
    %c22_347 = arith.constant 22 : index
    %c0_348 = arith.constant 0 : index
    %c0_349 = arith.constant 0 : index
    %1071 = vector.load %arg4[%c22_347, %c0_348, %c0_349] : memref<32x4x32xf32, #tpu.memory_space<vmem>>, vector<1x4x16xf32>
    %1072 = vector.shape_cast %1071 : vector<1x4x16xf32> to vector<4x16xf32>
    %1073 = vector.shape_cast %1070 : vector<4x16xf32> to vector<1x4x16xf32>
    tpu.vector_store %arg4[%c22_347, %c0_348, %c0_349], %1073 {strides = array<i32>} : memref<32x4x32xf32, #tpu.memory_space<vmem>>, vector<1x4x16xf32>,
    %1074 = vector.extract_strided_slice %1069 {offsets = [0, 16], sizes = [4, 16], strides = [1, 1]} : vector<4x32xf32> to vector<4x16xf32>
    %c9_350 = arith.constant 9 : index
    %c0_351 = arith.constant 0 : index
    %c16_352 = arith.constant 16 : index
    %1075 = vector.load %arg4[%c9_350, %c0_351, %c16_352] : memref<32x4x32xf32, #tpu.memory_space<vmem>>, vector<1x4x16xf32>
    %1076 = vector.shape_cast %1075 : vector<1x4x16xf32> to vector<4x16xf32>
    %1077 = vector.shape_cast %1074 : vector<4x16xf32> to vector<1x4x16xf32>
    tpu.vector_store %arg4[%c9_350, %c0_351, %c16_352], %1077 {strides = array<i32>} : memref<32x4x32xf32, #tpu.memory_space<vmem>>, vector<1x4x16xf32>,
    %c27_353 = arith.constant 27 : index
    %c0_354 = arith.constant 0 : index
    %c0_355 = arith.constant 0 : index
    %1078 = vector.load %arg1[%c27_353, %c0_354, %c0_355] : memref<40x4x96xf32, #tpu.memory_space<vmem>>, vector<1x4x96xf32>
    %1079 = vector.shape_cast %1078 : vector<1x4x96xf32> to vector<4x96xf32>
    %cst_356 = arith.constant dense<0.000000e+00> : vector<4x96xf32>
    %1080 = tpu.matmul %1069, %0, %cst_356 {dimension_numbers = #tpu.dot_dimension_numbers<[1], [0], [0], [1], [0, 0, 1, 1], [], []>} : vector<4x32xf32>, vector<32x96xf32>, vector<4x96xf32> -> vector<4x96xf32>
    %1081 = vector.broadcast %1 : vector<1x96xf32> to vector<4x96xf32>
    %1082 = arith.addf %1080, %1081 : vector<4x96xf32>
    %1083 = vector.extract_strided_slice %1079 {offsets = [0, 0], sizes = [4, 32], strides = [1, 1]} : vector<4x96xf32> to vector<4x32xf32>
    %1084 = vector.extract_strided_slice %1082 {offsets = [0, 0], sizes = [4, 32], strides = [1, 1]} : vector<4x96xf32> to vector<4x32xf32>
    %1085 = arith.addf %1083, %1084 : vector<4x32xf32>
    %cst_357 = arith.constant 0.000000e+00 : f32
    %1086 = vector.broadcast %cst_357 : f32 to vector<4x32xf32>
    %1087 = arith.subf %1086, %1085 : vector<4x32xf32>
    %1088 = math.exp %1087 : vector<4x32xf32>
    %cst_358 = arith.constant 1.000000e+00 : f32
    %1089 = vector.broadcast %cst_358 : f32 to vector<4x32xf32>
    %1090 = arith.addf %1089, %1088 : vector<4x32xf32>
    %1091 = tpu.reciprocal %1090 {approx = true} : vector<4x32xf32> -> vector<4x32xf32>
    %1092 = vector.extract_strided_slice %1079 {offsets = [0, 32], sizes = [4, 32], strides = [1, 1]} : vector<4x96xf32> to vector<4x32xf32>
    %1093 = vector.extract_strided_slice %1082 {offsets = [0, 32], sizes = [4, 32], strides = [1, 1]} : vector<4x96xf32> to vector<4x32xf32>
    %1094 = arith.addf %1092, %1093 : vector<4x32xf32>
    %cst_359 = arith.constant 0.000000e+00 : f32
    %1095 = vector.broadcast %cst_359 : f32 to vector<4x32xf32>
    %1096 = arith.subf %1095, %1094 : vector<4x32xf32>
    %1097 = math.exp %1096 : vector<4x32xf32>
    %cst_360 = arith.constant 1.000000e+00 : f32
    %1098 = vector.broadcast %cst_360 : f32 to vector<4x32xf32>
    %1099 = arith.addf %1098, %1097 : vector<4x32xf32>
    %1100 = tpu.reciprocal %1099 {approx = true} : vector<4x32xf32> -> vector<4x32xf32>
    %1101 = vector.extract_strided_slice %1079 {offsets = [0, 64], sizes = [4, 32], strides = [1, 1]} : vector<4x96xf32> to vector<4x32xf32>
    %1102 = vector.extract_strided_slice %1082 {offsets = [0, 64], sizes = [4, 32], strides = [1, 1]} : vector<4x96xf32> to vector<4x32xf32>
    %1103 = arith.mulf %1091, %1102 : vector<4x32xf32>
    %1104 = arith.addf %1101, %1103 : vector<4x32xf32>
    %1105 = math.tanh %1104 : vector<4x32xf32>
    %cst_361 = arith.constant 1.000000e+00 : f32
    %1106 = vector.broadcast %cst_361 : f32 to vector<4x32xf32>
    %1107 = arith.subf %1106, %1100 : vector<4x32xf32>
    %1108 = arith.mulf %1107, %1105 : vector<4x32xf32>
    %1109 = arith.mulf %1100, %1069 : vector<4x32xf32>
    %1110 = arith.addf %1108, %1109 : vector<4x32xf32>
    %1111 = vector.extract_strided_slice %1110 {offsets = [0, 0], sizes = [4, 16], strides = [1, 1]} : vector<4x32xf32> to vector<4x16xf32>
    %c23_362 = arith.constant 23 : index
    %c0_363 = arith.constant 0 : index
    %c0_364 = arith.constant 0 : index
    %1112 = vector.load %arg4[%c23_362, %c0_363, %c0_364] : memref<32x4x32xf32, #tpu.memory_space<vmem>>, vector<1x4x16xf32>
    %1113 = vector.shape_cast %1112 : vector<1x4x16xf32> to vector<4x16xf32>
    %1114 = vector.shape_cast %1111 : vector<4x16xf32> to vector<1x4x16xf32>
    tpu.vector_store %arg4[%c23_362, %c0_363, %c0_364], %1114 {strides = array<i32>} : memref<32x4x32xf32, #tpu.memory_space<vmem>>, vector<1x4x16xf32>,
    %1115 = vector.extract_strided_slice %1110 {offsets = [0, 16], sizes = [4, 16], strides = [1, 1]} : vector<4x32xf32> to vector<4x16xf32>
    %c8_365 = arith.constant 8 : index
    %c0_366 = arith.constant 0 : index
    %c16_367 = arith.constant 16 : index
    %1116 = vector.load %arg4[%c8_365, %c0_366, %c16_367] : memref<32x4x32xf32, #tpu.memory_space<vmem>>, vector<1x4x16xf32>
    %1117 = vector.shape_cast %1116 : vector<1x4x16xf32> to vector<4x16xf32>
    %1118 = vector.shape_cast %1115 : vector<4x16xf32> to vector<1x4x16xf32>
    tpu.vector_store %arg4[%c8_365, %c0_366, %c16_367], %1118 {strides = array<i32>} : memref<32x4x32xf32, #tpu.memory_space<vmem>>, vector<1x4x16xf32>,
    %c28_368 = arith.constant 28 : index
    %c0_369 = arith.constant 0 : index
    %c0_370 = arith.constant 0 : index
    %1119 = vector.load %arg1[%c28_368, %c0_369, %c0_370] : memref<40x4x96xf32, #tpu.memory_space<vmem>>, vector<1x4x96xf32>
    %1120 = vector.shape_cast %1119 : vector<1x4x96xf32> to vector<4x96xf32>
    %cst_371 = arith.constant dense<0.000000e+00> : vector<4x96xf32>
    %1121 = tpu.matmul %1110, %0, %cst_371 {dimension_numbers = #tpu.dot_dimension_numbers<[1], [0], [0], [1], [0, 0, 1, 1], [], []>} : vector<4x32xf32>, vector<32x96xf32>, vector<4x96xf32> -> vector<4x96xf32>
    %1122 = vector.broadcast %1 : vector<1x96xf32> to vector<4x96xf32>
    %1123 = arith.addf %1121, %1122 : vector<4x96xf32>
    %1124 = vector.extract_strided_slice %1120 {offsets = [0, 0], sizes = [4, 32], strides = [1, 1]} : vector<4x96xf32> to vector<4x32xf32>
    %1125 = vector.extract_strided_slice %1123 {offsets = [0, 0], sizes = [4, 32], strides = [1, 1]} : vector<4x96xf32> to vector<4x32xf32>
    %1126 = arith.addf %1124, %1125 : vector<4x32xf32>
    %cst_372 = arith.constant 0.000000e+00 : f32
    %1127 = vector.broadcast %cst_372 : f32 to vector<4x32xf32>
    %1128 = arith.subf %1127, %1126 : vector<4x32xf32>
    %1129 = math.exp %1128 : vector<4x32xf32>
    %cst_373 = arith.constant 1.000000e+00 : f32
    %1130 = vector.broadcast %cst_373 : f32 to vector<4x32xf32>
    %1131 = arith.addf %1130, %1129 : vector<4x32xf32>
    %1132 = tpu.reciprocal %1131 {approx = true} : vector<4x32xf32> -> vector<4x32xf32>
    %1133 = vector.extract_strided_slice %1120 {offsets = [0, 32], sizes = [4, 32], strides = [1, 1]} : vector<4x96xf32> to vector<4x32xf32>
    %1134 = vector.extract_strided_slice %1123 {offsets = [0, 32], sizes = [4, 32], strides = [1, 1]} : vector<4x96xf32> to vector<4x32xf32>
    %1135 = arith.addf %1133, %1134 : vector<4x32xf32>
    %cst_374 = arith.constant 0.000000e+00 : f32
    %1136 = vector.broadcast %cst_374 : f32 to vector<4x32xf32>
    %1137 = arith.subf %1136, %1135 : vector<4x32xf32>
    %1138 = math.exp %1137 : vector<4x32xf32>
    %cst_375 = arith.constant 1.000000e+00 : f32
    %1139 = vector.broadcast %cst_375 : f32 to vector<4x32xf32>
    %1140 = arith.addf %1139, %1138 : vector<4x32xf32>
    %1141 = tpu.reciprocal %1140 {approx = true} : vector<4x32xf32> -> vector<4x32xf32>
    %1142 = vector.extract_strided_slice %1120 {offsets = [0, 64], sizes = [4, 32], strides = [1, 1]} : vector<4x96xf32> to vector<4x32xf32>
    %1143 = vector.extract_strided_slice %1123 {offsets = [0, 64], sizes = [4, 32], strides = [1, 1]} : vector<4x96xf32> to vector<4x32xf32>
    %1144 = arith.mulf %1132, %1143 : vector<4x32xf32>
    %1145 = arith.addf %1142, %1144 : vector<4x32xf32>
    %1146 = math.tanh %1145 : vector<4x32xf32>
    %cst_376 = arith.constant 1.000000e+00 : f32
    %1147 = vector.broadcast %cst_376 : f32 to vector<4x32xf32>
    %1148 = arith.subf %1147, %1141 : vector<4x32xf32>
    %1149 = arith.mulf %1148, %1146 : vector<4x32xf32>
    %1150 = arith.mulf %1141, %1110 : vector<4x32xf32>
    %1151 = arith.addf %1149, %1150 : vector<4x32xf32>
    %1152 = vector.extract_strided_slice %1151 {offsets = [0, 0], sizes = [4, 16], strides = [1, 1]} : vector<4x32xf32> to vector<4x16xf32>
    %c24_377 = arith.constant 24 : index
    %c0_378 = arith.constant 0 : index
    %c0_379 = arith.constant 0 : index
    %1153 = vector.load %arg4[%c24_377, %c0_378, %c0_379] : memref<32x4x32xf32, #tpu.memory_space<vmem>>, vector<1x4x16xf32>
    %1154 = vector.shape_cast %1153 : vector<1x4x16xf32> to vector<4x16xf32>
    %1155 = vector.shape_cast %1152 : vector<4x16xf32> to vector<1x4x16xf32>
    tpu.vector_store %arg4[%c24_377, %c0_378, %c0_379], %1155 {strides = array<i32>} : memref<32x4x32xf32, #tpu.memory_space<vmem>>, vector<1x4x16xf32>,
    %1156 = vector.extract_strided_slice %1151 {offsets = [0, 16], sizes = [4, 16], strides = [1, 1]} : vector<4x32xf32> to vector<4x16xf32>
    %c7_380 = arith.constant 7 : index
    %c0_381 = arith.constant 0 : index
    %c16_382 = arith.constant 16 : index
    %1157 = vector.load %arg4[%c7_380, %c0_381, %c16_382] : memref<32x4x32xf32, #tpu.memory_space<vmem>>, vector<1x4x16xf32>
    %1158 = vector.shape_cast %1157 : vector<1x4x16xf32> to vector<4x16xf32>
    %1159 = vector.shape_cast %1156 : vector<4x16xf32> to vector<1x4x16xf32>
    tpu.vector_store %arg4[%c7_380, %c0_381, %c16_382], %1159 {strides = array<i32>} : memref<32x4x32xf32, #tpu.memory_space<vmem>>, vector<1x4x16xf32>,
    %c29_383 = arith.constant 29 : index
    %c0_384 = arith.constant 0 : index
    %c0_385 = arith.constant 0 : index
    %1160 = vector.load %arg1[%c29_383, %c0_384, %c0_385] : memref<40x4x96xf32, #tpu.memory_space<vmem>>, vector<1x4x96xf32>
    %1161 = vector.shape_cast %1160 : vector<1x4x96xf32> to vector<4x96xf32>
    %cst_386 = arith.constant dense<0.000000e+00> : vector<4x96xf32>
    %1162 = tpu.matmul %1151, %0, %cst_386 {dimension_numbers = #tpu.dot_dimension_numbers<[1], [0], [0], [1], [0, 0, 1, 1], [], []>} : vector<4x32xf32>, vector<32x96xf32>, vector<4x96xf32> -> vector<4x96xf32>
    %1163 = vector.broadcast %1 : vector<1x96xf32> to vector<4x96xf32>
    %1164 = arith.addf %1162, %1163 : vector<4x96xf32>
    %1165 = vector.extract_strided_slice %1161 {offsets = [0, 0], sizes = [4, 32], strides = [1, 1]} : vector<4x96xf32> to vector<4x32xf32>
    %1166 = vector.extract_strided_slice %1164 {offsets = [0, 0], sizes = [4, 32], strides = [1, 1]} : vector<4x96xf32> to vector<4x32xf32>
    %1167 = arith.addf %1165, %1166 : vector<4x32xf32>
    %cst_387 = arith.constant 0.000000e+00 : f32
    %1168 = vector.broadcast %cst_387 : f32 to vector<4x32xf32>
    %1169 = arith.subf %1168, %1167 : vector<4x32xf32>
    %1170 = math.exp %1169 : vector<4x32xf32>
    %cst_388 = arith.constant 1.000000e+00 : f32
    %1171 = vector.broadcast %cst_388 : f32 to vector<4x32xf32>
    %1172 = arith.addf %1171, %1170 : vector<4x32xf32>
    %1173 = tpu.reciprocal %1172 {approx = true} : vector<4x32xf32> -> vector<4x32xf32>
    %1174 = vector.extract_strided_slice %1161 {offsets = [0, 32], sizes = [4, 32], strides = [1, 1]} : vector<4x96xf32> to vector<4x32xf32>
    %1175 = vector.extract_strided_slice %1164 {offsets = [0, 32], sizes = [4, 32], strides = [1, 1]} : vector<4x96xf32> to vector<4x32xf32>
    %1176 = arith.addf %1174, %1175 : vector<4x32xf32>
    %cst_389 = arith.constant 0.000000e+00 : f32
    %1177 = vector.broadcast %cst_389 : f32 to vector<4x32xf32>
    %1178 = arith.subf %1177, %1176 : vector<4x32xf32>
    %1179 = math.exp %1178 : vector<4x32xf32>
    %cst_390 = arith.constant 1.000000e+00 : f32
    %1180 = vector.broadcast %cst_390 : f32 to vector<4x32xf32>
    %1181 = arith.addf %1180, %1179 : vector<4x32xf32>
    %1182 = tpu.reciprocal %1181 {approx = true} : vector<4x32xf32> -> vector<4x32xf32>
    %1183 = vector.extract_strided_slice %1161 {offsets = [0, 64], sizes = [4, 32], strides = [1, 1]} : vector<4x96xf32> to vector<4x32xf32>
    %1184 = vector.extract_strided_slice %1164 {offsets = [0, 64], sizes = [4, 32], strides = [1, 1]} : vector<4x96xf32> to vector<4x32xf32>
    %1185 = arith.mulf %1173, %1184 : vector<4x32xf32>
    %1186 = arith.addf %1183, %1185 : vector<4x32xf32>
    %1187 = math.tanh %1186 : vector<4x32xf32>
    %cst_391 = arith.constant 1.000000e+00 : f32
    %1188 = vector.broadcast %cst_391 : f32 to vector<4x32xf32>
    %1189 = arith.subf %1188, %1182 : vector<4x32xf32>
    %1190 = arith.mulf %1189, %1187 : vector<4x32xf32>
    %1191 = arith.mulf %1182, %1151 : vector<4x32xf32>
    %1192 = arith.addf %1190, %1191 : vector<4x32xf32>
    %1193 = vector.extract_strided_slice %1192 {offsets = [0, 0], sizes = [4, 16], strides = [1, 1]} : vector<4x32xf32> to vector<4x16xf32>
    %c25_392 = arith.constant 25 : index
    %c0_393 = arith.constant 0 : index
    %c0_394 = arith.constant 0 : index
    %1194 = vector.load %arg4[%c25_392, %c0_393, %c0_394] : memref<32x4x32xf32, #tpu.memory_space<vmem>>, vector<1x4x16xf32>
    %1195 = vector.shape_cast %1194 : vector<1x4x16xf32> to vector<4x16xf32>
    %1196 = vector.shape_cast %1193 : vector<4x16xf32> to vector<1x4x16xf32>
    tpu.vector_store %arg4[%c25_392, %c0_393, %c0_394], %1196 {strides = array<i32>} : memref<32x4x32xf32, #tpu.memory_space<vmem>>, vector<1x4x16xf32>,
    %1197 = vector.extract_strided_slice %1192 {offsets = [0, 16], sizes = [4, 16], strides = [1, 1]} : vector<4x32xf32> to vector<4x16xf32>
    %c6_395 = arith.constant 6 : index
    %c0_396 = arith.constant 0 : index
    %c16_397 = arith.constant 16 : index
    %1198 = vector.load %arg4[%c6_395, %c0_396, %c16_397] : memref<32x4x32xf32, #tpu.memory_space<vmem>>, vector<1x4x16xf32>
    %1199 = vector.shape_cast %1198 : vector<1x4x16xf32> to vector<4x16xf32>
    %1200 = vector.shape_cast %1197 : vector<4x16xf32> to vector<1x4x16xf32>
    tpu.vector_store %arg4[%c6_395, %c0_396, %c16_397], %1200 {strides = array<i32>} : memref<32x4x32xf32, #tpu.memory_space<vmem>>, vector<1x4x16xf32>,
    %c30_398 = arith.constant 30 : index
    %c0_399 = arith.constant 0 : index
    %c0_400 = arith.constant 0 : index
    %1201 = vector.load %arg1[%c30_398, %c0_399, %c0_400] : memref<40x4x96xf32, #tpu.memory_space<vmem>>, vector<1x4x96xf32>
    %1202 = vector.shape_cast %1201 : vector<1x4x96xf32> to vector<4x96xf32>
    %cst_401 = arith.constant dense<0.000000e+00> : vector<4x96xf32>
    %1203 = tpu.matmul %1192, %0, %cst_401 {dimension_numbers = #tpu.dot_dimension_numbers<[1], [0], [0], [1], [0, 0, 1, 1], [], []>} : vector<4x32xf32>, vector<32x96xf32>, vector<4x96xf32> -> vector<4x96xf32>
    %1204 = vector.broadcast %1 : vector<1x96xf32> to vector<4x96xf32>
    %1205 = arith.addf %1203, %1204 : vector<4x96xf32>
    %1206 = vector.extract_strided_slice %1202 {offsets = [0, 0], sizes = [4, 32], strides = [1, 1]} : vector<4x96xf32> to vector<4x32xf32>
    %1207 = vector.extract_strided_slice %1205 {offsets = [0, 0], sizes = [4, 32], strides = [1, 1]} : vector<4x96xf32> to vector<4x32xf32>
    %1208 = arith.addf %1206, %1207 : vector<4x32xf32>
    %cst_402 = arith.constant 0.000000e+00 : f32
    %1209 = vector.broadcast %cst_402 : f32 to vector<4x32xf32>
    %1210 = arith.subf %1209, %1208 : vector<4x32xf32>
    %1211 = math.exp %1210 : vector<4x32xf32>
    %cst_403 = arith.constant 1.000000e+00 : f32
    %1212 = vector.broadcast %cst_403 : f32 to vector<4x32xf32>
    %1213 = arith.addf %1212, %1211 : vector<4x32xf32>
    %1214 = tpu.reciprocal %1213 {approx = true} : vector<4x32xf32> -> vector<4x32xf32>
    %1215 = vector.extract_strided_slice %1202 {offsets = [0, 32], sizes = [4, 32], strides = [1, 1]} : vector<4x96xf32> to vector<4x32xf32>
    %1216 = vector.extract_strided_slice %1205 {offsets = [0, 32], sizes = [4, 32], strides = [1, 1]} : vector<4x96xf32> to vector<4x32xf32>
    %1217 = arith.addf %1215, %1216 : vector<4x32xf32>
    %cst_404 = arith.constant 0.000000e+00 : f32
    %1218 = vector.broadcast %cst_404 : f32 to vector<4x32xf32>
    %1219 = arith.subf %1218, %1217 : vector<4x32xf32>
    %1220 = math.exp %1219 : vector<4x32xf32>
    %cst_405 = arith.constant 1.000000e+00 : f32
    %1221 = vector.broadcast %cst_405 : f32 to vector<4x32xf32>
    %1222 = arith.addf %1221, %1220 : vector<4x32xf32>
    %1223 = tpu.reciprocal %1222 {approx = true} : vector<4x32xf32> -> vector<4x32xf32>
    %1224 = vector.extract_strided_slice %1202 {offsets = [0, 64], sizes = [4, 32], strides = [1, 1]} : vector<4x96xf32> to vector<4x32xf32>
    %1225 = vector.extract_strided_slice %1205 {offsets = [0, 64], sizes = [4, 32], strides = [1, 1]} : vector<4x96xf32> to vector<4x32xf32>
    %1226 = arith.mulf %1214, %1225 : vector<4x32xf32>
    %1227 = arith.addf %1224, %1226 : vector<4x32xf32>
    %1228 = math.tanh %1227 : vector<4x32xf32>
    %cst_406 = arith.constant 1.000000e+00 : f32
    %1229 = vector.broadcast %cst_406 : f32 to vector<4x32xf32>
    %1230 = arith.subf %1229, %1223 : vector<4x32xf32>
    %1231 = arith.mulf %1230, %1228 : vector<4x32xf32>
    %1232 = arith.mulf %1223, %1192 : vector<4x32xf32>
    %1233 = arith.addf %1231, %1232 : vector<4x32xf32>
    %1234 = vector.extract_strided_slice %1233 {offsets = [0, 0], sizes = [4, 16], strides = [1, 1]} : vector<4x32xf32> to vector<4x16xf32>
    %c26_407 = arith.constant 26 : index
    %c0_408 = arith.constant 0 : index
    %c0_409 = arith.constant 0 : index
    %1235 = vector.load %arg4[%c26_407, %c0_408, %c0_409] : memref<32x4x32xf32, #tpu.memory_space<vmem>>, vector<1x4x16xf32>
    %1236 = vector.shape_cast %1235 : vector<1x4x16xf32> to vector<4x16xf32>
    %1237 = vector.shape_cast %1234 : vector<4x16xf32> to vector<1x4x16xf32>
    tpu.vector_store %arg4[%c26_407, %c0_408, %c0_409], %1237 {strides = array<i32>} : memref<32x4x32xf32, #tpu.memory_space<vmem>>, vector<1x4x16xf32>,
    %1238 = vector.extract_strided_slice %1233 {offsets = [0, 16], sizes = [4, 16], strides = [1, 1]} : vector<4x32xf32> to vector<4x16xf32>
    %c5_410 = arith.constant 5 : index
    %c0_411 = arith.constant 0 : index
    %c16_412 = arith.constant 16 : index
    %1239 = vector.load %arg4[%c5_410, %c0_411, %c16_412] : memref<32x4x32xf32, #tpu.memory_space<vmem>>, vector<1x4x16xf32>
    %1240 = vector.shape_cast %1239 : vector<1x4x16xf32> to vector<4x16xf32>
    %1241 = vector.shape_cast %1238 : vector<4x16xf32> to vector<1x4x16xf32>
    tpu.vector_store %arg4[%c5_410, %c0_411, %c16_412], %1241 {strides = array<i32>} : memref<32x4x32xf32, #tpu.memory_space<vmem>>, vector<1x4x16xf32>,
    %c31_413 = arith.constant 31 : index
    %c0_414 = arith.constant 0 : index
    %c0_415 = arith.constant 0 : index
    %1242 = vector.load %arg1[%c31_413, %c0_414, %c0_415] : memref<40x4x96xf32, #tpu.memory_space<vmem>>, vector<1x4x96xf32>
    %1243 = vector.shape_cast %1242 : vector<1x4x96xf32> to vector<4x96xf32>
    %cst_416 = arith.constant dense<0.000000e+00> : vector<4x96xf32>
    %1244 = tpu.matmul %1233, %0, %cst_416 {dimension_numbers = #tpu.dot_dimension_numbers<[1], [0], [0], [1], [0, 0, 1, 1], [], []>} : vector<4x32xf32>, vector<32x96xf32>, vector<4x96xf32> -> vector<4x96xf32>
    %1245 = vector.broadcast %1 : vector<1x96xf32> to vector<4x96xf32>
    %1246 = arith.addf %1244, %1245 : vector<4x96xf32>
    %1247 = vector.extract_strided_slice %1243 {offsets = [0, 0], sizes = [4, 32], strides = [1, 1]} : vector<4x96xf32> to vector<4x32xf32>
    %1248 = vector.extract_strided_slice %1246 {offsets = [0, 0], sizes = [4, 32], strides = [1, 1]} : vector<4x96xf32> to vector<4x32xf32>
    %1249 = arith.addf %1247, %1248 : vector<4x32xf32>
    %cst_417 = arith.constant 0.000000e+00 : f32
    %1250 = vector.broadcast %cst_417 : f32 to vector<4x32xf32>
    %1251 = arith.subf %1250, %1249 : vector<4x32xf32>
    %1252 = math.exp %1251 : vector<4x32xf32>
    %cst_418 = arith.constant 1.000000e+00 : f32
    %1253 = vector.broadcast %cst_418 : f32 to vector<4x32xf32>
    %1254 = arith.addf %1253, %1252 : vector<4x32xf32>
    %1255 = tpu.reciprocal %1254 {approx = true} : vector<4x32xf32> -> vector<4x32xf32>
    %1256 = vector.extract_strided_slice %1243 {offsets = [0, 32], sizes = [4, 32], strides = [1, 1]} : vector<4x96xf32> to vector<4x32xf32>
    %1257 = vector.extract_strided_slice %1246 {offsets = [0, 32], sizes = [4, 32], strides = [1, 1]} : vector<4x96xf32> to vector<4x32xf32>
    %1258 = arith.addf %1256, %1257 : vector<4x32xf32>
    %cst_419 = arith.constant 0.000000e+00 : f32
    %1259 = vector.broadcast %cst_419 : f32 to vector<4x32xf32>
    %1260 = arith.subf %1259, %1258 : vector<4x32xf32>
    %1261 = math.exp %1260 : vector<4x32xf32>
    %cst_420 = arith.constant 1.000000e+00 : f32
    %1262 = vector.broadcast %cst_420 : f32 to vector<4x32xf32>
    %1263 = arith.addf %1262, %1261 : vector<4x32xf32>
    %1264 = tpu.reciprocal %1263 {approx = true} : vector<4x32xf32> -> vector<4x32xf32>
    %1265 = vector.extract_strided_slice %1243 {offsets = [0, 64], sizes = [4, 32], strides = [1, 1]} : vector<4x96xf32> to vector<4x32xf32>
    %1266 = vector.extract_strided_slice %1246 {offsets = [0, 64], sizes = [4, 32], strides = [1, 1]} : vector<4x96xf32> to vector<4x32xf32>
    %1267 = arith.mulf %1255, %1266 : vector<4x32xf32>
    %1268 = arith.addf %1265, %1267 : vector<4x32xf32>
    %1269 = math.tanh %1268 : vector<4x32xf32>
    %cst_421 = arith.constant 1.000000e+00 : f32
    %1270 = vector.broadcast %cst_421 : f32 to vector<4x32xf32>
    %1271 = arith.subf %1270, %1264 : vector<4x32xf32>
    %1272 = arith.mulf %1271, %1269 : vector<4x32xf32>
    %1273 = arith.mulf %1264, %1233 : vector<4x32xf32>
    %1274 = arith.addf %1272, %1273 : vector<4x32xf32>
    %1275 = vector.extract_strided_slice %1274 {offsets = [0, 0], sizes = [4, 16], strides = [1, 1]} : vector<4x32xf32> to vector<4x16xf32>
    %c27_422 = arith.constant 27 : index
    %c0_423 = arith.constant 0 : index
    %c0_424 = arith.constant 0 : index
    %1276 = vector.load %arg4[%c27_422, %c0_423, %c0_424] : memref<32x4x32xf32, #tpu.memory_space<vmem>>, vector<1x4x16xf32>
    %1277 = vector.shape_cast %1276 : vector<1x4x16xf32> to vector<4x16xf32>
    %1278 = vector.shape_cast %1275 : vector<4x16xf32> to vector<1x4x16xf32>
    tpu.vector_store %arg4[%c27_422, %c0_423, %c0_424], %1278 {strides = array<i32>} : memref<32x4x32xf32, #tpu.memory_space<vmem>>, vector<1x4x16xf32>,
    %1279 = vector.extract_strided_slice %1274 {offsets = [0, 16], sizes = [4, 16], strides = [1, 1]} : vector<4x32xf32> to vector<4x16xf32>
    %c4_425 = arith.constant 4 : index
    %c0_426 = arith.constant 0 : index
    %c16_427 = arith.constant 16 : index
    %1280 = vector.load %arg4[%c4_425, %c0_426, %c16_427] : memref<32x4x32xf32, #tpu.memory_space<vmem>>, vector<1x4x16xf32>
    %1281 = vector.shape_cast %1280 : vector<1x4x16xf32> to vector<4x16xf32>
    %1282 = vector.shape_cast %1279 : vector<4x16xf32> to vector<1x4x16xf32>
    tpu.vector_store %arg4[%c4_425, %c0_426, %c16_427], %1282 {strides = array<i32>} : memref<32x4x32xf32, #tpu.memory_space<vmem>>, vector<1x4x16xf32>,
    %c32 = arith.constant 32 : index
    %c0_428 = arith.constant 0 : index
    %c0_429 = arith.constant 0 : index
    %1283 = vector.load %arg1[%c32, %c0_428, %c0_429] : memref<40x4x96xf32, #tpu.memory_space<vmem>>, vector<1x4x96xf32>
    %1284 = vector.shape_cast %1283 : vector<1x4x96xf32> to vector<4x96xf32>
    %cst_430 = arith.constant dense<0.000000e+00> : vector<4x96xf32>
    %1285 = tpu.matmul %1274, %0, %cst_430 {dimension_numbers = #tpu.dot_dimension_numbers<[1], [0], [0], [1], [0, 0, 1, 1], [], []>} : vector<4x32xf32>, vector<32x96xf32>, vector<4x96xf32> -> vector<4x96xf32>
    %1286 = vector.broadcast %1 : vector<1x96xf32> to vector<4x96xf32>
    %1287 = arith.addf %1285, %1286 : vector<4x96xf32>
    %1288 = vector.extract_strided_slice %1284 {offsets = [0, 0], sizes = [4, 32], strides = [1, 1]} : vector<4x96xf32> to vector<4x32xf32>
    %1289 = vector.extract_strided_slice %1287 {offsets = [0, 0], sizes = [4, 32], strides = [1, 1]} : vector<4x96xf32> to vector<4x32xf32>
    %1290 = arith.addf %1288, %1289 : vector<4x32xf32>
    %cst_431 = arith.constant 0.000000e+00 : f32
    %1291 = vector.broadcast %cst_431 : f32 to vector<4x32xf32>
    %1292 = arith.subf %1291, %1290 : vector<4x32xf32>
    %1293 = math.exp %1292 : vector<4x32xf32>
    %cst_432 = arith.constant 1.000000e+00 : f32
    %1294 = vector.broadcast %cst_432 : f32 to vector<4x32xf32>
    %1295 = arith.addf %1294, %1293 : vector<4x32xf32>
    %1296 = tpu.reciprocal %1295 {approx = true} : vector<4x32xf32> -> vector<4x32xf32>
    %1297 = vector.extract_strided_slice %1284 {offsets = [0, 32], sizes = [4, 32], strides = [1, 1]} : vector<4x96xf32> to vector<4x32xf32>
    %1298 = vector.extract_strided_slice %1287 {offsets = [0, 32], sizes = [4, 32], strides = [1, 1]} : vector<4x96xf32> to vector<4x32xf32>
    %1299 = arith.addf %1297, %1298 : vector<4x32xf32>
    %cst_433 = arith.constant 0.000000e+00 : f32
    %1300 = vector.broadcast %cst_433 : f32 to vector<4x32xf32>
    %1301 = arith.subf %1300, %1299 : vector<4x32xf32>
    %1302 = math.exp %1301 : vector<4x32xf32>
    %cst_434 = arith.constant 1.000000e+00 : f32
    %1303 = vector.broadcast %cst_434 : f32 to vector<4x32xf32>
    %1304 = arith.addf %1303, %1302 : vector<4x32xf32>
    %1305 = tpu.reciprocal %1304 {approx = true} : vector<4x32xf32> -> vector<4x32xf32>
    %1306 = vector.extract_strided_slice %1284 {offsets = [0, 64], sizes = [4, 32], strides = [1, 1]} : vector<4x96xf32> to vector<4x32xf32>
    %1307 = vector.extract_strided_slice %1287 {offsets = [0, 64], sizes = [4, 32], strides = [1, 1]} : vector<4x96xf32> to vector<4x32xf32>
    %1308 = arith.mulf %1296, %1307 : vector<4x32xf32>
    %1309 = arith.addf %1306, %1308 : vector<4x32xf32>
    %1310 = math.tanh %1309 : vector<4x32xf32>
    %cst_435 = arith.constant 1.000000e+00 : f32
    %1311 = vector.broadcast %cst_435 : f32 to vector<4x32xf32>
    %1312 = arith.subf %1311, %1305 : vector<4x32xf32>
    %1313 = arith.mulf %1312, %1310 : vector<4x32xf32>
    %1314 = arith.mulf %1305, %1274 : vector<4x32xf32>
    %1315 = arith.addf %1313, %1314 : vector<4x32xf32>
    %1316 = vector.extract_strided_slice %1315 {offsets = [0, 0], sizes = [4, 16], strides = [1, 1]} : vector<4x32xf32> to vector<4x16xf32>
    %c28_436 = arith.constant 28 : index
    %c0_437 = arith.constant 0 : index
    %c0_438 = arith.constant 0 : index
    %1317 = vector.load %arg4[%c28_436, %c0_437, %c0_438] : memref<32x4x32xf32, #tpu.memory_space<vmem>>, vector<1x4x16xf32>
    %1318 = vector.shape_cast %1317 : vector<1x4x16xf32> to vector<4x16xf32>
    %1319 = vector.shape_cast %1316 : vector<4x16xf32> to vector<1x4x16xf32>
    tpu.vector_store %arg4[%c28_436, %c0_437, %c0_438], %1319 {strides = array<i32>} : memref<32x4x32xf32, #tpu.memory_space<vmem>>, vector<1x4x16xf32>,
    %1320 = vector.extract_strided_slice %1315 {offsets = [0, 16], sizes = [4, 16], strides = [1, 1]} : vector<4x32xf32> to vector<4x16xf32>
    %c3_439 = arith.constant 3 : index
    %c0_440 = arith.constant 0 : index
    %c16_441 = arith.constant 16 : index
    %1321 = vector.load %arg4[%c3_439, %c0_440, %c16_441] : memref<32x4x32xf32, #tpu.memory_space<vmem>>, vector<1x4x16xf32>
    %1322 = vector.shape_cast %1321 : vector<1x4x16xf32> to vector<4x16xf32>
    %1323 = vector.shape_cast %1320 : vector<4x16xf32> to vector<1x4x16xf32>
    tpu.vector_store %arg4[%c3_439, %c0_440, %c16_441], %1323 {strides = array<i32>} : memref<32x4x32xf32, #tpu.memory_space<vmem>>, vector<1x4x16xf32>,
    %c33 = arith.constant 33 : index
    %c0_442 = arith.constant 0 : index
    %c0_443 = arith.constant 0 : index
    %1324 = vector.load %arg1[%c33, %c0_442, %c0_443] : memref<40x4x96xf32, #tpu.memory_space<vmem>>, vector<1x4x96xf32>
    %1325 = vector.shape_cast %1324 : vector<1x4x96xf32> to vector<4x96xf32>
    %cst_444 = arith.constant dense<0.000000e+00> : vector<4x96xf32>
    %1326 = tpu.matmul %1315, %0, %cst_444 {dimension_numbers = #tpu.dot_dimension_numbers<[1], [0], [0], [1], [0, 0, 1, 1], [], []>} : vector<4x32xf32>, vector<32x96xf32>, vector<4x96xf32> -> vector<4x96xf32>
    %1327 = vector.broadcast %1 : vector<1x96xf32> to vector<4x96xf32>
    %1328 = arith.addf %1326, %1327 : vector<4x96xf32>
    %1329 = vector.extract_strided_slice %1325 {offsets = [0, 0], sizes = [4, 32], strides = [1, 1]} : vector<4x96xf32> to vector<4x32xf32>
    %1330 = vector.extract_strided_slice %1328 {offsets = [0, 0], sizes = [4, 32], strides = [1, 1]} : vector<4x96xf32> to vector<4x32xf32>
    %1331 = arith.addf %1329, %1330 : vector<4x32xf32>
    %cst_445 = arith.constant 0.000000e+00 : f32
    %1332 = vector.broadcast %cst_445 : f32 to vector<4x32xf32>
    %1333 = arith.subf %1332, %1331 : vector<4x32xf32>
    %1334 = math.exp %1333 : vector<4x32xf32>
    %cst_446 = arith.constant 1.000000e+00 : f32
    %1335 = vector.broadcast %cst_446 : f32 to vector<4x32xf32>
    %1336 = arith.addf %1335, %1334 : vector<4x32xf32>
    %1337 = tpu.reciprocal %1336 {approx = true} : vector<4x32xf32> -> vector<4x32xf32>
    %1338 = vector.extract_strided_slice %1325 {offsets = [0, 32], sizes = [4, 32], strides = [1, 1]} : vector<4x96xf32> to vector<4x32xf32>
    %1339 = vector.extract_strided_slice %1328 {offsets = [0, 32], sizes = [4, 32], strides = [1, 1]} : vector<4x96xf32> to vector<4x32xf32>
    %1340 = arith.addf %1338, %1339 : vector<4x32xf32>
    %cst_447 = arith.constant 0.000000e+00 : f32
    %1341 = vector.broadcast %cst_447 : f32 to vector<4x32xf32>
    %1342 = arith.subf %1341, %1340 : vector<4x32xf32>
    %1343 = math.exp %1342 : vector<4x32xf32>
    %cst_448 = arith.constant 1.000000e+00 : f32
    %1344 = vector.broadcast %cst_448 : f32 to vector<4x32xf32>
    %1345 = arith.addf %1344, %1343 : vector<4x32xf32>
    %1346 = tpu.reciprocal %1345 {approx = true} : vector<4x32xf32> -> vector<4x32xf32>
    %1347 = vector.extract_strided_slice %1325 {offsets = [0, 64], sizes = [4, 32], strides = [1, 1]} : vector<4x96xf32> to vector<4x32xf32>
    %1348 = vector.extract_strided_slice %1328 {offsets = [0, 64], sizes = [4, 32], strides = [1, 1]} : vector<4x96xf32> to vector<4x32xf32>
    %1349 = arith.mulf %1337, %1348 : vector<4x32xf32>
    %1350 = arith.addf %1347, %1349 : vector<4x32xf32>
    %1351 = math.tanh %1350 : vector<4x32xf32>
    %cst_449 = arith.constant 1.000000e+00 : f32
    %1352 = vector.broadcast %cst_449 : f32 to vector<4x32xf32>
    %1353 = arith.subf %1352, %1346 : vector<4x32xf32>
    %1354 = arith.mulf %1353, %1351 : vector<4x32xf32>
    %1355 = arith.mulf %1346, %1315 : vector<4x32xf32>
    %1356 = arith.addf %1354, %1355 : vector<4x32xf32>
    %1357 = vector.extract_strided_slice %1356 {offsets = [0, 0], sizes = [4, 16], strides = [1, 1]} : vector<4x32xf32> to vector<4x16xf32>
    %c29_450 = arith.constant 29 : index
    %c0_451 = arith.constant 0 : index
    %c0_452 = arith.constant 0 : index
    %1358 = vector.load %arg4[%c29_450, %c0_451, %c0_452] : memref<32x4x32xf32, #tpu.memory_space<vmem>>, vector<1x4x16xf32>
    %1359 = vector.shape_cast %1358 : vector<1x4x16xf32> to vector<4x16xf32>
    %1360 = vector.shape_cast %1357 : vector<4x16xf32> to vector<1x4x16xf32>
    tpu.vector_store %arg4[%c29_450, %c0_451, %c0_452], %1360 {strides = array<i32>} : memref<32x4x32xf32, #tpu.memory_space<vmem>>, vector<1x4x16xf32>,
    %1361 = vector.extract_strided_slice %1356 {offsets = [0, 16], sizes = [4, 16], strides = [1, 1]} : vector<4x32xf32> to vector<4x16xf32>
    %c2_453 = arith.constant 2 : index
    %c0_454 = arith.constant 0 : index
    %c16_455 = arith.constant 16 : index
    %1362 = vector.load %arg4[%c2_453, %c0_454, %c16_455] : memref<32x4x32xf32, #tpu.memory_space<vmem>>, vector<1x4x16xf32>
    %1363 = vector.shape_cast %1362 : vector<1x4x16xf32> to vector<4x16xf32>
    %1364 = vector.shape_cast %1361 : vector<4x16xf32> to vector<1x4x16xf32>
    tpu.vector_store %arg4[%c2_453, %c0_454, %c16_455], %1364 {strides = array<i32>} : memref<32x4x32xf32, #tpu.memory_space<vmem>>, vector<1x4x16xf32>,
    %c34 = arith.constant 34 : index
    %c0_456 = arith.constant 0 : index
    %c0_457 = arith.constant 0 : index
    %1365 = vector.load %arg1[%c34, %c0_456, %c0_457] : memref<40x4x96xf32, #tpu.memory_space<vmem>>, vector<1x4x96xf32>
    %1366 = vector.shape_cast %1365 : vector<1x4x96xf32> to vector<4x96xf32>
    %cst_458 = arith.constant dense<0.000000e+00> : vector<4x96xf32>
    %1367 = tpu.matmul %1356, %0, %cst_458 {dimension_numbers = #tpu.dot_dimension_numbers<[1], [0], [0], [1], [0, 0, 1, 1], [], []>} : vector<4x32xf32>, vector<32x96xf32>, vector<4x96xf32> -> vector<4x96xf32>
    %1368 = vector.broadcast %1 : vector<1x96xf32> to vector<4x96xf32>
    %1369 = arith.addf %1367, %1368 : vector<4x96xf32>
    %1370 = vector.extract_strided_slice %1366 {offsets = [0, 0], sizes = [4, 32], strides = [1, 1]} : vector<4x96xf32> to vector<4x32xf32>
    %1371 = vector.extract_strided_slice %1369 {offsets = [0, 0], sizes = [4, 32], strides = [1, 1]} : vector<4x96xf32> to vector<4x32xf32>
    %1372 = arith.addf %1370, %1371 : vector<4x32xf32>
    %cst_459 = arith.constant 0.000000e+00 : f32
    %1373 = vector.broadcast %cst_459 : f32 to vector<4x32xf32>
    %1374 = arith.subf %1373, %1372 : vector<4x32xf32>
    %1375 = math.exp %1374 : vector<4x32xf32>
    %cst_460 = arith.constant 1.000000e+00 : f32
    %1376 = vector.broadcast %cst_460 : f32 to vector<4x32xf32>
    %1377 = arith.addf %1376, %1375 : vector<4x32xf32>
    %1378 = tpu.reciprocal %1377 {approx = true} : vector<4x32xf32> -> vector<4x32xf32>
    %1379 = vector.extract_strided_slice %1366 {offsets = [0, 32], sizes = [4, 32], strides = [1, 1]} : vector<4x96xf32> to vector<4x32xf32>
    %1380 = vector.extract_strided_slice %1369 {offsets = [0, 32], sizes = [4, 32], strides = [1, 1]} : vector<4x96xf32> to vector<4x32xf32>
    %1381 = arith.addf %1379, %1380 : vector<4x32xf32>
    %cst_461 = arith.constant 0.000000e+00 : f32
    %1382 = vector.broadcast %cst_461 : f32 to vector<4x32xf32>
    %1383 = arith.subf %1382, %1381 : vector<4x32xf32>
    %1384 = math.exp %1383 : vector<4x32xf32>
    %cst_462 = arith.constant 1.000000e+00 : f32
    %1385 = vector.broadcast %cst_462 : f32 to vector<4x32xf32>
    %1386 = arith.addf %1385, %1384 : vector<4x32xf32>
    %1387 = tpu.reciprocal %1386 {approx = true} : vector<4x32xf32> -> vector<4x32xf32>
    %1388 = vector.extract_strided_slice %1366 {offsets = [0, 64], sizes = [4, 32], strides = [1, 1]} : vector<4x96xf32> to vector<4x32xf32>
    %1389 = vector.extract_strided_slice %1369 {offsets = [0, 64], sizes = [4, 32], strides = [1, 1]} : vector<4x96xf32> to vector<4x32xf32>
    %1390 = arith.mulf %1378, %1389 : vector<4x32xf32>
    %1391 = arith.addf %1388, %1390 : vector<4x32xf32>
    %1392 = math.tanh %1391 : vector<4x32xf32>
    %cst_463 = arith.constant 1.000000e+00 : f32
    %1393 = vector.broadcast %cst_463 : f32 to vector<4x32xf32>
    %1394 = arith.subf %1393, %1387 : vector<4x32xf32>
    %1395 = arith.mulf %1394, %1392 : vector<4x32xf32>
    %1396 = arith.mulf %1387, %1356 : vector<4x32xf32>
    %1397 = arith.addf %1395, %1396 : vector<4x32xf32>
    %1398 = vector.extract_strided_slice %1397 {offsets = [0, 0], sizes = [4, 16], strides = [1, 1]} : vector<4x32xf32> to vector<4x16xf32>
    %c30_464 = arith.constant 30 : index
    %c0_465 = arith.constant 0 : index
    %c0_466 = arith.constant 0 : index
    %1399 = vector.load %arg4[%c30_464, %c0_465, %c0_466] : memref<32x4x32xf32, #tpu.memory_space<vmem>>, vector<1x4x16xf32>
    %1400 = vector.shape_cast %1399 : vector<1x4x16xf32> to vector<4x16xf32>
    %1401 = vector.shape_cast %1398 : vector<4x16xf32> to vector<1x4x16xf32>
    tpu.vector_store %arg4[%c30_464, %c0_465, %c0_466], %1401 {strides = array<i32>} : memref<32x4x32xf32, #tpu.memory_space<vmem>>, vector<1x4x16xf32>,
    %1402 = vector.extract_strided_slice %1397 {offsets = [0, 16], sizes = [4, 16], strides = [1, 1]} : vector<4x32xf32> to vector<4x16xf32>
    %c1_467 = arith.constant 1 : index
    %c0_468 = arith.constant 0 : index
    %c16_469 = arith.constant 16 : index
    %1403 = vector.load %arg4[%c1_467, %c0_468, %c16_469] : memref<32x4x32xf32, #tpu.memory_space<vmem>>, vector<1x4x16xf32>
    %1404 = vector.shape_cast %1403 : vector<1x4x16xf32> to vector<4x16xf32>
    %1405 = vector.shape_cast %1402 : vector<4x16xf32> to vector<1x4x16xf32>
    tpu.vector_store %arg4[%c1_467, %c0_468, %c16_469], %1405 {strides = array<i32>} : memref<32x4x32xf32, #tpu.memory_space<vmem>>, vector<1x4x16xf32>,
    %c35 = arith.constant 35 : index
    %c0_470 = arith.constant 0 : index
    %c0_471 = arith.constant 0 : index
    %1406 = vector.load %arg1[%c35, %c0_470, %c0_471] : memref<40x4x96xf32, #tpu.memory_space<vmem>>, vector<1x4x96xf32>
    %1407 = vector.shape_cast %1406 : vector<1x4x96xf32> to vector<4x96xf32>
    %cst_472 = arith.constant dense<0.000000e+00> : vector<4x96xf32>
    %1408 = tpu.matmul %1397, %0, %cst_472 {dimension_numbers = #tpu.dot_dimension_numbers<[1], [0], [0], [1], [0, 0, 1, 1], [], []>} : vector<4x32xf32>, vector<32x96xf32>, vector<4x96xf32> -> vector<4x96xf32>
    %1409 = vector.broadcast %1 : vector<1x96xf32> to vector<4x96xf32>
    %1410 = arith.addf %1408, %1409 : vector<4x96xf32>
    %1411 = vector.extract_strided_slice %1407 {offsets = [0, 0], sizes = [4, 32], strides = [1, 1]} : vector<4x96xf32> to vector<4x32xf32>
    %1412 = vector.extract_strided_slice %1410 {offsets = [0, 0], sizes = [4, 32], strides = [1, 1]} : vector<4x96xf32> to vector<4x32xf32>
    %1413 = arith.addf %1411, %1412 : vector<4x32xf32>
    %cst_473 = arith.constant 0.000000e+00 : f32
    %1414 = vector.broadcast %cst_473 : f32 to vector<4x32xf32>
    %1415 = arith.subf %1414, %1413 : vector<4x32xf32>
    %1416 = math.exp %1415 : vector<4x32xf32>
    %cst_474 = arith.constant 1.000000e+00 : f32
    %1417 = vector.broadcast %cst_474 : f32 to vector<4x32xf32>
    %1418 = arith.addf %1417, %1416 : vector<4x32xf32>
    %1419 = tpu.reciprocal %1418 {approx = true} : vector<4x32xf32> -> vector<4x32xf32>
    %1420 = vector.extract_strided_slice %1407 {offsets = [0, 32], sizes = [4, 32], strides = [1, 1]} : vector<4x96xf32> to vector<4x32xf32>
    %1421 = vector.extract_strided_slice %1410 {offsets = [0, 32], sizes = [4, 32], strides = [1, 1]} : vector<4x96xf32> to vector<4x32xf32>
    %1422 = arith.addf %1420, %1421 : vector<4x32xf32>
    %cst_475 = arith.constant 0.000000e+00 : f32
    %1423 = vector.broadcast %cst_475 : f32 to vector<4x32xf32>
    %1424 = arith.subf %1423, %1422 : vector<4x32xf32>
    %1425 = math.exp %1424 : vector<4x32xf32>
    %cst_476 = arith.constant 1.000000e+00 : f32
    %1426 = vector.broadcast %cst_476 : f32 to vector<4x32xf32>
    %1427 = arith.addf %1426, %1425 : vector<4x32xf32>
    %1428 = tpu.reciprocal %1427 {approx = true} : vector<4x32xf32> -> vector<4x32xf32>
    %1429 = vector.extract_strided_slice %1407 {offsets = [0, 64], sizes = [4, 32], strides = [1, 1]} : vector<4x96xf32> to vector<4x32xf32>
    %1430 = vector.extract_strided_slice %1410 {offsets = [0, 64], sizes = [4, 32], strides = [1, 1]} : vector<4x96xf32> to vector<4x32xf32>
    %1431 = arith.mulf %1419, %1430 : vector<4x32xf32>
    %1432 = arith.addf %1429, %1431 : vector<4x32xf32>
    %1433 = math.tanh %1432 : vector<4x32xf32>
    %cst_477 = arith.constant 1.000000e+00 : f32
    %1434 = vector.broadcast %cst_477 : f32 to vector<4x32xf32>
    %1435 = arith.subf %1434, %1428 : vector<4x32xf32>
    %1436 = arith.mulf %1435, %1433 : vector<4x32xf32>
    %1437 = arith.mulf %1428, %1397 : vector<4x32xf32>
    %1438 = arith.addf %1436, %1437 : vector<4x32xf32>
    %1439 = vector.extract_strided_slice %1438 {offsets = [0, 0], sizes = [4, 16], strides = [1, 1]} : vector<4x32xf32> to vector<4x16xf32>
    %c31_478 = arith.constant 31 : index
    %c0_479 = arith.constant 0 : index
    %c0_480 = arith.constant 0 : index
    %1440 = vector.load %arg4[%c31_478, %c0_479, %c0_480] : memref<32x4x32xf32, #tpu.memory_space<vmem>>, vector<1x4x16xf32>
    %1441 = vector.shape_cast %1440 : vector<1x4x16xf32> to vector<4x16xf32>
    %1442 = vector.shape_cast %1439 : vector<4x16xf32> to vector<1x4x16xf32>
    tpu.vector_store %arg4[%c31_478, %c0_479, %c0_480], %1442 {strides = array<i32>} : memref<32x4x32xf32, #tpu.memory_space<vmem>>, vector<1x4x16xf32>,
    %1443 = vector.extract_strided_slice %1438 {offsets = [0, 16], sizes = [4, 16], strides = [1, 1]} : vector<4x32xf32> to vector<4x16xf32>
    %c0_481 = arith.constant 0 : index
    %c0_482 = arith.constant 0 : index
    %c16_483 = arith.constant 16 : index
    %1444 = vector.load %arg4[%c0_481, %c0_482, %c16_483] : memref<32x4x32xf32, #tpu.memory_space<vmem>>, vector<1x4x16xf32>
    %1445 = vector.shape_cast %1444 : vector<1x4x16xf32> to vector<4x16xf32>
    %1446 = vector.shape_cast %1443 : vector<4x16xf32> to vector<1x4x16xf32>
    tpu.vector_store %arg4[%c0_481, %c0_482, %c16_483], %1446 {strides = array<i32>} : memref<32x4x32xf32, #tpu.memory_space<vmem>>, vector<1x4x16xf32>,
    return
  }
  func.func @transform_0(%arg0: i32) -> (i32, i32, i32) {
    %c0_i32 = arith.constant 0 : i32
    %c0_i32_0 = arith.constant 0 : i32
    %c0_i32_1 = arith.constant 0 : i32
    %c0_i32_2 = arith.constant 0 : i32
    return %c0_i32, %c0_i32_0, %c0_i32_1 : i32, i32, i32
  }
  func.func @transform_1(%arg0: i32) -> (i32, i32) {
    %c0_i32 = arith.constant 0 : i32
    %c0_i32_0 = arith.constant 0 : i32
    %c0_i32_1 = arith.constant 0 : i32
    return %c0_i32, %c0_i32_0 : i32, i32
  }
  func.func @transform_2(%arg0: i32) -> (i32, i32) {
    %c0_i32 = arith.constant 0 : i32
    %c0_i32_0 = arith.constant 0 : i32
    %c0_i32_1 = arith.constant 0 : i32
    return %c0_i32, %c0_i32_0 : i32, i32
  }
  func.func @transform_3(%arg0: i32) -> (i32, i32, i32) {
    %c0_i32 = arith.constant 0 : i32
    %c0_i32_0 = arith.constant 0 : i32
    %c0_i32_1 = arith.constant 0 : i32
    %c0_i32_2 = arith.constant 0 : i32
    return %c0_i32, %c0_i32_0, %c0_i32_1 : i32, i32, i32
  }
}

</mosaic_0001>

<llo_original>
// kernel: squeeze.4
$region0: #{squeeze.4}
  %s0 = inlined_call_operand.vmem [shape: f32[48], index: 0, kind: input, shape index: {}]
  %s1 = inlined_call_operand.hbm [shape: f32[2,1,24], index: 1, kind: output, shape index: {}]
  $region1: #{squeeze.4} parent=0
    #allocation0 [shape = 'u8[1024]{0}', space=vmem, size = 0x400, scoped, tag = 'operand span for operand 1']
    #allocation1 [shape = 's32[1]{0}', space=sflag, size = 0x4, scoped, tag = 'scoped memory for squeeze.4']
    #allocation2 [shape = 'u8[4096]{0}', space=vmem, size = 0x1000, scoped, tag = 'scoped mem for output reshape']
    #allocation3 [shape = 'u8[4096]{0}', space=vmem, size = 0x1000, scoped, tag = 'scoped mem for input reshape']
    %2 = vsyncpa [#allocation1], 0
    %s4 = sshllo.u32 0, 1
    %v5 = vld [vmem:[%s0] sm:%s4]
    %6 = vst [vmem:[#allocation3] sm:%s4] %v5
    %v7 = vld [vmem:[#allocation3] sm:$0x1]
    %vm8 = vcmask 195584
    %9 = vst.msk [vmem:[#allocation2] sm:$0x1] %vm8, %v7
    %v10 = vld [vmem:[#allocation3] sm:$0x1]
    %11 = vrot.lane.b32.xlu0 %v10, 104
    %v12 = vpop.permute.xlu0 %11
    %vm13 = vcmask 195584
    %s14 = scalar_lea.vmem [#allocation2], 1
    %15 = vst.msk [vmem:[%s14] sm:$0x1] %vm13, %v12
    %s17 = sshllo.u32 0, 2
    %v19 = vld [vmem:[#allocation2] sm:%s17]
    %s20 = sshllo.u32 0, 2
    %21 = vst [vmem:[#allocation0] sm:%s20] %v19
    %s23 = ssub.s32 32, 32
    %24 = vsyncadd [#allocation1], %s23
    %s26 = sshll.u32 [#allocation0], 4
    %s27 = int_to_ptr.vmem [resolvable:$true] %s26
    %29 = dma.vmem_to_hbm [thread:$0]  %s27, 32, %s1, [#allocation1]
    %30 = dma.done [#allocation1], 32
    %31 = vsyncpa [#allocation1], 1

// kernel: regressor_forward.3
$region0: #{regressor_forward.3}
  #allocation0 [shape = 'u32[]', space=smem, size = 0x4, offset = 0x4, fixed_abs, tag = 'smem constant byte address 0x4 - core index']
  #allocation1 [shape = 'u32[144,128]{1,0:T(1,128)}', space=vmem, size = 0x12000, scoped, tag = 'internal scratch']
  %s0 = inlined_call_operand.vmem [shape: f32[2,4,40], index: 0, kind: input, shape index: {}]
  %s1 = inlined_call_operand.vmem [shape: f32[32,128], index: 1, kind: input, shape index: {}]
  %s2 = inlined_call_operand.vmem [shape: f32[2,1,2], index: 2, kind: input, shape index: {}]
  %s3 = inlined_call_operand.vmem [shape: f32[32,36], index: 3, kind: input, shape index: {}]
  %s4 = inlined_call_operand.vmem [shape: f32[32,1], index: 4, kind: input, shape index: {}]
  %s5 = inlined_call_operand.vmem [shape: f32[64,32], index: 5, kind: input, shape index: {}]
  %s6 = inlined_call_operand.vmem [shape: f32[2,32,64], index: 6, kind: input, shape index: {}]
  %s7 = inlined_call_operand.vmem [shape: f32[2,32,1], index: 7, kind: input, shape index: {}]
  %s8 = inlined_call_operand.vmem [shape: f32[2,32,32], index: 8, kind: input, shape index: {}]
  %s9 = inlined_call_operand.vmem [shape: f32[2,32,1], index: 9, kind: input, shape index: {}]
  %s10 = inlined_call_operand.vmem [shape: f32[2,32,32], index: 10, kind: input, shape index: {}]
  %s11 = inlined_call_operand.vmem [shape: f32[2,32,1], index: 11, kind: input, shape index: {}]
  %s12 = inlined_call_operand.vmem [shape: f32[2,1,288], index: 12, kind: input, shape index: {}]
  %s13 = inlined_call_operand.vmem [shape: f32[2,1,1], index: 13, kind: input, shape index: {}]
  %s14 = inlined_call_operand.vmem [shape: f32[2,32,64], index: 14, kind: input, shape index: {}]
  %s15 = inlined_call_operand.vmem [shape: f32[2,32,32], index: 15, kind: input, shape index: {}]
  %s16 = inlined_call_operand.vmem [shape: f32[2,32,32], index: 16, kind: input, shape index: {}]
  %s17 = inlined_call_operand.vmem [shape: f32[2,1,32], index: 17, kind: input, shape index: {}]
  %s18 = inlined_call_operand.vmem [shape: f32[2,1,1], index: 18, kind: input, shape index: {}]
  %s19 = inlined_call_operand.vmem [shape: f32[2,1,48], index: 19, kind: output, shape index: {0}]
  %s20 = inlined_call_operand.vmem [shape: f32[2,1,2], index: 20, kind: output, shape index: {1}]
  %s21 = inlined_call_operand.vmem [shape: f32[64,2], index: 21, kind: output, shape index: {2}]
  %22 = xla_tuple %s19, %s20, %s21
  %s23 = sld [smem:[#allocation0]]
  $region102: #{regressor_forward.3} parent=0
    _
  %s25 = ssub.s32 1, %s23
  %s26 = scalar_select 0, %s25, %s23
  // Predicated region
  $region2: #{regressor_forward.3} parent=0 // pred_check
    _
  $region3: #{regressor_forward.3} parent=0 // pred_check_branch
    %28 = sbr.rel (0) target = $region5
  $region4: #{regressor_forward.3} parent=0 // pred_region
    _
  $region5: #{regressor_forward.3} parent=0 // pred_fallthru
    _
  // Predicated region
  $region6: #{regressor_forward.3} parent=0 // pred_check
    _
  $region7: #{regressor_forward.3} parent=0 // pred_check_branch
    %30 = sbr.rel (0) target = $region9
  $region8: #{regressor_forward.3} parent=0 // pred_region
    _
  $region9: #{regressor_forward.3} parent=0 // pred_fallthru
    _
  // Predicated region
  $region10: #{regressor_forward.3} parent=0 // pred_check
    _
  $region11: #{regressor_forward.3} parent=0 // pred_check_branch
    %32 = sbr.rel (0) target = $region13
  $region12: #{regressor_forward.3} parent=0 // pred_region
    _
  $region13: #{regressor_forward.3} parent=0 // pred_fallthru
    _
  // Predicated region
  $region14: #{regressor_forward.3} parent=0 // pred_check
    _
  $region15: #{regressor_forward.3} parent=0 // pred_check_branch
    %34 = sbr.rel (0) target = $region17
  $region16: #{regressor_forward.3} parent=0 // pred_region
    _
  $region17: #{regressor_forward.3} parent=0 // pred_fallthru
    _
  // Predicated region
  $region18: #{regressor_forward.3} parent=0 // pred_check
    _
  $region19: #{regressor_forward.3} parent=0 // pred_check_branch
    %36 = sbr.rel (0) target = $region21
  $region20: #{regressor_forward.3} parent=0 // pred_region
    _
  $region21: #{regressor_forward.3} parent=0 // pred_fallthru
    _
  // Predicated region
  $region22: #{regressor_forward.3} parent=0 // pred_check
    _
  $region23: #{regressor_forward.3} parent=0 // pred_check_branch
    %38 = sbr.rel (0) target = $region25
  $region24: #{regressor_forward.3} parent=0 // pred_region
    _
  $region25: #{regressor_forward.3} parent=0 // pred_fallthru
    _
  // Predicated region
  $region26: #{regressor_forward.3} parent=0 // pred_check
    _
  $region27: #{regressor_forward.3} parent=0 // pred_check_branch
    %40 = sbr.rel (0) target = $region29
  $region28: #{regressor_forward.3} parent=0 // pred_region
    _
  $region29: #{regressor_forward.3} parent=0 // pred_fallthru
    _
  // Predicated region
  $region30: #{regressor_forward.3} parent=0 // pred_check
    _
  $region31: #{regressor_forward.3} parent=0 // pred_check_branch
    %42 = sbr.rel (0) target = $region33
  $region32: #{regressor_forward.3} parent=0 // pred_region
    _
  $region33: #{regressor_forward.3} parent=0 // pred_fallthru
    _
  // Predicated region
  $region34: #{regressor_forward.3} parent=0 // pred_check
    _
  $region35: #{regressor_forward.3} parent=0 // pred_check_branch
    %44 = sbr.rel (0) target = $region37
  $region36: #{regressor_forward.3} parent=0 // pred_region
    _
  $region37: #{regressor_forward.3} parent=0 // pred_fallthru
    _
  // Predicated region
  $region38: #{regressor_forward.3} parent=0 // pred_check
    _
  $region39: #{regressor_forward.3} parent=0 // pred_check_branch
    %46 = sbr.rel (0) target = $region41
  $region40: #{regressor_forward.3} parent=0 // pred_region
    _
  $region41: #{regressor_forward.3} parent=0 // pred_fallthru
    _
  // Predicated region
  $region42: #{regressor_forward.3} parent=0 // pred_check
    _
  $region43: #{regressor_forward.3} parent=0 // pred_check_branch
    %48 = sbr.rel (0) target = $region45
  $region44: #{regressor_forward.3} parent=0 // pred_region
    _
  $region45: #{regressor_forward.3} parent=0 // pred_fallthru
    _
  // Predicated region
  $region46: #{regressor_forward.3} parent=0 // pred_check
    _
  $region47: #{regressor_forward.3} parent=0 // pred_check_branch
    %50 = sbr.rel (0) target = $region49
  $region48: #{regressor_forward.3} parent=0 // pred_region
    _
  $region49: #{regressor_forward.3} parent=0 // pred_fallthru
    _
  // Predicated region
  $region50: #{regressor_forward.3} parent=0 // pred_check
    _
  $region51: #{regressor_forward.3} parent=0 // pred_check_branch
    %52 = sbr.rel (0) target = $region53
  $region52: #{regressor_forward.3} parent=0 // pred_region
    _
  $region53: #{regressor_forward.3} parent=0 // pred_fallthru
    _
  // Predicated region
  $region54: #{regressor_forward.3} parent=0 // pred_check
    _
  $region55: #{regressor_forward.3} parent=0 // pred_check_branch
    %54 = sbr.rel (0) target = $region57
  $region56: #{regressor_forward.3} parent=0 // pred_region
    _
  $region57: #{regressor_forward.3} parent=0 // pred_fallthru
    _
  // Predicated region
  $region58: #{regressor_forward.3} parent=0 // pred_check
    _
  $region59: #{regressor_forward.3} parent=0 // pred_check_branch
    %56 = sbr.rel (0) target = $region61
  $region60: #{regressor_forward.3} parent=0 // pred_region
    _
  $region61: #{regressor_forward.3} parent=0 // pred_fallthru
    _
  // Predicated region
  $region62: #{regressor_forward.3} parent=0 // pred_check
    _
  $region63: #{regressor_forward.3} parent=0 // pred_check_branch
    %58 = sbr.rel (0) target = $region65
  $region64: #{regressor_forward.3} parent=0 // pred_region
    _
  $region65: #{regressor_forward.3} parent=0 // pred_fallthru
    _
  // Predicated region
  $region66: #{regressor_forward.3} parent=0 // pred_check
    _
  $region67: #{regressor_forward.3} parent=0 // pred_check_branch
    %60 = sbr.rel (0) target = $region69
  $region68: #{regressor_forward.3} parent=0 // pred_region
    _
  $region69: #{regressor_forward.3} parent=0 // pred_fallthru
    _
  // Predicated region
  $region70: #{regressor_forward.3} parent=0 // pred_check
    _
  $region71: #{regressor_forward.3} parent=0 // pred_check_branch
    %62 = sbr.rel (0) target = $region73
  $region72: #{regressor_forward.3} parent=0 // pred_region
    _
  $region73: #{regressor_forward.3} parent=0 // pred_fallthru
    _
  // Predicated region
  $region74: #{regressor_forward.3} parent=0 // pred_check
    _
  $region75: #{regressor_forward.3} parent=0 // pred_check_branch
    %64 = sbr.rel (0) target = $region77
  $region76: #{regressor_forward.3} parent=0 // pred_region
    _
  $region77: #{regressor_forward.3} parent=0 // pred_fallthru
    _
  %v65 = vld [vmem:[%s0] sm:$0xf]
  %s66 = scalar_lea.vmem %s0, 4
  %v67 = vld [vmem:[%s66] sm:$0xf]
  %69 = vrot.lane.b32.xlu0 %v67, 32
  %v70 = vpop.permute.xlu0 %69
  %vm72 = vcmask 261120
  %v73 = vsel %vm72, %v65, %v70
  %75 = vrot.lane.b32.xlu0 %v65, 127
  %v76 = vpop.permute.xlu0 %75
  %78 = vrot.lane.b32.xlu0 %v67, 31
  %v79 = vpop.permute.xlu0 %78
  %v81 = vsel %vm72, %v76, %v79
  %82 = vrot.lane.b32.xlu0 %v65, 126
  %v83 = vpop.permute.xlu0 %82
  %85 = vrot.lane.b32.xlu0 %v67, 30
  %v86 = vpop.permute.xlu0 %85
  %v88 = vsel %vm72, %v83, %v86
  %89 = vrot.lane.b32.xlu0 %v65, 125
  %v90 = vpop.permute.xlu0 %89
  %92 = vrot.lane.b32.xlu0 %v67, 29
  %v93 = vpop.permute.xlu0 %92
  %v95 = vsel %vm72, %v90, %v93
  %96 = vrot.lane.b32.xlu0 %v65, 124
  %v97 = vpop.permute.xlu0 %96
  %99 = vrot.lane.b32.xlu0 %v67, 28
  %v100 = vpop.permute.xlu0 %99
  %v102 = vsel %vm72, %v97, %v100
  %103 = vrot.lane.b32.xlu0 %v65, 123
  %v104 = vpop.permute.xlu0 %103
  %106 = vrot.lane.b32.xlu0 %v67, 27
  %v107 = vpop.permute.xlu0 %106
  %v109 = vsel %vm72, %v104, %v107
  %110 = vrot.lane.b32.xlu0 %v65, 122
  %v111 = vpop.permute.xlu0 %110
  %113 = vrot.lane.b32.xlu0 %v67, 26
  %v114 = vpop.permute.xlu0 %113
  %v116 = vsel %vm72, %v111, %v114
  %117 = vrot.lane.b32.xlu0 %v65, 121
  %v118 = vpop.permute.xlu0 %117
  %120 = vrot.lane.b32.xlu0 %v67, 25
  %v121 = vpop.permute.xlu0 %120
  %v123 = vsel %vm72, %v118, %v121
  %124 = vrot.lane.b32.xlu0 %v65, 120
  %v125 = vpop.permute.xlu0 %124
  %127 = vrot.lane.b32.xlu0 %v67, 24
  %v128 = vpop.permute.xlu0 %127
  %v130 = vsel %vm72, %v125, %v128
  %v132 = vrot.slane %v81, 4
  %v135 = vrot.slane %v95, 4
  %v138 = vrot.slane %v109, 4
  %v141 = vrot.slane %v123, 4
  %vm143 = vcmask 1043456
  %v144 = vsel %vm143, %v73, %v132
  %v145 = vsel %vm143, %v88, %v135
  %v146 = vsel %vm143, %v102, %v138
  %v147 = vsel %vm143, %v116, %v141
  %v148 = vld [vmem:[%s3] sm:$0xff]
  %v149 = vld [vmem:[%s3 + $0x8] sm:$0xff]
  %v150 = vld [vmem:[%s3 + $0x10] sm:$0xff]
  %v151 = vld [vmem:[%s3 + $0x18] sm:$0xff]
  %v152 = vld [vmem:[%s4] sm:$0xff]
  %v153 = vld [vmem:[%s4 + $0x8] sm:$0xff]
  %v154 = vld [vmem:[%s4 + $0x10] sm:$0xff]
  %v155 = vld [vmem:[%s4 + $0x18] sm:$0xff]
  %157 = vset.pattern.permute.xlu0 0
  %158 = vperm.xlu0 %157, %v152
  %v159 = vpop.permute.xlu0 %158
  %162 = vset.pattern.permute.xlu0 0
  %163 = vperm.xlu0 %162, %v153
  %v164 = vpop.permute.xlu0 %163
  %167 = vset.pattern.permute.xlu0 0
  %168 = vperm.xlu0 %167, %v154
  %v169 = vpop.permute.xlu0 %168
  %172 = vset.pattern.permute.xlu0 0
  %173 = vperm.xlu0 %172, %v155
  %v174 = vpop.permute.xlu0 %173
  %vm176 = vcmask 293888
  %v178 = vsel %vm176, %v148, 0
  %v181 = vsel %vm176, %v149, 0
  %v184 = vsel %vm176, %v150, 0
  %v187 = vsel %vm176, %v151, 0
  %v190 = vsel %vm143, %v130, 0
  %192 = vmatprep.subr.mxu0 0.0
  %193 = vmatpush1.msra.mxu0 %v144
  %194 = vmatprep.subr.mxu0 0.0
  %195 = vmatpush1.msra.mxu0 %v145
  %196 = vmatprep.subr.mxu0 0.0
  %197 = vmatpush1.msra.mxu0 %v146
  %198 = vmatprep.subr.mxu0 0.0
  %199 = vmatpush1.msra.mxu0 %v147
  %200 = vmatprep.subr.mxu0 0.0
  %201 = vmatpush1.msra.mxu0 %v190
  %202 = vmatprep.subr.mxu0 0.0
  %203 = vmatpush1.msra.mxu0 0.0
  %204 = vmatprep.subr.mxu0 0.0
  %205 = vmatpush1.msra.mxu0 0.0
  %206 = vmatprep.subr.mxu0 0.0
  %207 = vmatpush1.msra.mxu0 0.0
  %208 = vmatprep.subr.mxu0 0.0
  %209 = vmatpush1.msra.mxu0 0.0
  %210 = vmatprep.subr.mxu0 0.0
  %211 = vmatpush1.msra.mxu0 0.0
  %212 = vmatprep.subr.mxu0 0.0
  %213 = vmatpush1.msra.mxu0 0.0
  %214 = vmatprep.subr.mxu0 0.0
  %215 = vmatpush1.msra.mxu0 0.0
  %216 = vmatprep.subr.mxu0 0.0
  %217 = vmatpush1.msra.mxu0 0.0
  %218 = vmatprep.subr.mxu0 0.0
  %219 = vmatpush1.msra.mxu0 0.0
  %220 = vmatprep.subr.mxu0 0.0
  %221 = vmatpush1.msra.mxu0 0.0
  %222 = vmatprep.subr.mxu0 0.0
  %223 = vmatpush1.msra.mxu0 0.0
  %224 = vmatprep.subr.mxu0 0.0
  %225 = vmatpush1.msra.mxu0 0.0
  %226 = vmatprep.subr.mxu0 0.0
  %227 = vmatpush1.msra.mxu0 0.0
  %228 = vmatprep.subr.mxu0 0.0
  %229 = vmatpush1.msra.mxu0 0.0
  %230 = vmatprep.subr.mxu0 0.0
  %231 = vmatpush1.msra.mxu0 0.0
  %232 = vmatprep.subr.mxu0 0.0
  %233 = vmatpush1.msra.mxu0 0.0
  %234 = vmatprep.subr.mxu0 0.0
  %235 = vmatpush1.msra.mxu0 0.0
  %236 = vmatprep.subr.mxu0 0.0
  %237 = vmatpush1.msra.mxu0 0.0
  %238 = vmatprep.subr.mxu0 0.0
  %239 = vmatpush1.msra.mxu0 0.0
  %240 = vmatprep.subr.mxu0 0.0
  %241 = vmatpush1.msra.mxu0 0.0
  %242 = vmatprep.subr.mxu0 0.0
  %243 = vmatpush1.msra.mxu0 0.0
  %244 = vmatprep.subr.mxu0 0.0
  %245 = vmatpush1.msra.mxu0 0.0
  %246 = vmatprep.subr.mxu0 0.0
  %247 = vmatpush1.msra.mxu0 0.0
  %248 = vmatprep.subr.mxu0 0.0
  %249 = vmatpush1.msra.mxu0 0.0
  %250 = vmatprep.subr.mxu0 0.0
  %251 = vmatpush1.msra.mxu0 0.0
  %252 = vmatprep.subr.mxu0 0.0
  %253 = vmatpush1.msra.mxu0 0.0
  %254 = vmatprep.subr.mxu0 0.0
  %255 = vmatpush1.msra.mxu0 0.0
  %256 = vmatprep.mubr.f32.mxu0 0.0
  %257 = vmatmul.mubr.f32.gmra.mrb[0].mxu0 %v178
  %v258 = vpop.f32.mrb[0].mxu0
  %v259 = vadd.f32 %v159, %v258
  %v260 = vpop.f32.mrb[0].mxu0
  %261 = vmatprep.mubr.f32.mxu0 0.0
  %262 = vmatmul.mubr.f32.gmra.mrb[0].mxu0 %v181
  %v263 = vpop.f32.mrb[0].mxu0
  %v264 = vadd.f32 %v164, %v263
  %v265 = vpop.f32.mrb[0].mxu0
  %266 = vmatprep.mubr.f32.mxu0 0.0
  %267 = vmatmul.mubr.f32.gmra.mrb[0].mxu0 %v184
  %v268 = vpop.f32.mrb[0].mxu0
  %v269 = vadd.f32 %v169, %v268
  %v270 = vpop.f32.mrb[0].mxu0
  %271 = vmatprep.mubr.f32.mxu0 0.0
  %272 = vmatmul.mubr.f32.gmra.mrb[0].mxu0 %v187
  %v273 = vpop.f32.mrb[0].mxu0
  %v274 = vadd.f32 %v174, %v273
  %v275 = vpop.f32.mrb[0].mxu0
  %276 = vdwg.mxu0
  %v277 = vsel %vm72, %v259, 0.0
  %278 = vadd.xlane.f32.xlu0 %v277
  %v279 = vpop.xlane.xlu0 %278
  %v280 = vsel %vm72, %v264, 0.0
  %281 = vadd.xlane.f32.xlu0 %v280
  %v282 = vpop.xlane.xlu0 %281
  %v283 = vsel %vm72, %v269, 0.0
  %284 = vadd.xlane.f32.xlu0 %v283
  %v285 = vpop.xlane.xlu0 %284
  %v286 = vsel %vm72, %v274, 0.0
  %287 = vadd.xlane.f32.xlu0 %v286
  %v288 = vpop.xlane.xlu0 %287
  %v289 = vrcp.pop 32.0
  %v290 = vmul.f32 %v279, %v289
  %v291 = vmul.f32 %v282, %v289
  %v292 = vmul.f32 %v285, %v289
  %v293 = vmul.f32 %v288, %v289
  %298 = vrot.lane.b32.xlu0 %v259, 96
  %v299 = vpop.permute.xlu0 %298
  %300 = vrot.lane.b32.xlu0 %v264, 96
  %v301 = vpop.permute.xlu0 %300
  %302 = vrot.lane.b32.xlu0 %v269, 96
  %v303 = vpop.permute.xlu0 %302
  %304 = vrot.lane.b32.xlu0 %v274, 96
  %v305 = vpop.permute.xlu0 %304
  %v310 = vsel %vm72, %v299, 0.0
  %311 = vadd.xlane.f32.xlu0 %v310
  %v312 = vpop.xlane.xlu0 %311
  %v313 = vsel %vm72, %v301, 0.0
  %314 = vadd.xlane.f32.xlu0 %v313
  %v315 = vpop.xlane.xlu0 %314
  %v316 = vsel %vm72, %v303, 0.0
  %317 = vadd.xlane.f32.xlu0 %v316
  %v318 = vpop.xlane.xlu0 %317
  %v319 = vsel %vm72, %v305, 0.0
  %320 = vadd.xlane.f32.xlu0 %v319
  %v321 = vpop.xlane.xlu0 %320
  %v322 = vmul.f32 %v312, %v289
  %v323 = vmul.f32 %v315, %v289
  %v324 = vmul.f32 %v318, %v289
  %v325 = vmul.f32 %v321, %v289
  %vm326 = vcmask 7168
  %v327 = vsel %vm326, %v290, %v322
  %v328 = vsel %vm326, %v291, %v323
  %v329 = vsel %vm326, %v292, %v324
  %v330 = vsel %vm326, %v293, %v325
  %v331 = vld [vmem:[%s5] sm:$0xff]
  %v332 = vld [vmem:[%s5 + $0x8] sm:$0xff]
  %v333 = vld [vmem:[%s5 + $0x10] sm:$0xff]
  %v334 = vld [vmem:[%s5 + $0x18] sm:$0xff]
  %v335 = vld [vmem:[%s5 + $0x20] sm:$0xff]
  %v336 = vld [vmem:[%s5 + $0x28] sm:$0xff]
  %v337 = vld [vmem:[%s5 + $0x30] sm:$0xff]
  %v338 = vld [vmem:[%s5 + $0x38] sm:$0xff]
  %v340 = vsel %vm72, %v331, 0
  %v343 = vsel %vm72, %v332, 0
  %v346 = vsel %vm72, %v333, 0
  %v349 = vsel %vm72, %v334, 0
  %v352 = vsel %vm72, %v335, 0
  %v355 = vsel %vm72, %v336, 0
  %v358 = vsel %vm72, %v337, 0
  %v361 = vsel %vm72, %v338, 0
  %363 = vmatprep.subr.mxu0 0.0
  %364 = vmatpush1.msra.mxu0 %v327
  %365 = vmatprep.subr.mxu0 0.0
  %366 = vmatpush1.msra.mxu0 %v328
  %367 = vmatprep.subr.mxu0 0.0
  %368 = vmatpush1.msra.mxu0 %v329
  %369 = vmatprep.subr.mxu0 0.0
  %370 = vmatpush1.msra.mxu0 %v330
  %371 = vmatprep.subr.mxu0 0.0
  %372 = vmatpush1.msra.mxu0 0.0
  %373 = vmatprep.subr.mxu0 0.0
  %374 = vmatpush1.msra.mxu0 0.0
  %375 = vmatprep.subr.mxu0 0.0
  %376 = vmatpush1.msra.mxu0 0.0
  %377 = vmatprep.subr.mxu0 0.0
  %378 = vmatpush1.msra.mxu0 0.0
  %379 = vmatprep.subr.mxu0 0.0
  %380 = vmatpush1.msra.mxu0 0.0
  %381 = vmatprep.subr.mxu0 0.0
  %382 = vmatpush1.msra.mxu0 0.0
  %383 = vmatprep.subr.mxu0 0.0
  %384 = vmatpush1.msra.mxu0 0.0
  %385 = vmatprep.subr.mxu0 0.0
  %386 = vmatpush1.msra.mxu0 0.0
  %387 = vmatprep.subr.mxu0 0.0
  %388 = vmatpush1.msra.mxu0 0.0
  %389 = vmatprep.subr.mxu0 0.0
  %390 = vmatpush1.msra.mxu0 0.0
  %391 = vmatprep.subr.mxu0 0.0
  %392 = vmatpush1.msra.mxu0 0.0
  %393 = vmatprep.subr.mxu0 0.0
  %394 = vmatpush1.msra.mxu0 0.0
  %395 = vmatprep.subr.mxu0 0.0
  %396 = vmatpush1.msra.mxu0 0.0
  %397 = vmatprep.subr.mxu0 0.0
  %398 = vmatpush1.msra.mxu0 0.0
  %399 = vmatprep.subr.mxu0 0.0
  %400 = vmatpush1.msra.mxu0 0.0
  %401 = vmatprep.subr.mxu0 0.0
  %402 = vmatpush1.msra.mxu0 0.0
  %403 = vmatprep.subr.mxu0 0.0
  %404 = vmatpush1.msra.mxu0 0.0
  %405 = vmatprep.subr.mxu0 0.0
  %406 = vmatpush1.msra.mxu0 0.0
  %407 = vmatprep.subr.mxu0 0.0
  %408 = vmatpush1.msra.mxu0 0.0
  %409 = vmatprep.subr.mxu0 0.0
  %410 = vmatpush1.msra.mxu0 0.0
  %411 = vmatprep.subr.mxu0 0.0
  %412 = vmatpush1.msra.mxu0 0.0
  %413 = vmatprep.subr.mxu0 0.0
  %414 = vmatpush1.msra.mxu0 0.0
  %415 = vmatprep.subr.mxu0 0.0
  %416 = vmatpush1.msra.mxu0 0.0
  %417 = vmatprep.subr.mxu0 0.0
  %418 = vmatpush1.msra.mxu0 0.0
  %419 = vmatprep.subr.mxu0 0.0
  %420 = vmatpush1.msra.mxu0 0.0
  %421 = vmatprep.subr.mxu0 0.0
  %422 = vmatpush1.msra.mxu0 0.0
  %423 = vmatprep.subr.mxu0 0.0
  %424 = vmatpush1.msra.mxu0 0.0
  %425 = vmatprep.subr.mxu0 0.0
  %426 = vmatpush1.msra.mxu0 0.0
  %427 = vmatprep.mubr.f32.mxu0 0.0
  %428 = vmatmul.mubr.f32.gmra.mrb[0].mxu0 %v340
  %v429 = vpop.f32.mrb[0].mxu0
  %v430 = vadd.f32 0.0, %v429
  %v431 = vpop.f32.mrb[0].mxu0
  %432 = vmatprep.mubr.f32.mxu0 0.0
  %433 = vmatmul.mubr.f32.gmra.mrb[0].mxu0 %v343
  %v434 = vpop.f32.mrb[0].mxu0
  %v435 = vadd.f32 0.0, %v434
  %v436 = vpop.f32.mrb[0].mxu0
  %437 = vmatprep.mubr.f32.mxu0 0.0
  %438 = vmatmul.mubr.f32.gmra.mrb[0].mxu0 %v346
  %v439 = vpop.f32.mrb[0].mxu0
  %v440 = vadd.f32 0.0, %v439
  %v441 = vpop.f32.mrb[0].mxu0
  %442 = vmatprep.mubr.f32.mxu0 0.0
  %443 = vmatmul.mubr.f32.gmra.mrb[0].mxu0 %v349
  %v444 = vpop.f32.mrb[0].mxu0
  %v445 = vadd.f32 0.0, %v444
  %v446 = vpop.f32.mrb[0].mxu0
  %447 = vmatprep.mubr.f32.mxu0 0.0
  %448 = vmatmul.mubr.f32.gmra.mrb[0].mxu0 %v352
  %v449 = vpop.f32.mrb[0].mxu0
  %v450 = vadd.f32 0.0, %v449
  %v451 = vpop.f32.mrb[0].mxu0
  %452 = vmatprep.mubr.f32.mxu0 0.0
  %453 = vmatmul.mubr.f32.gmra.mrb[0].mxu0 %v355
  %v454 = vpop.f32.mrb[0].mxu0
  %v455 = vadd.f32 0.0, %v454
  %v456 = vpop.f32.mrb[0].mxu0
  %457 = vmatprep.mubr.f32.mxu0 0.0
  %458 = vmatmul.mubr.f32.gmra.mrb[0].mxu0 %v358
  %v459 = vpop.f32.mrb[0].mxu0
  %v460 = vadd.f32 0.0, %v459
  %v461 = vpop.f32.mrb[0].mxu0
  %462 = vmatprep.mubr.f32.mxu0 0.0
  %463 = vmatmul.mubr.f32.gmra.mrb[0].mxu0 %v361
  %v464 = vpop.f32.mrb[0].mxu0
  %v465 = vadd.f32 0.0, %v464
  %v466 = vpop.f32.mrb[0].mxu0
  %467 = vdwg.mxu0
  %v468 = vsub.f32 0.0, %v430
  %v469 = vsub.f32 0.0, %v435
  %v470 = vsub.f32 0.0, %v440
  %v471 = vsub.f32 0.0, %v445
  %v472 = vsub.f32 0.0, %v450
  %v473 = vsub.f32 0.0, %v455
  %v474 = vsub.f32 0.0, %v460
  %v475 = vsub.f32 0.0, %v465
  %v476 = vmul.f32 %v468, 1.442695
  %v477 = vpow.pop %v476
  %v478 = vmul.f32 %v469, 1.442695
  %v479 = vpow.pop %v478
  %v480 = vmul.f32 %v470, 1.442695
  %v481 = vpow.pop %v480
  %v482 = vmul.f32 %v471, 1.442695
  %v483 = vpow.pop %v482
  %v484 = vmul.f32 %v472, 1.442695
  %v485 = vpow.pop %v484
  %v486 = vmul.f32 %v473, 1.442695
  %v487 = vpow.pop %v486
  %v488 = vmul.f32 %v474, 1.442695
  %v489 = vpow.pop %v488
  %v490 = vmul.f32 %v475, 1.442695
  %v491 = vpow.pop %v490
  %v492 = vadd.f32 %v477, 1.0
  %v493 = vadd.f32 %v479, 1.0
  %v494 = vadd.f32 %v481, 1.0
  %v495 = vadd.f32 %v483, 1.0
  %v496 = vadd.f32 %v485, 1.0
  %v497 = vadd.f32 %v487, 1.0
  %v498 = vadd.f32 %v489, 1.0
  %v499 = vadd.f32 %v491, 1.0
  %v500 = vrcp.pop %v492
  %v501 = vmul.f32 1.0, %v500
  %v502 = vrcp.pop %v493
  %v503 = vmul.f32 1.0, %v502
  %v504 = vrcp.pop %v494
  %v505 = vmul.f32 1.0, %v504
  %v506 = vrcp.pop %v495
  %v507 = vmul.f32 1.0, %v506
  %v508 = vrcp.pop %v496
  %v509 = vmul.f32 1.0, %v508
  %v510 = vrcp.pop %v497
  %v511 = vmul.f32 1.0, %v510
  %v512 = vrcp.pop %v498
  %v513 = vmul.f32 1.0, %v512
  %v514 = vrcp.pop %v499
  %v515 = vmul.f32 1.0, %v514
  %vm516 = vcmask 15360
  %517 = vst.msk [vmem:[%s21] sm:$0xff] %vm516, %v501
  %518 = vst.msk [vmem:[%s21 + $0x8] sm:$0xff] %vm516, %v503
  %519 = vst.msk [vmem:[%s21 + $0x10] sm:$0xff] %vm516, %v505
  %520 = vst.msk [vmem:[%s21 + $0x18] sm:$0xff] %vm516, %v507
  %521 = vst.msk [vmem:[%s21 + $0x20] sm:$0xff] %vm516, %v509
  %522 = vst.msk [vmem:[%s21 + $0x28] sm:$0xff] %vm516, %v511
  %523 = vst.msk [vmem:[%s21 + $0x30] sm:$0xff] %vm516, %v513
  %524 = vst.msk [vmem:[%s21 + $0x38] sm:$0xff] %vm516, %v515
  %v525 = vld [vmem:[%s1] sm:$0xff]
  %v526 = vld [vmem:[%s1 + $0x8] sm:$0xff]
  %v527 = vld [vmem:[%s1 + $0x10] sm:$0xff]
  %v528 = vld [vmem:[%s1 + $0x18] sm:$0xff]
  %529 = vxpose.xlu0.b32.start [1/16] %v525, 128
  %530 = vxpose.xlu0.b32.cont [2/16] %v526, 128
  %531 = vxpose.xlu0.b32.cont [3/16] %v527, 128
  %532 = vxpose.xlu0.b32.cont [4/16] %v528, 128
  %533 = vxpose.xlu0.b32.cont [5/16] 0.0, 128
  %534 = vxpose.xlu0.b32.cont [6/16] 0.0, 128
  %535 = vxpose.xlu0.b32.cont [7/16] 0.0, 128
  %536 = vxpose.xlu0.b32.cont [8/16] 0.0, 128
  %537 = vxpose.xlu0.b32.cont [9/16] 0.0, 128
  %538 = vxpose.xlu0.b32.cont [10/16] 0.0, 128
  %539 = vxpose.xlu0.b32.cont [11/16] 0.0, 128
  %540 = vxpose.xlu0.b32.cont [12/16] 0.0, 128
  %541 = vxpose.xlu0.b32.cont [13/16] 0.0, 128
  %542 = vxpose.xlu0.b32.cont [14/16] 0.0, 128
  %543 = vxpose.xlu0.b32.cont [15/16] 0.0, 128
  %544 = vxpose.xlu0.b32.end [16/16] 0.0, 128
  %v545 = vpop.trf.xlu0
  %v546 = vpop.trf.xlu0
  %v547 = vpop.trf.xlu0
  %v548 = vpop.trf.xlu0
  %v549 = vpop.trf.xlu0
  %v550 = vpop.trf.xlu0
  %v551 = vpop.trf.xlu0
  %v552 = vpop.trf.xlu0
  %v553 = vpop.trf.xlu0
  %v554 = vpop.trf.xlu0
  %v555 = vpop.trf.xlu0
  %v556 = vpop.trf.xlu0
  %v557 = vpop.trf.xlu0
  %v558 = vpop.trf.xlu0
  %v559 = vpop.trf.xlu0
  %v560 = vpop.trf.xlu0
  %565 = vrot.lane.b32.xlu0 %v553, 32
  %v566 = vpop.permute.xlu0 %565
  %567 = vrot.lane.b32.xlu0 %v554, 32
  %v568 = vpop.permute.xlu0 %567
  %569 = vrot.lane.b32.xlu0 %v555, 32
  %v570 = vpop.permute.xlu0 %569
  %571 = vrot.lane.b32.xlu0 %v556, 32
  %v572 = vpop.permute.xlu0 %571
  %v577 = vsel %vm72, %v545, %v566
  %v578 = vsel %vm72, %v546, %v568
  %v579 = vsel %vm72, %v547, %v570
  %v580 = vsel %vm72, %v548, %v572
  %582 = vset.pattern.permute.xlu0 0
  %583 = vperm.xlu0 %582, %v501
  %v584 = vpop.permute.xlu0 %583
  %587 = vset.pattern.permute.xlu0 0
  %588 = vperm.xlu0 %587, %v503
  %v589 = vpop.permute.xlu0 %588
  %592 = vset.pattern.permute.xlu0 0
  %593 = vperm.xlu0 %592, %v505
  %v594 = vpop.permute.xlu0 %593
  %597 = vset.pattern.permute.xlu0 0
  %598 = vperm.xlu0 %597, %v507
  %v599 = vpop.permute.xlu0 %598
  %601 = vset.pattern.permute.xlu0 1
  %602 = vperm.xlu0 %601, %v501
  %v603 = vpop.permute.xlu0 %602
  %605 = vset.pattern.permute.xlu0 1
  %606 = vperm.xlu0 %605, %v503
  %v607 = vpop.permute.xlu0 %606
  %609 = vset.pattern.permute.xlu0 1
  %610 = vperm.xlu0 %609, %v505
  %v611 = vpop.permute.xlu0 %610
  %613 = vset.pattern.permute.xlu0 1
  %614 = vperm.xlu0 %613, %v507
  %v615 = vpop.permute.xlu0 %614
  %v617 = vsel %vm72, %v584, %v603
  %v618 = vsel %vm72, %v589, %v607
  %v619 = vsel %vm72, %v594, %v611
  %v620 = vsel %vm72, %v599, %v615
  %v621 = vmul.f32 %v259, %v617
  %v622 = vmul.f32 %v264, %v618
  %v623 = vmul.f32 %v269, %v619
  %v624 = vmul.f32 %v274, %v620
  %v625 = vld [vmem:[%s6] sm:$0xff]
  %v626 = vld [vmem:[%s6 + $0x8] sm:$0xff]
  %v627 = vld [vmem:[%s6 + $0x10] sm:$0xff]
  %v628 = vld [vmem:[%s6 + $0x18] sm:$0xff]
  %v629 = vld [vmem:[%s7] sm:$0xff]
  %v630 = vld [vmem:[%s7 + $0x8] sm:$0xff]
  %v631 = vld [vmem:[%s7 + $0x10] sm:$0xff]
  %v632 = vld [vmem:[%s7 + $0x18] sm:$0xff]
  %634 = vset.pattern.permute.xlu0 0
  %635 = vperm.xlu0 %634, %v629
  %v636 = vpop.permute.xlu0 %635
  %639 = vset.pattern.permute.xlu0 0
  %640 = vperm.xlu0 %639, %v630
  %v641 = vpop.permute.xlu0 %640
  %644 = vset.pattern.permute.xlu0 0
  %645 = vperm.xlu0 %644, %v631
  %v646 = vpop.permute.xlu0 %645
  %649 = vset.pattern.permute.xlu0 0
  %650 = vperm.xlu0 %649, %v632
  %v651 = vpop.permute.xlu0 %650
  %vm653 = vcmask 523264
  %v655 = vsel %vm653, %v625, 0
  %v658 = vsel %vm653, %v626, 0
  %v661 = vsel %vm653, %v627, 0
  %v664 = vsel %vm653, %v628, 0
  %666 = vmatprep.subr.mxu0 0.0
  %667 = vmatpush1.msra.mxu0 %v621
  %668 = vmatprep.subr.mxu0 0.0
  %669 = vmatpush1.msra.mxu0 %v622
  %670 = vmatprep.subr.mxu0 0.0
  %671 = vmatpush1.msra.mxu0 %v623
  %672 = vmatprep.subr.mxu0 0.0
  %673 = vmatpush1.msra.mxu0 %v624
  %674 = vmatprep.subr.mxu0 0.0
  %675 = vmatpush1.msra.mxu0 %v577
  %676 = vmatprep.subr.mxu0 0.0
  %677 = vmatpush1.msra.mxu0 %v578
  %678 = vmatprep.subr.mxu0 0.0
  %679 = vmatpush1.msra.mxu0 %v579
  %680 = vmatprep.subr.mxu0 0.0
  %681 = vmatpush1.msra.mxu0 %v580
  %682 = vmatprep.subr.mxu0 0.0
  %683 = vmatpush1.msra.mxu0 0.0
  %684 = vmatprep.subr.mxu0 0.0
  %685 = vmatpush1.msra.mxu0 0.0
  %686 = vmatprep.subr.mxu0 0.0
  %687 = vmatpush1.msra.mxu0 0.0
  %688 = vmatprep.subr.mxu0 0.0
  %689 = vmatpush1.msra.mxu0 0.0
  %690 = vmatprep.subr.mxu0 0.0
  %691 = vmatpush1.msra.mxu0 0.0
  %692 = vmatprep.subr.mxu0 0.0
  %693 = vmatpush1.msra.mxu0 0.0
  %694 = vmatprep.subr.mxu0 0.0
  %695 = vmatpush1.msra.mxu0 0.0
  %696 = vmatprep.subr.mxu0 0.0
  %697 = vmatpush1.msra.mxu0 0.0
  %698 = vmatprep.subr.mxu0 0.0
  %699 = vmatpush1.msra.mxu0 0.0
  %700 = vmatprep.subr.mxu0 0.0
  %701 = vmatpush1.msra.mxu0 0.0
  %702 = vmatprep.subr.mxu0 0.0
  %703 = vmatpush1.msra.mxu0 0.0
  %704 = vmatprep.subr.mxu0 0.0
  %705 = vmatpush1.msra.mxu0 0.0
  %706 = vmatprep.subr.mxu0 0.0
  %707 = vmatpush1.msra.mxu0 0.0
  %708 = vmatprep.subr.mxu0 0.0
  %709 = vmatpush1.msra.mxu0 0.0
  %710 = vmatprep.subr.mxu0 0.0
  %711 = vmatpush1.msra.mxu0 0.0
  %712 = vmatprep.subr.mxu0 0.0
  %713 = vmatpush1.msra.mxu0 0.0
  %714 = vmatprep.subr.mxu0 0.0
  %715 = vmatpush1.msra.mxu0 0.0
  %716 = vmatprep.subr.mxu0 0.0
  %717 = vmatpush1.msra.mxu0 0.0
  %718 = vmatprep.subr.mxu0 0.0
  %719 = vmatpush1.msra.mxu0 0.0
  %720 = vmatprep.subr.mxu0 0.0
  %721 = vmatpush1.msra.mxu0 0.0
  %722 = vmatprep.subr.mxu0 0.0
  %723 = vmatpush1.msra.mxu0 0.0
  %724 = vmatprep.subr.mxu0 0.0
  %725 = vmatpush1.msra.mxu0 0.0
  %726 = vmatprep.subr.mxu0 0.0
  %727 = vmatpush1.msra.mxu0 0.0
  %728 = vmatprep.subr.mxu0 0.0
  %729 = vmatpush1.msra.mxu0 0.0
  %730 = vmatprep.mubr.f32.mxu0 0.0
  %731 = vmatmul.mubr.f32.gmra.mrb[0].mxu0 %v655
  %v732 = vpop.f32.mrb[0].mxu0
  %v733 = vadd.f32 %v636, %v732
  %v734 = vpop.f32.mrb[0].mxu0
  %735 = vmatprep.mubr.f32.mxu0 0.0
  %736 = vmatmul.mubr.f32.gmra.mrb[0].mxu0 %v658
  %v737 = vpop.f32.mrb[0].mxu0
  %v738 = vadd.f32 %v641, %v737
  %v739 = vpop.f32.mrb[0].mxu0
  %740 = vmatprep.mubr.f32.mxu0 0.0
  %741 = vmatmul.mubr.f32.gmra.mrb[0].mxu0 %v661
  %v742 = vpop.f32.mrb[0].mxu0
  %v743 = vadd.f32 %v646, %v742
  %v744 = vpop.f32.mrb[0].mxu0
  %745 = vmatprep.mubr.f32.mxu0 0.0
  %746 = vmatmul.mubr.f32.gmra.mrb[0].mxu0 %v664
  %v747 = vpop.f32.mrb[0].mxu0
  %v748 = vadd.f32 %v651, %v747
  %v749 = vpop.f32.mrb[0].mxu0
  %750 = vdwg.mxu0
  %vm751 = vcmp.gt.f32.partialorder %v733, 0.0
  %vm752 = vcmp.gt.f32.partialorder %v738, 0.0
  %vm753 = vcmp.gt.f32.partialorder %v743, 0.0
  %vm754 = vcmp.gt.f32.partialorder %v748, 0.0
  %v755 = vmin.f32 %v733, 0.0
  %v756 = vmin.f32 %v738, 0.0
  %v757 = vmin.f32 %v743, 0.0
  %v758 = vmin.f32 %v748, 0.0
  %v759 = vmul.f32 %v755, 1.442695
  %v760 = vpow.pop %v759
  %v761 = vmul.f32 %v756, 1.442695
  %v762 = vpow.pop %v761
  %v763 = vmul.f32 %v757, 1.442695
  %v764 = vpow.pop %v763
  %v765 = vmul.f32 %v758, 1.442695
  %v766 = vpow.pop %v765
  %v767 = vsub.f32 %v760, 1.0
  %v768 = vsub.f32 %v762, 1.0
  %v769 = vsub.f32 %v764, 1.0
  %v770 = vsub.f32 %v766, 1.0
  %v771 = vsel %vm751, %v733, %v767
  %v772 = vsel %vm752, %v738, %v768
  %v773 = vsel %vm753, %v743, %v769
  %v774 = vsel %vm754, %v748, %v770
  %v775 = vld [vmem:[%s8] sm:$0xff]
  %v776 = vld [vmem:[%s8 + $0x8] sm:$0xff]
  %v777 = vld [vmem:[%s8 + $0x10] sm:$0xff]
  %v778 = vld [vmem:[%s8 + $0x18] sm:$0xff]
  %v779 = vld [vmem:[%s9] sm:$0xff]
  %v780 = vld [vmem:[%s9 + $0x8] sm:$0xff]
  %v781 = vld [vmem:[%s9 + $0x10] sm:$0xff]
  %v782 = vld [vmem:[%s9 + $0x18] sm:$0xff]
  %784 = vset.pattern.permute.xlu0 0
  %785 = vperm.xlu0 %784, %v779
  %v786 = vpop.permute.xlu0 %785
  %789 = vset.pattern.permute.xlu0 0
  %790 = vperm.xlu0 %789, %v780
  %v791 = vpop.permute.xlu0 %790
  %794 = vset.pattern.permute.xlu0 0
  %795 = vperm.xlu0 %794, %v781
  %v796 = vpop.permute.xlu0 %795
  %799 = vset.pattern.permute.xlu0 0
  %800 = vperm.xlu0 %799, %v782
  %v801 = vpop.permute.xlu0 %800
  %v804 = vsel %vm72, %v775, 0
  %v807 = vsel %vm72, %v776, 0
  %v810 = vsel %vm72, %v777, 0
  %v813 = vsel %vm72, %v778, 0
  %815 = vmatprep.subr.mxu0 0.0
  %816 = vmatpush1.msra.mxu0 %v771
  %817 = vmatprep.subr.mxu0 0.0
  %818 = vmatpush1.msra.mxu0 %v772
  %819 = vmatprep.subr.mxu0 0.0
  %820 = vmatpush1.msra.mxu0 %v773
  %821 = vmatprep.subr.mxu0 0.0
  %822 = vmatpush1.msra.mxu0 %v774
  %823 = vmatprep.subr.mxu0 0.0
  %824 = vmatpush1.msra.mxu0 0.0
  %825 = vmatprep.subr.mxu0 0.0
  %826 = vmatpush1.msra.mxu0 0.0
  %827 = vmatprep.subr.mxu0 0.0
  %828 = vmatpush1.msra.mxu0 0.0
  %829 = vmatprep.subr.mxu0 0.0
  %830 = vmatpush1.msra.mxu0 0.0
  %831 = vmatprep.subr.mxu0 0.0
  %832 = vmatpush1.msra.mxu0 0.0
  %833 = vmatprep.subr.mxu0 0.0
  %834 = vmatpush1.msra.mxu0 0.0
  %835 = vmatprep.subr.mxu0 0.0
  %836 = vmatpush1.msra.mxu0 0.0
  %837 = vmatprep.subr.mxu0 0.0
  %838 = vmatpush1.msra.mxu0 0.0
  %839 = vmatprep.subr.mxu0 0.0
  %840 = vmatpush1.msra.mxu0 0.0
  %841 = vmatprep.subr.mxu0 0.0
  %842 = vmatpush1.msra.mxu0 0.0
  %843 = vmatprep.subr.mxu0 0.0
  %844 = vmatpush1.msra.mxu0 0.0
  %845 = vmatprep.subr.mxu0 0.0
  %846 = vmatpush1.msra.mxu0 0.0
  %847 = vmatprep.subr.mxu0 0.0
  %848 = vmatpush1.msra.mxu0 0.0
  %849 = vmatprep.subr.mxu0 0.0
  %850 = vmatpush1.msra.mxu0 0.0
  %851 = vmatprep.subr.mxu0 0.0
  %852 = vmatpush1.msra.mxu0 0.0
  %853 = vmatprep.subr.mxu0 0.0
  %854 = vmatpush1.msra.mxu0 0.0
  %855 = vmatprep.subr.mxu0 0.0
  %856 = vmatpush1.msra.mxu0 0.0
  %857 = vmatprep.subr.mxu0 0.0
  %858 = vmatpush1.msra.mxu0 0.0
  %859 = vmatprep.subr.mxu0 0.0
  %860 = vmatpush1.msra.mxu0 0.0
  %861 = vmatprep.subr.mxu0 0.0
  %862 = vmatpush1.msra.mxu0 0.0
  %863 = vmatprep.subr.mxu0 0.0
  %864 = vmatpush1.msra.mxu0 0.0
  %865 = vmatprep.subr.mxu0 0.0
  %866 = vmatpush1.msra.mxu0 0.0
  %867 = vmatprep.subr.mxu0 0.0
  %868 = vmatpush1.msra.mxu0 0.0
  %869 = vmatprep.subr.mxu0 0.0
  %870 = vmatpush1.msra.mxu0 0.0
  %871 = vmatprep.subr.mxu0 0.0
  %872 = vmatpush1.msra.mxu0 0.0
  %873 = vmatprep.subr.mxu0 0.0
  %874 = vmatpush1.msra.mxu0 0.0
  %875 = vmatprep.subr.mxu0 0.0
  %876 = vmatpush1.msra.mxu0 0.0
  %877 = vmatprep.subr.mxu0 0.0
  %878 = vmatpush1.msra.mxu0 0.0
  %879 = vmatprep.mubr.f32.mxu0 0.0
  %880 = vmatmul.mubr.f32.gmra.mrb[0].mxu0 %v804
  %v881 = vpop.f32.mrb[0].mxu0
  %v882 = vadd.f32 %v786, %v881
  %v883 = vpop.f32.mrb[0].mxu0
  %884 = vmatprep.mubr.f32.mxu0 0.0
  %885 = vmatmul.mubr.f32.gmra.mrb[0].mxu0 %v807
  %v886 = vpop.f32.mrb[0].mxu0
  %v887 = vadd.f32 %v791, %v886
  %v888 = vpop.f32.mrb[0].mxu0
  %889 = vmatprep.mubr.f32.mxu0 0.0
  %890 = vmatmul.mubr.f32.gmra.mrb[0].mxu0 %v810
  %v891 = vpop.f32.mrb[0].mxu0
  %v892 = vadd.f32 %v796, %v891
  %v893 = vpop.f32.mrb[0].mxu0
  %894 = vmatprep.mubr.f32.mxu0 0.0
  %895 = vmatmul.mubr.f32.gmra.mrb[0].mxu0 %v813
  %v896 = vpop.f32.mrb[0].mxu0
  %v897 = vadd.f32 %v801, %v896
  %v898 = vpop.f32.mrb[0].mxu0
  %899 = vdwg.mxu0
  %vm900 = vcmp.gt.f32.partialorder %v882, 0.0
  %vm901 = vcmp.gt.f32.partialorder %v887, 0.0
  %vm902 = vcmp.gt.f32.partialorder %v892, 0.0
  %vm903 = vcmp.gt.f32.partialorder %v897, 0.0
  %v904 = vmin.f32 %v882, 0.0
  %v905 = vmin.f32 %v887, 0.0
  %v906 = vmin.f32 %v892, 0.0
  %v907 = vmin.f32 %v897, 0.0
  %v908 = vmul.f32 %v904, 1.442695
  %v909 = vpow.pop %v908
  %v910 = vmul.f32 %v905, 1.442695
  %v911 = vpow.pop %v910
  %v912 = vmul.f32 %v906, 1.442695
  %v913 = vpow.pop %v912
  %v914 = vmul.f32 %v907, 1.442695
  %v915 = vpow.pop %v914
  %v916 = vsub.f32 %v909, 1.0
  %v917 = vsub.f32 %v911, 1.0
  %v918 = vsub.f32 %v913, 1.0
  %v919 = vsub.f32 %v915, 1.0
  %v920 = vsel %vm900, %v882, %v916
  %v921 = vsel %vm901, %v887, %v917
  %v922 = vsel %vm902, %v892, %v918
  %v923 = vsel %vm903, %v897, %v919
  %v924 = vld [vmem:[%s10] sm:$0xff]
  %v925 = vld [vmem:[%s10 + $0x8] sm:$0xff]
  %v926 = vld [vmem:[%s10 + $0x10] sm:$0xff]
  %v927 = vld [vmem:[%s10 + $0x18] sm:$0xff]
  %v928 = vld [vmem:[%s11] sm:$0xff]
  %v929 = vld [vmem:[%s11 + $0x8] sm:$0xff]
  %v930 = vld [vmem:[%s11 + $0x10] sm:$0xff]
  %v931 = vld [vmem:[%s11 + $0x18] sm:$0xff]
  %933 = vset.pattern.permute.xlu0 0
  %934 = vperm.xlu0 %933, %v928
  %v935 = vpop.permute.xlu0 %934
  %938 = vset.pattern.permute.xlu0 0
  %939 = vperm.xlu0 %938, %v929
  %v940 = vpop.permute.xlu0 %939
  %943 = vset.pattern.permute.xlu0 0
  %944 = vperm.xlu0 %943, %v930
  %v945 = vpop.permute.xlu0 %944
  %948 = vset.pattern.permute.xlu0 0
  %949 = vperm.xlu0 %948, %v931
  %v950 = vpop.permute.xlu0 %949
  %v953 = vsel %vm72, %v924, 0
  %v956 = vsel %vm72, %v925, 0
  %v959 = vsel %vm72, %v926, 0
  %v962 = vsel %vm72, %v927, 0
  %964 = vmatprep.subr.mxu0 0.0
  %965 = vmatpush1.msra.mxu0 %v920
  %966 = vmatprep.subr.mxu0 0.0
  %967 = vmatpush1.msra.mxu0 %v921
  %968 = vmatprep.subr.mxu0 0.0
  %969 = vmatpush1.msra.mxu0 %v922
  %970 = vmatprep.subr.mxu0 0.0
  %971 = vmatpush1.msra.mxu0 %v923
  %972 = vmatprep.subr.mxu0 0.0
  %973 = vmatpush1.msra.mxu0 0.0
  %974 = vmatprep.subr.mxu0 0.0
  %975 = vmatpush1.msra.mxu0 0.0
  %976 = vmatprep.subr.mxu0 0.0
  %977 = vmatpush1.msra.mxu0 0.0
  %978 = vmatprep.subr.mxu0 0.0
  %979 = vmatpush1.msra.mxu0 0.0
  %980 = vmatprep.subr.mxu0 0.0
  %981 = vmatpush1.msra.mxu0 0.0
  %982 = vmatprep.subr.mxu0 0.0
  %983 = vmatpush1.msra.mxu0 0.0
  %984 = vmatprep.subr.mxu0 0.0
  %985 = vmatpush1.msra.mxu0 0.0
  %986 = vmatprep.subr.mxu0 0.0
  %987 = vmatpush1.msra.mxu0 0.0
  %988 = vmatprep.subr.mxu0 0.0
  %989 = vmatpush1.msra.mxu0 0.0
  %990 = vmatprep.subr.mxu0 0.0
  %991 = vmatpush1.msra.mxu0 0.0
  %992 = vmatprep.subr.mxu0 0.0
  %993 = vmatpush1.msra.mxu0 0.0
  %994 = vmatprep.subr.mxu0 0.0
  %995 = vmatpush1.msra.mxu0 0.0
  %996 = vmatprep.subr.mxu0 0.0
  %997 = vmatpush1.msra.mxu0 0.0
  %998 = vmatprep.subr.mxu0 0.0
  %999 = vmatpush1.msra.mxu0 0.0
  %1000 = vmatprep.subr.mxu0 0.0
  %1001 = vmatpush1.msra.mxu0 0.0
  %1002 = vmatprep.subr.mxu0 0.0
  %1003 = vmatpush1.msra.mxu0 0.0
  %1004 = vmatprep.subr.mxu0 0.0
  %1005 = vmatpush1.msra.mxu0 0.0
  %1006 = vmatprep.subr.mxu0 0.0
  %1007 = vmatpush1.msra.mxu0 0.0
  %1008 = vmatprep.subr.mxu0 0.0
  %1009 = vmatpush1.msra.mxu0 0.0
  %1010 = vmatprep.subr.mxu0 0.0
  %1011 = vmatpush1.msra.mxu0 0.0
  %1012 = vmatprep.subr.mxu0 0.0
  %1013 = vmatpush1.msra.mxu0 0.0
  %1014 = vmatprep.subr.mxu0 0.0
  %1015 = vmatpush1.msra.mxu0 0.0
  %1016 = vmatprep.subr.mxu0 0.0
  %1017 = vmatpush1.msra.mxu0 0.0
  %1018 = vmatprep.subr.mxu0 0.0
  %1019 = vmatpush1.msra.mxu0 0.0
  %1020 = vmatprep.subr.mxu0 0.0
  %1021 = vmatpush1.msra.mxu0 0.0
  %1022 = vmatprep.subr.mxu0 0.0
  %1023 = vmatpush1.msra.mxu0 0.0
  %1024 = vmatprep.subr.mxu0 0.0
  %1025 = vmatpush1.msra.mxu0 0.0
  %1026 = vmatprep.subr.mxu0 0.0
  %1027 = vmatpush1.msra.mxu0 0.0
  %1028 = vmatprep.mubr.f32.mxu0 0.0
  %1029 = vmatmul.mubr.f32.gmra.mrb[0].mxu0 %v953
  %v1030 = vpop.f32.mrb[0].mxu0
  %v1031 = vadd.f32 %v935, %v1030
  %v1032 = vpop.f32.mrb[0].mxu0
  %1033 = vmatprep.mubr.f32.mxu0 0.0
  %1034 = vmatmul.mubr.f32.gmra.mrb[0].mxu0 %v956
  %v1035 = vpop.f32.mrb[0].mxu0
  %v1036 = vadd.f32 %v940, %v1035
  %v1037 = vpop.f32.mrb[0].mxu0
  %1038 = vmatprep.mubr.f32.mxu0 0.0
  %1039 = vmatmul.mubr.f32.gmra.mrb[0].mxu0 %v959
  %v1040 = vpop.f32.mrb[0].mxu0
  %v1041 = vadd.f32 %v945, %v1040
  %v1042 = vpop.f32.mrb[0].mxu0
  %1043 = vmatprep.mubr.f32.mxu0 0.0
  %1044 = vmatmul.mubr.f32.gmra.mrb[0].mxu0 %v962
  %v1045 = vpop.f32.mrb[0].mxu0
  %v1046 = vadd.f32 %v950, %v1045
  %v1047 = vpop.f32.mrb[0].mxu0
  %1048 = vdwg.mxu0
  %vm1049 = vcmp.gt.f32.partialorder %v1031, 0.0
  %vm1050 = vcmp.gt.f32.partialorder %v1036, 0.0
  %vm1051 = vcmp.gt.f32.partialorder %v1041, 0.0
  %vm1052 = vcmp.gt.f32.partialorder %v1046, 0.0
  %v1053 = vmin.f32 %v1031, 0.0
  %v1054 = vmin.f32 %v1036, 0.0
  %v1055 = vmin.f32 %v1041, 0.0
  %v1056 = vmin.f32 %v1046, 0.0
  %v1057 = vmul.f32 %v1053, 1.442695
  %v1058 = vpow.pop %v1057
  %v1059 = vmul.f32 %v1054, 1.442695
  %v1060 = vpow.pop %v1059
  %v1061 = vmul.f32 %v1055, 1.442695
  %v1062 = vpow.pop %v1061
  %v1063 = vmul.f32 %v1056, 1.442695
  %v1064 = vpow.pop %v1063
  %v1065 = vsub.f32 %v1058, 1.0
  %v1066 = vsub.f32 %v1060, 1.0
  %v1067 = vsub.f32 %v1062, 1.0
  %v1068 = vsub.f32 %v1064, 1.0
  %v1069 = vsel %vm1049, %v1031, %v1065
  %v1070 = vsel %vm1050, %v1036, %v1066
  %v1071 = vsel %vm1051, %v1041, %v1067
  %v1072 = vsel %vm1052, %v1046, %v1068
  %1077 = vrot.lane.b32.xlu0 %v1069, 120
  %v1078 = vpop.permute.xlu0 %1077
  %1079 = vrot.lane.b32.xlu0 %v1070, 120
  %v1080 = vpop.permute.xlu0 %1079
  %1081 = vrot.lane.b32.xlu0 %v1071, 120
  %v1082 = vpop.permute.xlu0 %1081
  %1083 = vrot.lane.b32.xlu0 %v1072, 120
  %v1084 = vpop.permute.xlu0 %1083
  %vm1089 = vcmask 195584
  %v1090 = vsel %vm1089, %v1069, %v1078
  %v1091 = vsel %vm1089, %v1070, %v1080
  %v1092 = vsel %vm1089, %v1071, %v1082
  %v1093 = vsel %vm1089, %v1072, %v1084
  %1094 = vrot.lane.b32.xlu0 %v1069, 127
  %v1095 = vpop.permute.xlu0 %1094
  %1096 = vrot.lane.b32.xlu0 %v1070, 127
  %v1097 = vpop.permute.xlu0 %1096
  %1098 = vrot.lane.b32.xlu0 %v1071, 127
  %v1099 = vpop.permute.xlu0 %1098
  %1100 = vrot.lane.b32.xlu0 %v1072, 127
  %v1101 = vpop.permute.xlu0 %1100
  %1106 = vrot.lane.b32.xlu0 %v1069, 119
  %v1107 = vpop.permute.xlu0 %1106
  %1108 = vrot.lane.b32.xlu0 %v1070, 119
  %v1109 = vpop.permute.xlu0 %1108
  %1110 = vrot.lane.b32.xlu0 %v1071, 119
  %v1111 = vpop.permute.xlu0 %1110
  %1112 = vrot.lane.b32.xlu0 %v1072, 119
  %v1113 = vpop.permute.xlu0 %1112
  %v1118 = vsel %vm1089, %v1095, %v1107
  %v1119 = vsel %vm1089, %v1097, %v1109
  %v1120 = vsel %vm1089, %v1099, %v1111
  %v1121 = vsel %vm1089, %v1101, %v1113
  %1122 = vrot.lane.b32.xlu0 %v1069, 126
  %v1123 = vpop.permute.xlu0 %1122
  %1124 = vrot.lane.b32.xlu0 %v1070, 126
  %v1125 = vpop.permute.xlu0 %1124
  %1126 = vrot.lane.b32.xlu0 %v1071, 126
  %v1127 = vpop.permute.xlu0 %1126
  %1128 = vrot.lane.b32.xlu0 %v1072, 126
  %v1129 = vpop.permute.xlu0 %1128
  %1134 = vrot.lane.b32.xlu0 %v1069, 118
  %v1135 = vpop.permute.xlu0 %1134
  %1136 = vrot.lane.b32.xlu0 %v1070, 118
  %v1137 = vpop.permute.xlu0 %1136
  %1138 = vrot.lane.b32.xlu0 %v1071, 118
  %v1139 = vpop.permute.xlu0 %1138
  %1140 = vrot.lane.b32.xlu0 %v1072, 118
  %v1141 = vpop.permute.xlu0 %1140
  %v1146 = vsel %vm1089, %v1123, %v1135
  %v1147 = vsel %vm1089, %v1125, %v1137
  %v1148 = vsel %vm1089, %v1127, %v1139
  %v1149 = vsel %vm1089, %v1129, %v1141
  %1150 = vrot.lane.b32.xlu0 %v1069, 125
  %v1151 = vpop.permute.xlu0 %1150
  %1152 = vrot.lane.b32.xlu0 %v1070, 125
  %v1153 = vpop.permute.xlu0 %1152
  %1154 = vrot.lane.b32.xlu0 %v1071, 125
  %v1155 = vpop.permute.xlu0 %1154
  %1156 = vrot.lane.b32.xlu0 %v1072, 125
  %v1157 = vpop.permute.xlu0 %1156
  %1162 = vrot.lane.b32.xlu0 %v1069, 117
  %v1163 = vpop.permute.xlu0 %1162
  %1164 = vrot.lane.b32.xlu0 %v1070, 117
  %v1165 = vpop.permute.xlu0 %1164
  %1166 = vrot.lane.b32.xlu0 %v1071, 117
  %v1167 = vpop.permute.xlu0 %1166
  %1168 = vrot.lane.b32.xlu0 %v1072, 117
  %v1169 = vpop.permute.xlu0 %1168
  %v1174 = vsel %vm1089, %v1151, %v1163
  %v1175 = vsel %vm1089, %v1153, %v1165
  %v1176 = vsel %vm1089, %v1155, %v1167
  %v1177 = vsel %vm1089, %v1157, %v1169
  %1178 = vrot.lane.b32.xlu0 %v1069, 124
  %v1179 = vpop.permute.xlu0 %1178
  %1180 = vrot.lane.b32.xlu0 %v1070, 124
  %v1181 = vpop.permute.xlu0 %1180
  %1182 = vrot.lane.b32.xlu0 %v1071, 124
  %v1183 = vpop.permute.xlu0 %1182
  %1184 = vrot.lane.b32.xlu0 %v1072, 124
  %v1185 = vpop.permute.xlu0 %1184
  %1190 = vrot.lane.b32.xlu0 %v1069, 116
  %v1191 = vpop.permute.xlu0 %1190
  %1192 = vrot.lane.b32.xlu0 %v1070, 116
  %v1193 = vpop.permute.xlu0 %1192
  %1194 = vrot.lane.b32.xlu0 %v1071, 116
  %v1195 = vpop.permute.xlu0 %1194
  %1196 = vrot.lane.b32.xlu0 %v1072, 116
  %v1197 = vpop.permute.xlu0 %1196
  %v1202 = vsel %vm1089, %v1179, %v1191
  %v1203 = vsel %vm1089, %v1181, %v1193
  %v1204 = vsel %vm1089, %v1183, %v1195
  %v1205 = vsel %vm1089, %v1185, %v1197
  %1206 = vrot.lane.b32.xlu0 %v1069, 123
  %v1207 = vpop.permute.xlu0 %1206
  %1208 = vrot.lane.b32.xlu0 %v1070, 123
  %v1209 = vpop.permute.xlu0 %1208
  %1210 = vrot.lane.b32.xlu0 %v1071, 123
  %v1211 = vpop.permute.xlu0 %1210
  %1212 = vrot.lane.b32.xlu0 %v1072, 123
  %v1213 = vpop.permute.xlu0 %1212
  %1218 = vrot.lane.b32.xlu0 %v1069, 115
  %v1219 = vpop.permute.xlu0 %1218
  %1220 = vrot.lane.b32.xlu0 %v1070, 115
  %v1221 = vpop.permute.xlu0 %1220
  %1222 = vrot.lane.b32.xlu0 %v1071, 115
  %v1223 = vpop.permute.xlu0 %1222
  %1224 = vrot.lane.b32.xlu0 %v1072, 115
  %v1225 = vpop.permute.xlu0 %1224
  %v1230 = vsel %vm1089, %v1207, %v1219
  %v1231 = vsel %vm1089, %v1209, %v1221
  %v1232 = vsel %vm1089, %v1211, %v1223
  %v1233 = vsel %vm1089, %v1213, %v1225
  %1234 = vrot.lane.b32.xlu0 %v1069, 122
  %v1235 = vpop.permute.xlu0 %1234
  %1236 = vrot.lane.b32.xlu0 %v1070, 122
  %v1237 = vpop.permute.xlu0 %1236
  %1238 = vrot.lane.b32.xlu0 %v1071, 122
  %v1239 = vpop.permute.xlu0 %1238
  %1240 = vrot.lane.b32.xlu0 %v1072, 122
  %v1241 = vpop.permute.xlu0 %1240
  %1246 = vrot.lane.b32.xlu0 %v1069, 114
  %v1247 = vpop.permute.xlu0 %1246
  %1248 = vrot.lane.b32.xlu0 %v1070, 114
  %v1249 = vpop.permute.xlu0 %1248
  %1250 = vrot.lane.b32.xlu0 %v1071, 114
  %v1251 = vpop.permute.xlu0 %1250
  %1252 = vrot.lane.b32.xlu0 %v1072, 114
  %v1253 = vpop.permute.xlu0 %1252
  %v1258 = vsel %vm1089, %v1235, %v1247
  %v1259 = vsel %vm1089, %v1237, %v1249
  %v1260 = vsel %vm1089, %v1239, %v1251
  %v1261 = vsel %vm1089, %v1241, %v1253
  %1262 = vrot.lane.b32.xlu0 %v1069, 121
  %v1263 = vpop.permute.xlu0 %1262
  %1264 = vrot.lane.b32.xlu0 %v1070, 121
  %v1265 = vpop.permute.xlu0 %1264
  %1266 = vrot.lane.b32.xlu0 %v1071, 121
  %v1267 = vpop.permute.xlu0 %1266
  %1268 = vrot.lane.b32.xlu0 %v1072, 121
  %v1269 = vpop.permute.xlu0 %1268
  %1274 = vrot.lane.b32.xlu0 %v1069, 113
  %v1275 = vpop.permute.xlu0 %1274
  %1276 = vrot.lane.b32.xlu0 %v1070, 113
  %v1277 = vpop.permute.xlu0 %1276
  %1278 = vrot.lane.b32.xlu0 %v1071, 113
  %v1279 = vpop.permute.xlu0 %1278
  %1280 = vrot.lane.b32.xlu0 %v1072, 113
  %v1281 = vpop.permute.xlu0 %1280
  %v1286 = vsel %vm1089, %v1263, %v1275
  %v1287 = vsel %vm1089, %v1265, %v1277
  %v1288 = vsel %vm1089, %v1267, %v1279
  %v1289 = vsel %vm1089, %v1269, %v1281
  %1290 = vrot.lane.b32.xlu0 %v1069, 112
  %v1291 = vpop.permute.xlu0 %1290
  %1292 = vrot.lane.b32.xlu0 %v1070, 112
  %v1293 = vpop.permute.xlu0 %1292
  %1294 = vrot.lane.b32.xlu0 %v1071, 112
  %v1295 = vpop.permute.xlu0 %1294
  %1296 = vrot.lane.b32.xlu0 %v1072, 112
  %v1297 = vpop.permute.xlu0 %1296
  %v1302 = vsel %vm1089, %v1078, %v1291
  %v1303 = vsel %vm1089, %v1080, %v1293
  %v1304 = vsel %vm1089, %v1082, %v1295
  %v1305 = vsel %vm1089, %v1084, %v1297
  %v1306 = vld [vmem:[%s12] sm:$0x7]
  %v1307 = vld [vmem:[%s13] sm:$0x1]
  %1309 = vset.pattern.permute.xlu0 0
  %1310 = vperm.xlu0 %1309, %v1307
  %v1311 = vpop.permute.xlu0 %1310
  %v1313 = vlaneseq
  %v1314 = vshrl.u32 %v1313, 7
  %v1315 = vsub.s32 0, %v1314
  %v1316 = vrot.slane %v1311, %v1315
  %v1318 = vlaneseq
  %v1319 = vshrl.u32 %v1318, 7
  %v1320 = vsub.s32 0, %v1319
  %v1321 = vrot.slane %v1306, %v1320
  %v1322 = vlaneseq
  %v1323 = vshrl.u32 %v1322, 7
  %v1324 = vsub.s32 1, %v1323
  %v1325 = vrot.slane %v1306, %v1324
  %v1326 = vlaneseq
  %v1327 = vshrl.u32 %v1326, 7
  %v1328 = vsub.s32 2, %v1327
  %v1329 = vrot.slane %v1306, %v1328
  %v1332 = vsel %vm72, %v1329, 0
  %1334 = vmatprep.subr.mxu0 0.0
  %1335 = vmatpush1.msra.mxu0 %v1090
  %1336 = vmatprep.subr.mxu0 0.0
  %1337 = vmatpush1.msra.mxu0 %v1091
  %1338 = vmatprep.subr.mxu0 0.0
  %1339 = vmatpush1.msra.mxu0 %v1092
  %1340 = vmatprep.subr.mxu0 0.0
  %1341 = vmatpush1.msra.mxu0 %v1093
  %1342 = vmatprep.subr.mxu0 0.0
  %1343 = vmatpush1.msra.mxu0 %v1118
  %1344 = vmatprep.subr.mxu0 0.0
  %1345 = vmatpush1.msra.mxu0 %v1119
  %1346 = vmatprep.subr.mxu0 0.0
  %1347 = vmatpush1.msra.mxu0 %v1120
  %1348 = vmatprep.subr.mxu0 0.0
  %1349 = vmatpush1.msra.mxu0 %v1121
  %1350 = vmatprep.subr.mxu0 0.0
  %1351 = vmatpush1.msra.mxu0 %v1146
  %1352 = vmatprep.subr.mxu0 0.0
  %1353 = vmatpush1.msra.mxu0 %v1147
  %1354 = vmatprep.subr.mxu0 0.0
  %1355 = vmatpush1.msra.mxu0 %v1148
  %1356 = vmatprep.subr.mxu0 0.0
  %1357 = vmatpush1.msra.mxu0 %v1149
  %1358 = vmatprep.subr.mxu0 0.0
  %1359 = vmatpush1.msra.mxu0 %v1174
  %1360 = vmatprep.subr.mxu0 0.0
  %1361 = vmatpush1.msra.mxu0 %v1175
  %1362 = vmatprep.subr.mxu0 0.0
  %1363 = vmatpush1.msra.mxu0 %v1176
  %1364 = vmatprep.subr.mxu0 0.0
  %1365 = vmatpush1.msra.mxu0 %v1177
  %1366 = vmatprep.subr.mxu0 0.0
  %1367 = vmatpush1.msra.mxu0 %v1202
  %1368 = vmatprep.subr.mxu0 0.0
  %1369 = vmatpush1.msra.mxu0 %v1203
  %1370 = vmatprep.subr.mxu0 0.0
  %1371 = vmatpush1.msra.mxu0 %v1204
  %1372 = vmatprep.subr.mxu0 0.0
  %1373 = vmatpush1.msra.mxu0 %v1205
  %1374 = vmatprep.subr.mxu0 0.0
  %1375 = vmatpush1.msra.mxu0 %v1230
  %1376 = vmatprep.subr.mxu0 0.0
  %1377 = vmatpush1.msra.mxu0 %v1231
  %1378 = vmatprep.subr.mxu0 0.0
  %1379 = vmatpush1.msra.mxu0 %v1232
  %1380 = vmatprep.subr.mxu0 0.0
  %1381 = vmatpush1.msra.mxu0 %v1233
  %1382 = vmatprep.subr.mxu0 0.0
  %1383 = vmatpush1.msra.mxu0 %v1258
  %1384 = vmatprep.subr.mxu0 0.0
  %1385 = vmatpush1.msra.mxu0 %v1259
  %1386 = vmatprep.subr.mxu0 0.0
  %1387 = vmatpush1.msra.mxu0 %v1260
  %1388 = vmatprep.subr.mxu0 0.0
  %1389 = vmatpush1.msra.mxu0 %v1261
  %1390 = vmatprep.subr.mxu0 0.0
  %1391 = vmatpush1.msra.mxu0 %v1286
  %1392 = vmatprep.subr.mxu0 0.0
  %1393 = vmatpush1.msra.mxu0 %v1287
  %1394 = vmatprep.subr.mxu0 0.0
  %1395 = vmatpush1.msra.mxu0 %v1288
  %1396 = vmatprep.subr.mxu0 0.0
  %1397 = vmatpush1.msra.mxu0 %v1289
  %1398 = vmatprep.mubr.f32.mxu0 %v1325
  %1399 = vmatmul.mubr.f32.gmra.mrb[0].mxu0 %v1321
  %v1400 = vpop.f32.mrb[0].mxu0
  %v1401 = vadd.f32 %v1316, %v1400
  %v1402 = vpop.f32.mrb[0].mxu0
  %1403 = vdwg.mxu0
  %1404 = vmatprep.subr.mxu0 0.0
  %1405 = vmatpush1.msra.mxu0 %v1302
  %1406 = vmatprep.subr.mxu0 0.0
  %1407 = vmatpush1.msra.mxu0 %v1303
  %1408 = vmatprep.subr.mxu0 0.0
  %1409 = vmatpush1.msra.mxu0 %v1304
  %1410 = vmatprep.subr.mxu0 0.0
  %1411 = vmatpush1.msra.mxu0 %v1305
  %1412 = vmatprep.subr.mxu0 0.0
  %1413 = vmatpush1.msra.mxu0 0.0
  %1414 = vmatprep.subr.mxu0 0.0
  %1415 = vmatpush1.msra.mxu0 0.0
  %1416 = vmatprep.subr.mxu0 0.0
  %1417 = vmatpush1.msra.mxu0 0.0
  %1418 = vmatprep.subr.mxu0 0.0
  %1419 = vmatpush1.msra.mxu0 0.0
  %1420 = vmatprep.subr.mxu0 0.0
  %1421 = vmatpush1.msra.mxu0 0.0
  %1422 = vmatprep.subr.mxu0 0.0
  %1423 = vmatpush1.msra.mxu0 0.0
  %1424 = vmatprep.subr.mxu0 0.0
  %1425 = vmatpush1.msra.mxu0 0.0
  %1426 = vmatprep.subr.mxu0 0.0
  %1427 = vmatpush1.msra.mxu0 0.0
  %1428 = vmatprep.subr.mxu0 0.0
  %1429 = vmatpush1.msra.mxu0 0.0
  %1430 = vmatprep.subr.mxu0 0.0
  %1431 = vmatpush1.msra.mxu0 0.0
  %1432 = vmatprep.subr.mxu0 0.0
  %1433 = vmatpush1.msra.mxu0 0.0
  %1434 = vmatprep.subr.mxu0 0.0
  %1435 = vmatpush1.msra.mxu0 0.0
  %1436 = vmatprep.subr.mxu0 0.0
  %1437 = vmatpush1.msra.mxu0 0.0
  %1438 = vmatprep.subr.mxu0 0.0
  %1439 = vmatpush1.msra.mxu0 0.0
  %1440 = vmatprep.subr.mxu0 0.0
  %1441 = vmatpush1.msra.mxu0 0.0
  %1442 = vmatprep.subr.mxu0 0.0
  %1443 = vmatpush1.msra.mxu0 0.0
  %1444 = vmatprep.subr.mxu0 0.0
  %1445 = vmatpush1.msra.mxu0 0.0
  %1446 = vmatprep.subr.mxu0 0.0
  %1447 = vmatpush1.msra.mxu0 0.0
  %1448 = vmatprep.subr.mxu0 0.0
  %1449 = vmatpush1.msra.mxu0 0.0
  %1450 = vmatprep.subr.mxu0 0.0
  %1451 = vmatpush1.msra.mxu0 0.0
  %1452 = vmatprep.subr.mxu0 0.0
  %1453 = vmatpush1.msra.mxu0 0.0
  %1454 = vmatprep.subr.mxu0 0.0
  %1455 = vmatpush1.msra.mxu0 0.0
  %1456 = vmatprep.subr.mxu0 0.0
  %1457 = vmatpush1.msra.mxu0 0.0
  %1458 = vmatprep.subr.mxu0 0.0
  %1459 = vmatpush1.msra.mxu0 0.0
  %1460 = vmatprep.subr.mxu0 0.0
  %1461 = vmatpush1.msra.mxu0 0.0
  %1462 = vmatprep.subr.mxu0 0.0
  %1463 = vmatpush1.msra.mxu0 0.0
  %1464 = vmatprep.subr.mxu0 0.0
  %1465 = vmatpush1.msra.mxu0 0.0
  %1466 = vmatprep.subr.mxu0 0.0
  %1467 = vmatpush1.msra.mxu0 0.0
  %1468 = vmatprep.mubr.f32.mxu0 0.0
  %1469 = vmatmul.mubr.f32.gmra.mrb[0].mxu0 %v1332
  %v1470 = vpop.f32.mrb[0].mxu0
  %v1471 = vadd.f32 %v1401, %v1470
  %v1472 = vpop.f32.mrb[0].mxu0
  %1473 = vdwg.mxu0
  %vm1474 = vcmask 188416
  %v1475 = vsel %vm1474, %v1471, -inf
  %1476 = vmax.xlane.f32.xlu0 %v1475
  %v1477 = vpop.xlane.xlu0 %1476
  %v1478 = vsub.f32 %v1471, %v1477
  %v1479 = vmul.f32 %v1478, 1.442695
  %v1480 = vpow.pop %v1479
  %v1481 = vsel %vm1474, %v1480, 0.0
  %1482 = vadd.xlane.f32.xlu0 %v1481
  %v1483 = vpop.xlane.xlu0 %1482
  %v1484 = vrcp.pop %v1483
  %v1485 = vmul.f32 %v1480, %v1484
  %vm1486 = vcmask 385216
  %v1487 = vsel %vm1486, %v1471, -inf
  %1488 = vmax.xlane.f32.xlu0 %v1487
  %v1489 = vpop.xlane.xlu0 %1488
  %v1490 = vsub.f32 %v1471, %v1489
  %v1491 = vmul.f32 %v1490, 1.442695
  %v1492 = vpow.pop %v1491
  %1494 = vrot.lane.b32.xlu0 %v1492, 104
  %v1495 = vpop.permute.xlu0 %1494
  %v1497 = vsel %vm1474, %v1495, 0.0
  %1498 = vadd.xlane.f32.xlu0 %v1497
  %v1499 = vpop.xlane.xlu0 %1498
  %v1500 = vrcp.pop %v1499
  %v1501 = vmul.f32 %v1492, %v1500
  %v1502 = vsel %vm1089, %v1485, %v1501
  %vm1503 = vcmask 385024
  %1504 = vst.msk [vmem:[%s19] sm:$0x1] %vm1503, %v1502
  %v1505 = vsel %vm72, %v621, 0.0
  %1506 = vadd.xlane.f32.xlu0 %v1505
  %v1507 = vpop.xlane.xlu0 %1506
  %v1508 = vsel %vm72, %v622, 0.0
  %1509 = vadd.xlane.f32.xlu0 %v1508
  %v1510 = vpop.xlane.xlu0 %1509
  %v1511 = vsel %vm72, %v623, 0.0
  %1512 = vadd.xlane.f32.xlu0 %v1511
  %v1513 = vpop.xlane.xlu0 %1512
  %v1514 = vsel %vm72, %v624, 0.0
  %1515 = vadd.xlane.f32.xlu0 %v1514
  %v1516 = vpop.xlane.xlu0 %1515
  %v1517 = vmul.f32 %v1507, %v289
  %v1518 = vmul.f32 %v1510, %v289
  %v1519 = vmul.f32 %v1513, %v289
  %v1520 = vmul.f32 %v1516, %v289
  %1525 = vrot.lane.b32.xlu0 %v621, 96
  %v1526 = vpop.permute.xlu0 %1525
  %1527 = vrot.lane.b32.xlu0 %v622, 96
  %v1528 = vpop.permute.xlu0 %1527
  %1529 = vrot.lane.b32.xlu0 %v623, 96
  %v1530 = vpop.permute.xlu0 %1529
  %1531 = vrot.lane.b32.xlu0 %v624, 96
  %v1532 = vpop.permute.xlu0 %1531
  %v1537 = vsel %vm72, %v1526, 0.0
  %1538 = vadd.xlane.f32.xlu0 %v1537
  %v1539 = vpop.xlane.xlu0 %1538
  %v1540 = vsel %vm72, %v1528, 0.0
  %1541 = vadd.xlane.f32.xlu0 %v1540
  %v1542 = vpop.xlane.xlu0 %1541
  %v1543 = vsel %vm72, %v1530, 0.0
  %1544 = vadd.xlane.f32.xlu0 %v1543
  %v1545 = vpop.xlane.xlu0 %1544
  %v1546 = vsel %vm72, %v1532, 0.0
  %1547 = vadd.xlane.f32.xlu0 %v1546
  %v1548 = vpop.xlane.xlu0 %1547
  %v1549 = vmul.f32 %v1539, %v289
  %v1550 = vmul.f32 %v1542, %v289
  %v1551 = vmul.f32 %v1545, %v289
  %v1552 = vmul.f32 %v1548, %v289
  %v1553 = vsel %vm326, %v1517, %v1549
  %v1554 = vsel %vm326, %v1518, %v1550
  %v1555 = vsel %vm326, %v1519, %v1551
  %v1556 = vsel %vm326, %v1520, %v1552
  %v1557 = vsel %vm72, %v577, 0.0
  %1558 = vadd.xlane.f32.xlu0 %v1557
  %v1559 = vpop.xlane.xlu0 %1558
  %v1560 = vsel %vm72, %v578, 0.0
  %1561 = vadd.xlane.f32.xlu0 %v1560
  %v1562 = vpop.xlane.xlu0 %1561
  %v1563 = vsel %vm72, %v579, 0.0
  %1564 = vadd.xlane.f32.xlu0 %v1563
  %v1565 = vpop.xlane.xlu0 %1564
  %v1566 = vsel %vm72, %v580, 0.0
  %1567 = vadd.xlane.f32.xlu0 %v1566
  %v1568 = vpop.xlane.xlu0 %1567
  %v1569 = vmul.f32 %v1559, %v289
  %v1570 = vmul.f32 %v1562, %v289
  %v1571 = vmul.f32 %v1565, %v289
  %v1572 = vmul.f32 %v1568, %v289
  %1577 = vrot.lane.b32.xlu0 %v577, 96
  %v1578 = vpop.permute.xlu0 %1577
  %1579 = vrot.lane.b32.xlu0 %v578, 96
  %v1580 = vpop.permute.xlu0 %1579
  %1581 = vrot.lane.b32.xlu0 %v579, 96
  %v1582 = vpop.permute.xlu0 %1581
  %1583 = vrot.lane.b32.xlu0 %v580, 96
  %v1584 = vpop.permute.xlu0 %1583
  %v1589 = vsel %vm72, %v1578, 0.0
  %1590 = vadd.xlane.f32.xlu0 %v1589
  %v1591 = vpop.xlane.xlu0 %1590
  %v1592 = vsel %vm72, %v1580, 0.0
  %1593 = vadd.xlane.f32.xlu0 %v1592
  %v1594 = vpop.xlane.xlu0 %1593
  %v1595 = vsel %vm72, %v1582, 0.0
  %1596 = vadd.xlane.f32.xlu0 %v1595
  %v1597 = vpop.xlane.xlu0 %1596
  %v1598 = vsel %vm72, %v1584, 0.0
  %1599 = vadd.xlane.f32.xlu0 %v1598
  %v1600 = vpop.xlane.xlu0 %1599
  %v1601 = vmul.f32 %v1591, %v289
  %v1602 = vmul.f32 %v1594, %v289
  %v1603 = vmul.f32 %v1597, %v289
  %v1604 = vmul.f32 %v1600, %v289
  %v1605 = vsel %vm326, %v1569, %v1601
  %v1606 = vsel %vm326, %v1570, %v1602
  %v1607 = vsel %vm326, %v1571, %v1603
  %v1608 = vsel %vm326, %v1572, %v1604
  %v1609 = vld [vmem:[%s14] sm:$0xff]
  %v1610 = vld [vmem:[%s14 + $0x8] sm:$0xff]
  %v1611 = vld [vmem:[%s14 + $0x10] sm:$0xff]
  %v1612 = vld [vmem:[%s14 + $0x18] sm:$0xff]
  %v1614 = vsel %vm653, %v1609, 0
  %v1617 = vsel %vm653, %v1610, 0
  %v1620 = vsel %vm653, %v1611, 0
  %v1623 = vsel %vm653, %v1612, 0
  %1625 = vmatprep.subr.mxu0 0.0
  %1626 = vmatpush1.msra.mxu0 %v1553
  %1627 = vmatprep.subr.mxu0 0.0
  %1628 = vmatpush1.msra.mxu0 %v1554
  %1629 = vmatprep.subr.mxu0 0.0
  %1630 = vmatpush1.msra.mxu0 %v1555
  %1631 = vmatprep.subr.mxu0 0.0
  %1632 = vmatpush1.msra.mxu0 %v1556
  %1633 = vmatprep.subr.mxu0 0.0
  %1634 = vmatpush1.msra.mxu0 %v1605
  %1635 = vmatprep.subr.mxu0 0.0
  %1636 = vmatpush1.msra.mxu0 %v1606
  %1637 = vmatprep.subr.mxu0 0.0
  %1638 = vmatpush1.msra.mxu0 %v1607
  %1639 = vmatprep.subr.mxu0 0.0
  %1640 = vmatpush1.msra.mxu0 %v1608
  %1641 = vmatprep.subr.mxu0 0.0
  %1642 = vmatpush1.msra.mxu0 0.0
  %1643 = vmatprep.subr.mxu0 0.0
  %1644 = vmatpush1.msra.mxu0 0.0
  %1645 = vmatprep.subr.mxu0 0.0
  %1646 = vmatpush1.msra.mxu0 0.0
  %1647 = vmatprep.subr.mxu0 0.0
  %1648 = vmatpush1.msra.mxu0 0.0
  %1649 = vmatprep.subr.mxu0 0.0
  %1650 = vmatpush1.msra.mxu0 0.0
  %1651 = vmatprep.subr.mxu0 0.0
  %1652 = vmatpush1.msra.mxu0 0.0
  %1653 = vmatprep.subr.mxu0 0.0
  %1654 = vmatpush1.msra.mxu0 0.0
  %1655 = vmatprep.subr.mxu0 0.0
  %1656 = vmatpush1.msra.mxu0 0.0
  %1657 = vmatprep.subr.mxu0 0.0
  %1658 = vmatpush1.msra.mxu0 0.0
  %1659 = vmatprep.subr.mxu0 0.0
  %1660 = vmatpush1.msra.mxu0 0.0
  %1661 = vmatprep.subr.mxu0 0.0
  %1662 = vmatpush1.msra.mxu0 0.0
  %1663 = vmatprep.subr.mxu0 0.0
  %1664 = vmatpush1.msra.mxu0 0.0
  %1665 = vmatprep.subr.mxu0 0.0
  %1666 = vmatpush1.msra.mxu0 0.0
  %1667 = vmatprep.subr.mxu0 0.0
  %1668 = vmatpush1.msra.mxu0 0.0
  %1669 = vmatprep.subr.mxu0 0.0
  %1670 = vmatpush1.msra.mxu0 0.0
  %1671 = vmatprep.subr.mxu0 0.0
  %1672 = vmatpush1.msra.mxu0 0.0
  %1673 = vmatprep.subr.mxu0 0.0
  %1674 = vmatpush1.msra.mxu0 0.0
  %1675 = vmatprep.subr.mxu0 0.0
  %1676 = vmatpush1.msra.mxu0 0.0
  %1677 = vmatprep.subr.mxu0 0.0
  %1678 = vmatpush1.msra.mxu0 0.0
  %1679 = vmatprep.subr.mxu0 0.0
  %1680 = vmatpush1.msra.mxu0 0.0
  %1681 = vmatprep.subr.mxu0 0.0
  %1682 = vmatpush1.msra.mxu0 0.0
  %1683 = vmatprep.subr.mxu0 0.0
  %1684 = vmatpush1.msra.mxu0 0.0
  %1685 = vmatprep.subr.mxu0 0.0
  %1686 = vmatpush1.msra.mxu0 0.0
  %1687 = vmatprep.subr.mxu0 0.0
  %1688 = vmatpush1.msra.mxu0 0.0
  %1689 = vmatprep.mubr.f32.mxu0 0.0
  %1690 = vmatmul.mubr.f32.gmra.mrb[0].mxu0 %v1614
  %v1691 = vpop.f32.mrb[0].mxu0
  %v1692 = vadd.f32 0.0, %v1691
  %v1693 = vpop.f32.mrb[0].mxu0
  %1694 = vmatprep.mubr.f32.mxu0 0.0
  %1695 = vmatmul.mubr.f32.gmra.mrb[0].mxu0 %v1617
  %v1696 = vpop.f32.mrb[0].mxu0
  %v1697 = vadd.f32 0.0, %v1696
  %v1698 = vpop.f32.mrb[0].mxu0
  %1699 = vmatprep.mubr.f32.mxu0 0.0
  %1700 = vmatmul.mubr.f32.gmra.mrb[0].mxu0 %v1620
  %v1701 = vpop.f32.mrb[0].mxu0
  %v1702 = vadd.f32 0.0, %v1701
  %v1703 = vpop.f32.mrb[0].mxu0
  %1704 = vmatprep.mubr.f32.mxu0 0.0
  %1705 = vmatmul.mubr.f32.gmra.mrb[0].mxu0 %v1623
  %v1706 = vpop.f32.mrb[0].mxu0
  %v1707 = vadd.f32 0.0, %v1706
  %v1708 = vpop.f32.mrb[0].mxu0
  %1709 = vdwg.mxu0
  %vm1710 = vcmp.gt.f32.partialorder %v1692, 0.0
  %vm1711 = vcmp.gt.f32.partialorder %v1697, 0.0
  %vm1712 = vcmp.gt.f32.partialorder %v1702, 0.0
  %vm1713 = vcmp.gt.f32.partialorder %v1707, 0.0
  %v1714 = vmin.f32 %v1692, 0.0
  %v1715 = vmin.f32 %v1697, 0.0
  %v1716 = vmin.f32 %v1702, 0.0
  %v1717 = vmin.f32 %v1707, 0.0
  %v1718 = vmul.f32 %v1714, 1.442695
  %v1719 = vpow.pop %v1718
  %v1720 = vmul.f32 %v1715, 1.442695
  %v1721 = vpow.pop %v1720
  %v1722 = vmul.f32 %v1716, 1.442695
  %v1723 = vpow.pop %v1722
  %v1724 = vmul.f32 %v1717, 1.442695
  %v1725 = vpow.pop %v1724
  %v1726 = vsub.f32 %v1719, 1.0
  %v1727 = vsub.f32 %v1721, 1.0
  %v1728 = vsub.f32 %v1723, 1.0
  %v1729 = vsub.f32 %v1725, 1.0
  %v1730 = vsel %vm1710, %v1692, %v1726
  %v1731 = vsel %vm1711, %v1697, %v1727
  %v1732 = vsel %vm1712, %v1702, %v1728
  %v1733 = vsel %vm1713, %v1707, %v1729
  %v1734 = vld [vmem:[%s15] sm:$0xff]
  %v1735 = vld [vmem:[%s15 + $0x8] sm:$0xff]
  %v1736 = vld [vmem:[%s15 + $0x10] sm:$0xff]
  %v1737 = vld [vmem:[%s15 + $0x18] sm:$0xff]
  %v1739 = vsel %vm72, %v1734, 0
  %v1742 = vsel %vm72, %v1735, 0
  %v1745 = vsel %vm72, %v1736, 0
  %v1748 = vsel %vm72, %v1737, 0
  %1750 = vmatprep.subr.mxu0 0.0
  %1751 = vmatpush1.msra.mxu0 %v1730
  %1752 = vmatprep.subr.mxu0 0.0
  %1753 = vmatpush1.msra.mxu0 %v1731
  %1754 = vmatprep.subr.mxu0 0.0
  %1755 = vmatpush1.msra.mxu0 %v1732
  %1756 = vmatprep.subr.mxu0 0.0
  %1757 = vmatpush1.msra.mxu0 %v1733
  %1758 = vmatprep.subr.mxu0 0.0
  %1759 = vmatpush1.msra.mxu0 0.0
  %1760 = vmatprep.subr.mxu0 0.0
  %1761 = vmatpush1.msra.mxu0 0.0
  %1762 = vmatprep.subr.mxu0 0.0
  %1763 = vmatpush1.msra.mxu0 0.0
  %1764 = vmatprep.subr.mxu0 0.0
  %1765 = vmatpush1.msra.mxu0 0.0
  %1766 = vmatprep.subr.mxu0 0.0
  %1767 = vmatpush1.msra.mxu0 0.0
  %1768 = vmatprep.subr.mxu0 0.0
  %1769 = vmatpush1.msra.mxu0 0.0
  %1770 = vmatprep.subr.mxu0 0.0
  %1771 = vmatpush1.msra.mxu0 0.0
  %1772 = vmatprep.subr.mxu0 0.0
  %1773 = vmatpush1.msra.mxu0 0.0
  %1774 = vmatprep.subr.mxu0 0.0
  %1775 = vmatpush1.msra.mxu0 0.0
  %1776 = vmatprep.subr.mxu0 0.0
  %1777 = vmatpush1.msra.mxu0 0.0
  %1778 = vmatprep.subr.mxu0 0.0
  %1779 = vmatpush1.msra.mxu0 0.0
  %1780 = vmatprep.subr.mxu0 0.0
  %1781 = vmatpush1.msra.mxu0 0.0
  %1782 = vmatprep.subr.mxu0 0.0
  %1783 = vmatpush1.msra.mxu0 0.0
  %1784 = vmatprep.subr.mxu0 0.0
  %1785 = vmatpush1.msra.mxu0 0.0
  %1786 = vmatprep.subr.mxu0 0.0
  %1787 = vmatpush1.msra.mxu0 0.0
  %1788 = vmatprep.subr.mxu0 0.0
  %1789 = vmatpush1.msra.mxu0 0.0
  %1790 = vmatprep.subr.mxu0 0.0
  %1791 = vmatpush1.msra.mxu0 0.0
  %1792 = vmatprep.subr.mxu0 0.0
  %1793 = vmatpush1.msra.mxu0 0.0
  %1794 = vmatprep.subr.mxu0 0.0
  %1795 = vmatpush1.msra.mxu0 0.0
  %1796 = vmatprep.subr.mxu0 0.0
  %1797 = vmatpush1.msra.mxu0 0.0
  %1798 = vmatprep.subr.mxu0 0.0
  %1799 = vmatpush1.msra.mxu0 0.0
  %1800 = vmatprep.subr.mxu0 0.0
  %1801 = vmatpush1.msra.mxu0 0.0
  %1802 = vmatprep.subr.mxu0 0.0
  %1803 = vmatpush1.msra.mxu0 0.0
  %1804 = vmatprep.subr.mxu0 0.0
  %1805 = vmatpush1.msra.mxu0 0.0
  %1806 = vmatprep.subr.mxu0 0.0
  %1807 = vmatpush1.msra.mxu0 0.0
  %1808 = vmatprep.subr.mxu0 0.0
  %1809 = vmatpush1.msra.mxu0 0.0
  %1810 = vmatprep.subr.mxu0 0.0
  %1811 = vmatpush1.msra.mxu0 0.0
  %1812 = vmatprep.subr.mxu0 0.0
  %1813 = vmatpush1.msra.mxu0 0.0
  %1814 = vmatprep.mubr.f32.mxu0 0.0
  %1815 = vmatmul.mubr.f32.gmra.mrb[0].mxu0 %v1739
  %v1816 = vpop.f32.mrb[0].mxu0
  %v1817 = vadd.f32 0.0, %v1816
  %v1818 = vpop.f32.mrb[0].mxu0
  %1819 = vmatprep.mubr.f32.mxu0 0.0
  %1820 = vmatmul.mubr.f32.gmra.mrb[0].mxu0 %v1742
  %v1821 = vpop.f32.mrb[0].mxu0
  %v1822 = vadd.f32 0.0, %v1821
  %v1823 = vpop.f32.mrb[0].mxu0
  %1824 = vmatprep.mubr.f32.mxu0 0.0
  %1825 = vmatmul.mubr.f32.gmra.mrb[0].mxu0 %v1745
  %v1826 = vpop.f32.mrb[0].mxu0
  %v1827 = vadd.f32 0.0, %v1826
  %v1828 = vpop.f32.mrb[0].mxu0
  %1829 = vmatprep.mubr.f32.mxu0 0.0
  %1830 = vmatmul.mubr.f32.gmra.mrb[0].mxu0 %v1748
  %v1831 = vpop.f32.mrb[0].mxu0
  %v1832 = vadd.f32 0.0, %v1831
  %v1833 = vpop.f32.mrb[0].mxu0
  %1834 = vdwg.mxu0
  %vm1835 = vcmp.gt.f32.partialorder %v1817, 0.0
  %vm1836 = vcmp.gt.f32.partialorder %v1822, 0.0
  %vm1837 = vcmp.gt.f32.partialorder %v1827, 0.0
  %vm1838 = vcmp.gt.f32.partialorder %v1832, 0.0
  %v1839 = vmin.f32 %v1817, 0.0
  %v1840 = vmin.f32 %v1822, 0.0
  %v1841 = vmin.f32 %v1827, 0.0
  %v1842 = vmin.f32 %v1832, 0.0
  %v1843 = vmul.f32 %v1839, 1.442695
  %v1844 = vpow.pop %v1843
  %v1845 = vmul.f32 %v1840, 1.442695
  %v1846 = vpow.pop %v1845
  %v1847 = vmul.f32 %v1841, 1.442695
  %v1848 = vpow.pop %v1847
  %v1849 = vmul.f32 %v1842, 1.442695
  %v1850 = vpow.pop %v1849
  %v1851 = vsub.f32 %v1844, 1.0
  %v1852 = vsub.f32 %v1846, 1.0
  %v1853 = vsub.f32 %v1848, 1.0
  %v1854 = vsub.f32 %v1850, 1.0
  %v1855 = vsel %vm1835, %v1817, %v1851
  %v1856 = vsel %vm1836, %v1822, %v1852
  %v1857 = vsel %vm1837, %v1827, %v1853
  %v1858 = vsel %vm1838, %v1832, %v1854
  %v1859 = vld [vmem:[%s16] sm:$0xff]
  %v1860 = vld [vmem:[%s16 + $0x8] sm:$0xff]
  %v1861 = vld [vmem:[%s16 + $0x10] sm:$0xff]
  %v1862 = vld [vmem:[%s16 + $0x18] sm:$0xff]
  %v1864 = vsel %vm72, %v1859, 0
  %v1867 = vsel %vm72, %v1860, 0
  %v1870 = vsel %vm72, %v1861, 0
  %v1873 = vsel %vm72, %v1862, 0
  %1875 = vmatprep.subr.mxu0 0.0
  %1876 = vmatpush1.msra.mxu0 %v1855
  %1877 = vmatprep.subr.mxu0 0.0
  %1878 = vmatpush1.msra.mxu0 %v1856
  %1879 = vmatprep.subr.mxu0 0.0
  %1880 = vmatpush1.msra.mxu0 %v1857
  %1881 = vmatprep.subr.mxu0 0.0
  %1882 = vmatpush1.msra.mxu0 %v1858
  %1883 = vmatprep.subr.mxu0 0.0
  %1884 = vmatpush1.msra.mxu0 0.0
  %1885 = vmatprep.subr.mxu0 0.0
  %1886 = vmatpush1.msra.mxu0 0.0
  %1887 = vmatprep.subr.mxu0 0.0
  %1888 = vmatpush1.msra.mxu0 0.0
  %1889 = vmatprep.subr.mxu0 0.0
  %1890 = vmatpush1.msra.mxu0 0.0
  %1891 = vmatprep.subr.mxu0 0.0
  %1892 = vmatpush1.msra.mxu0 0.0
  %1893 = vmatprep.subr.mxu0 0.0
  %1894 = vmatpush1.msra.mxu0 0.0
  %1895 = vmatprep.subr.mxu0 0.0
  %1896 = vmatpush1.msra.mxu0 0.0
  %1897 = vmatprep.subr.mxu0 0.0
  %1898 = vmatpush1.msra.mxu0 0.0
  %1899 = vmatprep.subr.mxu0 0.0
  %1900 = vmatpush1.msra.mxu0 0.0
  %1901 = vmatprep.subr.mxu0 0.0
  %1902 = vmatpush1.msra.mxu0 0.0
  %1903 = vmatprep.subr.mxu0 0.0
  %1904 = vmatpush1.msra.mxu0 0.0
  %1905 = vmatprep.subr.mxu0 0.0
  %1906 = vmatpush1.msra.mxu0 0.0
  %1907 = vmatprep.subr.mxu0 0.0
  %1908 = vmatpush1.msra.mxu0 0.0
  %1909 = vmatprep.subr.mxu0 0.0
  %1910 = vmatpush1.msra.mxu0 0.0
  %1911 = vmatprep.subr.mxu0 0.0
  %1912 = vmatpush1.msra.mxu0 0.0
  %1913 = vmatprep.subr.mxu0 0.0
  %1914 = vmatpush1.msra.mxu0 0.0
  %1915 = vmatprep.subr.mxu0 0.0
  %1916 = vmatpush1.msra.mxu0 0.0
  %1917 = vmatprep.subr.mxu0 0.0
  %1918 = vmatpush1.msra.mxu0 0.0
  %1919 = vmatprep.subr.mxu0 0.0
  %1920 = vmatpush1.msra.mxu0 0.0
  %1921 = vmatprep.subr.mxu0 0.0
  %1922 = vmatpush1.msra.mxu0 0.0
  %1923 = vmatprep.subr.mxu0 0.0
  %1924 = vmatpush1.msra.mxu0 0.0
  %1925 = vmatprep.subr.mxu0 0.0
  %1926 = vmatpush1.msra.mxu0 0.0
  %1927 = vmatprep.subr.mxu0 0.0
  %1928 = vmatpush1.msra.mxu0 0.0
  %1929 = vmatprep.subr.mxu0 0.0
  %1930 = vmatpush1.msra.mxu0 0.0
  %1931 = vmatprep.subr.mxu0 0.0
  %1932 = vmatpush1.msra.mxu0 0.0
  %1933 = vmatprep.subr.mxu0 0.0
  %1934 = vmatpush1.msra.mxu0 0.0
  %1935 = vmatprep.subr.mxu0 0.0
  %1936 = vmatpush1.msra.mxu0 0.0
  %1937 = vmatprep.subr.mxu0 0.0
  %1938 = vmatpush1.msra.mxu0 0.0
  %1939 = vmatprep.mubr.f32.mxu0 0.0
  %1940 = vmatmul.mubr.f32.gmra.mrb[0].mxu0 %v1864
  %v1941 = vpop.f32.mrb[0].mxu0
  %v1942 = vadd.f32 0.0, %v1941
  %v1943 = vpop.f32.mrb[0].mxu0
  %1944 = vmatprep.mubr.f32.mxu0 0.0
  %1945 = vmatmul.mubr.f32.gmra.mrb[0].mxu0 %v1867
  %v1946 = vpop.f32.mrb[0].mxu0
  %v1947 = vadd.f32 0.0, %v1946
  %v1948 = vpop.f32.mrb[0].mxu0
  %1949 = vmatprep.mubr.f32.mxu0 0.0
  %1950 = vmatmul.mubr.f32.gmra.mrb[0].mxu0 %v1870
  %v1951 = vpop.f32.mrb[0].mxu0
  %v1952 = vadd.f32 0.0, %v1951
  %v1953 = vpop.f32.mrb[0].mxu0
  %1954 = vmatprep.mubr.f32.mxu0 0.0
  %1955 = vmatmul.mubr.f32.gmra.mrb[0].mxu0 %v1873
  %v1956 = vpop.f32.mrb[0].mxu0
  %v1957 = vadd.f32 0.0, %v1956
  %v1958 = vpop.f32.mrb[0].mxu0
  %1959 = vdwg.mxu0
  %vm1960 = vcmp.gt.f32.partialorder %v1942, 0.0
  %vm1961 = vcmp.gt.f32.partialorder %v1947, 0.0
  %vm1962 = vcmp.gt.f32.partialorder %v1952, 0.0
  %vm1963 = vcmp.gt.f32.partialorder %v1957, 0.0
  %v1964 = vmin.f32 %v1942, 0.0
  %v1965 = vmin.f32 %v1947, 0.0
  %v1966 = vmin.f32 %v1952, 0.0
  %v1967 = vmin.f32 %v1957, 0.0
  %v1968 = vmul.f32 %v1964, 1.442695
  %v1969 = vpow.pop %v1968
  %v1970 = vmul.f32 %v1965, 1.442695
  %v1971 = vpow.pop %v1970
  %v1972 = vmul.f32 %v1966, 1.442695
  %v1973 = vpow.pop %v1972
  %v1974 = vmul.f32 %v1967, 1.442695
  %v1975 = vpow.pop %v1974
  %v1976 = vsub.f32 %v1969, 1.0
  %v1977 = vsub.f32 %v1971, 1.0
  %v1978 = vsub.f32 %v1973, 1.0
  %v1979 = vsub.f32 %v1975, 1.0
  %v1980 = vsel %vm1960, %v1942, %v1976
  %v1981 = vsel %vm1961, %v1947, %v1977
  %v1982 = vsel %vm1962, %v1952, %v1978
  %v1983 = vsel %vm1963, %v1957, %v1979
  %v1984 = vld [vmem:[%s17] sm:$0x1]
  %v1985 = vld [vmem:[%s18] sm:$0x1]
  %1987 = vset.pattern.permute.xlu0 0
  %1988 = vperm.xlu0 %1987, %v1985
  %v1989 = vpop.permute.xlu0 %1988
  %v1991 = vlaneseq
  %v1992 = vshrl.u32 %v1991, 7
  %v1993 = vsub.s32 0, %v1992
  %v1994 = vrot.slane %v1989, %v1993
  %v1996 = vsel %vm72, %v1984, 0
  %1998 = vmatprep.subr.mxu0 0.0
  %1999 = vmatpush1.msra.mxu0 %v1980
  %2000 = vmatprep.subr.mxu0 0.0
  %2001 = vmatpush1.msra.mxu0 %v1981
  %2002 = vmatprep.subr.mxu0 0.0
  %2003 = vmatpush1.msra.mxu0 %v1982
  %2004 = vmatprep.subr.mxu0 0.0
  %2005 = vmatpush1.msra.mxu0 %v1983
  %2006 = vmatprep.subr.mxu0 0.0
  %2007 = vmatpush1.msra.mxu0 0.0
  %2008 = vmatprep.subr.mxu0 0.0
  %2009 = vmatpush1.msra.mxu0 0.0
  %2010 = vmatprep.subr.mxu0 0.0
  %2011 = vmatpush1.msra.mxu0 0.0
  %2012 = vmatprep.subr.mxu0 0.0
  %2013 = vmatpush1.msra.mxu0 0.0
  %2014 = vmatprep.subr.mxu0 0.0
  %2015 = vmatpush1.msra.mxu0 0.0
  %2016 = vmatprep.subr.mxu0 0.0
  %2017 = vmatpush1.msra.mxu0 0.0
  %2018 = vmatprep.subr.mxu0 0.0
  %2019 = vmatpush1.msra.mxu0 0.0
  %2020 = vmatprep.subr.mxu0 0.0
  %2021 = vmatpush1.msra.mxu0 0.0
  %2022 = vmatprep.subr.mxu0 0.0
  %2023 = vmatpush1.msra.mxu0 0.0
  %2024 = vmatprep.subr.mxu0 0.0
  %2025 = vmatpush1.msra.mxu0 0.0
  %2026 = vmatprep.subr.mxu0 0.0
  %2027 = vmatpush1.msra.mxu0 0.0
  %2028 = vmatprep.subr.mxu0 0.0
  %2029 = vmatpush1.msra.mxu0 0.0
  %2030 = vmatprep.subr.mxu0 0.0
  %2031 = vmatpush1.msra.mxu0 0.0
  %2032 = vmatprep.subr.mxu0 0.0
  %2033 = vmatpush1.msra.mxu0 0.0
  %2034 = vmatprep.subr.mxu0 0.0
  %2035 = vmatpush1.msra.mxu0 0.0
  %2036 = vmatprep.subr.mxu0 0.0
  %2037 = vmatpush1.msra.mxu0 0.0
  %2038 = vmatprep.subr.mxu0 0.0
  %2039 = vmatpush1.msra.mxu0 0.0
  %2040 = vmatprep.subr.mxu0 0.0
  %2041 = vmatpush1.msra.mxu0 0.0
  %2042 = vmatprep.subr.mxu0 0.0
  %2043 = vmatpush1.msra.mxu0 0.0
  %2044 = vmatprep.subr.mxu0 0.0
  %2045 = vmatpush1.msra.mxu0 0.0
  %2046 = vmatprep.subr.mxu0 0.0
  %2047 = vmatpush1.msra.mxu0 0.0
  %2048 = vmatprep.subr.mxu0 0.0
  %2049 = vmatpush1.msra.mxu0 0.0
  %2050 = vmatprep.subr.mxu0 0.0
  %2051 = vmatpush1.msra.mxu0 0.0
  %2052 = vmatprep.subr.mxu0 0.0
  %2053 = vmatpush1.msra.mxu0 0.0
  %2054 = vmatprep.subr.mxu0 0.0
  %2055 = vmatpush1.msra.mxu0 0.0
  %2056 = vmatprep.subr.mxu0 0.0
  %2057 = vmatpush1.msra.mxu0 0.0
  %2058 = vmatprep.subr.mxu0 0.0
  %2059 = vmatpush1.msra.mxu0 0.0
  %2060 = vmatprep.subr.mxu0 0.0
  %2061 = vmatpush1.msra.mxu0 0.0
  %2062 = vmatprep.mubr.f32.mxu0 0.0
  %2063 = vmatmul.mubr.f32.gmra.mrb[0].mxu0 %v1996
  %v2064 = vpop.f32.mrb[0].mxu0
  %v2065 = vadd.f32 %v1994, %v2064
  %v2066 = vpop.f32.mrb[0].mxu0
  %2067 = vdwg.mxu0
  %vm2068 = vcmp.gt.f32.partialorder %v2065, 20.0
  %v2069 = vmin.f32 %v2065, 20.0
  %v2070 = vmul.f32 %v2069, 1.442695
  %v2071 = vpow.pop %v2070
  %v2072 = vadd.f32 %v2071, 1.0
  %v2073 = vlog2.pop %v2072
  %v2074 = vmul.f32 %v2073, 0.6931472
  %v2075 = vsel %vm2068, %v2065, %v2074
  %v2076 = vld [vmem:[%s2] sm:$0x1]
  %v2077 = vmul.f32 %v2075, %v2076
  %vm2078 = vcmask 8192
  %2079 = vst.msk [vmem:[%s20] sm:$0x1] %vm2078, %v2077
  %2084 = vrot.lane.b32.xlu0 %v557, 32
  %v2085 = vpop.permute.xlu0 %2084
  %2086 = vrot.lane.b32.xlu0 %v558, 32
  %v2087 = vpop.permute.xlu0 %2086
  %2088 = vrot.lane.b32.xlu0 %v559, 32
  %v2089 = vpop.permute.xlu0 %2088
  %2090 = vrot.lane.b32.xlu0 %v560, 32
  %v2091 = vpop.permute.xlu0 %2090
  %v2096 = vsel %vm72, %v549, %v2085
  %v2097 = vsel %vm72, %v550, %v2087
  %v2098 = vsel %vm72, %v551, %v2089
  %v2099 = vsel %vm72, %v552, %v2091
  %2101 = vset.pattern.permute.xlu0 0
  %2102 = vperm.xlu0 %2101, %v509
  %v2103 = vpop.permute.xlu0 %2102
  %2106 = vset.pattern.permute.xlu0 0
  %2107 = vperm.xlu0 %2106, %v511
  %v2108 = vpop.permute.xlu0 %2107
  %2111 = vset.pattern.permute.xlu0 0
  %2112 = vperm.xlu0 %2111, %v513
  %v2113 = vpop.permute.xlu0 %2112
  %2116 = vset.pattern.permute.xlu0 0
  %2117 = vperm.xlu0 %2116, %v515
  %v2118 = vpop.permute.xlu0 %2117
  %2120 = vset.pattern.permute.xlu0 1
  %2121 = vperm.xlu0 %2120, %v509
  %v2122 = vpop.permute.xlu0 %2121
  %2124 = vset.pattern.permute.xlu0 1
  %2125 = vperm.xlu0 %2124, %v511
  %v2126 = vpop.permute.xlu0 %2125
  %2128 = vset.pattern.permute.xlu0 1
  %2129 = vperm.xlu0 %2128, %v513
  %v2130 = vpop.permute.xlu0 %2129
  %2132 = vset.pattern.permute.xlu0 1
  %2133 = vperm.xlu0 %2132, %v515
  %v2134 = vpop.permute.xlu0 %2133
  %v2136 = vsel %vm72, %v2103, %v2122
  %v2137 = vsel %vm72, %v2108, %v2126
  %v2138 = vsel %vm72, %v2113, %v2130
  %v2139 = vsel %vm72, %v2118, %v2134
  %v2140 = vmul.f32 %v259, %v2136
  %v2141 = vmul.f32 %v264, %v2137
  %v2142 = vmul.f32 %v269, %v2138
  %v2143 = vmul.f32 %v274, %v2139
  %s2144 = scalar_lea.vmem %s6, 32
  %v2145 = vld [vmem:[%s2144] sm:$0xff]
  %v2146 = vld [vmem:[%s2144 + $0x8] sm:$0xff]
  %v2147 = vld [vmem:[%s2144 + $0x10] sm:$0xff]
  %v2148 = vld [vmem:[%s2144 + $0x18] sm:$0xff]
  %s2149 = scalar_lea.vmem %s7, 32
  %v2150 = vld [vmem:[%s2149] sm:$0xff]
  %v2151 = vld [vmem:[%s2149 + $0x8] sm:$0xff]
  %v2152 = vld [vmem:[%s2149 + $0x10] sm:$0xff]
  %v2153 = vld [vmem:[%s2149 + $0x18] sm:$0xff]
  %2155 = vset.pattern.permute.xlu0 0
  %2156 = vperm.xlu0 %2155, %v2150
  %v2157 = vpop.permute.xlu0 %2156
  %2160 = vset.pattern.permute.xlu0 0
  %2161 = vperm.xlu0 %2160, %v2151
  %v2162 = vpop.permute.xlu0 %2161
  %2165 = vset.pattern.permute.xlu0 0
  %2166 = vperm.xlu0 %2165, %v2152
  %v2167 = vpop.permute.xlu0 %2166
  %2170 = vset.pattern.permute.xlu0 0
  %2171 = vperm.xlu0 %2170, %v2153
  %v2172 = vpop.permute.xlu0 %2171
  %v2175 = vsel %vm653, %v2145, 0
  %v2178 = vsel %vm653, %v2146, 0
  %v2181 = vsel %vm653, %v2147, 0
  %v2184 = vsel %vm653, %v2148, 0
  %2186 = vmatprep.subr.mxu0 0.0
  %2187 = vmatpush1.msra.mxu0 %v2140
  %2188 = vmatprep.subr.mxu0 0.0
  %2189 = vmatpush1.msra.mxu0 %v2141
  %2190 = vmatprep.subr.mxu0 0.0
  %2191 = vmatpush1.msra.mxu0 %v2142
  %2192 = vmatprep.subr.mxu0 0.0
  %2193 = vmatpush1.msra.mxu0 %v2143
  %2194 = vmatprep.subr.mxu0 0.0
  %2195 = vmatpush1.msra.mxu0 %v2096
  %2196 = vmatprep.subr.mxu0 0.0
  %2197 = vmatpush1.msra.mxu0 %v2097
  %2198 = vmatprep.subr.mxu0 0.0
  %2199 = vmatpush1.msra.mxu0 %v2098
  %2200 = vmatprep.subr.mxu0 0.0
  %2201 = vmatpush1.msra.mxu0 %v2099
  %2202 = vmatprep.subr.mxu0 0.0
  %2203 = vmatpush1.msra.mxu0 0.0
  %2204 = vmatprep.subr.mxu0 0.0
  %2205 = vmatpush1.msra.mxu0 0.0
  %2206 = vmatprep.subr.mxu0 0.0
  %2207 = vmatpush1.msra.mxu0 0.0
  %2208 = vmatprep.subr.mxu0 0.0
  %2209 = vmatpush1.msra.mxu0 0.0
  %2210 = vmatprep.subr.mxu0 0.0
  %2211 = vmatpush1.msra.mxu0 0.0
  %2212 = vmatprep.subr.mxu0 0.0
  %2213 = vmatpush1.msra.mxu0 0.0
  %2214 = vmatprep.subr.mxu0 0.0
  %2215 = vmatpush1.msra.mxu0 0.0
  %2216 = vmatprep.subr.mxu0 0.0
  %2217 = vmatpush1.msra.mxu0 0.0
  %2218 = vmatprep.subr.mxu0 0.0
  %2219 = vmatpush1.msra.mxu0 0.0
  %2220 = vmatprep.subr.mxu0 0.0
  %2221 = vmatpush1.msra.mxu0 0.0
  %2222 = vmatprep.subr.mxu0 0.0
  %2223 = vmatpush1.msra.mxu0 0.0
  %2224 = vmatprep.subr.mxu0 0.0
  %2225 = vmatpush1.msra.mxu0 0.0
  %2226 = vmatprep.subr.mxu0 0.0
  %2227 = vmatpush1.msra.mxu0 0.0
  %2228 = vmatprep.subr.mxu0 0.0
  %2229 = vmatpush1.msra.mxu0 0.0
  %2230 = vmatprep.subr.mxu0 0.0
  %2231 = vmatpush1.msra.mxu0 0.0
  %2232 = vmatprep.subr.mxu0 0.0
  %2233 = vmatpush1.msra.mxu0 0.0
  %2234 = vmatprep.subr.mxu0 0.0
  %2235 = vmatpush1.msra.mxu0 0.0
  %2236 = vmatprep.subr.mxu0 0.0
  %2237 = vmatpush1.msra.mxu0 0.0
  %2238 = vmatprep.subr.mxu0 0.0
  %2239 = vmatpush1.msra.mxu0 0.0
  %2240 = vmatprep.subr.mxu0 0.0
  %2241 = vmatpush1.msra.mxu0 0.0
  %2242 = vmatprep.subr.mxu0 0.0
  %2243 = vmatpush1.msra.mxu0 0.0
  %2244 = vmatprep.subr.mxu0 0.0
  %2245 = vmatpush1.msra.mxu0 0.0
  %2246 = vmatprep.subr.mxu0 0.0
  %2247 = vmatpush1.msra.mxu0 0.0
  %2248 = vmatprep.subr.mxu0 0.0
  %2249 = vmatpush1.msra.mxu0 0.0
  %2250 = vmatprep.mubr.f32.mxu0 0.0
  %2251 = vmatmul.mubr.f32.gmra.mrb[0].mxu0 %v2175
  %v2252 = vpop.f32.mrb[0].mxu0
  %v2253 = vadd.f32 %v2157, %v2252
  %v2254 = vpop.f32.mrb[0].mxu0
  %2255 = vmatprep.mubr.f32.mxu0 0.0
  %2256 = vmatmul.mubr.f32.gmra.mrb[0].mxu0 %v2178
  %v2257 = vpop.f32.mrb[0].mxu0
  %v2258 = vadd.f32 %v2162, %v2257
  %v2259 = vpop.f32.mrb[0].mxu0
  %2260 = vmatprep.mubr.f32.mxu0 0.0
  %2261 = vmatmul.mubr.f32.gmra.mrb[0].mxu0 %v2181
  %v2262 = vpop.f32.mrb[0].mxu0
  %v2263 = vadd.f32 %v2167, %v2262
  %v2264 = vpop.f32.mrb[0].mxu0
  %2265 = vmatprep.mubr.f32.mxu0 0.0
  %2266 = vmatmul.mubr.f32.gmra.mrb[0].mxu0 %v2184
  %v2267 = vpop.f32.mrb[0].mxu0
  %v2268 = vadd.f32 %v2172, %v2267
  %v2269 = vpop.f32.mrb[0].mxu0
  %2270 = vdwg.mxu0
  %vm2271 = vcmp.gt.f32.partialorder %v2253, 0.0
  %vm2272 = vcmp.gt.f32.partialorder %v2258, 0.0
  %vm2273 = vcmp.gt.f32.partialorder %v2263, 0.0
  %vm2274 = vcmp.gt.f32.partialorder %v2268, 0.0
  %v2275 = vmin.f32 %v2253, 0.0
  %v2276 = vmin.f32 %v2258, 0.0
  %v2277 = vmin.f32 %v2263, 0.0
  %v2278 = vmin.f32 %v2268, 0.0
  %v2279 = vmul.f32 %v2275, 1.442695
  %v2280 = vpow.pop %v2279
  %v2281 = vmul.f32 %v2276, 1.442695
  %v2282 = vpow.pop %v2281
  %v2283 = vmul.f32 %v2277, 1.442695
  %v2284 = vpow.pop %v2283
  %v2285 = vmul.f32 %v2278, 1.442695
  %v2286 = vpow.pop %v2285
  %v2287 = vsub.f32 %v2280, 1.0
  %v2288 = vsub.f32 %v2282, 1.0
  %v2289 = vsub.f32 %v2284, 1.0
  %v2290 = vsub.f32 %v2286, 1.0
  %v2291 = vsel %vm2271, %v2253, %v2287
  %v2292 = vsel %vm2272, %v2258, %v2288
  %v2293 = vsel %vm2273, %v2263, %v2289
  %v2294 = vsel %vm2274, %v2268, %v2290
  %s2295 = scalar_lea.vmem %s8, 32
  %v2296 = vld [vmem:[%s2295] sm:$0xff]
  %v2297 = vld [vmem:[%s2295 + $0x8] sm:$0xff]
  %v2298 = vld [vmem:[%s2295 + $0x10] sm:$0xff]
  %v2299 = vld [vmem:[%s2295 + $0x18] sm:$0xff]
  %s2300 = scalar_lea.vmem %s9, 32
  %v2301 = vld [vmem:[%s2300] sm:$0xff]
  %v2302 = vld [vmem:[%s2300 + $0x8] sm:$0xff]
  %v2303 = vld [vmem:[%s2300 + $0x10] sm:$0xff]
  %v2304 = vld [vmem:[%s2300 + $0x18] sm:$0xff]
  %2306 = vset.pattern.permute.xlu0 0
  %2307 = vperm.xlu0 %2306, %v2301
  %v2308 = vpop.permute.xlu0 %2307
  %2311 = vset.pattern.permute.xlu0 0
  %2312 = vperm.xlu0 %2311, %v2302
  %v2313 = vpop.permute.xlu0 %2312
  %2316 = vset.pattern.permute.xlu0 0
  %2317 = vperm.xlu0 %2316, %v2303
  %v2318 = vpop.permute.xlu0 %2317
  %2321 = vset.pattern.permute.xlu0 0
  %2322 = vperm.xlu0 %2321, %v2304
  %v2323 = vpop.permute.xlu0 %2322
  %v2326 = vsel %vm72, %v2296, 0
  %v2329 = vsel %vm72, %v2297, 0
  %v2332 = vsel %vm72, %v2298, 0
  %v2335 = vsel %vm72, %v2299, 0
  %2337 = vmatprep.subr.mxu0 0.0
  %2338 = vmatpush1.msra.mxu0 %v2291
  %2339 = vmatprep.subr.mxu0 0.0
  %2340 = vmatpush1.msra.mxu0 %v2292
  %2341 = vmatprep.subr.mxu0 0.0
  %2342 = vmatpush1.msra.mxu0 %v2293
  %2343 = vmatprep.subr.mxu0 0.0
  %2344 = vmatpush1.msra.mxu0 %v2294
  %2345 = vmatprep.subr.mxu0 0.0
  %2346 = vmatpush1.msra.mxu0 0.0
  %2347 = vmatprep.subr.mxu0 0.0
  %2348 = vmatpush1.msra.mxu0 0.0
  %2349 = vmatprep.subr.mxu0 0.0
  %2350 = vmatpush1.msra.mxu0 0.0
  %2351 = vmatprep.subr.mxu0 0.0
  %2352 = vmatpush1.msra.mxu0 0.0
  %2353 = vmatprep.subr.mxu0 0.0
  %2354 = vmatpush1.msra.mxu0 0.0
  %2355 = vmatprep.subr.mxu0 0.0
  %2356 = vmatpush1.msra.mxu0 0.0
  %2357 = vmatprep.subr.mxu0 0.0
  %2358 = vmatpush1.msra.mxu0 0.0
  %2359 = vmatprep.subr.mxu0 0.0
  %2360 = vmatpush1.msra.mxu0 0.0
  %2361 = vmatprep.subr.mxu0 0.0
  %2362 = vmatpush1.msra.mxu0 0.0
  %2363 = vmatprep.subr.mxu0 0.0
  %2364 = vmatpush1.msra.mxu0 0.0
  %2365 = vmatprep.subr.mxu0 0.0
  %2366 = vmatpush1.msra.mxu0 0.0
  %2367 = vmatprep.subr.mxu0 0.0
  %2368 = vmatpush1.msra.mxu0 0.0
  %2369 = vmatprep.subr.mxu0 0.0
  %2370 = vmatpush1.msra.mxu0 0.0
  %2371 = vmatprep.subr.mxu0 0.0
  %2372 = vmatpush1.msra.mxu0 0.0
  %2373 = vmatprep.subr.mxu0 0.0
  %2374 = vmatpush1.msra.mxu0 0.0
  %2375 = vmatprep.subr.mxu0 0.0
  %2376 = vmatpush1.msra.mxu0 0.0
  %2377 = vmatprep.subr.mxu0 0.0
  %2378 = vmatpush1.msra.mxu0 0.0
  %2379 = vmatprep.subr.mxu0 0.0
  %2380 = vmatpush1.msra.mxu0 0.0
  %2381 = vmatprep.subr.mxu0 0.0
  %2382 = vmatpush1.msra.mxu0 0.0
  %2383 = vmatprep.subr.mxu0 0.0
  %2384 = vmatpush1.msra.mxu0 0.0
  %2385 = vmatprep.subr.mxu0 0.0
  %2386 = vmatpush1.msra.mxu0 0.0
  %2387 = vmatprep.subr.mxu0 0.0
  %2388 = vmatpush1.msra.mxu0 0.0
  %2389 = vmatprep.subr.mxu0 0.0
  %2390 = vmatpush1.msra.mxu0 0.0
  %2391 = vmatprep.subr.mxu0 0.0
  %2392 = vmatpush1.msra.mxu0 0.0
  %2393 = vmatprep.subr.mxu0 0.0
  %2394 = vmatpush1.msra.mxu0 0.0
  %2395 = vmatprep.subr.mxu0 0.0
  %2396 = vmatpush1.msra.mxu0 0.0
  %2397 = vmatprep.subr.mxu0 0.0
  %2398 = vmatpush1.msra.mxu0 0.0
  %2399 = vmatprep.subr.mxu0 0.0
  %2400 = vmatpush1.msra.mxu0 0.0
  %2401 = vmatprep.mubr.f32.mxu0 0.0
  %2402 = vmatmul.mubr.f32.gmra.mrb[0].mxu0 %v2326
  %v2403 = vpop.f32.mrb[0].mxu0
  %v2404 = vadd.f32 %v2308, %v2403
  %v2405 = vpop.f32.mrb[0].mxu0
  %2406 = vmatprep.mubr.f32.mxu0 0.0
  %2407 = vmatmul.mubr.f32.gmra.mrb[0].mxu0 %v2329
  %v2408 = vpop.f32.mrb[0].mxu0
  %v2409 = vadd.f32 %v2313, %v2408
  %v2410 = vpop.f32.mrb[0].mxu0
  %2411 = vmatprep.mubr.f32.mxu0 0.0
  %2412 = vmatmul.mubr.f32.gmra.mrb[0].mxu0 %v2332
  %v2413 = vpop.f32.mrb[0].mxu0
  %v2414 = vadd.f32 %v2318, %v2413
  %v2415 = vpop.f32.mrb[0].mxu0
  %2416 = vmatprep.mubr.f32.mxu0 0.0
  %2417 = vmatmul.mubr.f32.gmra.mrb[0].mxu0 %v2335
  %v2418 = vpop.f32.mrb[0].mxu0
  %v2419 = vadd.f32 %v2323, %v2418
  %v2420 = vpop.f32.mrb[0].mxu0
  %2421 = vdwg.mxu0
  %vm2422 = vcmp.gt.f32.partialorder %v2404, 0.0
  %vm2423 = vcmp.gt.f32.partialorder %v2409, 0.0
  %vm2424 = vcmp.gt.f32.partialorder %v2414, 0.0
  %vm2425 = vcmp.gt.f32.partialorder %v2419, 0.0
  %v2426 = vmin.f32 %v2404, 0.0
  %v2427 = vmin.f32 %v2409, 0.0
  %v2428 = vmin.f32 %v2414, 0.0
  %v2429 = vmin.f32 %v2419, 0.0
  %v2430 = vmul.f32 %v2426, 1.442695
  %v2431 = vpow.pop %v2430
  %v2432 = vmul.f32 %v2427, 1.442695
  %v2433 = vpow.pop %v2432
  %v2434 = vmul.f32 %v2428, 1.442695
  %v2435 = vpow.pop %v2434
  %v2436 = vmul.f32 %v2429, 1.442695
  %v2437 = vpow.pop %v2436
  %v2438 = vsub.f32 %v2431, 1.0
  %v2439 = vsub.f32 %v2433, 1.0
  %v2440 = vsub.f32 %v2435, 1.0
  %v2441 = vsub.f32 %v2437, 1.0
  %v2442 = vsel %vm2422, %v2404, %v2438
  %v2443 = vsel %vm2423, %v2409, %v2439
  %v2444 = vsel %vm2424, %v2414, %v2440
  %v2445 = vsel %vm2425, %v2419, %v2441
  %s2446 = scalar_lea.vmem %s10, 32
  %v2447 = vld [vmem:[%s2446] sm:$0xff]
  %v2448 = vld [vmem:[%s2446 + $0x8] sm:$0xff]
  %v2449 = vld [vmem:[%s2446 + $0x10] sm:$0xff]
  %v2450 = vld [vmem:[%s2446 + $0x18] sm:$0xff]
  %s2451 = scalar_lea.vmem %s11, 32
  %v2452 = vld [vmem:[%s2451] sm:$0xff]
  %v2453 = vld [vmem:[%s2451 + $0x8] sm:$0xff]
  %v2454 = vld [vmem:[%s2451 + $0x10] sm:$0xff]
  %v2455 = vld [vmem:[%s2451 + $0x18] sm:$0xff]
  %2457 = vset.pattern.permute.xlu0 0
  %2458 = vperm.xlu0 %2457, %v2452
  %v2459 = vpop.permute.xlu0 %2458
  %2462 = vset.pattern.permute.xlu0 0
  %2463 = vperm.xlu0 %2462, %v2453
  %v2464 = vpop.permute.xlu0 %2463
  %2467 = vset.pattern.permute.xlu0 0
  %2468 = vperm.xlu0 %2467, %v2454
  %v2469 = vpop.permute.xlu0 %2468
  %2472 = vset.pattern.permute.xlu0 0
  %2473 = vperm.xlu0 %2472, %v2455
  %v2474 = vpop.permute.xlu0 %2473
  %v2477 = vsel %vm72, %v2447, 0
  %v2480 = vsel %vm72, %v2448, 0
  %v2483 = vsel %vm72, %v2449, 0
  %v2486 = vsel %vm72, %v2450, 0
  %2488 = vmatprep.subr.mxu0 0.0
  %2489 = vmatpush1.msra.mxu0 %v2442
  %2490 = vmatprep.subr.mxu0 0.0
  %2491 = vmatpush1.msra.mxu0 %v2443
  %2492 = vmatprep.subr.mxu0 0.0
  %2493 = vmatpush1.msra.mxu0 %v2444
  %2494 = vmatprep.subr.mxu0 0.0
  %2495 = vmatpush1.msra.mxu0 %v2445
  %2496 = vmatprep.subr.mxu0 0.0
  %2497 = vmatpush1.msra.mxu0 0.0
  %2498 = vmatprep.subr.mxu0 0.0
  %2499 = vmatpush1.msra.mxu0 0.0
  %2500 = vmatprep.subr.mxu0 0.0
  %2501 = vmatpush1.msra.mxu0 0.0
  %2502 = vmatprep.subr.mxu0 0.0
  %2503 = vmatpush1.msra.mxu0 0.0
  %2504 = vmatprep.subr.mxu0 0.0
  %2505 = vmatpush1.msra.mxu0 0.0
  %2506 = vmatprep.subr.mxu0 0.0
  %2507 = vmatpush1.msra.mxu0 0.0
  %2508 = vmatprep.subr.mxu0 0.0
  %2509 = vmatpush1.msra.mxu0 0.0
  %2510 = vmatprep.subr.mxu0 0.0
  %2511 = vmatpush1.msra.mxu0 0.0
  %2512 = vmatprep.subr.mxu0 0.0
  %2513 = vmatpush1.msra.mxu0 0.0
  %2514 = vmatprep.subr.mxu0 0.0
  %2515 = vmatpush1.msra.mxu0 0.0
  %2516 = vmatprep.subr.mxu0 0.0
  %2517 = vmatpush1.msra.mxu0 0.0
  %2518 = vmatprep.subr.mxu0 0.0
  %2519 = vmatpush1.msra.mxu0 0.0
  %2520 = vmatprep.subr.mxu0 0.0
  %2521 = vmatpush1.msra.mxu0 0.0
  %2522 = vmatprep.subr.mxu0 0.0
  %2523 = vmatpush1.msra.mxu0 0.0
  %2524 = vmatprep.subr.mxu0 0.0
  %2525 = vmatpush1.msra.mxu0 0.0
  %2526 = vmatprep.subr.mxu0 0.0
  %2527 = vmatpush1.msra.mxu0 0.0
  %2528 = vmatprep.subr.mxu0 0.0
  %2529 = vmatpush1.msra.mxu0 0.0
  %2530 = vmatprep.subr.mxu0 0.0
  %2531 = vmatpush1.msra.mxu0 0.0
  %2532 = vmatprep.subr.mxu0 0.0
  %2533 = vmatpush1.msra.mxu0 0.0
  %2534 = vmatprep.subr.mxu0 0.0
  %2535 = vmatpush1.msra.mxu0 0.0
  %2536 = vmatprep.subr.mxu0 0.0
  %2537 = vmatpush1.msra.mxu0 0.0
  %2538 = vmatprep.subr.mxu0 0.0
  %2539 = vmatpush1.msra.mxu0 0.0
  %2540 = vmatprep.subr.mxu0 0.0
  %2541 = vmatpush1.msra.mxu0 0.0
  %2542 = vmatprep.subr.mxu0 0.0
  %2543 = vmatpush1.msra.mxu0 0.0
  %2544 = vmatprep.subr.mxu0 0.0
  %2545 = vmatpush1.msra.mxu0 0.0
  %2546 = vmatprep.subr.mxu0 0.0
  %2547 = vmatpush1.msra.mxu0 0.0
  %2548 = vmatprep.subr.mxu0 0.0
  %2549 = vmatpush1.msra.mxu0 0.0
  %2550 = vmatprep.subr.mxu0 0.0
  %2551 = vmatpush1.msra.mxu0 0.0
  %2552 = vmatprep.mubr.f32.mxu0 0.0
  %2553 = vmatmul.mubr.f32.gmra.mrb[0].mxu0 %v2477
  %v2554 = vpop.f32.mrb[0].mxu0
  %v2555 = vadd.f32 %v2459, %v2554
  %v2556 = vpop.f32.mrb[0].mxu0
  %2557 = vmatprep.mubr.f32.mxu0 0.0
  %2558 = vmatmul.mubr.f32.gmra.mrb[0].mxu0 %v2480
  %v2559 = vpop.f32.mrb[0].mxu0
  %v2560 = vadd.f32 %v2464, %v2559
  %v2561 = vpop.f32.mrb[0].mxu0
  %2562 = vmatprep.mubr.f32.mxu0 0.0
  %2563 = vmatmul.mubr.f32.gmra.mrb[0].mxu0 %v2483
  %v2564 = vpop.f32.mrb[0].mxu0
  %v2565 = vadd.f32 %v2469, %v2564
  %v2566 = vpop.f32.mrb[0].mxu0
  %2567 = vmatprep.mubr.f32.mxu0 0.0
  %2568 = vmatmul.mubr.f32.gmra.mrb[0].mxu0 %v2486
  %v2569 = vpop.f32.mrb[0].mxu0
  %v2570 = vadd.f32 %v2474, %v2569
  %v2571 = vpop.f32.mrb[0].mxu0
  %2572 = vdwg.mxu0
  %vm2573 = vcmp.gt.f32.partialorder %v2555, 0.0
  %vm2574 = vcmp.gt.f32.partialorder %v2560, 0.0
  %vm2575 = vcmp.gt.f32.partialorder %v2565, 0.0
  %vm2576 = vcmp.gt.f32.partialorder %v2570, 0.0
  %v2577 = vmin.f32 %v2555, 0.0
  %v2578 = vmin.f32 %v2560, 0.0
  %v2579 = vmin.f32 %v2565, 0.0
  %v2580 = vmin.f32 %v2570, 0.0
  %v2581 = vmul.f32 %v2577, 1.442695
  %v2582 = vpow.pop %v2581
  %v2583 = vmul.f32 %v2578, 1.442695
  %v2584 = vpow.pop %v2583
  %v2585 = vmul.f32 %v2579, 1.442695
  %v2586 = vpow.pop %v2585
  %v2587 = vmul.f32 %v2580, 1.442695
  %v2588 = vpow.pop %v2587
  %v2589 = vsub.f32 %v2582, 1.0
  %v2590 = vsub.f32 %v2584, 1.0
  %v2591 = vsub.f32 %v2586, 1.0
  %v2592 = vsub.f32 %v2588, 1.0
  %v2593 = vsel %vm2573, %v2555, %v2589
  %v2594 = vsel %vm2574, %v2560, %v2590
  %v2595 = vsel %vm2575, %v2565, %v2591
  %v2596 = vsel %vm2576, %v2570, %v2592
  %2601 = vrot.lane.b32.xlu0 %v2593, 120
  %v2602 = vpop.permute.xlu0 %2601
  %2603 = vrot.lane.b32.xlu0 %v2594, 120
  %v2604 = vpop.permute.xlu0 %2603
  %2605 = vrot.lane.b32.xlu0 %v2595, 120
  %v2606 = vpop.permute.xlu0 %2605
  %2607 = vrot.lane.b32.xlu0 %v2596, 120
  %v2608 = vpop.permute.xlu0 %2607
  %v2613 = vsel %vm1089, %v2593, %v2602
  %v2614 = vsel %vm1089, %v2594, %v2604
  %v2615 = vsel %vm1089, %v2595, %v2606
  %v2616 = vsel %vm1089, %v2596, %v2608
  %2617 = vrot.lane.b32.xlu0 %v2593, 127
  %v2618 = vpop.permute.xlu0 %2617
  %2619 = vrot.lane.b32.xlu0 %v2594, 127
  %v2620 = vpop.permute.xlu0 %2619
  %2621 = vrot.lane.b32.xlu0 %v2595, 127
  %v2622 = vpop.permute.xlu0 %2621
  %2623 = vrot.lane.b32.xlu0 %v2596, 127
  %v2624 = vpop.permute.xlu0 %2623
  %2629 = vrot.lane.b32.xlu0 %v2593, 119
  %v2630 = vpop.permute.xlu0 %2629
  %2631 = vrot.lane.b32.xlu0 %v2594, 119
  %v2632 = vpop.permute.xlu0 %2631
  %2633 = vrot.lane.b32.xlu0 %v2595, 119
  %v2634 = vpop.permute.xlu0 %2633
  %2635 = vrot.lane.b32.xlu0 %v2596, 119
  %v2636 = vpop.permute.xlu0 %2635
  %v2641 = vsel %vm1089, %v2618, %v2630
  %v2642 = vsel %vm1089, %v2620, %v2632
  %v2643 = vsel %vm1089, %v2622, %v2634
  %v2644 = vsel %vm1089, %v2624, %v2636
  %2645 = vrot.lane.b32.xlu0 %v2593, 126
  %v2646 = vpop.permute.xlu0 %2645
  %2647 = vrot.lane.b32.xlu0 %v2594, 126
  %v2648 = vpop.permute.xlu0 %2647
  %2649 = vrot.lane.b32.xlu0 %v2595, 126
  %v2650 = vpop.permute.xlu0 %2649
  %2651 = vrot.lane.b32.xlu0 %v2596, 126
  %v2652 = vpop.permute.xlu0 %2651
  %2657 = vrot.lane.b32.xlu0 %v2593, 118
  %v2658 = vpop.permute.xlu0 %2657
  %2659 = vrot.lane.b32.xlu0 %v2594, 118
  %v2660 = vpop.permute.xlu0 %2659
  %2661 = vrot.lane.b32.xlu0 %v2595, 118
  %v2662 = vpop.permute.xlu0 %2661
  %2663 = vrot.lane.b32.xlu0 %v2596, 118
  %v2664 = vpop.permute.xlu0 %2663
  %v2669 = vsel %vm1089, %v2646, %v2658
  %v2670 = vsel %vm1089, %v2648, %v2660
  %v2671 = vsel %vm1089, %v2650, %v2662
  %v2672 = vsel %vm1089, %v2652, %v2664
  %2673 = vrot.lane.b32.xlu0 %v2593, 125
  %v2674 = vpop.permute.xlu0 %2673
  %2675 = vrot.lane.b32.xlu0 %v2594, 125
  %v2676 = vpop.permute.xlu0 %2675
  %2677 = vrot.lane.b32.xlu0 %v2595, 125
  %v2678 = vpop.permute.xlu0 %2677
  %2679 = vrot.lane.b32.xlu0 %v2596, 125
  %v2680 = vpop.permute.xlu0 %2679
  %2685 = vrot.lane.b32.xlu0 %v2593, 117
  %v2686 = vpop.permute.xlu0 %2685
  %2687 = vrot.lane.b32.xlu0 %v2594, 117
  %v2688 = vpop.permute.xlu0 %2687
  %2689 = vrot.lane.b32.xlu0 %v2595, 117
  %v2690 = vpop.permute.xlu0 %2689
  %2691 = vrot.lane.b32.xlu0 %v2596, 117
  %v2692 = vpop.permute.xlu0 %2691
  %v2697 = vsel %vm1089, %v2674, %v2686
  %v2698 = vsel %vm1089, %v2676, %v2688
  %v2699 = vsel %vm1089, %v2678, %v2690
  %v2700 = vsel %vm1089, %v2680, %v2692
  %2701 = vrot.lane.b32.xlu0 %v2593, 124
  %v2702 = vpop.permute.xlu0 %2701
  %2703 = vrot.lane.b32.xlu0 %v2594, 124
  %v2704 = vpop.permute.xlu0 %2703
  %2705 = vrot.lane.b32.xlu0 %v2595, 124
  %v2706 = vpop.permute.xlu0 %2705
  %2707 = vrot.lane.b32.xlu0 %v2596, 124
  %v2708 = vpop.permute.xlu0 %2707
  %2713 = vrot.lane.b32.xlu0 %v2593, 116
  %v2714 = vpop.permute.xlu0 %2713
  %2715 = vrot.lane.b32.xlu0 %v2594, 116
  %v2716 = vpop.permute.xlu0 %2715
  %2717 = vrot.lane.b32.xlu0 %v2595, 116
  %v2718 = vpop.permute.xlu0 %2717
  %2719 = vrot.lane.b32.xlu0 %v2596, 116
  %v2720 = vpop.permute.xlu0 %2719
  %v2725 = vsel %vm1089, %v2702, %v2714
  %v2726 = vsel %vm1089, %v2704, %v2716
  %v2727 = vsel %vm1089, %v2706, %v2718
  %v2728 = vsel %vm1089, %v2708, %v2720
  %2729 = vrot.lane.b32.xlu0 %v2593, 123
  %v2730 = vpop.permute.xlu0 %2729
  %2731 = vrot.lane.b32.xlu0 %v2594, 123
  %v2732 = vpop.permute.xlu0 %2731
  %2733 = vrot.lane.b32.xlu0 %v2595, 123
  %v2734 = vpop.permute.xlu0 %2733
  %2735 = vrot.lane.b32.xlu0 %v2596, 123
  %v2736 = vpop.permute.xlu0 %2735
  %2741 = vrot.lane.b32.xlu0 %v2593, 115
  %v2742 = vpop.permute.xlu0 %2741
  %2743 = vrot.lane.b32.xlu0 %v2594, 115
  %v2744 = vpop.permute.xlu0 %2743
  %2745 = vrot.lane.b32.xlu0 %v2595, 115
  %v2746 = vpop.permute.xlu0 %2745
  %2747 = vrot.lane.b32.xlu0 %v2596, 115
  %v2748 = vpop.permute.xlu0 %2747
  %v2753 = vsel %vm1089, %v2730, %v2742
  %v2754 = vsel %vm1089, %v2732, %v2744
  %v2755 = vsel %vm1089, %v2734, %v2746
  %v2756 = vsel %vm1089, %v2736, %v2748
  %2757 = vrot.lane.b32.xlu0 %v2593, 122
  %v2758 = vpop.permute.xlu0 %2757
  %2759 = vrot.lane.b32.xlu0 %v2594, 122
  %v2760 = vpop.permute.xlu0 %2759
  %2761 = vrot.lane.b32.xlu0 %v2595, 122
  %v2762 = vpop.permute.xlu0 %2761
  %2763 = vrot.lane.b32.xlu0 %v2596, 122
  %v2764 = vpop.permute.xlu0 %2763
  %2769 = vrot.lane.b32.xlu0 %v2593, 114
  %v2770 = vpop.permute.xlu0 %2769
  %2771 = vrot.lane.b32.xlu0 %v2594, 114
  %v2772 = vpop.permute.xlu0 %2771
  %2773 = vrot.lane.b32.xlu0 %v2595, 114
  %v2774 = vpop.permute.xlu0 %2773
  %2775 = vrot.lane.b32.xlu0 %v2596, 114
  %v2776 = vpop.permute.xlu0 %2775
  %v2781 = vsel %vm1089, %v2758, %v2770
  %v2782 = vsel %vm1089, %v2760, %v2772
  %v2783 = vsel %vm1089, %v2762, %v2774
  %v2784 = vsel %vm1089, %v2764, %v2776
  %2785 = vrot.lane.b32.xlu0 %v2593, 121
  %v2786 = vpop.permute.xlu0 %2785
  %2787 = vrot.lane.b32.xlu0 %v2594, 121
  %v2788 = vpop.permute.xlu0 %2787
  %2789 = vrot.lane.b32.xlu0 %v2595, 121
  %v2790 = vpop.permute.xlu0 %2789
  %2791 = vrot.lane.b32.xlu0 %v2596, 121
  %v2792 = vpop.permute.xlu0 %2791
  %2797 = vrot.lane.b32.xlu0 %v2593, 113
  %v2798 = vpop.permute.xlu0 %2797
  %2799 = vrot.lane.b32.xlu0 %v2594, 113
  %v2800 = vpop.permute.xlu0 %2799
  %2801 = vrot.lane.b32.xlu0 %v2595, 113
  %v2802 = vpop.permute.xlu0 %2801
  %2803 = vrot.lane.b32.xlu0 %v2596, 113
  %v2804 = vpop.permute.xlu0 %2803
  %v2809 = vsel %vm1089, %v2786, %v2798
  %v2810 = vsel %vm1089, %v2788, %v2800
  %v2811 = vsel %vm1089, %v2790, %v2802
  %v2812 = vsel %vm1089, %v2792, %v2804
  %2813 = vrot.lane.b32.xlu0 %v2593, 112
  %v2814 = vpop.permute.xlu0 %2813
  %2815 = vrot.lane.b32.xlu0 %v2594, 112
  %v2816 = vpop.permute.xlu0 %2815
  %2817 = vrot.lane.b32.xlu0 %v2595, 112
  %v2818 = vpop.permute.xlu0 %2817
  %2819 = vrot.lane.b32.xlu0 %v2596, 112
  %v2820 = vpop.permute.xlu0 %2819
  %v2825 = vsel %vm1089, %v2602, %v2814
  %v2826 = vsel %vm1089, %v2604, %v2816
  %v2827 = vsel %vm1089, %v2606, %v2818
  %v2828 = vsel %vm1089, %v2608, %v2820
  %s2829 = scalar_lea.vmem %s12, 3
  %v2830 = vld [vmem:[%s2829] sm:$0x7]
  %s2831 = scalar_lea.vmem %s13, 1
  %v2832 = vld [vmem:[%s2831] sm:$0x1]
  %2834 = vset.pattern.permute.xlu0 0
  %2835 = vperm.xlu0 %2834, %v2832
  %v2836 = vpop.permute.xlu0 %2835
  %v2838 = vlaneseq
  %v2839 = vshrl.u32 %v2838, 7
  %v2840 = vsub.s32 0, %v2839
  %v2841 = vrot.slane %v2836, %v2840
  %v2843 = vlaneseq
  %v2844 = vshrl.u32 %v2843, 7
  %v2845 = vsub.s32 0, %v2844
  %v2846 = vrot.slane %v2830, %v2845
  %v2847 = vlaneseq
  %v2848 = vshrl.u32 %v2847, 7
  %v2849 = vsub.s32 1, %v2848
  %v2850 = vrot.slane %v2830, %v2849
  %v2851 = vlaneseq
  %v2852 = vshrl.u32 %v2851, 7
  %v2853 = vsub.s32 2, %v2852
  %v2854 = vrot.slane %v2830, %v2853
  %v2857 = vsel %vm72, %v2854, 0
  %2859 = vmatprep.subr.mxu0 0.0
  %2860 = vmatpush1.msra.mxu0 %v2613
  %2861 = vmatprep.subr.mxu0 0.0
  %2862 = vmatpush1.msra.mxu0 %v2614
  %2863 = vmatprep.subr.mxu0 0.0
  %2864 = vmatpush1.msra.mxu0 %v2615
  %2865 = vmatprep.subr.mxu0 0.0
  %2866 = vmatpush1.msra.mxu0 %v2616
  %2867 = vmatprep.subr.mxu0 0.0
  %2868 = vmatpush1.msra.mxu0 %v2641
  %2869 = vmatprep.subr.mxu0 0.0
  %2870 = vmatpush1.msra.mxu0 %v2642
  %2871 = vmatprep.subr.mxu0 0.0
  %2872 = vmatpush1.msra.mxu0 %v2643
  %2873 = vmatprep.subr.mxu0 0.0
  %2874 = vmatpush1.msra.mxu0 %v2644
  %2875 = vmatprep.subr.mxu0 0.0
  %2876 = vmatpush1.msra.mxu0 %v2669
  %2877 = vmatprep.subr.mxu0 0.0
  %2878 = vmatpush1.msra.mxu0 %v2670
  %2879 = vmatprep.subr.mxu0 0.0
  %2880 = vmatpush1.msra.mxu0 %v2671
  %2881 = vmatprep.subr.mxu0 0.0
  %2882 = vmatpush1.msra.mxu0 %v2672
  %2883 = vmatprep.subr.mxu0 0.0
  %2884 = vmatpush1.msra.mxu0 %v2697
  %2885 = vmatprep.subr.mxu0 0.0
  %2886 = vmatpush1.msra.mxu0 %v2698
  %2887 = vmatprep.subr.mxu0 0.0
  %2888 = vmatpush1.msra.mxu0 %v2699
  %2889 = vmatprep.subr.mxu0 0.0
  %2890 = vmatpush1.msra.mxu0 %v2700
  %2891 = vmatprep.subr.mxu0 0.0
  %2892 = vmatpush1.msra.mxu0 %v2725
  %2893 = vmatprep.subr.mxu0 0.0
  %2894 = vmatpush1.msra.mxu0 %v2726
  %2895 = vmatprep.subr.mxu0 0.0
  %2896 = vmatpush1.msra.mxu0 %v2727
  %2897 = vmatprep.subr.mxu0 0.0
  %2898 = vmatpush1.msra.mxu0 %v2728
  %2899 = vmatprep.subr.mxu0 0.0
  %2900 = vmatpush1.msra.mxu0 %v2753
  %2901 = vmatprep.subr.mxu0 0.0
  %2902 = vmatpush1.msra.mxu0 %v2754
  %2903 = vmatprep.subr.mxu0 0.0
  %2904 = vmatpush1.msra.mxu0 %v2755
  %2905 = vmatprep.subr.mxu0 0.0
  %2906 = vmatpush1.msra.mxu0 %v2756
  %2907 = vmatprep.subr.mxu0 0.0
  %2908 = vmatpush1.msra.mxu0 %v2781
  %2909 = vmatprep.subr.mxu0 0.0
  %2910 = vmatpush1.msra.mxu0 %v2782
  %2911 = vmatprep.subr.mxu0 0.0
  %2912 = vmatpush1.msra.mxu0 %v2783
  %2913 = vmatprep.subr.mxu0 0.0
  %2914 = vmatpush1.msra.mxu0 %v2784
  %2915 = vmatprep.subr.mxu0 0.0
  %2916 = vmatpush1.msra.mxu0 %v2809
  %2917 = vmatprep.subr.mxu0 0.0
  %2918 = vmatpush1.msra.mxu0 %v2810
  %2919 = vmatprep.subr.mxu0 0.0
  %2920 = vmatpush1.msra.mxu0 %v2811
  %2921 = vmatprep.subr.mxu0 0.0
  %2922 = vmatpush1.msra.mxu0 %v2812
  %2923 = vmatprep.mubr.f32.mxu0 %v2850
  %2924 = vmatmul.mubr.f32.gmra.mrb[0].mxu0 %v2846
  %v2925 = vpop.f32.mrb[0].mxu0
  %v2926 = vadd.f32 %v2841, %v2925
  %v2927 = vpop.f32.mrb[0].mxu0
  %2928 = vdwg.mxu0
  %2929 = vmatprep.subr.mxu0 0.0
  %2930 = vmatpush1.msra.mxu0 %v2825
  %2931 = vmatprep.subr.mxu0 0.0
  %2932 = vmatpush1.msra.mxu0 %v2826
  %2933 = vmatprep.subr.mxu0 0.0
  %2934 = vmatpush1.msra.mxu0 %v2827
  %2935 = vmatprep.subr.mxu0 0.0
  %2936 = vmatpush1.msra.mxu0 %v2828
  %2937 = vmatprep.subr.mxu0 0.0
  %2938 = vmatpush1.msra.mxu0 0.0
  %2939 = vmatprep.subr.mxu0 0.0
  %2940 = vmatpush1.msra.mxu0 0.0
  %2941 = vmatprep.subr.mxu0 0.0
  %2942 = vmatpush1.msra.mxu0 0.0
  %2943 = vmatprep.subr.mxu0 0.0
  %2944 = vmatpush1.msra.mxu0 0.0
  %2945 = vmatprep.subr.mxu0 0.0
  %2946 = vmatpush1.msra.mxu0 0.0
  %2947 = vmatprep.subr.mxu0 0.0
  %2948 = vmatpush1.msra.mxu0 0.0
  %2949 = vmatprep.subr.mxu0 0.0
  %2950 = vmatpush1.msra.mxu0 0.0
  %2951 = vmatprep.subr.mxu0 0.0
  %2952 = vmatpush1.msra.mxu0 0.0
  %2953 = vmatprep.subr.mxu0 0.0
  %2954 = vmatpush1.msra.mxu0 0.0
  %2955 = vmatprep.subr.mxu0 0.0
  %2956 = vmatpush1.msra.mxu0 0.0
  %2957 = vmatprep.subr.mxu0 0.0
  %2958 = vmatpush1.msra.mxu0 0.0
  %2959 = vmatprep.subr.mxu0 0.0
  %2960 = vmatpush1.msra.mxu0 0.0
  %2961 = vmatprep.subr.mxu0 0.0
  %2962 = vmatpush1.msra.mxu0 0.0
  %2963 = vmatprep.subr.mxu0 0.0
  %2964 = vmatpush1.msra.mxu0 0.0
  %2965 = vmatprep.subr.mxu0 0.0
  %2966 = vmatpush1.msra.mxu0 0.0
  %2967 = vmatprep.subr.mxu0 0.0
  %2968 = vmatpush1.msra.mxu0 0.0
  %2969 = vmatprep.subr.mxu0 0.0
  %2970 = vmatpush1.msra.mxu0 0.0
  %2971 = vmatprep.subr.mxu0 0.0
  %2972 = vmatpush1.msra.mxu0 0.0
  %2973 = vmatprep.subr.mxu0 0.0
  %2974 = vmatpush1.msra.mxu0 0.0
  %2975 = vmatprep.subr.mxu0 0.0
  %2976 = vmatpush1.msra.mxu0 0.0
  %2977 = vmatprep.subr.mxu0 0.0
  %2978 = vmatpush1.msra.mxu0 0.0
  %2979 = vmatprep.subr.mxu0 0.0
  %2980 = vmatpush1.msra.mxu0 0.0
  %2981 = vmatprep.subr.mxu0 0.0
  %2982 = vmatpush1.msra.mxu0 0.0
  %2983 = vmatprep.subr.mxu0 0.0
  %2984 = vmatpush1.msra.mxu0 0.0
  %2985 = vmatprep.subr.mxu0 0.0
  %2986 = vmatpush1.msra.mxu0 0.0
  %2987 = vmatprep.subr.mxu0 0.0
  %2988 = vmatpush1.msra.mxu0 0.0
  %2989 = vmatprep.subr.mxu0 0.0
  %2990 = vmatpush1.msra.mxu0 0.0
  %2991 = vmatprep.subr.mxu0 0.0
  %2992 = vmatpush1.msra.mxu0 0.0
  %2993 = vmatprep.mubr.f32.mxu0 0.0
  %2994 = vmatmul.mubr.f32.gmra.mrb[0].mxu0 %v2857
  %v2995 = vpop.f32.mrb[0].mxu0
  %v2996 = vadd.f32 %v2926, %v2995
  %v2997 = vpop.f32.mrb[0].mxu0
  %2998 = vdwg.mxu0
  %v2999 = vsel %vm1474, %v2996, -inf
  %3000 = vmax.xlane.f32.xlu0 %v2999
  %v3001 = vpop.xlane.xlu0 %3000
  %v3002 = vsub.f32 %v2996, %v3001
  %v3003 = vmul.f32 %v3002, 1.442695
  %v3004 = vpow.pop %v3003
  %v3005 = vsel %vm1474, %v3004, 0.0
  %3006 = vadd.xlane.f32.xlu0 %v3005
  %v3007 = vpop.xlane.xlu0 %3006
  %v3008 = vrcp.pop %v3007
  %v3009 = vmul.f32 %v3004, %v3008
  %v3010 = vsel %vm1486, %v2996, -inf
  %3011 = vmax.xlane.f32.xlu0 %v3010
  %v3012 = vpop.xlane.xlu0 %3011
  %v3013 = vsub.f32 %v2996, %v3012
  %v3014 = vmul.f32 %v3013, 1.442695
  %v3015 = vpow.pop %v3014
  %3017 = vrot.lane.b32.xlu0 %v3015, 104
  %v3018 = vpop.permute.xlu0 %3017
  %v3020 = vsel %vm1474, %v3018, 0.0
  %3021 = vadd.xlane.f32.xlu0 %v3020
  %v3022 = vpop.xlane.xlu0 %3021
  %v3023 = vrcp.pop %v3022
  %v3024 = vmul.f32 %v3015, %v3023
  %v3025 = vsel %vm1089, %v3009, %v3024
  %s3026 = scalar_lea.vmem %s19, 1
  %3027 = vst.msk [vmem:[%s3026] sm:$0x1] %vm1503, %v3025
  %v3028 = vsel %vm72, %v2140, 0.0
  %3029 = vadd.xlane.f32.xlu0 %v3028
  %v3030 = vpop.xlane.xlu0 %3029
  %v3031 = vsel %vm72, %v2141, 0.0
  %3032 = vadd.xlane.f32.xlu0 %v3031
  %v3033 = vpop.xlane.xlu0 %3032
  %v3034 = vsel %vm72, %v2142, 0.0
  %3035 = vadd.xlane.f32.xlu0 %v3034
  %v3036 = vpop.xlane.xlu0 %3035
  %v3037 = vsel %vm72, %v2143, 0.0
  %3038 = vadd.xlane.f32.xlu0 %v3037
  %v3039 = vpop.xlane.xlu0 %3038
  %v3040 = vmul.f32 %v3030, %v289
  %v3041 = vmul.f32 %v3033, %v289
  %v3042 = vmul.f32 %v3036, %v289
  %v3043 = vmul.f32 %v3039, %v289
  %3048 = vrot.lane.b32.xlu0 %v2140, 96
  %v3049 = vpop.permute.xlu0 %3048
  %3050 = vrot.lane.b32.xlu0 %v2141, 96
  %v3051 = vpop.permute.xlu0 %3050
  %3052 = vrot.lane.b32.xlu0 %v2142, 96
  %v3053 = vpop.permute.xlu0 %3052
  %3054 = vrot.lane.b32.xlu0 %v2143, 96
  %v3055 = vpop.permute.xlu0 %3054
  %v3060 = vsel %vm72, %v3049, 0.0
  %3061 = vadd.xlane.f32.xlu0 %v3060
  %v3062 = vpop.xlane.xlu0 %3061
  %v3063 = vsel %vm72, %v3051, 0.0
  %3064 = vadd.xlane.f32.xlu0 %v3063
  %v3065 = vpop.xlane.xlu0 %3064
  %v3066 = vsel %vm72, %v3053, 0.0
  %3067 = vadd.xlane.f32.xlu0 %v3066
  %v3068 = vpop.xlane.xlu0 %3067
  %v3069 = vsel %vm72, %v3055, 0.0
  %3070 = vadd.xlane.f32.xlu0 %v3069
  %v3071 = vpop.xlane.xlu0 %3070
  %v3072 = vmul.f32 %v3062, %v289
  %v3073 = vmul.f32 %v3065, %v289
  %v3074 = vmul.f32 %v3068, %v289
  %v3075 = vmul.f32 %v3071, %v289
  %v3076 = vsel %vm326, %v3040, %v3072
  %v3077 = vsel %vm326, %v3041, %v3073
  %v3078 = vsel %vm326, %v3042, %v3074
  %v3079 = vsel %vm326, %v3043, %v3075
  %v3080 = vsel %vm72, %v2096, 0.0
  %3081 = vadd.xlane.f32.xlu0 %v3080
  %v3082 = vpop.xlane.xlu0 %3081
  %v3083 = vsel %vm72, %v2097, 0.0
  %3084 = vadd.xlane.f32.xlu0 %v3083
  %v3085 = vpop.xlane.xlu0 %3084
  %v3086 = vsel %vm72, %v2098, 0.0
  %3087 = vadd.xlane.f32.xlu0 %v3086
  %v3088 = vpop.xlane.xlu0 %3087
  %v3089 = vsel %vm72, %v2099, 0.0
  %3090 = vadd.xlane.f32.xlu0 %v3089
  %v3091 = vpop.xlane.xlu0 %3090
  %v3092 = vmul.f32 %v3082, %v289
  %v3093 = vmul.f32 %v3085, %v289
  %v3094 = vmul.f32 %v3088, %v289
  %v3095 = vmul.f32 %v3091, %v289
  %3100 = vrot.lane.b32.xlu0 %v2096, 96
  %v3101 = vpop.permute.xlu0 %3100
  %3102 = vrot.lane.b32.xlu0 %v2097, 96
  %v3103 = vpop.permute.xlu0 %3102
  %3104 = vrot.lane.b32.xlu0 %v2098, 96
  %v3105 = vpop.permute.xlu0 %3104
  %3106 = vrot.lane.b32.xlu0 %v2099, 96
  %v3107 = vpop.permute.xlu0 %3106
  %v3112 = vsel %vm72, %v3101, 0.0
  %3113 = vadd.xlane.f32.xlu0 %v3112
  %v3114 = vpop.xlane.xlu0 %3113
  %v3115 = vsel %vm72, %v3103, 0.0
  %3116 = vadd.xlane.f32.xlu0 %v3115
  %v3117 = vpop.xlane.xlu0 %3116
  %v3118 = vsel %vm72, %v3105, 0.0
  %3119 = vadd.xlane.f32.xlu0 %v3118
  %v3120 = vpop.xlane.xlu0 %3119
  %v3121 = vsel %vm72, %v3107, 0.0
  %3122 = vadd.xlane.f32.xlu0 %v3121
  %v3123 = vpop.xlane.xlu0 %3122
  %v3124 = vmul.f32 %v3114, %v289
  %v3125 = vmul.f32 %v3117, %v289
  %v3126 = vmul.f32 %v3120, %v289
  %v3127 = vmul.f32 %v3123, %v289
  %v3128 = vsel %vm326, %v3092, %v3124
  %v3129 = vsel %vm326, %v3093, %v3125
  %v3130 = vsel %vm326, %v3094, %v3126
  %v3131 = vsel %vm326, %v3095, %v3127
  %s3132 = scalar_lea.vmem %s14, 32
  %v3133 = vld [vmem:[%s3132] sm:$0xff]
  %v3134 = vld [vmem:[%s3132 + $0x8] sm:$0xff]
  %v3135 = vld [vmem:[%s3132 + $0x10] sm:$0xff]
  %v3136 = vld [vmem:[%s3132 + $0x18] sm:$0xff]
  %v3138 = vsel %vm653, %v3133, 0
  %v3141 = vsel %vm653, %v3134, 0
  %v3144 = vsel %vm653, %v3135, 0
  %v3147 = vsel %vm653, %v3136, 0
  %3149 = vmatprep.subr.mxu0 0.0
  %3150 = vmatpush1.msra.mxu0 %v3076
  %3151 = vmatprep.subr.mxu0 0.0
  %3152 = vmatpush1.msra.mxu0 %v3077
  %3153 = vmatprep.subr.mxu0 0.0
  %3154 = vmatpush1.msra.mxu0 %v3078
  %3155 = vmatprep.subr.mxu0 0.0
  %3156 = vmatpush1.msra.mxu0 %v3079
  %3157 = vmatprep.subr.mxu0 0.0
  %3158 = vmatpush1.msra.mxu0 %v3128
  %3159 = vmatprep.subr.mxu0 0.0
  %3160 = vmatpush1.msra.mxu0 %v3129
  %3161 = vmatprep.subr.mxu0 0.0
  %3162 = vmatpush1.msra.mxu0 %v3130
  %3163 = vmatprep.subr.mxu0 0.0
  %3164 = vmatpush1.msra.mxu0 %v3131
  %3165 = vmatprep.subr.mxu0 0.0
  %3166 = vmatpush1.msra.mxu0 0.0
  %3167 = vmatprep.subr.mxu0 0.0
  %3168 = vmatpush1.msra.mxu0 0.0
  %3169 = vmatprep.subr.mxu0 0.0
  %3170 = vmatpush1.msra.mxu0 0.0
  %3171 = vmatprep.subr.mxu0 0.0
  %3172 = vmatpush1.msra.mxu0 0.0
  %3173 = vmatprep.subr.mxu0 0.0
  %3174 = vmatpush1.msra.mxu0 0.0
  %3175 = vmatprep.subr.mxu0 0.0
  %3176 = vmatpush1.msra.mxu0 0.0
  %3177 = vmatprep.subr.mxu0 0.0
  %3178 = vmatpush1.msra.mxu0 0.0
  %3179 = vmatprep.subr.mxu0 0.0
  %3180 = vmatpush1.msra.mxu0 0.0
  %3181 = vmatprep.subr.mxu0 0.0
  %3182 = vmatpush1.msra.mxu0 0.0
  %3183 = vmatprep.subr.mxu0 0.0
  %3184 = vmatpush1.msra.mxu0 0.0
  %3185 = vmatprep.subr.mxu0 0.0
  %3186 = vmatpush1.msra.mxu0 0.0
  %3187 = vmatprep.subr.mxu0 0.0
  %3188 = vmatpush1.msra.mxu0 0.0
  %3189 = vmatprep.subr.mxu0 0.0
  %3190 = vmatpush1.msra.mxu0 0.0
  %3191 = vmatprep.subr.mxu0 0.0
  %3192 = vmatpush1.msra.mxu0 0.0
  %3193 = vmatprep.subr.mxu0 0.0
  %3194 = vmatpush1.msra.mxu0 0.0
  %3195 = vmatprep.subr.mxu0 0.0
  %3196 = vmatpush1.msra.mxu0 0.0
  %3197 = vmatprep.subr.mxu0 0.0
  %3198 = vmatpush1.msra.mxu0 0.0
  %3199 = vmatprep.subr.mxu0 0.0
  %3200 = vmatpush1.msra.mxu0 0.0
  %3201 = vmatprep.subr.mxu0 0.0
  %3202 = vmatpush1.msra.mxu0 0.0
  %3203 = vmatprep.subr.mxu0 0.0
  %3204 = vmatpush1.msra.mxu0 0.0
  %3205 = vmatprep.subr.mxu0 0.0
  %3206 = vmatpush1.msra.mxu0 0.0
  %3207 = vmatprep.subr.mxu0 0.0
  %3208 = vmatpush1.msra.mxu0 0.0
  %3209 = vmatprep.subr.mxu0 0.0
  %3210 = vmatpush1.msra.mxu0 0.0
  %3211 = vmatprep.subr.mxu0 0.0
  %3212 = vmatpush1.msra.mxu0 0.0
  %3213 = vmatprep.mubr.f32.mxu0 0.0
  %3214 = vmatmul.mubr.f32.gmra.mrb[0].mxu0 %v3138
  %v3215 = vpop.f32.mrb[0].mxu0
  %v3216 = vadd.f32 0.0, %v3215
  %v3217 = vpop.f32.mrb[0].mxu0
  %3218 = vmatprep.mubr.f32.mxu0 0.0
  %3219 = vmatmul.mubr.f32.gmra.mrb[0].mxu0 %v3141
  %v3220 = vpop.f32.mrb[0].mxu0
  %v3221 = vadd.f32 0.0, %v3220
  %v3222 = vpop.f32.mrb[0].mxu0
  %3223 = vmatprep.mubr.f32.mxu0 0.0
  %3224 = vmatmul.mubr.f32.gmra.mrb[0].mxu0 %v3144
  %v3225 = vpop.f32.mrb[0].mxu0
  %v3226 = vadd.f32 0.0, %v3225
  %v3227 = vpop.f32.mrb[0].mxu0
  %3228 = vmatprep.mubr.f32.mxu0 0.0
  %3229 = vmatmul.mubr.f32.gmra.mrb[0].mxu0 %v3147
  %v3230 = vpop.f32.mrb[0].mxu0
  %v3231 = vadd.f32 0.0, %v3230
  %v3232 = vpop.f32.mrb[0].mxu0
  %3233 = vdwg.mxu0
  %vm3234 = vcmp.gt.f32.partialorder %v3216, 0.0
  %vm3235 = vcmp.gt.f32.partialorder %v3221, 0.0
  %vm3236 = vcmp.gt.f32.partialorder %v3226, 0.0
  %vm3237 = vcmp.gt.f32.partialorder %v3231, 0.0
  %v3238 = vmin.f32 %v3216, 0.0
  %v3239 = vmin.f32 %v3221, 0.0
  %v3240 = vmin.f32 %v3226, 0.0
  %v3241 = vmin.f32 %v3231, 0.0
  %v3242 = vmul.f32 %v3238, 1.442695
  %v3243 = vpow.pop %v3242
  %v3244 = vmul.f32 %v3239, 1.442695
  %v3245 = vpow.pop %v3244
  %v3246 = vmul.f32 %v3240, 1.442695
  %v3247 = vpow.pop %v3246
  %v3248 = vmul.f32 %v3241, 1.442695
  %v3249 = vpow.pop %v3248
  %v3250 = vsub.f32 %v3243, 1.0
  %v3251 = vsub.f32 %v3245, 1.0
  %v3252 = vsub.f32 %v3247, 1.0
  %v3253 = vsub.f32 %v3249, 1.0
  %v3254 = vsel %vm3234, %v3216, %v3250
  %v3255 = vsel %vm3235, %v3221, %v3251
  %v3256 = vsel %vm3236, %v3226, %v3252
  %v3257 = vsel %vm3237, %v3231, %v3253
  %s3258 = scalar_lea.vmem %s15, 32
  %v3259 = vld [vmem:[%s3258] sm:$0xff]
  %v3260 = vld [vmem:[%s3258 + $0x8] sm:$0xff]
  %v3261 = vld [vmem:[%s3258 + $0x10] sm:$0xff]
  %v3262 = vld [vmem:[%s3258 + $0x18] sm:$0xff]
  %v3264 = vsel %vm72, %v3259, 0
  %v3267 = vsel %vm72, %v3260, 0
  %v3270 = vsel %vm72, %v3261, 0
  %v3273 = vsel %vm72, %v3262, 0
  %3275 = vmatprep.subr.mxu0 0.0
  %3276 = vmatpush1.msra.mxu0 %v3254
  %3277 = vmatprep.subr.mxu0 0.0
  %3278 = vmatpush1.msra.mxu0 %v3255
  %3279 = vmatprep.subr.mxu0 0.0
  %3280 = vmatpush1.msra.mxu0 %v3256
  %3281 = vmatprep.subr.mxu0 0.0
  %3282 = vmatpush1.msra.mxu0 %v3257
  %3283 = vmatprep.subr.mxu0 0.0
  %3284 = vmatpush1.msra.mxu0 0.0
  %3285 = vmatprep.subr.mxu0 0.0
  %3286 = vmatpush1.msra.mxu0 0.0
  %3287 = vmatprep.subr.mxu0 0.0
  %3288 = vmatpush1.msra.mxu0 0.0
  %3289 = vmatprep.subr.mxu0 0.0
  %3290 = vmatpush1.msra.mxu0 0.0
  %3291 = vmatprep.subr.mxu0 0.0
  %3292 = vmatpush1.msra.mxu0 0.0
  %3293 = vmatprep.subr.mxu0 0.0
  %3294 = vmatpush1.msra.mxu0 0.0
  %3295 = vmatprep.subr.mxu0 0.0
  %3296 = vmatpush1.msra.mxu0 0.0
  %3297 = vmatprep.subr.mxu0 0.0
  %3298 = vmatpush1.msra.mxu0 0.0
  %3299 = vmatprep.subr.mxu0 0.0
  %3300 = vmatpush1.msra.mxu0 0.0
  %3301 = vmatprep.subr.mxu0 0.0
  %3302 = vmatpush1.msra.mxu0 0.0
  %3303 = vmatprep.subr.mxu0 0.0
  %3304 = vmatpush1.msra.mxu0 0.0
  %3305 = vmatprep.subr.mxu0 0.0
  %3306 = vmatpush1.msra.mxu0 0.0
  %3307 = vmatprep.subr.mxu0 0.0
  %3308 = vmatpush1.msra.mxu0 0.0
  %3309 = vmatprep.subr.mxu0 0.0
  %3310 = vmatpush1.msra.mxu0 0.0
  %3311 = vmatprep.subr.mxu0 0.0
  %3312 = vmatpush1.msra.mxu0 0.0
  %3313 = vmatprep.subr.mxu0 0.0
  %3314 = vmatpush1.msra.mxu0 0.0
  %3315 = vmatprep.subr.mxu0 0.0
  %3316 = vmatpush1.msra.mxu0 0.0
  %3317 = vmatprep.subr.mxu0 0.0
  %3318 = vmatpush1.msra.mxu0 0.0
  %3319 = vmatprep.subr.mxu0 0.0
  %3320 = vmatpush1.msra.mxu0 0.0
  %3321 = vmatprep.subr.mxu0 0.0
  %3322 = vmatpush1.msra.mxu0 0.0
  %3323 = vmatprep.subr.mxu0 0.0
  %3324 = vmatpush1.msra.mxu0 0.0
  %3325 = vmatprep.subr.mxu0 0.0
  %3326 = vmatpush1.msra.mxu0 0.0
  %3327 = vmatprep.subr.mxu0 0.0
  %3328 = vmatpush1.msra.mxu0 0.0
  %3329 = vmatprep.subr.mxu0 0.0
  %3330 = vmatpush1.msra.mxu0 0.0
  %3331 = vmatprep.subr.mxu0 0.0
  %3332 = vmatpush1.msra.mxu0 0.0
  %3333 = vmatprep.subr.mxu0 0.0
  %3334 = vmatpush1.msra.mxu0 0.0
  %3335 = vmatprep.subr.mxu0 0.0
  %3336 = vmatpush1.msra.mxu0 0.0
  %3337 = vmatprep.subr.mxu0 0.0
  %3338 = vmatpush1.msra.mxu0 0.0
  %3339 = vmatprep.mubr.f32.mxu0 0.0
  %3340 = vmatmul.mubr.f32.gmra.mrb[0].mxu0 %v3264
  %v3341 = vpop.f32.mrb[0].mxu0
  %v3342 = vadd.f32 0.0, %v3341
  %v3343 = vpop.f32.mrb[0].mxu0
  %3344 = vmatprep.mubr.f32.mxu0 0.0
  %3345 = vmatmul.mubr.f32.gmra.mrb[0].mxu0 %v3267
  %v3346 = vpop.f32.mrb[0].mxu0
  %v3347 = vadd.f32 0.0, %v3346
  %v3348 = vpop.f32.mrb[0].mxu0
  %3349 = vmatprep.mubr.f32.mxu0 0.0
  %3350 = vmatmul.mubr.f32.gmra.mrb[0].mxu0 %v3270
  %v3351 = vpop.f32.mrb[0].mxu0
  %v3352 = vadd.f32 0.0, %v3351
  %v3353 = vpop.f32.mrb[0].mxu0
  %3354 = vmatprep.mubr.f32.mxu0 0.0
  %3355 = vmatmul.mubr.f32.gmra.mrb[0].mxu0 %v3273
  %v3356 = vpop.f32.mrb[0].mxu0
  %v3357 = vadd.f32 0.0, %v3356
  %v3358 = vpop.f32.mrb[0].mxu0
  %3359 = vdwg.mxu0
  %vm3360 = vcmp.gt.f32.partialorder %v3342, 0.0
  %vm3361 = vcmp.gt.f32.partialorder %v3347, 0.0
  %vm3362 = vcmp.gt.f32.partialorder %v3352, 0.0
  %vm3363 = vcmp.gt.f32.partialorder %v3357, 0.0
  %v3364 = vmin.f32 %v3342, 0.0
  %v3365 = vmin.f32 %v3347, 0.0
  %v3366 = vmin.f32 %v3352, 0.0
  %v3367 = vmin.f32 %v3357, 0.0
  %v3368 = vmul.f32 %v3364, 1.442695
  %v3369 = vpow.pop %v3368
  %v3370 = vmul.f32 %v3365, 1.442695
  %v3371 = vpow.pop %v3370
  %v3372 = vmul.f32 %v3366, 1.442695
  %v3373 = vpow.pop %v3372
  %v3374 = vmul.f32 %v3367, 1.442695
  %v3375 = vpow.pop %v3374
  %v3376 = vsub.f32 %v3369, 1.0
  %v3377 = vsub.f32 %v3371, 1.0
  %v3378 = vsub.f32 %v3373, 1.0
  %v3379 = vsub.f32 %v3375, 1.0
  %v3380 = vsel %vm3360, %v3342, %v3376
  %v3381 = vsel %vm3361, %v3347, %v3377
  %v3382 = vsel %vm3362, %v3352, %v3378
  %v3383 = vsel %vm3363, %v3357, %v3379
  %s3384 = scalar_lea.vmem %s16, 32
  %v3385 = vld [vmem:[%s3384] sm:$0xff]
  %v3386 = vld [vmem:[%s3384 + $0x8] sm:$0xff]
  %v3387 = vld [vmem:[%s3384 + $0x10] sm:$0xff]
  %v3388 = vld [vmem:[%s3384 + $0x18] sm:$0xff]
  %v3390 = vsel %vm72, %v3385, 0
  %v3393 = vsel %vm72, %v3386, 0
  %v3396 = vsel %vm72, %v3387, 0
  %v3399 = vsel %vm72, %v3388, 0
  %3401 = vmatprep.subr.mxu0 0.0
  %3402 = vmatpush1.msra.mxu0 %v3380
  %3403 = vmatprep.subr.mxu0 0.0
  %3404 = vmatpush1.msra.mxu0 %v3381
  %3405 = vmatprep.subr.mxu0 0.0
  %3406 = vmatpush1.msra.mxu0 %v3382
  %3407 = vmatprep.subr.mxu0 0.0
  %3408 = vmatpush1.msra.mxu0 %v3383
  %3409 = vmatprep.subr.mxu0 0.0
  %3410 = vmatpush1.msra.mxu0 0.0
  %3411 = vmatprep.subr.mxu0 0.0
  %3412 = vmatpush1.msra.mxu0 0.0
  %3413 = vmatprep.subr.mxu0 0.0
  %3414 = vmatpush1.msra.mxu0 0.0
  %3415 = vmatprep.subr.mxu0 0.0
  %3416 = vmatpush1.msra.mxu0 0.0
  %3417 = vmatprep.subr.mxu0 0.0
  %3418 = vmatpush1.msra.mxu0 0.0
  %3419 = vmatprep.subr.mxu0 0.0
  %3420 = vmatpush1.msra.mxu0 0.0
  %3421 = vmatprep.subr.mxu0 0.0
  %3422 = vmatpush1.msra.mxu0 0.0
  %3423 = vmatprep.subr.mxu0 0.0
  %3424 = vmatpush1.msra.mxu0 0.0
  %3425 = vmatprep.subr.mxu0 0.0
  %3426 = vmatpush1.msra.mxu0 0.0
  %3427 = vmatprep.subr.mxu0 0.0
  %3428 = vmatpush1.msra.mxu0 0.0
  %3429 = vmatprep.subr.mxu0 0.0
  %3430 = vmatpush1.msra.mxu0 0.0
  %3431 = vmatprep.subr.mxu0 0.0
  %3432 = vmatpush1.msra.mxu0 0.0
  %3433 = vmatprep.subr.mxu0 0.0
  %3434 = vmatpush1.msra.mxu0 0.0
  %3435 = vmatprep.subr.mxu0 0.0
  %3436 = vmatpush1.msra.mxu0 0.0
  %3437 = vmatprep.subr.mxu0 0.0
  %3438 = vmatpush1.msra.mxu0 0.0
  %3439 = vmatprep.subr.mxu0 0.0
  %3440 = vmatpush1.msra.mxu0 0.0
  %3441 = vmatprep.subr.mxu0 0.0
  %3442 = vmatpush1.msra.mxu0 0.0
  %3443 = vmatprep.subr.mxu0 0.0
  %3444 = vmatpush1.msra.mxu0 0.0
  %3445 = vmatprep.subr.mxu0 0.0
  %3446 = vmatpush1.msra.mxu0 0.0
  %3447 = vmatprep.subr.mxu0 0.0
  %3448 = vmatpush1.msra.mxu0 0.0
  %3449 = vmatprep.subr.mxu0 0.0
  %3450 = vmatpush1.msra.mxu0 0.0
  %3451 = vmatprep.subr.mxu0 0.0
  %3452 = vmatpush1.msra.mxu0 0.0
  %3453 = vmatprep.subr.mxu0 0.0
  %3454 = vmatpush1.msra.mxu0 0.0
  %3455 = vmatprep.subr.mxu0 0.0
  %3456 = vmatpush1.msra.mxu0 0.0
  %3457 = vmatprep.subr.mxu0 0.0
  %3458 = vmatpush1.msra.mxu0 0.0
  %3459 = vmatprep.subr.mxu0 0.0
  %3460 = vmatpush1.msra.mxu0 0.0
  %3461 = vmatprep.subr.mxu0 0.0
  %3462 = vmatpush1.msra.mxu0 0.0
  %3463 = vmatprep.subr.mxu0 0.0
  %3464 = vmatpush1.msra.mxu0 0.0
  %3465 = vmatprep.mubr.f32.mxu0 0.0
  %3466 = vmatmul.mubr.f32.gmra.mrb[0].mxu0 %v3390
  %v3467 = vpop.f32.mrb[0].mxu0
  %v3468 = vadd.f32 0.0, %v3467
  %v3469 = vpop.f32.mrb[0].mxu0
  %3470 = vmatprep.mubr.f32.mxu0 0.0
  %3471 = vmatmul.mubr.f32.gmra.mrb[0].mxu0 %v3393
  %v3472 = vpop.f32.mrb[0].mxu0
  %v3473 = vadd.f32 0.0, %v3472
  %v3474 = vpop.f32.mrb[0].mxu0
  %3475 = vmatprep.mubr.f32.mxu0 0.0
  %3476 = vmatmul.mubr.f32.gmra.mrb[0].mxu0 %v3396
  %v3477 = vpop.f32.mrb[0].mxu0
  %v3478 = vadd.f32 0.0, %v3477
  %v3479 = vpop.f32.mrb[0].mxu0
  %3480 = vmatprep.mubr.f32.mxu0 0.0
  %3481 = vmatmul.mubr.f32.gmra.mrb[0].mxu0 %v3399
  %v3482 = vpop.f32.mrb[0].mxu0
  %v3483 = vadd.f32 0.0, %v3482
  %v3484 = vpop.f32.mrb[0].mxu0
  %3485 = vdwg.mxu0
  %vm3486 = vcmp.gt.f32.partialorder %v3468, 0.0
  %vm3487 = vcmp.gt.f32.partialorder %v3473, 0.0
  %vm3488 = vcmp.gt.f32.partialorder %v3478, 0.0
  %vm3489 = vcmp.gt.f32.partialorder %v3483, 0.0
  %v3490 = vmin.f32 %v3468, 0.0
  %v3491 = vmin.f32 %v3473, 0.0
  %v3492 = vmin.f32 %v3478, 0.0
  %v3493 = vmin.f32 %v3483, 0.0
  %v3494 = vmul.f32 %v3490, 1.442695
  %v3495 = vpow.pop %v3494
  %v3496 = vmul.f32 %v3491, 1.442695
  %v3497 = vpow.pop %v3496
  %v3498 = vmul.f32 %v3492, 1.442695
  %v3499 = vpow.pop %v3498
  %v3500 = vmul.f32 %v3493, 1.442695
  %v3501 = vpow.pop %v3500
  %v3502 = vsub.f32 %v3495, 1.0
  %v3503 = vsub.f32 %v3497, 1.0
  %v3504 = vsub.f32 %v3499, 1.0
  %v3505 = vsub.f32 %v3501, 1.0
  %v3506 = vsel %vm3486, %v3468, %v3502
  %v3507 = vsel %vm3487, %v3473, %v3503
  %v3508 = vsel %vm3488, %v3478, %v3504
  %v3509 = vsel %vm3489, %v3483, %v3505
  %s3510 = scalar_lea.vmem %s17, 1
  %v3511 = vld [vmem:[%s3510] sm:$0x1]
  %s3512 = scalar_lea.vmem %s18, 1
  %v3513 = vld [vmem:[%s3512] sm:$0x1]
  %3515 = vset.pattern.permute.xlu0 0
  %3516 = vperm.xlu0 %3515, %v3513
  %v3517 = vpop.permute.xlu0 %3516
  %v3519 = vlaneseq
  %v3520 = vshrl.u32 %v3519, 7
  %v3521 = vsub.s32 0, %v3520
  %v3522 = vrot.slane %v3517, %v3521
  %v3524 = vsel %vm72, %v3511, 0
  %3526 = vmatprep.subr.mxu0 0.0
  %3527 = vmatpush1.msra.mxu0 %v3506
  %3528 = vmatprep.subr.mxu0 0.0
  %3529 = vmatpush1.msra.mxu0 %v3507
  %3530 = vmatprep.subr.mxu0 0.0
  %3531 = vmatpush1.msra.mxu0 %v3508
  %3532 = vmatprep.subr.mxu0 0.0
  %3533 = vmatpush1.msra.mxu0 %v3509
  %3534 = vmatprep.subr.mxu0 0.0
  %3535 = vmatpush1.msra.mxu0 0.0
  %3536 = vmatprep.subr.mxu0 0.0
  %3537 = vmatpush1.msra.mxu0 0.0
  %3538 = vmatprep.subr.mxu0 0.0
  %3539 = vmatpush1.msra.mxu0 0.0
  %3540 = vmatprep.subr.mxu0 0.0
  %3541 = vmatpush1.msra.mxu0 0.0
  %3542 = vmatprep.subr.mxu0 0.0
  %3543 = vmatpush1.msra.mxu0 0.0
  %3544 = vmatprep.subr.mxu0 0.0
  %3545 = vmatpush1.msra.mxu0 0.0
  %3546 = vmatprep.subr.mxu0 0.0
  %3547 = vmatpush1.msra.mxu0 0.0
  %3548 = vmatprep.subr.mxu0 0.0
  %3549 = vmatpush1.msra.mxu0 0.0
  %3550 = vmatprep.subr.mxu0 0.0
  %3551 = vmatpush1.msra.mxu0 0.0
  %3552 = vmatprep.subr.mxu0 0.0
  %3553 = vmatpush1.msra.mxu0 0.0
  %3554 = vmatprep.subr.mxu0 0.0
  %3555 = vmatpush1.msra.mxu0 0.0
  %3556 = vmatprep.subr.mxu0 0.0
  %3557 = vmatpush1.msra.mxu0 0.0
  %3558 = vmatprep.subr.mxu0 0.0
  %3559 = vmatpush1.msra.mxu0 0.0
  %3560 = vmatprep.subr.mxu0 0.0
  %3561 = vmatpush1.msra.mxu0 0.0
  %3562 = vmatprep.subr.mxu0 0.0
  %3563 = vmatpush1.msra.mxu0 0.0
  %3564 = vmatprep.subr.mxu0 0.0
  %3565 = vmatpush1.msra.mxu0 0.0
  %3566 = vmatprep.subr.mxu0 0.0
  %3567 = vmatpush1.msra.mxu0 0.0
  %3568 = vmatprep.subr.mxu0 0.0
  %3569 = vmatpush1.msra.mxu0 0.0
  %3570 = vmatprep.subr.mxu0 0.0
  %3571 = vmatpush1.msra.mxu0 0.0
  %3572 = vmatprep.subr.mxu0 0.0
  %3573 = vmatpush1.msra.mxu0 0.0
  %3574 = vmatprep.subr.mxu0 0.0
  %3575 = vmatpush1.msra.mxu0 0.0
  %3576 = vmatprep.subr.mxu0 0.0
  %3577 = vmatpush1.msra.mxu0 0.0
  %3578 = vmatprep.subr.mxu0 0.0
  %3579 = vmatpush1.msra.mxu0 0.0
  %3580 = vmatprep.subr.mxu0 0.0
  %3581 = vmatpush1.msra.mxu0 0.0
  %3582 = vmatprep.subr.mxu0 0.0
  %3583 = vmatpush1.msra.mxu0 0.0
  %3584 = vmatprep.subr.mxu0 0.0
  %3585 = vmatpush1.msra.mxu0 0.0
  %3586 = vmatprep.subr.mxu0 0.0
  %3587 = vmatpush1.msra.mxu0 0.0
  %3588 = vmatprep.subr.mxu0 0.0
  %3589 = vmatpush1.msra.mxu0 0.0
  %3590 = vmatprep.mubr.f32.mxu0 0.0
  %3591 = vmatmul.mubr.f32.gmra.mrb[0].mxu0 %v3524
  %v3592 = vpop.f32.mrb[0].mxu0
  %v3593 = vadd.f32 %v3522, %v3592
  %v3594 = vpop.f32.mrb[0].mxu0
  %3595 = vdwg.mxu0
  %vm3596 = vcmp.gt.f32.partialorder %v3593, 20.0
  %v3597 = vmin.f32 %v3593, 20.0
  %v3598 = vmul.f32 %v3597, 1.442695
  %v3599 = vpow.pop %v3598
  %v3600 = vadd.f32 %v3599, 1.0
  %v3601 = vlog2.pop %v3600
  %v3602 = vmul.f32 %v3601, 0.6931472
  %v3603 = vsel %vm3596, %v3593, %v3602
  %s3604 = scalar_lea.vmem %s2, 1
  %v3605 = vld [vmem:[%s3604] sm:$0x1]
  %v3606 = vmul.f32 %v3603, %v3605
  %s3607 = scalar_lea.vmem %s20, 1
  %3608 = vst.msk [vmem:[%s3607] sm:$0x1] %vm2078, %v3606
  // Predicated region
  $region78: #{regressor_forward.3} parent=0 // pred_check
    _
  $region79: #{regressor_forward.3} parent=0 // pred_check_branch
    %3610 = sbr.rel (0) target = $region81
  $region80: #{regressor_forward.3} parent=0 // pred_region
    _
  $region81: #{regressor_forward.3} parent=0 // pred_fallthru
    _
  // Predicated region
  $region82: #{regressor_forward.3} parent=0 // pred_check
    _
  $region83: #{regressor_forward.3} parent=0 // pred_check_branch
    %3612 = sbr.rel (0) target = $region85
  $region84: #{regressor_forward.3} parent=0 // pred_region
    _
  $region85: #{regressor_forward.3} parent=0 // pred_fallthru
    _
  // Predicated region
  $region86: #{regressor_forward.3} parent=0 // pred_check
    _
  $region87: #{regressor_forward.3} parent=0 // pred_check_branch
    %3614 = sbr.rel (0) target = $region89
  $region88: #{regressor_forward.3} parent=0 // pred_region
    _
  $region89: #{regressor_forward.3} parent=0 // pred_fallthru
    _
  // Predicated region
  $region90: #{regressor_forward.3} parent=0 // pred_check
    _
  $region91: #{regressor_forward.3} parent=0 // pred_check_branch
    %3616 = sbr.rel (0) target = $region93
  $region92: #{regressor_forward.3} parent=0 // pred_region
    _
  $region93: #{regressor_forward.3} parent=0 // pred_fallthru
    _
  // Predicated region
  $region94: #{regressor_forward.3} parent=0 // pred_check
    _
  $region95: #{regressor_forward.3} parent=0 // pred_check_branch
    %3618 = sbr.rel (0) target = $region97
  $region96: #{regressor_forward.3} parent=0 // pred_region
    _
  $region97: #{regressor_forward.3} parent=0 // pred_fallthru
    _
  // Predicated region
  $region98: #{regressor_forward.3} parent=0 // pred_check
    _
  $region99: #{regressor_forward.3} parent=0 // pred_check_branch
    %3620 = sbr.rel (0) target = $region101
  $region100: #{regressor_forward.3} parent=0 // pred_region
    _
  $region101: #{regressor_forward.3} parent=0 // pred_fallthru
    _

// kernel: regressor_forward.2
$region0: #{regressor_forward.2}
  #allocation0 [shape = 'u32[]', space=smem, size = 0x4, offset = 0x4, fixed_abs, tag = 'smem constant byte address 0x4 - core index']
  #allocation1 [shape = 'u32[144,128]{1,0:T(1,128)}', space=vmem, size = 0x12000, scoped, tag = 'internal scratch']
  %s0 = inlined_call_operand.vmem [shape: f32[40,4,96], index: 0, kind: input, shape index: {}]
  %s1 = inlined_call_operand.vmem [shape: f32[32,96], index: 1, kind: input, shape index: {}]
  %s2 = inlined_call_operand.vmem [shape: f32[1,96], index: 2, kind: input, shape index: {}]
  %s3 = inlined_call_operand.vmem [shape: f32[32,4,32], index: 3, kind: output, shape index: {}]
  %s4 = sld [smem:[#allocation0]]
  $region22: #{regressor_forward.2} parent=0
    _
  %s6 = ssub.s32 1, %s4
  %s7 = scalar_select 0, %s6, %s4
  // Predicated region
  $region2: #{regressor_forward.2} parent=0 // pred_check
    _
  $region3: #{regressor_forward.2} parent=0 // pred_check_branch
    %9 = sbr.rel (0) target = $region5
  $region4: #{regressor_forward.2} parent=0 // pred_region
    _
  $region5: #{regressor_forward.2} parent=0 // pred_fallthru
    _
  // Predicated region
  $region6: #{regressor_forward.2} parent=0 // pred_check
    _
  $region7: #{regressor_forward.2} parent=0 // pred_check_branch
    %11 = sbr.rel (0) target = $region9
  $region8: #{regressor_forward.2} parent=0 // pred_region
    _
  $region9: #{regressor_forward.2} parent=0 // pred_fallthru
    _
  // Predicated region
  $region10: #{regressor_forward.2} parent=0 // pred_check
    _
  $region11: #{regressor_forward.2} parent=0 // pred_check_branch
    %13 = sbr.rel (0) target = $region13
  $region12: #{regressor_forward.2} parent=0 // pred_region
    _
  $region13: #{regressor_forward.2} parent=0 // pred_fallthru
    _
  %v14 = vld [vmem:[%s1] sm:$0xff]
  %v15 = vld [vmem:[%s1 + $0x8] sm:$0xff]
  %v16 = vld [vmem:[%s1 + $0x10] sm:$0xff]
  %v17 = vld [vmem:[%s1 + $0x18] sm:$0xff]
  %v18 = vld [vmem:[%s2] sm:$0x1]
  %v19 = vld [vmem:[%s0] sm:$0xf]
  %v21 = vlaneseq
  %v22 = vshrl.u32 %v21, 7
  %v23 = vsub.s32 0, %v22
  %v24 = vrot.slane %v18, %v23
  %vm26 = vcmask 261120
  %v28 = vsel %vm26, 0.0, 0
  %30 = vmatprep.subr.mxu0 0.0
  %31 = vmatpush1.msra.mxu0 %v14
  %32 = vmatprep.subr.mxu0 0.0
  %33 = vmatpush1.msra.mxu0 %v15
  %34 = vmatprep.subr.mxu0 0.0
  %35 = vmatpush1.msra.mxu0 %v16
  %36 = vmatprep.subr.mxu0 0.0
  %37 = vmatpush1.msra.mxu0 %v17
  %38 = vmatprep.subr.mxu0 0.0
  %39 = vmatpush1.msra.mxu0 0.0
  %40 = vmatprep.subr.mxu0 0.0
  %41 = vmatpush1.msra.mxu0 0.0
  %42 = vmatprep.subr.mxu0 0.0
  %43 = vmatpush1.msra.mxu0 0.0
  %44 = vmatprep.subr.mxu0 0.0
  %45 = vmatpush1.msra.mxu0 0.0
  %46 = vmatprep.subr.mxu0 0.0
  %47 = vmatpush1.msra.mxu0 0.0
  %48 = vmatprep.subr.mxu0 0.0
  %49 = vmatpush1.msra.mxu0 0.0
  %50 = vmatprep.subr.mxu0 0.0
  %51 = vmatpush1.msra.mxu0 0.0
  %52 = vmatprep.subr.mxu0 0.0
  %53 = vmatpush1.msra.mxu0 0.0
  %54 = vmatprep.subr.mxu0 0.0
  %55 = vmatpush1.msra.mxu0 0.0
  %56 = vmatprep.subr.mxu0 0.0
  %57 = vmatpush1.msra.mxu0 0.0
  %58 = vmatprep.subr.mxu0 0.0
  %59 = vmatpush1.msra.mxu0 0.0
  %60 = vmatprep.subr.mxu0 0.0
  %61 = vmatpush1.msra.mxu0 0.0
  %62 = vmatprep.subr.mxu0 0.0
  %63 = vmatpush1.msra.mxu0 0.0
  %64 = vmatprep.subr.mxu0 0.0
  %65 = vmatpush1.msra.mxu0 0.0
  %66 = vmatprep.subr.mxu0 0.0
  %67 = vmatpush1.msra.mxu0 0.0
  %68 = vmatprep.subr.mxu0 0.0
  %69 = vmatpush1.msra.mxu0 0.0
  %70 = vmatprep.subr.mxu0 0.0
  %71 = vmatpush1.msra.mxu0 0.0
  %72 = vmatprep.subr.mxu0 0.0
  %73 = vmatpush1.msra.mxu0 0.0
  %74 = vmatprep.subr.mxu0 0.0
  %75 = vmatpush1.msra.mxu0 0.0
  %76 = vmatprep.subr.mxu0 0.0
  %77 = vmatpush1.msra.mxu0 0.0
  %78 = vmatprep.subr.mxu0 0.0
  %79 = vmatpush1.msra.mxu0 0.0
  %80 = vmatprep.subr.mxu0 0.0
  %81 = vmatpush1.msra.mxu0 0.0
  %82 = vmatprep.subr.mxu0 0.0
  %83 = vmatpush1.msra.mxu0 0.0
  %84 = vmatprep.subr.mxu0 0.0
  %85 = vmatpush1.msra.mxu0 0.0
  %86 = vmatprep.subr.mxu0 0.0
  %87 = vmatpush1.msra.mxu0 0.0
  %88 = vmatprep.subr.mxu0 0.0
  %89 = vmatpush1.msra.mxu0 0.0
  %90 = vmatprep.subr.mxu0 0.0
  %91 = vmatpush1.msra.mxu0 0.0
  %92 = vmatprep.subr.mxu0 0.0
  %93 = vmatpush1.msra.mxu0 0.0
  %94 = vmatprep.mubr.f32.mxu0 0.0
  %95 = vmatmul.mubr.f32.gmra.mrb[0].mxu0 %v28
  %v96 = vpop.f32.mrb[0].mxu0
  %v97 = vadd.f32 %v24, %v96
  %v98 = vpop.f32.mrb[0].mxu0
  %99 = vdwg.mxu0
  %v100 = vadd.f32 %v19, %v97
  %v101 = vsub.f32 0.0, %v100
  %v102 = vmul.f32 %v101, 1.442695
  %v103 = vpow.pop %v102
  %v104 = vadd.f32 %v103, 1.0
  %v105 = vrcp.pop %v104
  %107 = vrot.lane.b32.xlu0 %v97, 64
  %v108 = vpop.permute.xlu0 %107
  %v110 = vmul.f32 %v105, %v108
  %112 = vrot.lane.b32.xlu0 %v110, 64
  %v113 = vpop.permute.xlu0 %112
  %v115 = vadd.f32 %v19, %v113
  %v116 = vtanh.pop %v115
  %v117 = vsub.f32 1.0, %v105
  %119 = vrot.lane.b32.xlu0 %v116, 96
  %v120 = vpop.permute.xlu0 %119
  %v122 = vmul.f32 %v117, %v120
  %v123 = vmul.f32 %v105, 0.0
  %v124 = vadd.f32 %v122, %v123
  %s125 = scalar_lea.vmem %s0, 4
  %v126 = vld [vmem:[%s125] sm:$0xf]
  %128 = vrot.lane.b32.xlu0 %v124, 96
  %v129 = vpop.permute.xlu0 %128
  %v130 = vsel %vm26, %v129, 0
  %132 = vmatprep.subr.mxu0 0.0
  %133 = vmatpush1.msra.mxu0 %v14
  %134 = vmatprep.subr.mxu0 0.0
  %135 = vmatpush1.msra.mxu0 %v15
  %136 = vmatprep.subr.mxu0 0.0
  %137 = vmatpush1.msra.mxu0 %v16
  %138 = vmatprep.subr.mxu0 0.0
  %139 = vmatpush1.msra.mxu0 %v17
  %140 = vmatprep.subr.mxu0 0.0
  %141 = vmatpush1.msra.mxu0 0.0
  %142 = vmatprep.subr.mxu0 0.0
  %143 = vmatpush1.msra.mxu0 0.0
  %144 = vmatprep.subr.mxu0 0.0
  %145 = vmatpush1.msra.mxu0 0.0
  %146 = vmatprep.subr.mxu0 0.0
  %147 = vmatpush1.msra.mxu0 0.0
  %148 = vmatprep.subr.mxu0 0.0
  %149 = vmatpush1.msra.mxu0 0.0
  %150 = vmatprep.subr.mxu0 0.0
  %151 = vmatpush1.msra.mxu0 0.0
  %152 = vmatprep.subr.mxu0 0.0
  %153 = vmatpush1.msra.mxu0 0.0
  %154 = vmatprep.subr.mxu0 0.0
  %155 = vmatpush1.msra.mxu0 0.0
  %156 = vmatprep.subr.mxu0 0.0
  %157 = vmatpush1.msra.mxu0 0.0
  %158 = vmatprep.subr.mxu0 0.0
  %159 = vmatpush1.msra.mxu0 0.0
  %160 = vmatprep.subr.mxu0 0.0
  %161 = vmatpush1.msra.mxu0 0.0
  %162 = vmatprep.subr.mxu0 0.0
  %163 = vmatpush1.msra.mxu0 0.0
  %164 = vmatprep.subr.mxu0 0.0
  %165 = vmatpush1.msra.mxu0 0.0
  %166 = vmatprep.subr.mxu0 0.0
  %167 = vmatpush1.msra.mxu0 0.0
  %168 = vmatprep.subr.mxu0 0.0
  %169 = vmatpush1.msra.mxu0 0.0
  %170 = vmatprep.subr.mxu0 0.0
  %171 = vmatpush1.msra.mxu0 0.0
  %172 = vmatprep.subr.mxu0 0.0
  %173 = vmatpush1.msra.mxu0 0.0
  %174 = vmatprep.subr.mxu0 0.0
  %175 = vmatpush1.msra.mxu0 0.0
  %176 = vmatprep.subr.mxu0 0.0
  %177 = vmatpush1.msra.mxu0 0.0
  %178 = vmatprep.subr.mxu0 0.0
  %179 = vmatpush1.msra.mxu0 0.0
  %180 = vmatprep.subr.mxu0 0.0
  %181 = vmatpush1.msra.mxu0 0.0
  %182 = vmatprep.subr.mxu0 0.0
  %183 = vmatpush1.msra.mxu0 0.0
  %184 = vmatprep.subr.mxu0 0.0
  %185 = vmatpush1.msra.mxu0 0.0
  %186 = vmatprep.subr.mxu0 0.0
  %187 = vmatpush1.msra.mxu0 0.0
  %188 = vmatprep.subr.mxu0 0.0
  %189 = vmatpush1.msra.mxu0 0.0
  %190 = vmatprep.subr.mxu0 0.0
  %191 = vmatpush1.msra.mxu0 0.0
  %192 = vmatprep.subr.mxu0 0.0
  %193 = vmatpush1.msra.mxu0 0.0
  %194 = vmatprep.subr.mxu0 0.0
  %195 = vmatpush1.msra.mxu0 0.0
  %196 = vmatprep.mubr.f32.mxu0 0.0
  %197 = vmatmul.mubr.f32.gmra.mrb[0].mxu0 %v130
  %v198 = vpop.f32.mrb[0].mxu0
  %v199 = vadd.f32 %v24, %v198
  %v200 = vpop.f32.mrb[0].mxu0
  %201 = vdwg.mxu0
  %v202 = vadd.f32 %v126, %v199
  %v203 = vsub.f32 0.0, %v202
  %v204 = vmul.f32 %v203, 1.442695
  %v205 = vpow.pop %v204
  %v206 = vadd.f32 %v205, 1.0
  %v207 = vrcp.pop %v206
  %209 = vrot.lane.b32.xlu0 %v199, 64
  %v210 = vpop.permute.xlu0 %209
  %v212 = vmul.f32 %v207, %v210
  %214 = vrot.lane.b32.xlu0 %v212, 64
  %v215 = vpop.permute.xlu0 %214
  %v217 = vadd.f32 %v126, %v215
  %v218 = vtanh.pop %v217
  %v219 = vsub.f32 1.0, %v207
  %221 = vrot.lane.b32.xlu0 %v218, 96
  %v222 = vpop.permute.xlu0 %221
  %v224 = vmul.f32 %v219, %v222
  %v225 = vmul.f32 %v207, %v124
  %v226 = vadd.f32 %v224, %v225
  %s227 = scalar_lea.vmem %s0, 8
  %v228 = vld [vmem:[%s227] sm:$0xf]
  %230 = vrot.lane.b32.xlu0 %v226, 96
  %v231 = vpop.permute.xlu0 %230
  %v232 = vsel %vm26, %v231, 0
  %234 = vmatprep.subr.mxu0 0.0
  %235 = vmatpush1.msra.mxu0 %v14
  %236 = vmatprep.subr.mxu0 0.0
  %237 = vmatpush1.msra.mxu0 %v15
  %238 = vmatprep.subr.mxu0 0.0
  %239 = vmatpush1.msra.mxu0 %v16
  %240 = vmatprep.subr.mxu0 0.0
  %241 = vmatpush1.msra.mxu0 %v17
  %242 = vmatprep.subr.mxu0 0.0
  %243 = vmatpush1.msra.mxu0 0.0
  %244 = vmatprep.subr.mxu0 0.0
  %245 = vmatpush1.msra.mxu0 0.0
  %246 = vmatprep.subr.mxu0 0.0
  %247 = vmatpush1.msra.mxu0 0.0
  %248 = vmatprep.subr.mxu0 0.0
  %249 = vmatpush1.msra.mxu0 0.0
  %250 = vmatprep.subr.mxu0 0.0
  %251 = vmatpush1.msra.mxu0 0.0
  %252 = vmatprep.subr.mxu0 0.0
  %253 = vmatpush1.msra.mxu0 0.0
  %254 = vmatprep.subr.mxu0 0.0
  %255 = vmatpush1.msra.mxu0 0.0
  %256 = vmatprep.subr.mxu0 0.0
  %257 = vmatpush1.msra.mxu0 0.0
  %258 = vmatprep.subr.mxu0 0.0
  %259 = vmatpush1.msra.mxu0 0.0
  %260 = vmatprep.subr.mxu0 0.0
  %261 = vmatpush1.msra.mxu0 0.0
  %262 = vmatprep.subr.mxu0 0.0
  %263 = vmatpush1.msra.mxu0 0.0
  %264 = vmatprep.subr.mxu0 0.0
  %265 = vmatpush1.msra.mxu0 0.0
  %266 = vmatprep.subr.mxu0 0.0
  %267 = vmatpush1.msra.mxu0 0.0
  %268 = vmatprep.subr.mxu0 0.0
  %269 = vmatpush1.msra.mxu0 0.0
  %270 = vmatprep.subr.mxu0 0.0
  %271 = vmatpush1.msra.mxu0 0.0
  %272 = vmatprep.subr.mxu0 0.0
  %273 = vmatpush1.msra.mxu0 0.0
  %274 = vmatprep.subr.mxu0 0.0
  %275 = vmatpush1.msra.mxu0 0.0
  %276 = vmatprep.subr.mxu0 0.0
  %277 = vmatpush1.msra.mxu0 0.0
  %278 = vmatprep.subr.mxu0 0.0
  %279 = vmatpush1.msra.mxu0 0.0
  %280 = vmatprep.subr.mxu0 0.0
  %281 = vmatpush1.msra.mxu0 0.0
  %282 = vmatprep.subr.mxu0 0.0
  %283 = vmatpush1.msra.mxu0 0.0
  %284 = vmatprep.subr.mxu0 0.0
  %285 = vmatpush1.msra.mxu0 0.0
  %286 = vmatprep.subr.mxu0 0.0
  %287 = vmatpush1.msra.mxu0 0.0
  %288 = vmatprep.subr.mxu0 0.0
  %289 = vmatpush1.msra.mxu0 0.0
  %290 = vmatprep.subr.mxu0 0.0
  %291 = vmatpush1.msra.mxu0 0.0
  %292 = vmatprep.subr.mxu0 0.0
  %293 = vmatpush1.msra.mxu0 0.0
  %294 = vmatprep.subr.mxu0 0.0
  %295 = vmatpush1.msra.mxu0 0.0
  %296 = vmatprep.subr.mxu0 0.0
  %297 = vmatpush1.msra.mxu0 0.0
  %298 = vmatprep.mubr.f32.mxu0 0.0
  %299 = vmatmul.mubr.f32.gmra.mrb[0].mxu0 %v232
  %v300 = vpop.f32.mrb[0].mxu0
  %v301 = vadd.f32 %v24, %v300
  %v302 = vpop.f32.mrb[0].mxu0
  %303 = vdwg.mxu0
  %v304 = vadd.f32 %v228, %v301
  %v305 = vsub.f32 0.0, %v304
  %v306 = vmul.f32 %v305, 1.442695
  %v307 = vpow.pop %v306
  %v308 = vadd.f32 %v307, 1.0
  %v309 = vrcp.pop %v308
  %311 = vrot.lane.b32.xlu0 %v301, 64
  %v312 = vpop.permute.xlu0 %311
  %v314 = vmul.f32 %v309, %v312
  %316 = vrot.lane.b32.xlu0 %v314, 64
  %v317 = vpop.permute.xlu0 %316
  %v319 = vadd.f32 %v228, %v317
  %v320 = vtanh.pop %v319
  %v321 = vsub.f32 1.0, %v309
  %323 = vrot.lane.b32.xlu0 %v320, 96
  %v324 = vpop.permute.xlu0 %323
  %v326 = vmul.f32 %v321, %v324
  %v327 = vmul.f32 %v309, %v226
  %v328 = vadd.f32 %v326, %v327
  %s329 = scalar_lea.vmem %s0, 12
  %v330 = vld [vmem:[%s329] sm:$0xf]
  %332 = vrot.lane.b32.xlu0 %v328, 96
  %v333 = vpop.permute.xlu0 %332
  %v334 = vsel %vm26, %v333, 0
  %336 = vmatprep.subr.mxu0 0.0
  %337 = vmatpush1.msra.mxu0 %v14
  %338 = vmatprep.subr.mxu0 0.0
  %339 = vmatpush1.msra.mxu0 %v15
  %340 = vmatprep.subr.mxu0 0.0
  %341 = vmatpush1.msra.mxu0 %v16
  %342 = vmatprep.subr.mxu0 0.0
  %343 = vmatpush1.msra.mxu0 %v17
  %344 = vmatprep.subr.mxu0 0.0
  %345 = vmatpush1.msra.mxu0 0.0
  %346 = vmatprep.subr.mxu0 0.0
  %347 = vmatpush1.msra.mxu0 0.0
  %348 = vmatprep.subr.mxu0 0.0
  %349 = vmatpush1.msra.mxu0 0.0
  %350 = vmatprep.subr.mxu0 0.0
  %351 = vmatpush1.msra.mxu0 0.0
  %352 = vmatprep.subr.mxu0 0.0
  %353 = vmatpush1.msra.mxu0 0.0
  %354 = vmatprep.subr.mxu0 0.0
  %355 = vmatpush1.msra.mxu0 0.0
  %356 = vmatprep.subr.mxu0 0.0
  %357 = vmatpush1.msra.mxu0 0.0
  %358 = vmatprep.subr.mxu0 0.0
  %359 = vmatpush1.msra.mxu0 0.0
  %360 = vmatprep.subr.mxu0 0.0
  %361 = vmatpush1.msra.mxu0 0.0
  %362 = vmatprep.subr.mxu0 0.0
  %363 = vmatpush1.msra.mxu0 0.0
  %364 = vmatprep.subr.mxu0 0.0
  %365 = vmatpush1.msra.mxu0 0.0
  %366 = vmatprep.subr.mxu0 0.0
  %367 = vmatpush1.msra.mxu0 0.0
  %368 = vmatprep.subr.mxu0 0.0
  %369 = vmatpush1.msra.mxu0 0.0
  %370 = vmatprep.subr.mxu0 0.0
  %371 = vmatpush1.msra.mxu0 0.0
  %372 = vmatprep.subr.mxu0 0.0
  %373 = vmatpush1.msra.mxu0 0.0
  %374 = vmatprep.subr.mxu0 0.0
  %375 = vmatpush1.msra.mxu0 0.0
  %376 = vmatprep.subr.mxu0 0.0
  %377 = vmatpush1.msra.mxu0 0.0
  %378 = vmatprep.subr.mxu0 0.0
  %379 = vmatpush1.msra.mxu0 0.0
  %380 = vmatprep.subr.mxu0 0.0
  %381 = vmatpush1.msra.mxu0 0.0
  %382 = vmatprep.subr.mxu0 0.0
  %383 = vmatpush1.msra.mxu0 0.0
  %384 = vmatprep.subr.mxu0 0.0
  %385 = vmatpush1.msra.mxu0 0.0
  %386 = vmatprep.subr.mxu0 0.0
  %387 = vmatpush1.msra.mxu0 0.0
  %388 = vmatprep.subr.mxu0 0.0
  %389 = vmatpush1.msra.mxu0 0.0
  %390 = vmatprep.subr.mxu0 0.0
  %391 = vmatpush1.msra.mxu0 0.0
  %392 = vmatprep.subr.mxu0 0.0
  %393 = vmatpush1.msra.mxu0 0.0
  %394 = vmatprep.subr.mxu0 0.0
  %395 = vmatpush1.msra.mxu0 0.0
  %396 = vmatprep.subr.mxu0 0.0
  %397 = vmatpush1.msra.mxu0 0.0
  %398 = vmatprep.subr.mxu0 0.0
  %399 = vmatpush1.msra.mxu0 0.0
  %400 = vmatprep.mubr.f32.mxu0 0.0
  %401 = vmatmul.mubr.f32.gmra.mrb[0].mxu0 %v334
  %v402 = vpop.f32.mrb[0].mxu0
  %v403 = vadd.f32 %v24, %v402
  %v404 = vpop.f32.mrb[0].mxu0
  %405 = vdwg.mxu0
  %v406 = vadd.f32 %v330, %v403
  %v407 = vsub.f32 0.0, %v406
  %v408 = vmul.f32 %v407, 1.442695
  %v409 = vpow.pop %v408
  %v410 = vadd.f32 %v409, 1.0
  %v411 = vrcp.pop %v410
  %413 = vrot.lane.b32.xlu0 %v403, 64
  %v414 = vpop.permute.xlu0 %413
  %v416 = vmul.f32 %v411, %v414
  %418 = vrot.lane.b32.xlu0 %v416, 64
  %v419 = vpop.permute.xlu0 %418
  %v421 = vadd.f32 %v330, %v419
  %v422 = vtanh.pop %v421
  %v423 = vsub.f32 1.0, %v411
  %425 = vrot.lane.b32.xlu0 %v422, 96
  %v426 = vpop.permute.xlu0 %425
  %v428 = vmul.f32 %v423, %v426
  %v429 = vmul.f32 %v411, %v328
  %v430 = vadd.f32 %v428, %v429
  %s431 = scalar_lea.vmem %s0, 16
  %v432 = vld [vmem:[%s431] sm:$0xf]
  %434 = vrot.lane.b32.xlu0 %v430, 96
  %v435 = vpop.permute.xlu0 %434
  %v436 = vsel %vm26, %v435, 0
  %438 = vmatprep.subr.mxu0 0.0
  %439 = vmatpush1.msra.mxu0 %v14
  %440 = vmatprep.subr.mxu0 0.0
  %441 = vmatpush1.msra.mxu0 %v15
  %442 = vmatprep.subr.mxu0 0.0
  %443 = vmatpush1.msra.mxu0 %v16
  %444 = vmatprep.subr.mxu0 0.0
  %445 = vmatpush1.msra.mxu0 %v17
  %446 = vmatprep.subr.mxu0 0.0
  %447 = vmatpush1.msra.mxu0 0.0
  %448 = vmatprep.subr.mxu0 0.0
  %449 = vmatpush1.msra.mxu0 0.0
  %450 = vmatprep.subr.mxu0 0.0
  %451 = vmatpush1.msra.mxu0 0.0
  %452 = vmatprep.subr.mxu0 0.0
  %453 = vmatpush1.msra.mxu0 0.0
  %454 = vmatprep.subr.mxu0 0.0
  %455 = vmatpush1.msra.mxu0 0.0
  %456 = vmatprep.subr.mxu0 0.0
  %457 = vmatpush1.msra.mxu0 0.0
  %458 = vmatprep.subr.mxu0 0.0
  %459 = vmatpush1.msra.mxu0 0.0
  %460 = vmatprep.subr.mxu0 0.0
  %461 = vmatpush1.msra.mxu0 0.0
  %462 = vmatprep.subr.mxu0 0.0
  %463 = vmatpush1.msra.mxu0 0.0
  %464 = vmatprep.subr.mxu0 0.0
  %465 = vmatpush1.msra.mxu0 0.0
  %466 = vmatprep.subr.mxu0 0.0
  %467 = vmatpush1.msra.mxu0 0.0
  %468 = vmatprep.subr.mxu0 0.0
  %469 = vmatpush1.msra.mxu0 0.0
  %470 = vmatprep.subr.mxu0 0.0
  %471 = vmatpush1.msra.mxu0 0.0
  %472 = vmatprep.subr.mxu0 0.0
  %473 = vmatpush1.msra.mxu0 0.0
  %474 = vmatprep.subr.mxu0 0.0
  %475 = vmatpush1.msra.mxu0 0.0
  %476 = vmatprep.subr.mxu0 0.0
  %477 = vmatpush1.msra.mxu0 0.0
  %478 = vmatprep.subr.mxu0 0.0
  %479 = vmatpush1.msra.mxu0 0.0
  %480 = vmatprep.subr.mxu0 0.0
  %481 = vmatpush1.msra.mxu0 0.0
  %482 = vmatprep.subr.mxu0 0.0
  %483 = vmatpush1.msra.mxu0 0.0
  %484 = vmatprep.subr.mxu0 0.0
  %485 = vmatpush1.msra.mxu0 0.0
  %486 = vmatprep.subr.mxu0 0.0
  %487 = vmatpush1.msra.mxu0 0.0
  %488 = vmatprep.subr.mxu0 0.0
  %489 = vmatpush1.msra.mxu0 0.0
  %490 = vmatprep.subr.mxu0 0.0
  %491 = vmatpush1.msra.mxu0 0.0
  %492 = vmatprep.subr.mxu0 0.0
  %493 = vmatpush1.msra.mxu0 0.0
  %494 = vmatprep.subr.mxu0 0.0
  %495 = vmatpush1.msra.mxu0 0.0
  %496 = vmatprep.subr.mxu0 0.0
  %497 = vmatpush1.msra.mxu0 0.0
  %498 = vmatprep.subr.mxu0 0.0
  %499 = vmatpush1.msra.mxu0 0.0
  %500 = vmatprep.subr.mxu0 0.0
  %501 = vmatpush1.msra.mxu0 0.0
  %502 = vmatprep.mubr.f32.mxu0 0.0
  %503 = vmatmul.mubr.f32.gmra.mrb[0].mxu0 %v436
  %v504 = vpop.f32.mrb[0].mxu0
  %v505 = vadd.f32 %v24, %v504
  %v506 = vpop.f32.mrb[0].mxu0
  %507 = vdwg.mxu0
  %v508 = vadd.f32 %v432, %v505
  %v509 = vsub.f32 0.0, %v508
  %v510 = vmul.f32 %v509, 1.442695
  %v511 = vpow.pop %v510
  %v512 = vadd.f32 %v511, 1.0
  %v513 = vrcp.pop %v512
  %515 = vrot.lane.b32.xlu0 %v505, 64
  %v516 = vpop.permute.xlu0 %515
  %v518 = vmul.f32 %v513, %v516
  %520 = vrot.lane.b32.xlu0 %v518, 64
  %v521 = vpop.permute.xlu0 %520
  %v523 = vadd.f32 %v432, %v521
  %v524 = vtanh.pop %v523
  %v525 = vsub.f32 1.0, %v513
  %527 = vrot.lane.b32.xlu0 %v524, 96
  %v528 = vpop.permute.xlu0 %527
  %v530 = vmul.f32 %v525, %v528
  %v531 = vmul.f32 %v513, %v430
  %v532 = vadd.f32 %v530, %v531
  %534 = vrot.lane.b32.xlu0 %v532, 96
  %v535 = vpop.permute.xlu0 %534
  %vm537 = vcmask 125952
  %538 = vst.msk [vmem:[%s3] sm:$0xf] %vm537, %v535
  %s539 = scalar_lea.vmem %s3, 124
  %vm540 = vcmask 257152
  %541 = vst.msk [vmem:[%s539] sm:$0xf] %vm540, %v535
  %s542 = scalar_lea.vmem %s0, 20
  %v543 = vld [vmem:[%s542] sm:$0xf]
  %v544 = vsel %vm26, %v535, 0
  %546 = vmatprep.subr.mxu0 0.0
  %547 = vmatpush1.msra.mxu0 %v14
  %548 = vmatprep.subr.mxu0 0.0
  %549 = vmatpush1.msra.mxu0 %v15
  %550 = vmatprep.subr.mxu0 0.0
  %551 = vmatpush1.msra.mxu0 %v16
  %552 = vmatprep.subr.mxu0 0.0
  %553 = vmatpush1.msra.mxu0 %v17
  %554 = vmatprep.subr.mxu0 0.0
  %555 = vmatpush1.msra.mxu0 0.0
  %556 = vmatprep.subr.mxu0 0.0
  %557 = vmatpush1.msra.mxu0 0.0
  %558 = vmatprep.subr.mxu0 0.0
  %559 = vmatpush1.msra.mxu0 0.0
  %560 = vmatprep.subr.mxu0 0.0
  %561 = vmatpush1.msra.mxu0 0.0
  %562 = vmatprep.subr.mxu0 0.0
  %563 = vmatpush1.msra.mxu0 0.0
  %564 = vmatprep.subr.mxu0 0.0
  %565 = vmatpush1.msra.mxu0 0.0
  %566 = vmatprep.subr.mxu0 0.0
  %567 = vmatpush1.msra.mxu0 0.0
  %568 = vmatprep.subr.mxu0 0.0
  %569 = vmatpush1.msra.mxu0 0.0
  %570 = vmatprep.subr.mxu0 0.0
  %571 = vmatpush1.msra.mxu0 0.0
  %572 = vmatprep.subr.mxu0 0.0
  %573 = vmatpush1.msra.mxu0 0.0
  %574 = vmatprep.subr.mxu0 0.0
  %575 = vmatpush1.msra.mxu0 0.0
  %576 = vmatprep.subr.mxu0 0.0
  %577 = vmatpush1.msra.mxu0 0.0
  %578 = vmatprep.subr.mxu0 0.0
  %579 = vmatpush1.msra.mxu0 0.0
  %580 = vmatprep.subr.mxu0 0.0
  %581 = vmatpush1.msra.mxu0 0.0
  %582 = vmatprep.subr.mxu0 0.0
  %583 = vmatpush1.msra.mxu0 0.0
  %584 = vmatprep.subr.mxu0 0.0
  %585 = vmatpush1.msra.mxu0 0.0
  %586 = vmatprep.subr.mxu0 0.0
  %587 = vmatpush1.msra.mxu0 0.0
  %588 = vmatprep.subr.mxu0 0.0
  %589 = vmatpush1.msra.mxu0 0.0
  %590 = vmatprep.subr.mxu0 0.0
  %591 = vmatpush1.msra.mxu0 0.0
  %592 = vmatprep.subr.mxu0 0.0
  %593 = vmatpush1.msra.mxu0 0.0
  %594 = vmatprep.subr.mxu0 0.0
  %595 = vmatpush1.msra.mxu0 0.0
  %596 = vmatprep.subr.mxu0 0.0
  %597 = vmatpush1.msra.mxu0 0.0
  %598 = vmatprep.subr.mxu0 0.0
  %599 = vmatpush1.msra.mxu0 0.0
  %600 = vmatprep.subr.mxu0 0.0
  %601 = vmatpush1.msra.mxu0 0.0
  %602 = vmatprep.subr.mxu0 0.0
  %603 = vmatpush1.msra.mxu0 0.0
  %604 = vmatprep.subr.mxu0 0.0
  %605 = vmatpush1.msra.mxu0 0.0
  %606 = vmatprep.subr.mxu0 0.0
  %607 = vmatpush1.msra.mxu0 0.0
  %608 = vmatprep.subr.mxu0 0.0
  %609 = vmatpush1.msra.mxu0 0.0
  %610 = vmatprep.mubr.f32.mxu0 0.0
  %611 = vmatmul.mubr.f32.gmra.mrb[0].mxu0 %v544
  %v612 = vpop.f32.mrb[0].mxu0
  %v613 = vadd.f32 %v24, %v612
  %v614 = vpop.f32.mrb[0].mxu0
  %615 = vdwg.mxu0
  %v616 = vadd.f32 %v543, %v613
  %v617 = vsub.f32 0.0, %v616
  %v618 = vmul.f32 %v617, 1.442695
  %v619 = vpow.pop %v618
  %v620 = vadd.f32 %v619, 1.0
  %v621 = vrcp.pop %v620
  %623 = vrot.lane.b32.xlu0 %v613, 64
  %v624 = vpop.permute.xlu0 %623
  %v626 = vmul.f32 %v621, %v624
  %628 = vrot.lane.b32.xlu0 %v626, 64
  %v629 = vpop.permute.xlu0 %628
  %v631 = vadd.f32 %v543, %v629
  %v632 = vtanh.pop %v631
  %v633 = vsub.f32 1.0, %v621
  %635 = vrot.lane.b32.xlu0 %v632, 96
  %v636 = vpop.permute.xlu0 %635
  %v638 = vmul.f32 %v633, %v636
  %v639 = vmul.f32 %v621, %v532
  %v640 = vadd.f32 %v638, %v639
  %642 = vrot.lane.b32.xlu0 %v640, 96
  %v643 = vpop.permute.xlu0 %642
  %s645 = scalar_lea.vmem %s3, 4
  %646 = vst.msk [vmem:[%s645] sm:$0xf] %vm537, %v643
  %s647 = scalar_lea.vmem %s3, 120
  %648 = vst.msk [vmem:[%s647] sm:$0xf] %vm540, %v643
  %s649 = scalar_lea.vmem %s0, 24
  %v650 = vld [vmem:[%s649] sm:$0xf]
  %v651 = vsel %vm26, %v643, 0
  %653 = vmatprep.subr.mxu0 0.0
  %654 = vmatpush1.msra.mxu0 %v14
  %655 = vmatprep.subr.mxu0 0.0
  %656 = vmatpush1.msra.mxu0 %v15
  %657 = vmatprep.subr.mxu0 0.0
  %658 = vmatpush1.msra.mxu0 %v16
  %659 = vmatprep.subr.mxu0 0.0
  %660 = vmatpush1.msra.mxu0 %v17
  %661 = vmatprep.subr.mxu0 0.0
  %662 = vmatpush1.msra.mxu0 0.0
  %663 = vmatprep.subr.mxu0 0.0
  %664 = vmatpush1.msra.mxu0 0.0
  %665 = vmatprep.subr.mxu0 0.0
  %666 = vmatpush1.msra.mxu0 0.0
  %667 = vmatprep.subr.mxu0 0.0
  %668 = vmatpush1.msra.mxu0 0.0
  %669 = vmatprep.subr.mxu0 0.0
  %670 = vmatpush1.msra.mxu0 0.0
  %671 = vmatprep.subr.mxu0 0.0
  %672 = vmatpush1.msra.mxu0 0.0
  %673 = vmatprep.subr.mxu0 0.0
  %674 = vmatpush1.msra.mxu0 0.0
  %675 = vmatprep.subr.mxu0 0.0
  %676 = vmatpush1.msra.mxu0 0.0
  %677 = vmatprep.subr.mxu0 0.0
  %678 = vmatpush1.msra.mxu0 0.0
  %679 = vmatprep.subr.mxu0 0.0
  %680 = vmatpush1.msra.mxu0 0.0
  %681 = vmatprep.subr.mxu0 0.0
  %682 = vmatpush1.msra.mxu0 0.0
  %683 = vmatprep.subr.mxu0 0.0
  %684 = vmatpush1.msra.mxu0 0.0
  %685 = vmatprep.subr.mxu0 0.0
  %686 = vmatpush1.msra.mxu0 0.0
  %687 = vmatprep.subr.mxu0 0.0
  %688 = vmatpush1.msra.mxu0 0.0
  %689 = vmatprep.subr.mxu0 0.0
  %690 = vmatpush1.msra.mxu0 0.0
  %691 = vmatprep.subr.mxu0 0.0
  %692 = vmatpush1.msra.mxu0 0.0
  %693 = vmatprep.subr.mxu0 0.0
  %694 = vmatpush1.msra.mxu0 0.0
  %695 = vmatprep.subr.mxu0 0.0
  %696 = vmatpush1.msra.mxu0 0.0
  %697 = vmatprep.subr.mxu0 0.0
  %698 = vmatpush1.msra.mxu0 0.0
  %699 = vmatprep.subr.mxu0 0.0
  %700 = vmatpush1.msra.mxu0 0.0
  %701 = vmatprep.subr.mxu0 0.0
  %702 = vmatpush1.msra.mxu0 0.0
  %703 = vmatprep.subr.mxu0 0.0
  %704 = vmatpush1.msra.mxu0 0.0
  %705 = vmatprep.subr.mxu0 0.0
  %706 = vmatpush1.msra.mxu0 0.0
  %707 = vmatprep.subr.mxu0 0.0
  %708 = vmatpush1.msra.mxu0 0.0
  %709 = vmatprep.subr.mxu0 0.0
  %710 = vmatpush1.msra.mxu0 0.0
  %711 = vmatprep.subr.mxu0 0.0
  %712 = vmatpush1.msra.mxu0 0.0
  %713 = vmatprep.subr.mxu0 0.0
  %714 = vmatpush1.msra.mxu0 0.0
  %715 = vmatprep.subr.mxu0 0.0
  %716 = vmatpush1.msra.mxu0 0.0
  %717 = vmatprep.mubr.f32.mxu0 0.0
  %718 = vmatmul.mubr.f32.gmra.mrb[0].mxu0 %v651
  %v719 = vpop.f32.mrb[0].mxu0
  %v720 = vadd.f32 %v24, %v719
  %v721 = vpop.f32.mrb[0].mxu0
  %722 = vdwg.mxu0
  %v723 = vadd.f32 %v650, %v720
  %v724 = vsub.f32 0.0, %v723
  %v725 = vmul.f32 %v724, 1.442695
  %v726 = vpow.pop %v725
  %v727 = vadd.f32 %v726, 1.0
  %v728 = vrcp.pop %v727
  %730 = vrot.lane.b32.xlu0 %v720, 64
  %v731 = vpop.permute.xlu0 %730
  %v733 = vmul.f32 %v728, %v731
  %735 = vrot.lane.b32.xlu0 %v733, 64
  %v736 = vpop.permute.xlu0 %735
  %v738 = vadd.f32 %v650, %v736
  %v739 = vtanh.pop %v738
  %v740 = vsub.f32 1.0, %v728
  %742 = vrot.lane.b32.xlu0 %v739, 96
  %v743 = vpop.permute.xlu0 %742
  %v745 = vmul.f32 %v740, %v743
  %v746 = vmul.f32 %v728, %v640
  %v747 = vadd.f32 %v745, %v746
  %749 = vrot.lane.b32.xlu0 %v747, 96
  %v750 = vpop.permute.xlu0 %749
  %s752 = scalar_lea.vmem %s3, 8
  %753 = vst.msk [vmem:[%s752] sm:$0xf] %vm537, %v750
  %s754 = scalar_lea.vmem %s3, 116
  %755 = vst.msk [vmem:[%s754] sm:$0xf] %vm540, %v750
  %s756 = scalar_lea.vmem %s0, 28
  %v757 = vld [vmem:[%s756] sm:$0xf]
  %v758 = vsel %vm26, %v750, 0
  %760 = vmatprep.subr.mxu0 0.0
  %761 = vmatpush1.msra.mxu0 %v14
  %762 = vmatprep.subr.mxu0 0.0
  %763 = vmatpush1.msra.mxu0 %v15
  %764 = vmatprep.subr.mxu0 0.0
  %765 = vmatpush1.msra.mxu0 %v16
  %766 = vmatprep.subr.mxu0 0.0
  %767 = vmatpush1.msra.mxu0 %v17
  %768 = vmatprep.subr.mxu0 0.0
  %769 = vmatpush1.msra.mxu0 0.0
  %770 = vmatprep.subr.mxu0 0.0
  %771 = vmatpush1.msra.mxu0 0.0
  %772 = vmatprep.subr.mxu0 0.0
  %773 = vmatpush1.msra.mxu0 0.0
  %774 = vmatprep.subr.mxu0 0.0
  %775 = vmatpush1.msra.mxu0 0.0
  %776 = vmatprep.subr.mxu0 0.0
  %777 = vmatpush1.msra.mxu0 0.0
  %778 = vmatprep.subr.mxu0 0.0
  %779 = vmatpush1.msra.mxu0 0.0
  %780 = vmatprep.subr.mxu0 0.0
  %781 = vmatpush1.msra.mxu0 0.0
  %782 = vmatprep.subr.mxu0 0.0
  %783 = vmatpush1.msra.mxu0 0.0
  %784 = vmatprep.subr.mxu0 0.0
  %785 = vmatpush1.msra.mxu0 0.0
  %786 = vmatprep.subr.mxu0 0.0
  %787 = vmatpush1.msra.mxu0 0.0
  %788 = vmatprep.subr.mxu0 0.0
  %789 = vmatpush1.msra.mxu0 0.0
  %790 = vmatprep.subr.mxu0 0.0
  %791 = vmatpush1.msra.mxu0 0.0
  %792 = vmatprep.subr.mxu0 0.0
  %793 = vmatpush1.msra.mxu0 0.0
  %794 = vmatprep.subr.mxu0 0.0
  %795 = vmatpush1.msra.mxu0 0.0
  %796 = vmatprep.subr.mxu0 0.0
  %797 = vmatpush1.msra.mxu0 0.0
  %798 = vmatprep.subr.mxu0 0.0
  %799 = vmatpush1.msra.mxu0 0.0
  %800 = vmatprep.subr.mxu0 0.0
  %801 = vmatpush1.msra.mxu0 0.0
  %802 = vmatprep.subr.mxu0 0.0
  %803 = vmatpush1.msra.mxu0 0.0
  %804 = vmatprep.subr.mxu0 0.0
  %805 = vmatpush1.msra.mxu0 0.0
  %806 = vmatprep.subr.mxu0 0.0
  %807 = vmatpush1.msra.mxu0 0.0
  %808 = vmatprep.subr.mxu0 0.0
  %809 = vmatpush1.msra.mxu0 0.0
  %810 = vmatprep.subr.mxu0 0.0
  %811 = vmatpush1.msra.mxu0 0.0
  %812 = vmatprep.subr.mxu0 0.0
  %813 = vmatpush1.msra.mxu0 0.0
  %814 = vmatprep.subr.mxu0 0.0
  %815 = vmatpush1.msra.mxu0 0.0
  %816 = vmatprep.subr.mxu0 0.0
  %817 = vmatpush1.msra.mxu0 0.0
  %818 = vmatprep.subr.mxu0 0.0
  %819 = vmatpush1.msra.mxu0 0.0
  %820 = vmatprep.subr.mxu0 0.0
  %821 = vmatpush1.msra.mxu0 0.0
  %822 = vmatprep.subr.mxu0 0.0
  %823 = vmatpush1.msra.mxu0 0.0
  %824 = vmatprep.mubr.f32.mxu0 0.0
  %825 = vmatmul.mubr.f32.gmra.mrb[0].mxu0 %v758
  %v826 = vpop.f32.mrb[0].mxu0
  %v827 = vadd.f32 %v24, %v826
  %v828 = vpop.f32.mrb[0].mxu0
  %829 = vdwg.mxu0
  %v830 = vadd.f32 %v757, %v827
  %v831 = vsub.f32 0.0, %v830
  %v832 = vmul.f32 %v831, 1.442695
  %v833 = vpow.pop %v832
  %v834 = vadd.f32 %v833, 1.0
  %v835 = vrcp.pop %v834
  %837 = vrot.lane.b32.xlu0 %v827, 64
  %v838 = vpop.permute.xlu0 %837
  %v840 = vmul.f32 %v835, %v838
  %842 = vrot.lane.b32.xlu0 %v840, 64
  %v843 = vpop.permute.xlu0 %842
  %v845 = vadd.f32 %v757, %v843
  %v846 = vtanh.pop %v845
  %v847 = vsub.f32 1.0, %v835
  %849 = vrot.lane.b32.xlu0 %v846, 96
  %v850 = vpop.permute.xlu0 %849
  %v852 = vmul.f32 %v847, %v850
  %v853 = vmul.f32 %v835, %v747
  %v854 = vadd.f32 %v852, %v853
  %856 = vrot.lane.b32.xlu0 %v854, 96
  %v857 = vpop.permute.xlu0 %856
  %s859 = scalar_lea.vmem %s3, 12
  %860 = vst.msk [vmem:[%s859] sm:$0xf] %vm537, %v857
  %s861 = scalar_lea.vmem %s3, 112
  %862 = vst.msk [vmem:[%s861] sm:$0xf] %vm540, %v857
  %s863 = scalar_lea.vmem %s0, 32
  %v864 = vld [vmem:[%s863] sm:$0xf]
  %v865 = vsel %vm26, %v857, 0
  %867 = vmatprep.subr.mxu0 0.0
  %868 = vmatpush1.msra.mxu0 %v14
  %869 = vmatprep.subr.mxu0 0.0
  %870 = vmatpush1.msra.mxu0 %v15
  %871 = vmatprep.subr.mxu0 0.0
  %872 = vmatpush1.msra.mxu0 %v16
  %873 = vmatprep.subr.mxu0 0.0
  %874 = vmatpush1.msra.mxu0 %v17
  %875 = vmatprep.subr.mxu0 0.0
  %876 = vmatpush1.msra.mxu0 0.0
  %877 = vmatprep.subr.mxu0 0.0
  %878 = vmatpush1.msra.mxu0 0.0
  %879 = vmatprep.subr.mxu0 0.0
  %880 = vmatpush1.msra.mxu0 0.0
  %881 = vmatprep.subr.mxu0 0.0
  %882 = vmatpush1.msra.mxu0 0.0
  %883 = vmatprep.subr.mxu0 0.0
  %884 = vmatpush1.msra.mxu0 0.0
  %885 = vmatprep.subr.mxu0 0.0
  %886 = vmatpush1.msra.mxu0 0.0
  %887 = vmatprep.subr.mxu0 0.0
  %888 = vmatpush1.msra.mxu0 0.0
  %889 = vmatprep.subr.mxu0 0.0
  %890 = vmatpush1.msra.mxu0 0.0
  %891 = vmatprep.subr.mxu0 0.0
  %892 = vmatpush1.msra.mxu0 0.0
  %893 = vmatprep.subr.mxu0 0.0
  %894 = vmatpush1.msra.mxu0 0.0
  %895 = vmatprep.subr.mxu0 0.0
  %896 = vmatpush1.msra.mxu0 0.0
  %897 = vmatprep.subr.mxu0 0.0
  %898 = vmatpush1.msra.mxu0 0.0
  %899 = vmatprep.subr.mxu0 0.0
  %900 = vmatpush1.msra.mxu0 0.0
  %901 = vmatprep.subr.mxu0 0.0
  %902 = vmatpush1.msra.mxu0 0.0
  %903 = vmatprep.subr.mxu0 0.0
  %904 = vmatpush1.msra.mxu0 0.0
  %905 = vmatprep.subr.mxu0 0.0
  %906 = vmatpush1.msra.mxu0 0.0
  %907 = vmatprep.subr.mxu0 0.0
  %908 = vmatpush1.msra.mxu0 0.0
  %909 = vmatprep.subr.mxu0 0.0
  %910 = vmatpush1.msra.mxu0 0.0
  %911 = vmatprep.subr.mxu0 0.0
  %912 = vmatpush1.msra.mxu0 0.0
  %913 = vmatprep.subr.mxu0 0.0
  %914 = vmatpush1.msra.mxu0 0.0
  %915 = vmatprep.subr.mxu0 0.0
  %916 = vmatpush1.msra.mxu0 0.0
  %917 = vmatprep.subr.mxu0 0.0
  %918 = vmatpush1.msra.mxu0 0.0
  %919 = vmatprep.subr.mxu0 0.0
  %920 = vmatpush1.msra.mxu0 0.0
  %921 = vmatprep.subr.mxu0 0.0
  %922 = vmatpush1.msra.mxu0 0.0
  %923 = vmatprep.subr.mxu0 0.0
  %924 = vmatpush1.msra.mxu0 0.0
  %925 = vmatprep.subr.mxu0 0.0
  %926 = vmatpush1.msra.mxu0 0.0
  %927 = vmatprep.subr.mxu0 0.0
  %928 = vmatpush1.msra.mxu0 0.0
  %929 = vmatprep.subr.mxu0 0.0
  %930 = vmatpush1.msra.mxu0 0.0
  %931 = vmatprep.mubr.f32.mxu0 0.0
  %932 = vmatmul.mubr.f32.gmra.mrb[0].mxu0 %v865
  %v933 = vpop.f32.mrb[0].mxu0
  %v934 = vadd.f32 %v24, %v933
  %v935 = vpop.f32.mrb[0].mxu0
  %936 = vdwg.mxu0
  %v937 = vadd.f32 %v864, %v934
  %v938 = vsub.f32 0.0, %v937
  %v939 = vmul.f32 %v938, 1.442695
  %v940 = vpow.pop %v939
  %v941 = vadd.f32 %v940, 1.0
  %v942 = vrcp.pop %v941
  %944 = vrot.lane.b32.xlu0 %v934, 64
  %v945 = vpop.permute.xlu0 %944
  %v947 = vmul.f32 %v942, %v945
  %949 = vrot.lane.b32.xlu0 %v947, 64
  %v950 = vpop.permute.xlu0 %949
  %v952 = vadd.f32 %v864, %v950
  %v953 = vtanh.pop %v952
  %v954 = vsub.f32 1.0, %v942
  %956 = vrot.lane.b32.xlu0 %v953, 96
  %v957 = vpop.permute.xlu0 %956
  %v959 = vmul.f32 %v954, %v957
  %v960 = vmul.f32 %v942, %v854
  %v961 = vadd.f32 %v959, %v960
  %963 = vrot.lane.b32.xlu0 %v961, 96
  %v964 = vpop.permute.xlu0 %963
  %s966 = scalar_lea.vmem %s3, 16
  %967 = vst.msk [vmem:[%s966] sm:$0xf] %vm537, %v964
  %s968 = scalar_lea.vmem %s3, 108
  %969 = vst.msk [vmem:[%s968] sm:$0xf] %vm540, %v964
  %s970 = scalar_lea.vmem %s0, 36
  %v971 = vld [vmem:[%s970] sm:$0xf]
  %v972 = vsel %vm26, %v964, 0
  %974 = vmatprep.subr.mxu0 0.0
  %975 = vmatpush1.msra.mxu0 %v14
  %976 = vmatprep.subr.mxu0 0.0
  %977 = vmatpush1.msra.mxu0 %v15
  %978 = vmatprep.subr.mxu0 0.0
  %979 = vmatpush1.msra.mxu0 %v16
  %980 = vmatprep.subr.mxu0 0.0
  %981 = vmatpush1.msra.mxu0 %v17
  %982 = vmatprep.subr.mxu0 0.0
  %983 = vmatpush1.msra.mxu0 0.0
  %984 = vmatprep.subr.mxu0 0.0
  %985 = vmatpush1.msra.mxu0 0.0
  %986 = vmatprep.subr.mxu0 0.0
  %987 = vmatpush1.msra.mxu0 0.0
  %988 = vmatprep.subr.mxu0 0.0
  %989 = vmatpush1.msra.mxu0 0.0
  %990 = vmatprep.subr.mxu0 0.0
  %991 = vmatpush1.msra.mxu0 0.0
  %992 = vmatprep.subr.mxu0 0.0
  %993 = vmatpush1.msra.mxu0 0.0
  %994 = vmatprep.subr.mxu0 0.0
  %995 = vmatpush1.msra.mxu0 0.0
  %996 = vmatprep.subr.mxu0 0.0
  %997 = vmatpush1.msra.mxu0 0.0
  %998 = vmatprep.subr.mxu0 0.0
  %999 = vmatpush1.msra.mxu0 0.0
  %1000 = vmatprep.subr.mxu0 0.0
  %1001 = vmatpush1.msra.mxu0 0.0
  %1002 = vmatprep.subr.mxu0 0.0
  %1003 = vmatpush1.msra.mxu0 0.0
  %1004 = vmatprep.subr.mxu0 0.0
  %1005 = vmatpush1.msra.mxu0 0.0
  %1006 = vmatprep.subr.mxu0 0.0
  %1007 = vmatpush1.msra.mxu0 0.0
  %1008 = vmatprep.subr.mxu0 0.0
  %1009 = vmatpush1.msra.mxu0 0.0
  %1010 = vmatprep.subr.mxu0 0.0
  %1011 = vmatpush1.msra.mxu0 0.0
  %1012 = vmatprep.subr.mxu0 0.0
  %1013 = vmatpush1.msra.mxu0 0.0
  %1014 = vmatprep.subr.mxu0 0.0
  %1015 = vmatpush1.msra.mxu0 0.0
  %1016 = vmatprep.subr.mxu0 0.0
  %1017 = vmatpush1.msra.mxu0 0.0
  %1018 = vmatprep.subr.mxu0 0.0
  %1019 = vmatpush1.msra.mxu0 0.0
  %1020 = vmatprep.subr.mxu0 0.0
  %1021 = vmatpush1.msra.mxu0 0.0
  %1022 = vmatprep.subr.mxu0 0.0
  %1023 = vmatpush1.msra.mxu0 0.0
  %1024 = vmatprep.subr.mxu0 0.0
  %1025 = vmatpush1.msra.mxu0 0.0
  %1026 = vmatprep.subr.mxu0 0.0
  %1027 = vmatpush1.msra.mxu0 0.0
  %1028 = vmatprep.subr.mxu0 0.0
  %1029 = vmatpush1.msra.mxu0 0.0
  %1030 = vmatprep.subr.mxu0 0.0
  %1031 = vmatpush1.msra.mxu0 0.0
  %1032 = vmatprep.subr.mxu0 0.0
  %1033 = vmatpush1.msra.mxu0 0.0
  %1034 = vmatprep.subr.mxu0 0.0
  %1035 = vmatpush1.msra.mxu0 0.0
  %1036 = vmatprep.subr.mxu0 0.0
  %1037 = vmatpush1.msra.mxu0 0.0
  %1038 = vmatprep.mubr.f32.mxu0 0.0
  %1039 = vmatmul.mubr.f32.gmra.mrb[0].mxu0 %v972
  %v1040 = vpop.f32.mrb[0].mxu0
  %v1041 = vadd.f32 %v24, %v1040
  %v1042 = vpop.f32.mrb[0].mxu0
  %1043 = vdwg.mxu0
  %v1044 = vadd.f32 %v971, %v1041
  %v1045 = vsub.f32 0.0, %v1044
  %v1046 = vmul.f32 %v1045, 1.442695
  %v1047 = vpow.pop %v1046
  %v1048 = vadd.f32 %v1047, 1.0
  %v1049 = vrcp.pop %v1048
  %1051 = vrot.lane.b32.xlu0 %v1041, 64
  %v1052 = vpop.permute.xlu0 %1051
  %v1054 = vmul.f32 %v1049, %v1052
  %1056 = vrot.lane.b32.xlu0 %v1054, 64
  %v1057 = vpop.permute.xlu0 %1056
  %v1059 = vadd.f32 %v971, %v1057
  %v1060 = vtanh.pop %v1059
  %v1061 = vsub.f32 1.0, %v1049
  %1063 = vrot.lane.b32.xlu0 %v1060, 96
  %v1064 = vpop.permute.xlu0 %1063
  %v1066 = vmul.f32 %v1061, %v1064
  %v1067 = vmul.f32 %v1049, %v961
  %v1068 = vadd.f32 %v1066, %v1067
  %1070 = vrot.lane.b32.xlu0 %v1068, 96
  %v1071 = vpop.permute.xlu0 %1070
  %s1073 = scalar_lea.vmem %s3, 20
  %1074 = vst.msk [vmem:[%s1073] sm:$0xf] %vm537, %v1071
  %s1075 = scalar_lea.vmem %s3, 104
  %1076 = vst.msk [vmem:[%s1075] sm:$0xf] %vm540, %v1071
  %s1077 = scalar_lea.vmem %s0, 40
  %v1078 = vld [vmem:[%s1077] sm:$0xf]
  %v1079 = vsel %vm26, %v1071, 0
  %1081 = vmatprep.subr.mxu0 0.0
  %1082 = vmatpush1.msra.mxu0 %v14
  %1083 = vmatprep.subr.mxu0 0.0
  %1084 = vmatpush1.msra.mxu0 %v15
  %1085 = vmatprep.subr.mxu0 0.0
  %1086 = vmatpush1.msra.mxu0 %v16
  %1087 = vmatprep.subr.mxu0 0.0
  %1088 = vmatpush1.msra.mxu0 %v17
  %1089 = vmatprep.subr.mxu0 0.0
  %1090 = vmatpush1.msra.mxu0 0.0
  %1091 = vmatprep.subr.mxu0 0.0
  %1092 = vmatpush1.msra.mxu0 0.0
  %1093 = vmatprep.subr.mxu0 0.0
  %1094 = vmatpush1.msra.mxu0 0.0
  %1095 = vmatprep.subr.mxu0 0.0
  %1096 = vmatpush1.msra.mxu0 0.0
  %1097 = vmatprep.subr.mxu0 0.0
  %1098 = vmatpush1.msra.mxu0 0.0
  %1099 = vmatprep.subr.mxu0 0.0
  %1100 = vmatpush1.msra.mxu0 0.0
  %1101 = vmatprep.subr.mxu0 0.0
  %1102 = vmatpush1.msra.mxu0 0.0
  %1103 = vmatprep.subr.mxu0 0.0
  %1104 = vmatpush1.msra.mxu0 0.0
  %1105 = vmatprep.subr.mxu0 0.0
  %1106 = vmatpush1.msra.mxu0 0.0
  %1107 = vmatprep.subr.mxu0 0.0
  %1108 = vmatpush1.msra.mxu0 0.0
  %1109 = vmatprep.subr.mxu0 0.0
  %1110 = vmatpush1.msra.mxu0 0.0
  %1111 = vmatprep.subr.mxu0 0.0
  %1112 = vmatpush1.msra.mxu0 0.0
  %1113 = vmatprep.subr.mxu0 0.0
  %1114 = vmatpush1.msra.mxu0 0.0
  %1115 = vmatprep.subr.mxu0 0.0
  %1116 = vmatpush1.msra.mxu0 0.0
  %1117 = vmatprep.subr.mxu0 0.0
  %1118 = vmatpush1.msra.mxu0 0.0
  %1119 = vmatprep.subr.mxu0 0.0
  %1120 = vmatpush1.msra.mxu0 0.0
  %1121 = vmatprep.subr.mxu0 0.0
  %1122 = vmatpush1.msra.mxu0 0.0
  %1123 = vmatprep.subr.mxu0 0.0
  %1124 = vmatpush1.msra.mxu0 0.0
  %1125 = vmatprep.subr.mxu0 0.0
  %1126 = vmatpush1.msra.mxu0 0.0
  %1127 = vmatprep.subr.mxu0 0.0
  %1128 = vmatpush1.msra.mxu0 0.0
  %1129 = vmatprep.subr.mxu0 0.0
  %1130 = vmatpush1.msra.mxu0 0.0
  %1131 = vmatprep.subr.mxu0 0.0
  %1132 = vmatpush1.msra.mxu0 0.0
  %1133 = vmatprep.subr.mxu0 0.0
  %1134 = vmatpush1.msra.mxu0 0.0
  %1135 = vmatprep.subr.mxu0 0.0
  %1136 = vmatpush1.msra.mxu0 0.0
  %1137 = vmatprep.subr.mxu0 0.0
  %1138 = vmatpush1.msra.mxu0 0.0
  %1139 = vmatprep.subr.mxu0 0.0
  %1140 = vmatpush1.msra.mxu0 0.0
  %1141 = vmatprep.subr.mxu0 0.0
  %1142 = vmatpush1.msra.mxu0 0.0
  %1143 = vmatprep.subr.mxu0 0.0
  %1144 = vmatpush1.msra.mxu0 0.0
  %1145 = vmatprep.mubr.f32.mxu0 0.0
  %1146 = vmatmul.mubr.f32.gmra.mrb[0].mxu0 %v1079
  %v1147 = vpop.f32.mrb[0].mxu0
  %v1148 = vadd.f32 %v24, %v1147
  %v1149 = vpop.f32.mrb[0].mxu0
  %1150 = vdwg.mxu0
  %v1151 = vadd.f32 %v1078, %v1148
  %v1152 = vsub.f32 0.0, %v1151
  %v1153 = vmul.f32 %v1152, 1.442695
  %v1154 = vpow.pop %v1153
  %v1155 = vadd.f32 %v1154, 1.0
  %v1156 = vrcp.pop %v1155
  %1158 = vrot.lane.b32.xlu0 %v1148, 64
  %v1159 = vpop.permute.xlu0 %1158
  %v1161 = vmul.f32 %v1156, %v1159
  %1163 = vrot.lane.b32.xlu0 %v1161, 64
  %v1164 = vpop.permute.xlu0 %1163
  %v1166 = vadd.f32 %v1078, %v1164
  %v1167 = vtanh.pop %v1166
  %v1168 = vsub.f32 1.0, %v1156
  %1170 = vrot.lane.b32.xlu0 %v1167, 96
  %v1171 = vpop.permute.xlu0 %1170
  %v1173 = vmul.f32 %v1168, %v1171
  %v1174 = vmul.f32 %v1156, %v1068
  %v1175 = vadd.f32 %v1173, %v1174
  %1177 = vrot.lane.b32.xlu0 %v1175, 96
  %v1178 = vpop.permute.xlu0 %1177
  %s1180 = scalar_lea.vmem %s3, 24
  %1181 = vst.msk [vmem:[%s1180] sm:$0xf] %vm537, %v1178
  %s1182 = scalar_lea.vmem %s3, 100
  %1183 = vst.msk [vmem:[%s1182] sm:$0xf] %vm540, %v1178
  %s1184 = scalar_lea.vmem %s0, 44
  %v1185 = vld [vmem:[%s1184] sm:$0xf]
  %v1186 = vsel %vm26, %v1178, 0
  %1188 = vmatprep.subr.mxu0 0.0
  %1189 = vmatpush1.msra.mxu0 %v14
  %1190 = vmatprep.subr.mxu0 0.0
  %1191 = vmatpush1.msra.mxu0 %v15
  %1192 = vmatprep.subr.mxu0 0.0
  %1193 = vmatpush1.msra.mxu0 %v16
  %1194 = vmatprep.subr.mxu0 0.0
  %1195 = vmatpush1.msra.mxu0 %v17
  %1196 = vmatprep.subr.mxu0 0.0
  %1197 = vmatpush1.msra.mxu0 0.0
  %1198 = vmatprep.subr.mxu0 0.0
  %1199 = vmatpush1.msra.mxu0 0.0
  %1200 = vmatprep.subr.mxu0 0.0
  %1201 = vmatpush1.msra.mxu0 0.0
  %1202 = vmatprep.subr.mxu0 0.0
  %1203 = vmatpush1.msra.mxu0 0.0
  %1204 = vmatprep.subr.mxu0 0.0
  %1205 = vmatpush1.msra.mxu0 0.0
  %1206 = vmatprep.subr.mxu0 0.0
  %1207 = vmatpush1.msra.mxu0 0.0
  %1208 = vmatprep.subr.mxu0 0.0
  %1209 = vmatpush1.msra.mxu0 0.0
  %1210 = vmatprep.subr.mxu0 0.0
  %1211 = vmatpush1.msra.mxu0 0.0
  %1212 = vmatprep.subr.mxu0 0.0
  %1213 = vmatpush1.msra.mxu0 0.0
  %1214 = vmatprep.subr.mxu0 0.0
  %1215 = vmatpush1.msra.mxu0 0.0
  %1216 = vmatprep.subr.mxu0 0.0
  %1217 = vmatpush1.msra.mxu0 0.0
  %1218 = vmatprep.subr.mxu0 0.0
  %1219 = vmatpush1.msra.mxu0 0.0
  %1220 = vmatprep.subr.mxu0 0.0
  %1221 = vmatpush1.msra.mxu0 0.0
  %1222 = vmatprep.subr.mxu0 0.0
  %1223 = vmatpush1.msra.mxu0 0.0
  %1224 = vmatprep.subr.mxu0 0.0
  %1225 = vmatpush1.msra.mxu0 0.0
  %1226 = vmatprep.subr.mxu0 0.0
  %1227 = vmatpush1.msra.mxu0 0.0
  %1228 = vmatprep.subr.mxu0 0.0
  %1229 = vmatpush1.msra.mxu0 0.0
  %1230 = vmatprep.subr.mxu0 0.0
  %1231 = vmatpush1.msra.mxu0 0.0
  %1232 = vmatprep.subr.mxu0 0.0
  %1233 = vmatpush1.msra.mxu0 0.0
  %1234 = vmatprep.subr.mxu0 0.0
  %1235 = vmatpush1.msra.mxu0 0.0
  %1236 = vmatprep.subr.mxu0 0.0
  %1237 = vmatpush1.msra.mxu0 0.0
  %1238 = vmatprep.subr.mxu0 0.0
  %1239 = vmatpush1.msra.mxu0 0.0
  %1240 = vmatprep.subr.mxu0 0.0
  %1241 = vmatpush1.msra.mxu0 0.0
  %1242 = vmatprep.subr.mxu0 0.0
  %1243 = vmatpush1.msra.mxu0 0.0
  %1244 = vmatprep.subr.mxu0 0.0
  %1245 = vmatpush1.msra.mxu0 0.0
  %1246 = vmatprep.subr.mxu0 0.0
  %1247 = vmatpush1.msra.mxu0 0.0
  %1248 = vmatprep.subr.mxu0 0.0
  %1249 = vmatpush1.msra.mxu0 0.0
  %1250 = vmatprep.subr.mxu0 0.0
  %1251 = vmatpush1.msra.mxu0 0.0
  %1252 = vmatprep.mubr.f32.mxu0 0.0
  %1253 = vmatmul.mubr.f32.gmra.mrb[0].mxu0 %v1186
  %v1254 = vpop.f32.mrb[0].mxu0
  %v1255 = vadd.f32 %v24, %v1254
  %v1256 = vpop.f32.mrb[0].mxu0
  %1257 = vdwg.mxu0
  %v1258 = vadd.f32 %v1185, %v1255
  %v1259 = vsub.f32 0.0, %v1258
  %v1260 = vmul.f32 %v1259, 1.442695
  %v1261 = vpow.pop %v1260
  %v1262 = vadd.f32 %v1261, 1.0
  %v1263 = vrcp.pop %v1262
  %1265 = vrot.lane.b32.xlu0 %v1255, 64
  %v1266 = vpop.permute.xlu0 %1265
  %v1268 = vmul.f32 %v1263, %v1266
  %1270 = vrot.lane.b32.xlu0 %v1268, 64
  %v1271 = vpop.permute.xlu0 %1270
  %v1273 = vadd.f32 %v1185, %v1271
  %v1274 = vtanh.pop %v1273
  %v1275 = vsub.f32 1.0, %v1263
  %1277 = vrot.lane.b32.xlu0 %v1274, 96
  %v1278 = vpop.permute.xlu0 %1277
  %v1280 = vmul.f32 %v1275, %v1278
  %v1281 = vmul.f32 %v1263, %v1175
  %v1282 = vadd.f32 %v1280, %v1281
  %1284 = vrot.lane.b32.xlu0 %v1282, 96
  %v1285 = vpop.permute.xlu0 %1284
  %s1287 = scalar_lea.vmem %s3, 28
  %1288 = vst.msk [vmem:[%s1287] sm:$0xf] %vm537, %v1285
  %s1289 = scalar_lea.vmem %s3, 96
  %1290 = vst.msk [vmem:[%s1289] sm:$0xf] %vm540, %v1285
  %s1291 = scalar_lea.vmem %s0, 48
  %v1292 = vld [vmem:[%s1291] sm:$0xf]
  %v1293 = vsel %vm26, %v1285, 0
  %1295 = vmatprep.subr.mxu0 0.0
  %1296 = vmatpush1.msra.mxu0 %v14
  %1297 = vmatprep.subr.mxu0 0.0
  %1298 = vmatpush1.msra.mxu0 %v15
  %1299 = vmatprep.subr.mxu0 0.0
  %1300 = vmatpush1.msra.mxu0 %v16
  %1301 = vmatprep.subr.mxu0 0.0
  %1302 = vmatpush1.msra.mxu0 %v17
  %1303 = vmatprep.subr.mxu0 0.0
  %1304 = vmatpush1.msra.mxu0 0.0
  %1305 = vmatprep.subr.mxu0 0.0
  %1306 = vmatpush1.msra.mxu0 0.0
  %1307 = vmatprep.subr.mxu0 0.0
  %1308 = vmatpush1.msra.mxu0 0.0
  %1309 = vmatprep.subr.mxu0 0.0
  %1310 = vmatpush1.msra.mxu0 0.0
  %1311 = vmatprep.subr.mxu0 0.0
  %1312 = vmatpush1.msra.mxu0 0.0
  %1313 = vmatprep.subr.mxu0 0.0
  %1314 = vmatpush1.msra.mxu0 0.0
  %1315 = vmatprep.subr.mxu0 0.0
  %1316 = vmatpush1.msra.mxu0 0.0
  %1317 = vmatprep.subr.mxu0 0.0
  %1318 = vmatpush1.msra.mxu0 0.0
  %1319 = vmatprep.subr.mxu0 0.0
  %1320 = vmatpush1.msra.mxu0 0.0
  %1321 = vmatprep.subr.mxu0 0.0
  %1322 = vmatpush1.msra.mxu0 0.0
  %1323 = vmatprep.subr.mxu0 0.0
  %1324 = vmatpush1.msra.mxu0 0.0
  %1325 = vmatprep.subr.mxu0 0.0
  %1326 = vmatpush1.msra.mxu0 0.0
  %1327 = vmatprep.subr.mxu0 0.0
  %1328 = vmatpush1.msra.mxu0 0.0
  %1329 = vmatprep.subr.mxu0 0.0
  %1330 = vmatpush1.msra.mxu0 0.0
  %1331 = vmatprep.subr.mxu0 0.0
  %1332 = vmatpush1.msra.mxu0 0.0
  %1333 = vmatprep.subr.mxu0 0.0
  %1334 = vmatpush1.msra.mxu0 0.0
  %1335 = vmatprep.subr.mxu0 0.0
  %1336 = vmatpush1.msra.mxu0 0.0
  %1337 = vmatprep.subr.mxu0 0.0
  %1338 = vmatpush1.msra.mxu0 0.0
  %1339 = vmatprep.subr.mxu0 0.0
  %1340 = vmatpush1.msra.mxu0 0.0
  %1341 = vmatprep.subr.mxu0 0.0
  %1342 = vmatpush1.msra.mxu0 0.0
  %1343 = vmatprep.subr.mxu0 0.0
  %1344 = vmatpush1.msra.mxu0 0.0
  %1345 = vmatprep.subr.mxu0 0.0
  %1346 = vmatpush1.msra.mxu0 0.0
  %1347 = vmatprep.subr.mxu0 0.0
  %1348 = vmatpush1.msra.mxu0 0.0
  %1349 = vmatprep.subr.mxu0 0.0
  %1350 = vmatpush1.msra.mxu0 0.0
  %1351 = vmatprep.subr.mxu0 0.0
  %1352 = vmatpush1.msra.mxu0 0.0
  %1353 = vmatprep.subr.mxu0 0.0
  %1354 = vmatpush1.msra.mxu0 0.0
  %1355 = vmatprep.subr.mxu0 0.0
  %1356 = vmatpush1.msra.mxu0 0.0
  %1357 = vmatprep.subr.mxu0 0.0
  %1358 = vmatpush1.msra.mxu0 0.0
  %1359 = vmatprep.mubr.f32.mxu0 0.0
  %1360 = vmatmul.mubr.f32.gmra.mrb[0].mxu0 %v1293
  %v1361 = vpop.f32.mrb[0].mxu0
  %v1362 = vadd.f32 %v24, %v1361
  %v1363 = vpop.f32.mrb[0].mxu0
  %1364 = vdwg.mxu0
  %v1365 = vadd.f32 %v1292, %v1362
  %v1366 = vsub.f32 0.0, %v1365
  %v1367 = vmul.f32 %v1366, 1.442695
  %v1368 = vpow.pop %v1367
  %v1369 = vadd.f32 %v1368, 1.0
  %v1370 = vrcp.pop %v1369
  %1372 = vrot.lane.b32.xlu0 %v1362, 64
  %v1373 = vpop.permute.xlu0 %1372
  %v1375 = vmul.f32 %v1370, %v1373
  %1377 = vrot.lane.b32.xlu0 %v1375, 64
  %v1378 = vpop.permute.xlu0 %1377
  %v1380 = vadd.f32 %v1292, %v1378
  %v1381 = vtanh.pop %v1380
  %v1382 = vsub.f32 1.0, %v1370
  %1384 = vrot.lane.b32.xlu0 %v1381, 96
  %v1385 = vpop.permute.xlu0 %1384
  %v1387 = vmul.f32 %v1382, %v1385
  %v1388 = vmul.f32 %v1370, %v1282
  %v1389 = vadd.f32 %v1387, %v1388
  %1391 = vrot.lane.b32.xlu0 %v1389, 96
  %v1392 = vpop.permute.xlu0 %1391
  %s1394 = scalar_lea.vmem %s3, 32
  %1395 = vst.msk [vmem:[%s1394] sm:$0xf] %vm537, %v1392
  %s1396 = scalar_lea.vmem %s3, 92
  %1397 = vst.msk [vmem:[%s1396] sm:$0xf] %vm540, %v1392
  %s1398 = scalar_lea.vmem %s0, 52
  %v1399 = vld [vmem:[%s1398] sm:$0xf]
  %v1400 = vsel %vm26, %v1392, 0
  %1402 = vmatprep.subr.mxu0 0.0
  %1403 = vmatpush1.msra.mxu0 %v14
  %1404 = vmatprep.subr.mxu0 0.0
  %1405 = vmatpush1.msra.mxu0 %v15
  %1406 = vmatprep.subr.mxu0 0.0
  %1407 = vmatpush1.msra.mxu0 %v16
  %1408 = vmatprep.subr.mxu0 0.0
  %1409 = vmatpush1.msra.mxu0 %v17
  %1410 = vmatprep.subr.mxu0 0.0
  %1411 = vmatpush1.msra.mxu0 0.0
  %1412 = vmatprep.subr.mxu0 0.0
  %1413 = vmatpush1.msra.mxu0 0.0
  %1414 = vmatprep.subr.mxu0 0.0
  %1415 = vmatpush1.msra.mxu0 0.0
  %1416 = vmatprep.subr.mxu0 0.0
  %1417 = vmatpush1.msra.mxu0 0.0
  %1418 = vmatprep.subr.mxu0 0.0
  %1419 = vmatpush1.msra.mxu0 0.0
  %1420 = vmatprep.subr.mxu0 0.0
  %1421 = vmatpush1.msra.mxu0 0.0
  %1422 = vmatprep.subr.mxu0 0.0
  %1423 = vmatpush1.msra.mxu0 0.0
  %1424 = vmatprep.subr.mxu0 0.0
  %1425 = vmatpush1.msra.mxu0 0.0
  %1426 = vmatprep.subr.mxu0 0.0
  %1427 = vmatpush1.msra.mxu0 0.0
  %1428 = vmatprep.subr.mxu0 0.0
  %1429 = vmatpush1.msra.mxu0 0.0
  %1430 = vmatprep.subr.mxu0 0.0
  %1431 = vmatpush1.msra.mxu0 0.0
  %1432 = vmatprep.subr.mxu0 0.0
  %1433 = vmatpush1.msra.mxu0 0.0
  %1434 = vmatprep.subr.mxu0 0.0
  %1435 = vmatpush1.msra.mxu0 0.0
  %1436 = vmatprep.subr.mxu0 0.0
  %1437 = vmatpush1.msra.mxu0 0.0
  %1438 = vmatprep.subr.mxu0 0.0
  %1439 = vmatpush1.msra.mxu0 0.0
  %1440 = vmatprep.subr.mxu0 0.0
  %1441 = vmatpush1.msra.mxu0 0.0
  %1442 = vmatprep.subr.mxu0 0.0
  %1443 = vmatpush1.msra.mxu0 0.0
  %1444 = vmatprep.subr.mxu0 0.0
  %1445 = vmatpush1.msra.mxu0 0.0
  %1446 = vmatprep.subr.mxu0 0.0
  %1447 = vmatpush1.msra.mxu0 0.0
  %1448 = vmatprep.subr.mxu0 0.0
  %1449 = vmatpush1.msra.mxu0 0.0
  %1450 = vmatprep.subr.mxu0 0.0
  %1451 = vmatpush1.msra.mxu0 0.0
  %1452 = vmatprep.subr.mxu0 0.0
  %1453 = vmatpush1.msra.mxu0 0.0
  %1454 = vmatprep.subr.mxu0 0.0
  %1455 = vmatpush1.msra.mxu0 0.0
  %1456 = vmatprep.subr.mxu0 0.0
  %1457 = vmatpush1.msra.mxu0 0.0
  %1458 = vmatprep.subr.mxu0 0.0
  %1459 = vmatpush1.msra.mxu0 0.0
  %1460 = vmatprep.subr.mxu0 0.0
  %1461 = vmatpush1.msra.mxu0 0.0
  %1462 = vmatprep.subr.mxu0 0.0
  %1463 = vmatpush1.msra.mxu0 0.0
  %1464 = vmatprep.subr.mxu0 0.0
  %1465 = vmatpush1.msra.mxu0 0.0
  %1466 = vmatprep.mubr.f32.mxu0 0.0
  %1467 = vmatmul.mubr.f32.gmra.mrb[0].mxu0 %v1400
  %v1468 = vpop.f32.mrb[0].mxu0
  %v1469 = vadd.f32 %v24, %v1468
  %v1470 = vpop.f32.mrb[0].mxu0
  %1471 = vdwg.mxu0
  %v1472 = vadd.f32 %v1399, %v1469
  %v1473 = vsub.f32 0.0, %v1472
  %v1474 = vmul.f32 %v1473, 1.442695
  %v1475 = vpow.pop %v1474
  %v1476 = vadd.f32 %v1475, 1.0
  %v1477 = vrcp.pop %v1476
  %1479 = vrot.lane.b32.xlu0 %v1469, 64
  %v1480 = vpop.permute.xlu0 %1479
  %v1482 = vmul.f32 %v1477, %v1480
  %1484 = vrot.lane.b32.xlu0 %v1482, 64
  %v1485 = vpop.permute.xlu0 %1484
  %v1487 = vadd.f32 %v1399, %v1485
  %v1488 = vtanh.pop %v1487
  %v1489 = vsub.f32 1.0, %v1477
  %1491 = vrot.lane.b32.xlu0 %v1488, 96
  %v1492 = vpop.permute.xlu0 %1491
  %v1494 = vmul.f32 %v1489, %v1492
  %v1495 = vmul.f32 %v1477, %v1389
  %v1496 = vadd.f32 %v1494, %v1495
  %1498 = vrot.lane.b32.xlu0 %v1496, 96
  %v1499 = vpop.permute.xlu0 %1498
  %s1501 = scalar_lea.vmem %s3, 36
  %1502 = vst.msk [vmem:[%s1501] sm:$0xf] %vm537, %v1499
  %s1503 = scalar_lea.vmem %s3, 88
  %1504 = vst.msk [vmem:[%s1503] sm:$0xf] %vm540, %v1499
  %s1505 = scalar_lea.vmem %s0, 56
  %v1506 = vld [vmem:[%s1505] sm:$0xf]
  %v1507 = vsel %vm26, %v1499, 0
  %1509 = vmatprep.subr.mxu0 0.0
  %1510 = vmatpush1.msra.mxu0 %v14
  %1511 = vmatprep.subr.mxu0 0.0
  %1512 = vmatpush1.msra.mxu0 %v15
  %1513 = vmatprep.subr.mxu0 0.0
  %1514 = vmatpush1.msra.mxu0 %v16
  %1515 = vmatprep.subr.mxu0 0.0
  %1516 = vmatpush1.msra.mxu0 %v17
  %1517 = vmatprep.subr.mxu0 0.0
  %1518 = vmatpush1.msra.mxu0 0.0
  %1519 = vmatprep.subr.mxu0 0.0
  %1520 = vmatpush1.msra.mxu0 0.0
  %1521 = vmatprep.subr.mxu0 0.0
  %1522 = vmatpush1.msra.mxu0 0.0
  %1523 = vmatprep.subr.mxu0 0.0
  %1524 = vmatpush1.msra.mxu0 0.0
  %1525 = vmatprep.subr.mxu0 0.0
  %1526 = vmatpush1.msra.mxu0 0.0
  %1527 = vmatprep.subr.mxu0 0.0
  %1528 = vmatpush1.msra.mxu0 0.0
  %1529 = vmatprep.subr.mxu0 0.0
  %1530 = vmatpush1.msra.mxu0 0.0
  %1531 = vmatprep.subr.mxu0 0.0
  %1532 = vmatpush1.msra.mxu0 0.0
  %1533 = vmatprep.subr.mxu0 0.0
  %1534 = vmatpush1.msra.mxu0 0.0
  %1535 = vmatprep.subr.mxu0 0.0
  %1536 = vmatpush1.msra.mxu0 0.0
  %1537 = vmatprep.subr.mxu0 0.0
  %1538 = vmatpush1.msra.mxu0 0.0
  %1539 = vmatprep.subr.mxu0 0.0
  %1540 = vmatpush1.msra.mxu0 0.0
  %1541 = vmatprep.subr.mxu0 0.0
  %1542 = vmatpush1.msra.mxu0 0.0
  %1543 = vmatprep.subr.mxu0 0.0
  %1544 = vmatpush1.msra.mxu0 0.0
  %1545 = vmatprep.subr.mxu0 0.0
  %1546 = vmatpush1.msra.mxu0 0.0
  %1547 = vmatprep.subr.mxu0 0.0
  %1548 = vmatpush1.msra.mxu0 0.0
  %1549 = vmatprep.subr.mxu0 0.0
  %1550 = vmatpush1.msra.mxu0 0.0
  %1551 = vmatprep.subr.mxu0 0.0
  %1552 = vmatpush1.msra.mxu0 0.0
  %1553 = vmatprep.subr.mxu0 0.0
  %1554 = vmatpush1.msra.mxu0 0.0
  %1555 = vmatprep.subr.mxu0 0.0
  %1556 = vmatpush1.msra.mxu0 0.0
  %1557 = vmatprep.subr.mxu0 0.0
  %1558 = vmatpush1.msra.mxu0 0.0
  %1559 = vmatprep.subr.mxu0 0.0
  %1560 = vmatpush1.msra.mxu0 0.0
  %1561 = vmatprep.subr.mxu0 0.0
  %1562 = vmatpush1.msra.mxu0 0.0
  %1563 = vmatprep.subr.mxu0 0.0
  %1564 = vmatpush1.msra.mxu0 0.0
  %1565 = vmatprep.subr.mxu0 0.0
  %1566 = vmatpush1.msra.mxu0 0.0
  %1567 = vmatprep.subr.mxu0 0.0
  %1568 = vmatpush1.msra.mxu0 0.0
  %1569 = vmatprep.subr.mxu0 0.0
  %1570 = vmatpush1.msra.mxu0 0.0
  %1571 = vmatprep.subr.mxu0 0.0
  %1572 = vmatpush1.msra.mxu0 0.0
  %1573 = vmatprep.mubr.f32.mxu0 0.0
  %1574 = vmatmul.mubr.f32.gmra.mrb[0].mxu0 %v1507
  %v1575 = vpop.f32.mrb[0].mxu0
  %v1576 = vadd.f32 %v24, %v1575
  %v1577 = vpop.f32.mrb[0].mxu0
  %1578 = vdwg.mxu0
  %v1579 = vadd.f32 %v1506, %v1576
  %v1580 = vsub.f32 0.0, %v1579
  %v1581 = vmul.f32 %v1580, 1.442695
  %v1582 = vpow.pop %v1581
  %v1583 = vadd.f32 %v1582, 1.0
  %v1584 = vrcp.pop %v1583
  %1586 = vrot.lane.b32.xlu0 %v1576, 64
  %v1587 = vpop.permute.xlu0 %1586
  %v1589 = vmul.f32 %v1584, %v1587
  %1591 = vrot.lane.b32.xlu0 %v1589, 64
  %v1592 = vpop.permute.xlu0 %1591
  %v1594 = vadd.f32 %v1506, %v1592
  %v1595 = vtanh.pop %v1594
  %v1596 = vsub.f32 1.0, %v1584
  %1598 = vrot.lane.b32.xlu0 %v1595, 96
  %v1599 = vpop.permute.xlu0 %1598
  %v1601 = vmul.f32 %v1596, %v1599
  %v1602 = vmul.f32 %v1584, %v1496
  %v1603 = vadd.f32 %v1601, %v1602
  %1605 = vrot.lane.b32.xlu0 %v1603, 96
  %v1606 = vpop.permute.xlu0 %1605
  %s1608 = scalar_lea.vmem %s3, 40
  %1609 = vst.msk [vmem:[%s1608] sm:$0xf] %vm537, %v1606
  %s1610 = scalar_lea.vmem %s3, 84
  %1611 = vst.msk [vmem:[%s1610] sm:$0xf] %vm540, %v1606
  %s1612 = scalar_lea.vmem %s0, 60
  %v1613 = vld [vmem:[%s1612] sm:$0xf]
  %v1614 = vsel %vm26, %v1606, 0
  %1616 = vmatprep.subr.mxu0 0.0
  %1617 = vmatpush1.msra.mxu0 %v14
  %1618 = vmatprep.subr.mxu0 0.0
  %1619 = vmatpush1.msra.mxu0 %v15
  %1620 = vmatprep.subr.mxu0 0.0
  %1621 = vmatpush1.msra.mxu0 %v16
  %1622 = vmatprep.subr.mxu0 0.0
  %1623 = vmatpush1.msra.mxu0 %v17
  %1624 = vmatprep.subr.mxu0 0.0
  %1625 = vmatpush1.msra.mxu0 0.0
  %1626 = vmatprep.subr.mxu0 0.0
  %1627 = vmatpush1.msra.mxu0 0.0
  %1628 = vmatprep.subr.mxu0 0.0
  %1629 = vmatpush1.msra.mxu0 0.0
  %1630 = vmatprep.subr.mxu0 0.0
  %1631 = vmatpush1.msra.mxu0 0.0
  %1632 = vmatprep.subr.mxu0 0.0
  %1633 = vmatpush1.msra.mxu0 0.0
  %1634 = vmatprep.subr.mxu0 0.0
  %1635 = vmatpush1.msra.mxu0 0.0
  %1636 = vmatprep.subr.mxu0 0.0
  %1637 = vmatpush1.msra.mxu0 0.0
  %1638 = vmatprep.subr.mxu0 0.0
  %1639 = vmatpush1.msra.mxu0 0.0
  %1640 = vmatprep.subr.mxu0 0.0
  %1641 = vmatpush1.msra.mxu0 0.0
  %1642 = vmatprep.subr.mxu0 0.0
  %1643 = vmatpush1.msra.mxu0 0.0
  %1644 = vmatprep.subr.mxu0 0.0
  %1645 = vmatpush1.msra.mxu0 0.0
  %1646 = vmatprep.subr.mxu0 0.0
  %1647 = vmatpush1.msra.mxu0 0.0
  %1648 = vmatprep.subr.mxu0 0.0
  %1649 = vmatpush1.msra.mxu0 0.0
  %1650 = vmatprep.subr.mxu0 0.0
  %1651 = vmatpush1.msra.mxu0 0.0
  %1652 = vmatprep.subr.mxu0 0.0
  %1653 = vmatpush1.msra.mxu0 0.0
  %1654 = vmatprep.subr.mxu0 0.0
  %1655 = vmatpush1.msra.mxu0 0.0
  %1656 = vmatprep.subr.mxu0 0.0
  %1657 = vmatpush1.msra.mxu0 0.0
  %1658 = vmatprep.subr.mxu0 0.0
  %1659 = vmatpush1.msra.mxu0 0.0
  %1660 = vmatprep.subr.mxu0 0.0
  %1661 = vmatpush1.msra.mxu0 0.0
  %1662 = vmatprep.subr.mxu0 0.0
  %1663 = vmatpush1.msra.mxu0 0.0
  %1664 = vmatprep.subr.mxu0 0.0
  %1665 = vmatpush1.msra.mxu0 0.0
  %1666 = vmatprep.subr.mxu0 0.0
  %1667 = vmatpush1.msra.mxu0 0.0
  %1668 = vmatprep.subr.mxu0 0.0
  %1669 = vmatpush1.msra.mxu0 0.0
  %1670 = vmatprep.subr.mxu0 0.0
  %1671 = vmatpush1.msra.mxu0 0.0
  %1672 = vmatprep.subr.mxu0 0.0
  %1673 = vmatpush1.msra.mxu0 0.0
  %1674 = vmatprep.subr.mxu0 0.0
  %1675 = vmatpush1.msra.mxu0 0.0
  %1676 = vmatprep.subr.mxu0 0.0
  %1677 = vmatpush1.msra.mxu0 0.0
  %1678 = vmatprep.subr.mxu0 0.0
  %1679 = vmatpush1.msra.mxu0 0.0
  %1680 = vmatprep.mubr.f32.mxu0 0.0
  %1681 = vmatmul.mubr.f32.gmra.mrb[0].mxu0 %v1614
  %v1682 = vpop.f32.mrb[0].mxu0
  %v1683 = vadd.f32 %v24, %v1682
  %v1684 = vpop.f32.mrb[0].mxu0
  %1685 = vdwg.mxu0
  %v1686 = vadd.f32 %v1613, %v1683
  %v1687 = vsub.f32 0.0, %v1686
  %v1688 = vmul.f32 %v1687, 1.442695
  %v1689 = vpow.pop %v1688
  %v1690 = vadd.f32 %v1689, 1.0
  %v1691 = vrcp.pop %v1690
  %1693 = vrot.lane.b32.xlu0 %v1683, 64
  %v1694 = vpop.permute.xlu0 %1693
  %v1696 = vmul.f32 %v1691, %v1694
  %1698 = vrot.lane.b32.xlu0 %v1696, 64
  %v1699 = vpop.permute.xlu0 %1698
  %v1701 = vadd.f32 %v1613, %v1699
  %v1702 = vtanh.pop %v1701
  %v1703 = vsub.f32 1.0, %v1691
  %1705 = vrot.lane.b32.xlu0 %v1702, 96
  %v1706 = vpop.permute.xlu0 %1705
  %v1708 = vmul.f32 %v1703, %v1706
  %v1709 = vmul.f32 %v1691, %v1603
  %v1710 = vadd.f32 %v1708, %v1709
  %1712 = vrot.lane.b32.xlu0 %v1710, 96
  %v1713 = vpop.permute.xlu0 %1712
  %s1715 = scalar_lea.vmem %s3, 44
  %1716 = vst.msk [vmem:[%s1715] sm:$0xf] %vm537, %v1713
  %s1717 = scalar_lea.vmem %s3, 80
  %1718 = vst.msk [vmem:[%s1717] sm:$0xf] %vm540, %v1713
  %s1719 = scalar_lea.vmem %s0, 64
  %v1720 = vld [vmem:[%s1719] sm:$0xf]
  %v1721 = vsel %vm26, %v1713, 0
  %1723 = vmatprep.subr.mxu0 0.0
  %1724 = vmatpush1.msra.mxu0 %v14
  %1725 = vmatprep.subr.mxu0 0.0
  %1726 = vmatpush1.msra.mxu0 %v15
  %1727 = vmatprep.subr.mxu0 0.0
  %1728 = vmatpush1.msra.mxu0 %v16
  %1729 = vmatprep.subr.mxu0 0.0
  %1730 = vmatpush1.msra.mxu0 %v17
  %1731 = vmatprep.subr.mxu0 0.0
  %1732 = vmatpush1.msra.mxu0 0.0
  %1733 = vmatprep.subr.mxu0 0.0
  %1734 = vmatpush1.msra.mxu0 0.0
  %1735 = vmatprep.subr.mxu0 0.0
  %1736 = vmatpush1.msra.mxu0 0.0
  %1737 = vmatprep.subr.mxu0 0.0
  %1738 = vmatpush1.msra.mxu0 0.0
  %1739 = vmatprep.subr.mxu0 0.0
  %1740 = vmatpush1.msra.mxu0 0.0
  %1741 = vmatprep.subr.mxu0 0.0
  %1742 = vmatpush1.msra.mxu0 0.0
  %1743 = vmatprep.subr.mxu0 0.0
  %1744 = vmatpush1.msra.mxu0 0.0
  %1745 = vmatprep.subr.mxu0 0.0
  %1746 = vmatpush1.msra.mxu0 0.0
  %1747 = vmatprep.subr.mxu0 0.0
  %1748 = vmatpush1.msra.mxu0 0.0
  %1749 = vmatprep.subr.mxu0 0.0
  %1750 = vmatpush1.msra.mxu0 0.0
  %1751 = vmatprep.subr.mxu0 0.0
  %1752 = vmatpush1.msra.mxu0 0.0
  %1753 = vmatprep.subr.mxu0 0.0
  %1754 = vmatpush1.msra.mxu0 0.0
  %1755 = vmatprep.subr.mxu0 0.0
  %1756 = vmatpush1.msra.mxu0 0.0
  %1757 = vmatprep.subr.mxu0 0.0
  %1758 = vmatpush1.msra.mxu0 0.0
  %1759 = vmatprep.subr.mxu0 0.0
  %1760 = vmatpush1.msra.mxu0 0.0
  %1761 = vmatprep.subr.mxu0 0.0
  %1762 = vmatpush1.msra.mxu0 0.0
  %1763 = vmatprep.subr.mxu0 0.0
  %1764 = vmatpush1.msra.mxu0 0.0
  %1765 = vmatprep.subr.mxu0 0.0
  %1766 = vmatpush1.msra.mxu0 0.0
  %1767 = vmatprep.subr.mxu0 0.0
  %1768 = vmatpush1.msra.mxu0 0.0
  %1769 = vmatprep.subr.mxu0 0.0
  %1770 = vmatpush1.msra.mxu0 0.0
  %1771 = vmatprep.subr.mxu0 0.0
  %1772 = vmatpush1.msra.mxu0 0.0
  %1773 = vmatprep.subr.mxu0 0.0
  %1774 = vmatpush1.msra.mxu0 0.0
  %1775 = vmatprep.subr.mxu0 0.0
  %1776 = vmatpush1.msra.mxu0 0.0
  %1777 = vmatprep.subr.mxu0 0.0
  %1778 = vmatpush1.msra.mxu0 0.0
  %1779 = vmatprep.subr.mxu0 0.0
  %1780 = vmatpush1.msra.mxu0 0.0
  %1781 = vmatprep.subr.mxu0 0.0
  %1782 = vmatpush1.msra.mxu0 0.0
  %1783 = vmatprep.subr.mxu0 0.0
  %1784 = vmatpush1.msra.mxu0 0.0
  %1785 = vmatprep.subr.mxu0 0.0
  %1786 = vmatpush1.msra.mxu0 0.0
  %1787 = vmatprep.mubr.f32.mxu0 0.0
  %1788 = vmatmul.mubr.f32.gmra.mrb[0].mxu0 %v1721
  %v1789 = vpop.f32.mrb[0].mxu0
  %v1790 = vadd.f32 %v24, %v1789
  %v1791 = vpop.f32.mrb[0].mxu0
  %1792 = vdwg.mxu0
  %v1793 = vadd.f32 %v1720, %v1790
  %v1794 = vsub.f32 0.0, %v1793
  %v1795 = vmul.f32 %v1794, 1.442695
  %v1796 = vpow.pop %v1795
  %v1797 = vadd.f32 %v1796, 1.0
  %v1798 = vrcp.pop %v1797
  %1800 = vrot.lane.b32.xlu0 %v1790, 64
  %v1801 = vpop.permute.xlu0 %1800
  %v1803 = vmul.f32 %v1798, %v1801
  %1805 = vrot.lane.b32.xlu0 %v1803, 64
  %v1806 = vpop.permute.xlu0 %1805
  %v1808 = vadd.f32 %v1720, %v1806
  %v1809 = vtanh.pop %v1808
  %v1810 = vsub.f32 1.0, %v1798
  %1812 = vrot.lane.b32.xlu0 %v1809, 96
  %v1813 = vpop.permute.xlu0 %1812
  %v1815 = vmul.f32 %v1810, %v1813
  %v1816 = vmul.f32 %v1798, %v1710
  %v1817 = vadd.f32 %v1815, %v1816
  %1819 = vrot.lane.b32.xlu0 %v1817, 96
  %v1820 = vpop.permute.xlu0 %1819
  %s1822 = scalar_lea.vmem %s3, 48
  %1823 = vst.msk [vmem:[%s1822] sm:$0xf] %vm537, %v1820
  %s1824 = scalar_lea.vmem %s3, 76
  %1825 = vst.msk [vmem:[%s1824] sm:$0xf] %vm540, %v1820
  %s1826 = scalar_lea.vmem %s0, 68
  %v1827 = vld [vmem:[%s1826] sm:$0xf]
  %v1828 = vsel %vm26, %v1820, 0
  %1830 = vmatprep.subr.mxu0 0.0
  %1831 = vmatpush1.msra.mxu0 %v14
  %1832 = vmatprep.subr.mxu0 0.0
  %1833 = vmatpush1.msra.mxu0 %v15
  %1834 = vmatprep.subr.mxu0 0.0
  %1835 = vmatpush1.msra.mxu0 %v16
  %1836 = vmatprep.subr.mxu0 0.0
  %1837 = vmatpush1.msra.mxu0 %v17
  %1838 = vmatprep.subr.mxu0 0.0
  %1839 = vmatpush1.msra.mxu0 0.0
  %1840 = vmatprep.subr.mxu0 0.0
  %1841 = vmatpush1.msra.mxu0 0.0
  %1842 = vmatprep.subr.mxu0 0.0
  %1843 = vmatpush1.msra.mxu0 0.0
  %1844 = vmatprep.subr.mxu0 0.0
  %1845 = vmatpush1.msra.mxu0 0.0
  %1846 = vmatprep.subr.mxu0 0.0
  %1847 = vmatpush1.msra.mxu0 0.0
  %1848 = vmatprep.subr.mxu0 0.0
  %1849 = vmatpush1.msra.mxu0 0.0
  %1850 = vmatprep.subr.mxu0 0.0
  %1851 = vmatpush1.msra.mxu0 0.0
  %1852 = vmatprep.subr.mxu0 0.0
  %1853 = vmatpush1.msra.mxu0 0.0
  %1854 = vmatprep.subr.mxu0 0.0
  %1855 = vmatpush1.msra.mxu0 0.0
  %1856 = vmatprep.subr.mxu0 0.0
  %1857 = vmatpush1.msra.mxu0 0.0
  %1858 = vmatprep.subr.mxu0 0.0
  %1859 = vmatpush1.msra.mxu0 0.0
  %1860 = vmatprep.subr.mxu0 0.0
  %1861 = vmatpush1.msra.mxu0 0.0
  %1862 = vmatprep.subr.mxu0 0.0
  %1863 = vmatpush1.msra.mxu0 0.0
  %1864 = vmatprep.subr.mxu0 0.0
  %1865 = vmatpush1.msra.mxu0 0.0
  %1866 = vmatprep.subr.mxu0 0.0
  %1867 = vmatpush1.msra.mxu0 0.0
  %1868 = vmatprep.subr.mxu0 0.0
  %1869 = vmatpush1.msra.mxu0 0.0
  %1870 = vmatprep.subr.mxu0 0.0
  %1871 = vmatpush1.msra.mxu0 0.0
  %1872 = vmatprep.subr.mxu0 0.0
  %1873 = vmatpush1.msra.mxu0 0.0
  %1874 = vmatprep.subr.mxu0 0.0
  %1875 = vmatpush1.msra.mxu0 0.0
  %1876 = vmatprep.subr.mxu0 0.0
  %1877 = vmatpush1.msra.mxu0 0.0
  %1878 = vmatprep.subr.mxu0 0.0
  %1879 = vmatpush1.msra.mxu0 0.0
  %1880 = vmatprep.subr.mxu0 0.0
  %1881 = vmatpush1.msra.mxu0 0.0
  %1882 = vmatprep.subr.mxu0 0.0
  %1883 = vmatpush1.msra.mxu0 0.0
  %1884 = vmatprep.subr.mxu0 0.0
  %1885 = vmatpush1.msra.mxu0 0.0
  %1886 = vmatprep.subr.mxu0 0.0
  %1887 = vmatpush1.msra.mxu0 0.0
  %1888 = vmatprep.subr.mxu0 0.0
  %1889 = vmatpush1.msra.mxu0 0.0
  %1890 = vmatprep.subr.mxu0 0.0
  %1891 = vmatpush1.msra.mxu0 0.0
  %1892 = vmatprep.subr.mxu0 0.0
  %1893 = vmatpush1.msra.mxu0 0.0
  %1894 = vmatprep.mubr.f32.mxu0 0.0
  %1895 = vmatmul.mubr.f32.gmra.mrb[0].mxu0 %v1828
  %v1896 = vpop.f32.mrb[0].mxu0
  %v1897 = vadd.f32 %v24, %v1896
  %v1898 = vpop.f32.mrb[0].mxu0
  %1899 = vdwg.mxu0
  %v1900 = vadd.f32 %v1827, %v1897
  %v1901 = vsub.f32 0.0, %v1900
  %v1902 = vmul.f32 %v1901, 1.442695
  %v1903 = vpow.pop %v1902
  %v1904 = vadd.f32 %v1903, 1.0
  %v1905 = vrcp.pop %v1904
  %1907 = vrot.lane.b32.xlu0 %v1897, 64
  %v1908 = vpop.permute.xlu0 %1907
  %v1910 = vmul.f32 %v1905, %v1908
  %1912 = vrot.lane.b32.xlu0 %v1910, 64
  %v1913 = vpop.permute.xlu0 %1912
  %v1915 = vadd.f32 %v1827, %v1913
  %v1916 = vtanh.pop %v1915
  %v1917 = vsub.f32 1.0, %v1905
  %1919 = vrot.lane.b32.xlu0 %v1916, 96
  %v1920 = vpop.permute.xlu0 %1919
  %v1922 = vmul.f32 %v1917, %v1920
  %v1923 = vmul.f32 %v1905, %v1817
  %v1924 = vadd.f32 %v1922, %v1923
  %1926 = vrot.lane.b32.xlu0 %v1924, 96
  %v1927 = vpop.permute.xlu0 %1926
  %s1929 = scalar_lea.vmem %s3, 52
  %1930 = vst.msk [vmem:[%s1929] sm:$0xf] %vm537, %v1927
  %s1931 = scalar_lea.vmem %s3, 72
  %1932 = vst.msk [vmem:[%s1931] sm:$0xf] %vm540, %v1927
  %s1933 = scalar_lea.vmem %s0, 72
  %v1934 = vld [vmem:[%s1933] sm:$0xf]
  %v1935 = vsel %vm26, %v1927, 0
  %1937 = vmatprep.subr.mxu0 0.0
  %1938 = vmatpush1.msra.mxu0 %v14
  %1939 = vmatprep.subr.mxu0 0.0
  %1940 = vmatpush1.msra.mxu0 %v15
  %1941 = vmatprep.subr.mxu0 0.0
  %1942 = vmatpush1.msra.mxu0 %v16
  %1943 = vmatprep.subr.mxu0 0.0
  %1944 = vmatpush1.msra.mxu0 %v17
  %1945 = vmatprep.subr.mxu0 0.0
  %1946 = vmatpush1.msra.mxu0 0.0
  %1947 = vmatprep.subr.mxu0 0.0
  %1948 = vmatpush1.msra.mxu0 0.0
  %1949 = vmatprep.subr.mxu0 0.0
  %1950 = vmatpush1.msra.mxu0 0.0
  %1951 = vmatprep.subr.mxu0 0.0
  %1952 = vmatpush1.msra.mxu0 0.0
  %1953 = vmatprep.subr.mxu0 0.0
  %1954 = vmatpush1.msra.mxu0 0.0
  %1955 = vmatprep.subr.mxu0 0.0
  %1956 = vmatpush1.msra.mxu0 0.0
  %1957 = vmatprep.subr.mxu0 0.0
  %1958 = vmatpush1.msra.mxu0 0.0
  %1959 = vmatprep.subr.mxu0 0.0
  %1960 = vmatpush1.msra.mxu0 0.0
  %1961 = vmatprep.subr.mxu0 0.0
  %1962 = vmatpush1.msra.mxu0 0.0
  %1963 = vmatprep.subr.mxu0 0.0
  %1964 = vmatpush1.msra.mxu0 0.0
  %1965 = vmatprep.subr.mxu0 0.0
  %1966 = vmatpush1.msra.mxu0 0.0
  %1967 = vmatprep.subr.mxu0 0.0
  %1968 = vmatpush1.msra.mxu0 0.0
  %1969 = vmatprep.subr.mxu0 0.0
  %1970 = vmatpush1.msra.mxu0 0.0
  %1971 = vmatprep.subr.mxu0 0.0
  %1972 = vmatpush1.msra.mxu0 0.0
  %1973 = vmatprep.subr.mxu0 0.0
  %1974 = vmatpush1.msra.mxu0 0.0
  %1975 = vmatprep.subr.mxu0 0.0
  %1976 = vmatpush1.msra.mxu0 0.0
  %1977 = vmatprep.subr.mxu0 0.0
  %1978 = vmatpush1.msra.mxu0 0.0
  %1979 = vmatprep.subr.mxu0 0.0
  %1980 = vmatpush1.msra.mxu0 0.0
  %1981 = vmatprep.subr.mxu0 0.0
  %1982 = vmatpush1.msra.mxu0 0.0
  %1983 = vmatprep.subr.mxu0 0.0
  %1984 = vmatpush1.msra.mxu0 0.0
  %1985 = vmatprep.subr.mxu0 0.0
  %1986 = vmatpush1.msra.mxu0 0.0
  %1987 = vmatprep.subr.mxu0 0.0
  %1988 = vmatpush1.msra.mxu0 0.0
  %1989 = vmatprep.subr.mxu0 0.0
  %1990 = vmatpush1.msra.mxu0 0.0
  %1991 = vmatprep.subr.mxu0 0.0
  %1992 = vmatpush1.msra.mxu0 0.0
  %1993 = vmatprep.subr.mxu0 0.0
  %1994 = vmatpush1.msra.mxu0 0.0
  %1995 = vmatprep.subr.mxu0 0.0
  %1996 = vmatpush1.msra.mxu0 0.0
  %1997 = vmatprep.subr.mxu0 0.0
  %1998 = vmatpush1.msra.mxu0 0.0
  %1999 = vmatprep.subr.mxu0 0.0
  %2000 = vmatpush1.msra.mxu0 0.0
  %2001 = vmatprep.mubr.f32.mxu0 0.0
  %2002 = vmatmul.mubr.f32.gmra.mrb[0].mxu0 %v1935
  %v2003 = vpop.f32.mrb[0].mxu0
  %v2004 = vadd.f32 %v24, %v2003
  %v2005 = vpop.f32.mrb[0].mxu0
  %2006 = vdwg.mxu0
  %v2007 = vadd.f32 %v1934, %v2004
  %v2008 = vsub.f32 0.0, %v2007
  %v2009 = vmul.f32 %v2008, 1.442695
  %v2010 = vpow.pop %v2009
  %v2011 = vadd.f32 %v2010, 1.0
  %v2012 = vrcp.pop %v2011
  %2014 = vrot.lane.b32.xlu0 %v2004, 64
  %v2015 = vpop.permute.xlu0 %2014
  %v2017 = vmul.f32 %v2012, %v2015
  %2019 = vrot.lane.b32.xlu0 %v2017, 64
  %v2020 = vpop.permute.xlu0 %2019
  %v2022 = vadd.f32 %v1934, %v2020
  %v2023 = vtanh.pop %v2022
  %v2024 = vsub.f32 1.0, %v2012
  %2026 = vrot.lane.b32.xlu0 %v2023, 96
  %v2027 = vpop.permute.xlu0 %2026
  %v2029 = vmul.f32 %v2024, %v2027
  %v2030 = vmul.f32 %v2012, %v1924
  %v2031 = vadd.f32 %v2029, %v2030
  %2033 = vrot.lane.b32.xlu0 %v2031, 96
  %v2034 = vpop.permute.xlu0 %2033
  %s2036 = scalar_lea.vmem %s3, 56
  %2037 = vst.msk [vmem:[%s2036] sm:$0xf] %vm537, %v2034
  %s2038 = scalar_lea.vmem %s3, 68
  %2039 = vst.msk [vmem:[%s2038] sm:$0xf] %vm540, %v2034
  %s2040 = scalar_lea.vmem %s0, 76
  %v2041 = vld [vmem:[%s2040] sm:$0xf]
  %v2042 = vsel %vm26, %v2034, 0
  %2044 = vmatprep.subr.mxu0 0.0
  %2045 = vmatpush1.msra.mxu0 %v14
  %2046 = vmatprep.subr.mxu0 0.0
  %2047 = vmatpush1.msra.mxu0 %v15
  %2048 = vmatprep.subr.mxu0 0.0
  %2049 = vmatpush1.msra.mxu0 %v16
  %2050 = vmatprep.subr.mxu0 0.0
  %2051 = vmatpush1.msra.mxu0 %v17
  %2052 = vmatprep.subr.mxu0 0.0
  %2053 = vmatpush1.msra.mxu0 0.0
  %2054 = vmatprep.subr.mxu0 0.0
  %2055 = vmatpush1.msra.mxu0 0.0
  %2056 = vmatprep.subr.mxu0 0.0
  %2057 = vmatpush1.msra.mxu0 0.0
  %2058 = vmatprep.subr.mxu0 0.0
  %2059 = vmatpush1.msra.mxu0 0.0
  %2060 = vmatprep.subr.mxu0 0.0
  %2061 = vmatpush1.msra.mxu0 0.0
  %2062 = vmatprep.subr.mxu0 0.0
  %2063 = vmatpush1.msra.mxu0 0.0
  %2064 = vmatprep.subr.mxu0 0.0
  %2065 = vmatpush1.msra.mxu0 0.0
  %2066 = vmatprep.subr.mxu0 0.0
  %2067 = vmatpush1.msra.mxu0 0.0
  %2068 = vmatprep.subr.mxu0 0.0
  %2069 = vmatpush1.msra.mxu0 0.0
  %2070 = vmatprep.subr.mxu0 0.0
  %2071 = vmatpush1.msra.mxu0 0.0
  %2072 = vmatprep.subr.mxu0 0.0
  %2073 = vmatpush1.msra.mxu0 0.0
  %2074 = vmatprep.subr.mxu0 0.0
  %2075 = vmatpush1.msra.mxu0 0.0
  %2076 = vmatprep.subr.mxu0 0.0
  %2077 = vmatpush1.msra.mxu0 0.0
  %2078 = vmatprep.subr.mxu0 0.0
  %2079 = vmatpush1.msra.mxu0 0.0
  %2080 = vmatprep.subr.mxu0 0.0
  %2081 = vmatpush1.msra.mxu0 0.0
  %2082 = vmatprep.subr.mxu0 0.0
  %2083 = vmatpush1.msra.mxu0 0.0
  %2084 = vmatprep.subr.mxu0 0.0
  %2085 = vmatpush1.msra.mxu0 0.0
  %2086 = vmatprep.subr.mxu0 0.0
  %2087 = vmatpush1.msra.mxu0 0.0
  %2088 = vmatprep.subr.mxu0 0.0
  %2089 = vmatpush1.msra.mxu0 0.0
  %2090 = vmatprep.subr.mxu0 0.0
  %2091 = vmatpush1.msra.mxu0 0.0
  %2092 = vmatprep.subr.mxu0 0.0
  %2093 = vmatpush1.msra.mxu0 0.0
  %2094 = vmatprep.subr.mxu0 0.0
  %2095 = vmatpush1.msra.mxu0 0.0
  %2096 = vmatprep.subr.mxu0 0.0
  %2097 = vmatpush1.msra.mxu0 0.0
  %2098 = vmatprep.subr.mxu0 0.0
  %2099 = vmatpush1.msra.mxu0 0.0
  %2100 = vmatprep.subr.mxu0 0.0
  %2101 = vmatpush1.msra.mxu0 0.0
  %2102 = vmatprep.subr.mxu0 0.0
  %2103 = vmatpush1.msra.mxu0 0.0
  %2104 = vmatprep.subr.mxu0 0.0
  %2105 = vmatpush1.msra.mxu0 0.0
  %2106 = vmatprep.subr.mxu0 0.0
  %2107 = vmatpush1.msra.mxu0 0.0
  %2108 = vmatprep.mubr.f32.mxu0 0.0
  %2109 = vmatmul.mubr.f32.gmra.mrb[0].mxu0 %v2042
  %v2110 = vpop.f32.mrb[0].mxu0
  %v2111 = vadd.f32 %v24, %v2110
  %v2112 = vpop.f32.mrb[0].mxu0
  %2113 = vdwg.mxu0
  %v2114 = vadd.f32 %v2041, %v2111
  %v2115 = vsub.f32 0.0, %v2114
  %v2116 = vmul.f32 %v2115, 1.442695
  %v2117 = vpow.pop %v2116
  %v2118 = vadd.f32 %v2117, 1.0
  %v2119 = vrcp.pop %v2118
  %2121 = vrot.lane.b32.xlu0 %v2111, 64
  %v2122 = vpop.permute.xlu0 %2121
  %v2124 = vmul.f32 %v2119, %v2122
  %2126 = vrot.lane.b32.xlu0 %v2124, 64
  %v2127 = vpop.permute.xlu0 %2126
  %v2129 = vadd.f32 %v2041, %v2127
  %v2130 = vtanh.pop %v2129
  %v2131 = vsub.f32 1.0, %v2119
  %2133 = vrot.lane.b32.xlu0 %v2130, 96
  %v2134 = vpop.permute.xlu0 %2133
  %v2136 = vmul.f32 %v2131, %v2134
  %v2137 = vmul.f32 %v2119, %v2031
  %v2138 = vadd.f32 %v2136, %v2137
  %2140 = vrot.lane.b32.xlu0 %v2138, 96
  %v2141 = vpop.permute.xlu0 %2140
  %s2143 = scalar_lea.vmem %s3, 60
  %2144 = vst.msk [vmem:[%s2143] sm:$0xf] %vm537, %v2141
  %s2145 = scalar_lea.vmem %s3, 64
  %2146 = vst.msk [vmem:[%s2145] sm:$0xf] %vm540, %v2141
  %s2147 = scalar_lea.vmem %s0, 80
  %v2148 = vld [vmem:[%s2147] sm:$0xf]
  %v2149 = vsel %vm26, %v2141, 0
  %2151 = vmatprep.subr.mxu0 0.0
  %2152 = vmatpush1.msra.mxu0 %v14
  %2153 = vmatprep.subr.mxu0 0.0
  %2154 = vmatpush1.msra.mxu0 %v15
  %2155 = vmatprep.subr.mxu0 0.0
  %2156 = vmatpush1.msra.mxu0 %v16
  %2157 = vmatprep.subr.mxu0 0.0
  %2158 = vmatpush1.msra.mxu0 %v17
  %2159 = vmatprep.subr.mxu0 0.0
  %2160 = vmatpush1.msra.mxu0 0.0
  %2161 = vmatprep.subr.mxu0 0.0
  %2162 = vmatpush1.msra.mxu0 0.0
  %2163 = vmatprep.subr.mxu0 0.0
  %2164 = vmatpush1.msra.mxu0 0.0
  %2165 = vmatprep.subr.mxu0 0.0
  %2166 = vmatpush1.msra.mxu0 0.0
  %2167 = vmatprep.subr.mxu0 0.0
  %2168 = vmatpush1.msra.mxu0 0.0
  %2169 = vmatprep.subr.mxu0 0.0
  %2170 = vmatpush1.msra.mxu0 0.0
  %2171 = vmatprep.subr.mxu0 0.0
  %2172 = vmatpush1.msra.mxu0 0.0
  %2173 = vmatprep.subr.mxu0 0.0
  %2174 = vmatpush1.msra.mxu0 0.0
  %2175 = vmatprep.subr.mxu0 0.0
  %2176 = vmatpush1.msra.mxu0 0.0
  %2177 = vmatprep.subr.mxu0 0.0
  %2178 = vmatpush1.msra.mxu0 0.0
  %2179 = vmatprep.subr.mxu0 0.0
  %2180 = vmatpush1.msra.mxu0 0.0
  %2181 = vmatprep.subr.mxu0 0.0
  %2182 = vmatpush1.msra.mxu0 0.0
  %2183 = vmatprep.subr.mxu0 0.0
  %2184 = vmatpush1.msra.mxu0 0.0
  %2185 = vmatprep.subr.mxu0 0.0
  %2186 = vmatpush1.msra.mxu0 0.0
  %2187 = vmatprep.subr.mxu0 0.0
  %2188 = vmatpush1.msra.mxu0 0.0
  %2189 = vmatprep.subr.mxu0 0.0
  %2190 = vmatpush1.msra.mxu0 0.0
  %2191 = vmatprep.subr.mxu0 0.0
  %2192 = vmatpush1.msra.mxu0 0.0
  %2193 = vmatprep.subr.mxu0 0.0
  %2194 = vmatpush1.msra.mxu0 0.0
  %2195 = vmatprep.subr.mxu0 0.0
  %2196 = vmatpush1.msra.mxu0 0.0
  %2197 = vmatprep.subr.mxu0 0.0
  %2198 = vmatpush1.msra.mxu0 0.0
  %2199 = vmatprep.subr.mxu0 0.0
  %2200 = vmatpush1.msra.mxu0 0.0
  %2201 = vmatprep.subr.mxu0 0.0
  %2202 = vmatpush1.msra.mxu0 0.0
  %2203 = vmatprep.subr.mxu0 0.0
  %2204 = vmatpush1.msra.mxu0 0.0
  %2205 = vmatprep.subr.mxu0 0.0
  %2206 = vmatpush1.msra.mxu0 0.0
  %2207 = vmatprep.subr.mxu0 0.0
  %2208 = vmatpush1.msra.mxu0 0.0
  %2209 = vmatprep.subr.mxu0 0.0
  %2210 = vmatpush1.msra.mxu0 0.0
  %2211 = vmatprep.subr.mxu0 0.0
  %2212 = vmatpush1.msra.mxu0 0.0
  %2213 = vmatprep.subr.mxu0 0.0
  %2214 = vmatpush1.msra.mxu0 0.0
  %2215 = vmatprep.mubr.f32.mxu0 0.0
  %2216 = vmatmul.mubr.f32.gmra.mrb[0].mxu0 %v2149
  %v2217 = vpop.f32.mrb[0].mxu0
  %v2218 = vadd.f32 %v24, %v2217
  %v2219 = vpop.f32.mrb[0].mxu0
  %2220 = vdwg.mxu0
  %v2221 = vadd.f32 %v2148, %v2218
  %v2222 = vsub.f32 0.0, %v2221
  %v2223 = vmul.f32 %v2222, 1.442695
  %v2224 = vpow.pop %v2223
  %v2225 = vadd.f32 %v2224, 1.0
  %v2226 = vrcp.pop %v2225
  %2228 = vrot.lane.b32.xlu0 %v2218, 64
  %v2229 = vpop.permute.xlu0 %2228
  %v2231 = vmul.f32 %v2226, %v2229
  %2233 = vrot.lane.b32.xlu0 %v2231, 64
  %v2234 = vpop.permute.xlu0 %2233
  %v2236 = vadd.f32 %v2148, %v2234
  %v2237 = vtanh.pop %v2236
  %v2238 = vsub.f32 1.0, %v2226
  %2240 = vrot.lane.b32.xlu0 %v2237, 96
  %v2241 = vpop.permute.xlu0 %2240
  %v2243 = vmul.f32 %v2238, %v2241
  %v2244 = vmul.f32 %v2226, %v2138
  %v2245 = vadd.f32 %v2243, %v2244
  %2247 = vrot.lane.b32.xlu0 %v2245, 96
  %v2248 = vpop.permute.xlu0 %2247
  %2250 = vst.msk [vmem:[%s2145] sm:$0xf] %vm537, %v2248
  %2251 = vst.msk [vmem:[%s2143] sm:$0xf] %vm540, %v2248
  %s2252 = scalar_lea.vmem %s0, 84
  %v2253 = vld [vmem:[%s2252] sm:$0xf]
  %v2254 = vsel %vm26, %v2248, 0
  %2256 = vmatprep.subr.mxu0 0.0
  %2257 = vmatpush1.msra.mxu0 %v14
  %2258 = vmatprep.subr.mxu0 0.0
  %2259 = vmatpush1.msra.mxu0 %v15
  %2260 = vmatprep.subr.mxu0 0.0
  %2261 = vmatpush1.msra.mxu0 %v16
  %2262 = vmatprep.subr.mxu0 0.0
  %2263 = vmatpush1.msra.mxu0 %v17
  %2264 = vmatprep.subr.mxu0 0.0
  %2265 = vmatpush1.msra.mxu0 0.0
  %2266 = vmatprep.subr.mxu0 0.0
  %2267 = vmatpush1.msra.mxu0 0.0
  %2268 = vmatprep.subr.mxu0 0.0
  %2269 = vmatpush1.msra.mxu0 0.0
  %2270 = vmatprep.subr.mxu0 0.0
  %2271 = vmatpush1.msra.mxu0 0.0
  %2272 = vmatprep.subr.mxu0 0.0
  %2273 = vmatpush1.msra.mxu0 0.0
  %2274 = vmatprep.subr.mxu0 0.0
  %2275 = vmatpush1.msra.mxu0 0.0
  %2276 = vmatprep.subr.mxu0 0.0
  %2277 = vmatpush1.msra.mxu0 0.0
  %2278 = vmatprep.subr.mxu0 0.0
  %2279 = vmatpush1.msra.mxu0 0.0
  %2280 = vmatprep.subr.mxu0 0.0
  %2281 = vmatpush1.msra.mxu0 0.0
  %2282 = vmatprep.subr.mxu0 0.0
  %2283 = vmatpush1.msra.mxu0 0.0
  %2284 = vmatprep.subr.mxu0 0.0
  %2285 = vmatpush1.msra.mxu0 0.0
  %2286 = vmatprep.subr.mxu0 0.0
  %2287 = vmatpush1.msra.mxu0 0.0
  %2288 = vmatprep.subr.mxu0 0.0
  %2289 = vmatpush1.msra.mxu0 0.0
  %2290 = vmatprep.subr.mxu0 0.0
  %2291 = vmatpush1.msra.mxu0 0.0
  %2292 = vmatprep.subr.mxu0 0.0
  %2293 = vmatpush1.msra.mxu0 0.0
  %2294 = vmatprep.subr.mxu0 0.0
  %2295 = vmatpush1.msra.mxu0 0.0
  %2296 = vmatprep.subr.mxu0 0.0
  %2297 = vmatpush1.msra.mxu0 0.0
  %2298 = vmatprep.subr.mxu0 0.0
  %2299 = vmatpush1.msra.mxu0 0.0
  %2300 = vmatprep.subr.mxu0 0.0
  %2301 = vmatpush1.msra.mxu0 0.0
  %2302 = vmatprep.subr.mxu0 0.0
  %2303 = vmatpush1.msra.mxu0 0.0
  %2304 = vmatprep.subr.mxu0 0.0
  %2305 = vmatpush1.msra.mxu0 0.0
  %2306 = vmatprep.subr.mxu0 0.0
  %2307 = vmatpush1.msra.mxu0 0.0
  %2308 = vmatprep.subr.mxu0 0.0
  %2309 = vmatpush1.msra.mxu0 0.0
  %2310 = vmatprep.subr.mxu0 0.0
  %2311 = vmatpush1.msra.mxu0 0.0
  %2312 = vmatprep.subr.mxu0 0.0
  %2313 = vmatpush1.msra.mxu0 0.0
  %2314 = vmatprep.subr.mxu0 0.0
  %2315 = vmatpush1.msra.mxu0 0.0
  %2316 = vmatprep.subr.mxu0 0.0
  %2317 = vmatpush1.msra.mxu0 0.0
  %2318 = vmatprep.subr.mxu0 0.0
  %2319 = vmatpush1.msra.mxu0 0.0
  %2320 = vmatprep.mubr.f32.mxu0 0.0
  %2321 = vmatmul.mubr.f32.gmra.mrb[0].mxu0 %v2254
  %v2322 = vpop.f32.mrb[0].mxu0
  %v2323 = vadd.f32 %v24, %v2322
  %v2324 = vpop.f32.mrb[0].mxu0
  %2325 = vdwg.mxu0
  %v2326 = vadd.f32 %v2253, %v2323
  %v2327 = vsub.f32 0.0, %v2326
  %v2328 = vmul.f32 %v2327, 1.442695
  %v2329 = vpow.pop %v2328
  %v2330 = vadd.f32 %v2329, 1.0
  %v2331 = vrcp.pop %v2330
  %2333 = vrot.lane.b32.xlu0 %v2323, 64
  %v2334 = vpop.permute.xlu0 %2333
  %v2336 = vmul.f32 %v2331, %v2334
  %2338 = vrot.lane.b32.xlu0 %v2336, 64
  %v2339 = vpop.permute.xlu0 %2338
  %v2341 = vadd.f32 %v2253, %v2339
  %v2342 = vtanh.pop %v2341
  %v2343 = vsub.f32 1.0, %v2331
  %2345 = vrot.lane.b32.xlu0 %v2342, 96
  %v2346 = vpop.permute.xlu0 %2345
  %v2348 = vmul.f32 %v2343, %v2346
  %v2349 = vmul.f32 %v2331, %v2245
  %v2350 = vadd.f32 %v2348, %v2349
  %2352 = vrot.lane.b32.xlu0 %v2350, 96
  %v2353 = vpop.permute.xlu0 %2352
  %2355 = vst.msk [vmem:[%s2038] sm:$0xf] %vm537, %v2353
  %2356 = vst.msk [vmem:[%s2036] sm:$0xf] %vm540, %v2353
  %s2357 = scalar_lea.vmem %s0, 88
  %v2358 = vld [vmem:[%s2357] sm:$0xf]
  %v2359 = vsel %vm26, %v2353, 0
  %2361 = vmatprep.subr.mxu0 0.0
  %2362 = vmatpush1.msra.mxu0 %v14
  %2363 = vmatprep.subr.mxu0 0.0
  %2364 = vmatpush1.msra.mxu0 %v15
  %2365 = vmatprep.subr.mxu0 0.0
  %2366 = vmatpush1.msra.mxu0 %v16
  %2367 = vmatprep.subr.mxu0 0.0
  %2368 = vmatpush1.msra.mxu0 %v17
  %2369 = vmatprep.subr.mxu0 0.0
  %2370 = vmatpush1.msra.mxu0 0.0
  %2371 = vmatprep.subr.mxu0 0.0
  %2372 = vmatpush1.msra.mxu0 0.0
  %2373 = vmatprep.subr.mxu0 0.0
  %2374 = vmatpush1.msra.mxu0 0.0
  %2375 = vmatprep.subr.mxu0 0.0
  %2376 = vmatpush1.msra.mxu0 0.0
  %2377 = vmatprep.subr.mxu0 0.0
  %2378 = vmatpush1.msra.mxu0 0.0
  %2379 = vmatprep.subr.mxu0 0.0
  %2380 = vmatpush1.msra.mxu0 0.0
  %2381 = vmatprep.subr.mxu0 0.0
  %2382 = vmatpush1.msra.mxu0 0.0
  %2383 = vmatprep.subr.mxu0 0.0
  %2384 = vmatpush1.msra.mxu0 0.0
  %2385 = vmatprep.subr.mxu0 0.0
  %2386 = vmatpush1.msra.mxu0 0.0
  %2387 = vmatprep.subr.mxu0 0.0
  %2388 = vmatpush1.msra.mxu0 0.0
  %2389 = vmatprep.subr.mxu0 0.0
  %2390 = vmatpush1.msra.mxu0 0.0
  %2391 = vmatprep.subr.mxu0 0.0
  %2392 = vmatpush1.msra.mxu0 0.0
  %2393 = vmatprep.subr.mxu0 0.0
  %2394 = vmatpush1.msra.mxu0 0.0
  %2395 = vmatprep.subr.mxu0 0.0
  %2396 = vmatpush1.msra.mxu0 0.0
  %2397 = vmatprep.subr.mxu0 0.0
  %2398 = vmatpush1.msra.mxu0 0.0
  %2399 = vmatprep.subr.mxu0 0.0
  %2400 = vmatpush1.msra.mxu0 0.0
  %2401 = vmatprep.subr.mxu0 0.0
  %2402 = vmatpush1.msra.mxu0 0.0
  %2403 = vmatprep.subr.mxu0 0.0
  %2404 = vmatpush1.msra.mxu0 0.0
  %2405 = vmatprep.subr.mxu0 0.0
  %2406 = vmatpush1.msra.mxu0 0.0
  %2407 = vmatprep.subr.mxu0 0.0
  %2408 = vmatpush1.msra.mxu0 0.0
  %2409 = vmatprep.subr.mxu0 0.0
  %2410 = vmatpush1.msra.mxu0 0.0
  %2411 = vmatprep.subr.mxu0 0.0
  %2412 = vmatpush1.msra.mxu0 0.0
  %2413 = vmatprep.subr.mxu0 0.0
  %2414 = vmatpush1.msra.mxu0 0.0
  %2415 = vmatprep.subr.mxu0 0.0
  %2416 = vmatpush1.msra.mxu0 0.0
  %2417 = vmatprep.subr.mxu0 0.0
  %2418 = vmatpush1.msra.mxu0 0.0
  %2419 = vmatprep.subr.mxu0 0.0
  %2420 = vmatpush1.msra.mxu0 0.0
  %2421 = vmatprep.subr.mxu0 0.0
  %2422 = vmatpush1.msra.mxu0 0.0
  %2423 = vmatprep.subr.mxu0 0.0
  %2424 = vmatpush1.msra.mxu0 0.0
  %2425 = vmatprep.mubr.f32.mxu0 0.0
  %2426 = vmatmul.mubr.f32.gmra.mrb[0].mxu0 %v2359
  %v2427 = vpop.f32.mrb[0].mxu0
  %v2428 = vadd.f32 %v24, %v2427
  %v2429 = vpop.f32.mrb[0].mxu0
  %2430 = vdwg.mxu0
  %v2431 = vadd.f32 %v2358, %v2428
  %v2432 = vsub.f32 0.0, %v2431
  %v2433 = vmul.f32 %v2432, 1.442695
  %v2434 = vpow.pop %v2433
  %v2435 = vadd.f32 %v2434, 1.0
  %v2436 = vrcp.pop %v2435
  %2438 = vrot.lane.b32.xlu0 %v2428, 64
  %v2439 = vpop.permute.xlu0 %2438
  %v2441 = vmul.f32 %v2436, %v2439
  %2443 = vrot.lane.b32.xlu0 %v2441, 64
  %v2444 = vpop.permute.xlu0 %2443
  %v2446 = vadd.f32 %v2358, %v2444
  %v2447 = vtanh.pop %v2446
  %v2448 = vsub.f32 1.0, %v2436
  %2450 = vrot.lane.b32.xlu0 %v2447, 96
  %v2451 = vpop.permute.xlu0 %2450
  %v2453 = vmul.f32 %v2448, %v2451
  %v2454 = vmul.f32 %v2436, %v2350
  %v2455 = vadd.f32 %v2453, %v2454
  %2457 = vrot.lane.b32.xlu0 %v2455, 96
  %v2458 = vpop.permute.xlu0 %2457
  %2460 = vst.msk [vmem:[%s1931] sm:$0xf] %vm537, %v2458
  %2461 = vst.msk [vmem:[%s1929] sm:$0xf] %vm540, %v2458
  %s2462 = scalar_lea.vmem %s0, 92
  %v2463 = vld [vmem:[%s2462] sm:$0xf]
  %v2464 = vsel %vm26, %v2458, 0
  %2466 = vmatprep.subr.mxu0 0.0
  %2467 = vmatpush1.msra.mxu0 %v14
  %2468 = vmatprep.subr.mxu0 0.0
  %2469 = vmatpush1.msra.mxu0 %v15
  %2470 = vmatprep.subr.mxu0 0.0
  %2471 = vmatpush1.msra.mxu0 %v16
  %2472 = vmatprep.subr.mxu0 0.0
  %2473 = vmatpush1.msra.mxu0 %v17
  %2474 = vmatprep.subr.mxu0 0.0
  %2475 = vmatpush1.msra.mxu0 0.0
  %2476 = vmatprep.subr.mxu0 0.0
  %2477 = vmatpush1.msra.mxu0 0.0
  %2478 = vmatprep.subr.mxu0 0.0
  %2479 = vmatpush1.msra.mxu0 0.0
  %2480 = vmatprep.subr.mxu0 0.0
  %2481 = vmatpush1.msra.mxu0 0.0
  %2482 = vmatprep.subr.mxu0 0.0
  %2483 = vmatpush1.msra.mxu0 0.0
  %2484 = vmatprep.subr.mxu0 0.0
  %2485 = vmatpush1.msra.mxu0 0.0
  %2486 = vmatprep.subr.mxu0 0.0
  %2487 = vmatpush1.msra.mxu0 0.0
  %2488 = vmatprep.subr.mxu0 0.0
  %2489 = vmatpush1.msra.mxu0 0.0
  %2490 = vmatprep.subr.mxu0 0.0
  %2491 = vmatpush1.msra.mxu0 0.0
  %2492 = vmatprep.subr.mxu0 0.0
  %2493 = vmatpush1.msra.mxu0 0.0
  %2494 = vmatprep.subr.mxu0 0.0
  %2495 = vmatpush1.msra.mxu0 0.0
  %2496 = vmatprep.subr.mxu0 0.0
  %2497 = vmatpush1.msra.mxu0 0.0
  %2498 = vmatprep.subr.mxu0 0.0
  %2499 = vmatpush1.msra.mxu0 0.0
  %2500 = vmatprep.subr.mxu0 0.0
  %2501 = vmatpush1.msra.mxu0 0.0
  %2502 = vmatprep.subr.mxu0 0.0
  %2503 = vmatpush1.msra.mxu0 0.0
  %2504 = vmatprep.subr.mxu0 0.0
  %2505 = vmatpush1.msra.mxu0 0.0
  %2506 = vmatprep.subr.mxu0 0.0
  %2507 = vmatpush1.msra.mxu0 0.0
  %2508 = vmatprep.subr.mxu0 0.0
  %2509 = vmatpush1.msra.mxu0 0.0
  %2510 = vmatprep.subr.mxu0 0.0
  %2511 = vmatpush1.msra.mxu0 0.0
  %2512 = vmatprep.subr.mxu0 0.0
  %2513 = vmatpush1.msra.mxu0 0.0
  %2514 = vmatprep.subr.mxu0 0.0
  %2515 = vmatpush1.msra.mxu0 0.0
  %2516 = vmatprep.subr.mxu0 0.0
  %2517 = vmatpush1.msra.mxu0 0.0
  %2518 = vmatprep.subr.mxu0 0.0
  %2519 = vmatpush1.msra.mxu0 0.0
  %2520 = vmatprep.subr.mxu0 0.0
  %2521 = vmatpush1.msra.mxu0 0.0
  %2522 = vmatprep.subr.mxu0 0.0
  %2523 = vmatpush1.msra.mxu0 0.0
  %2524 = vmatprep.subr.mxu0 0.0
  %2525 = vmatpush1.msra.mxu0 0.0
  %2526 = vmatprep.subr.mxu0 0.0
  %2527 = vmatpush1.msra.mxu0 0.0
  %2528 = vmatprep.subr.mxu0 0.0
  %2529 = vmatpush1.msra.mxu0 0.0
  %2530 = vmatprep.mubr.f32.mxu0 0.0
  %2531 = vmatmul.mubr.f32.gmra.mrb[0].mxu0 %v2464
  %v2532 = vpop.f32.mrb[0].mxu0
  %v2533 = vadd.f32 %v24, %v2532
  %v2534 = vpop.f32.mrb[0].mxu0
  %2535 = vdwg.mxu0
  %v2536 = vadd.f32 %v2463, %v2533
  %v2537 = vsub.f32 0.0, %v2536
  %v2538 = vmul.f32 %v2537, 1.442695
  %v2539 = vpow.pop %v2538
  %v2540 = vadd.f32 %v2539, 1.0
  %v2541 = vrcp.pop %v2540
  %2543 = vrot.lane.b32.xlu0 %v2533, 64
  %v2544 = vpop.permute.xlu0 %2543
  %v2546 = vmul.f32 %v2541, %v2544
  %2548 = vrot.lane.b32.xlu0 %v2546, 64
  %v2549 = vpop.permute.xlu0 %2548
  %v2551 = vadd.f32 %v2463, %v2549
  %v2552 = vtanh.pop %v2551
  %v2553 = vsub.f32 1.0, %v2541
  %2555 = vrot.lane.b32.xlu0 %v2552, 96
  %v2556 = vpop.permute.xlu0 %2555
  %v2558 = vmul.f32 %v2553, %v2556
  %v2559 = vmul.f32 %v2541, %v2455
  %v2560 = vadd.f32 %v2558, %v2559
  %2562 = vrot.lane.b32.xlu0 %v2560, 96
  %v2563 = vpop.permute.xlu0 %2562
  %2565 = vst.msk [vmem:[%s1824] sm:$0xf] %vm537, %v2563
  %2566 = vst.msk [vmem:[%s1822] sm:$0xf] %vm540, %v2563
  %s2567 = scalar_lea.vmem %s0, 96
  %v2568 = vld [vmem:[%s2567] sm:$0xf]
  %v2569 = vsel %vm26, %v2563, 0
  %2571 = vmatprep.subr.mxu0 0.0
  %2572 = vmatpush1.msra.mxu0 %v14
  %2573 = vmatprep.subr.mxu0 0.0
  %2574 = vmatpush1.msra.mxu0 %v15
  %2575 = vmatprep.subr.mxu0 0.0
  %2576 = vmatpush1.msra.mxu0 %v16
  %2577 = vmatprep.subr.mxu0 0.0
  %2578 = vmatpush1.msra.mxu0 %v17
  %2579 = vmatprep.subr.mxu0 0.0
  %2580 = vmatpush1.msra.mxu0 0.0
  %2581 = vmatprep.subr.mxu0 0.0
  %2582 = vmatpush1.msra.mxu0 0.0
  %2583 = vmatprep.subr.mxu0 0.0
  %2584 = vmatpush1.msra.mxu0 0.0
  %2585 = vmatprep.subr.mxu0 0.0
  %2586 = vmatpush1.msra.mxu0 0.0
  %2587 = vmatprep.subr.mxu0 0.0
  %2588 = vmatpush1.msra.mxu0 0.0
  %2589 = vmatprep.subr.mxu0 0.0
  %2590 = vmatpush1.msra.mxu0 0.0
  %2591 = vmatprep.subr.mxu0 0.0
  %2592 = vmatpush1.msra.mxu0 0.0
  %2593 = vmatprep.subr.mxu0 0.0
  %2594 = vmatpush1.msra.mxu0 0.0
  %2595 = vmatprep.subr.mxu0 0.0
  %2596 = vmatpush1.msra.mxu0 0.0
  %2597 = vmatprep.subr.mxu0 0.0
  %2598 = vmatpush1.msra.mxu0 0.0
  %2599 = vmatprep.subr.mxu0 0.0
  %2600 = vmatpush1.msra.mxu0 0.0
  %2601 = vmatprep.subr.mxu0 0.0
  %2602 = vmatpush1.msra.mxu0 0.0
  %2603 = vmatprep.subr.mxu0 0.0
  %2604 = vmatpush1.msra.mxu0 0.0
  %2605 = vmatprep.subr.mxu0 0.0
  %2606 = vmatpush1.msra.mxu0 0.0
  %2607 = vmatprep.subr.mxu0 0.0
  %2608 = vmatpush1.msra.mxu0 0.0
  %2609 = vmatprep.subr.mxu0 0.0
  %2610 = vmatpush1.msra.mxu0 0.0
  %2611 = vmatprep.subr.mxu0 0.0
  %2612 = vmatpush1.msra.mxu0 0.0
  %2613 = vmatprep.subr.mxu0 0.0
  %2614 = vmatpush1.msra.mxu0 0.0
  %2615 = vmatprep.subr.mxu0 0.0
  %2616 = vmatpush1.msra.mxu0 0.0
  %2617 = vmatprep.subr.mxu0 0.0
  %2618 = vmatpush1.msra.mxu0 0.0
  %2619 = vmatprep.subr.mxu0 0.0
  %2620 = vmatpush1.msra.mxu0 0.0
  %2621 = vmatprep.subr.mxu0 0.0
  %2622 = vmatpush1.msra.mxu0 0.0
  %2623 = vmatprep.subr.mxu0 0.0
  %2624 = vmatpush1.msra.mxu0 0.0
  %2625 = vmatprep.subr.mxu0 0.0
  %2626 = vmatpush1.msra.mxu0 0.0
  %2627 = vmatprep.subr.mxu0 0.0
  %2628 = vmatpush1.msra.mxu0 0.0
  %2629 = vmatprep.subr.mxu0 0.0
  %2630 = vmatpush1.msra.mxu0 0.0
  %2631 = vmatprep.subr.mxu0 0.0
  %2632 = vmatpush1.msra.mxu0 0.0
  %2633 = vmatprep.subr.mxu0 0.0
  %2634 = vmatpush1.msra.mxu0 0.0
  %2635 = vmatprep.mubr.f32.mxu0 0.0
  %2636 = vmatmul.mubr.f32.gmra.mrb[0].mxu0 %v2569
  %v2637 = vpop.f32.mrb[0].mxu0
  %v2638 = vadd.f32 %v24, %v2637
  %v2639 = vpop.f32.mrb[0].mxu0
  %2640 = vdwg.mxu0
  %v2641 = vadd.f32 %v2568, %v2638
  %v2642 = vsub.f32 0.0, %v2641
  %v2643 = vmul.f32 %v2642, 1.442695
  %v2644 = vpow.pop %v2643
  %v2645 = vadd.f32 %v2644, 1.0
  %v2646 = vrcp.pop %v2645
  %2648 = vrot.lane.b32.xlu0 %v2638, 64
  %v2649 = vpop.permute.xlu0 %2648
  %v2651 = vmul.f32 %v2646, %v2649
  %2653 = vrot.lane.b32.xlu0 %v2651, 64
  %v2654 = vpop.permute.xlu0 %2653
  %v2656 = vadd.f32 %v2568, %v2654
  %v2657 = vtanh.pop %v2656
  %v2658 = vsub.f32 1.0, %v2646
  %2660 = vrot.lane.b32.xlu0 %v2657, 96
  %v2661 = vpop.permute.xlu0 %2660
  %v2663 = vmul.f32 %v2658, %v2661
  %v2664 = vmul.f32 %v2646, %v2560
  %v2665 = vadd.f32 %v2663, %v2664
  %2667 = vrot.lane.b32.xlu0 %v2665, 96
  %v2668 = vpop.permute.xlu0 %2667
  %2670 = vst.msk [vmem:[%s1717] sm:$0xf] %vm537, %v2668
  %2671 = vst.msk [vmem:[%s1715] sm:$0xf] %vm540, %v2668
  %s2672 = scalar_lea.vmem %s0, 100
  %v2673 = vld [vmem:[%s2672] sm:$0xf]
  %v2674 = vsel %vm26, %v2668, 0
  %2676 = vmatprep.subr.mxu0 0.0
  %2677 = vmatpush1.msra.mxu0 %v14
  %2678 = vmatprep.subr.mxu0 0.0
  %2679 = vmatpush1.msra.mxu0 %v15
  %2680 = vmatprep.subr.mxu0 0.0
  %2681 = vmatpush1.msra.mxu0 %v16
  %2682 = vmatprep.subr.mxu0 0.0
  %2683 = vmatpush1.msra.mxu0 %v17
  %2684 = vmatprep.subr.mxu0 0.0
  %2685 = vmatpush1.msra.mxu0 0.0
  %2686 = vmatprep.subr.mxu0 0.0
  %2687 = vmatpush1.msra.mxu0 0.0
  %2688 = vmatprep.subr.mxu0 0.0
  %2689 = vmatpush1.msra.mxu0 0.0
  %2690 = vmatprep.subr.mxu0 0.0
  %2691 = vmatpush1.msra.mxu0 0.0
  %2692 = vmatprep.subr.mxu0 0.0
  %2693 = vmatpush1.msra.mxu0 0.0
  %2694 = vmatprep.subr.mxu0 0.0
  %2695 = vmatpush1.msra.mxu0 0.0
  %2696 = vmatprep.subr.mxu0 0.0
  %2697 = vmatpush1.msra.mxu0 0.0
  %2698 = vmatprep.subr.mxu0 0.0
  %2699 = vmatpush1.msra.mxu0 0.0
  %2700 = vmatprep.subr.mxu0 0.0
  %2701 = vmatpush1.msra.mxu0 0.0
  %2702 = vmatprep.subr.mxu0 0.0
  %2703 = vmatpush1.msra.mxu0 0.0
  %2704 = vmatprep.subr.mxu0 0.0
  %2705 = vmatpush1.msra.mxu0 0.0
  %2706 = vmatprep.subr.mxu0 0.0
  %2707 = vmatpush1.msra.mxu0 0.0
  %2708 = vmatprep.subr.mxu0 0.0
  %2709 = vmatpush1.msra.mxu0 0.0
  %2710 = vmatprep.subr.mxu0 0.0
  %2711 = vmatpush1.msra.mxu0 0.0
  %2712 = vmatprep.subr.mxu0 0.0
  %2713 = vmatpush1.msra.mxu0 0.0
  %2714 = vmatprep.subr.mxu0 0.0
  %2715 = vmatpush1.msra.mxu0 0.0
  %2716 = vmatprep.subr.mxu0 0.0
  %2717 = vmatpush1.msra.mxu0 0.0
  %2718 = vmatprep.subr.mxu0 0.0
  %2719 = vmatpush1.msra.mxu0 0.0
  %2720 = vmatprep.subr.mxu0 0.0
  %2721 = vmatpush1.msra.mxu0 0.0
  %2722 = vmatprep.subr.mxu0 0.0
  %2723 = vmatpush1.msra.mxu0 0.0
  %2724 = vmatprep.subr.mxu0 0.0
  %2725 = vmatpush1.msra.mxu0 0.0
  %2726 = vmatprep.subr.mxu0 0.0
  %2727 = vmatpush1.msra.mxu0 0.0
  %2728 = vmatprep.subr.mxu0 0.0
  %2729 = vmatpush1.msra.mxu0 0.0
  %2730 = vmatprep.subr.mxu0 0.0
  %2731 = vmatpush1.msra.mxu0 0.0
  %2732 = vmatprep.subr.mxu0 0.0
  %2733 = vmatpush1.msra.mxu0 0.0
  %2734 = vmatprep.subr.mxu0 0.0
  %2735 = vmatpush1.msra.mxu0 0.0
  %2736 = vmatprep.subr.mxu0 0.0
  %2737 = vmatpush1.msra.mxu0 0.0
  %2738 = vmatprep.subr.mxu0 0.0
  %2739 = vmatpush1.msra.mxu0 0.0
  %2740 = vmatprep.mubr.f32.mxu0 0.0
  %2741 = vmatmul.mubr.f32.gmra.mrb[0].mxu0 %v2674
  %v2742 = vpop.f32.mrb[0].mxu0
  %v2743 = vadd.f32 %v24, %v2742
  %v2744 = vpop.f32.mrb[0].mxu0
  %2745 = vdwg.mxu0
  %v2746 = vadd.f32 %v2673, %v2743
  %v2747 = vsub.f32 0.0, %v2746
  %v2748 = vmul.f32 %v2747, 1.442695
  %v2749 = vpow.pop %v2748
  %v2750 = vadd.f32 %v2749, 1.0
  %v2751 = vrcp.pop %v2750
  %2753 = vrot.lane.b32.xlu0 %v2743, 64
  %v2754 = vpop.permute.xlu0 %2753
  %v2756 = vmul.f32 %v2751, %v2754
  %2758 = vrot.lane.b32.xlu0 %v2756, 64
  %v2759 = vpop.permute.xlu0 %2758
  %v2761 = vadd.f32 %v2673, %v2759
  %v2762 = vtanh.pop %v2761
  %v2763 = vsub.f32 1.0, %v2751
  %2765 = vrot.lane.b32.xlu0 %v2762, 96
  %v2766 = vpop.permute.xlu0 %2765
  %v2768 = vmul.f32 %v2763, %v2766
  %v2769 = vmul.f32 %v2751, %v2665
  %v2770 = vadd.f32 %v2768, %v2769
  %2772 = vrot.lane.b32.xlu0 %v2770, 96
  %v2773 = vpop.permute.xlu0 %2772
  %2775 = vst.msk [vmem:[%s1610] sm:$0xf] %vm537, %v2773
  %2776 = vst.msk [vmem:[%s1608] sm:$0xf] %vm540, %v2773
  %s2777 = scalar_lea.vmem %s0, 104
  %v2778 = vld [vmem:[%s2777] sm:$0xf]
  %v2779 = vsel %vm26, %v2773, 0
  %2781 = vmatprep.subr.mxu0 0.0
  %2782 = vmatpush1.msra.mxu0 %v14
  %2783 = vmatprep.subr.mxu0 0.0
  %2784 = vmatpush1.msra.mxu0 %v15
  %2785 = vmatprep.subr.mxu0 0.0
  %2786 = vmatpush1.msra.mxu0 %v16
  %2787 = vmatprep.subr.mxu0 0.0
  %2788 = vmatpush1.msra.mxu0 %v17
  %2789 = vmatprep.subr.mxu0 0.0
  %2790 = vmatpush1.msra.mxu0 0.0
  %2791 = vmatprep.subr.mxu0 0.0
  %2792 = vmatpush1.msra.mxu0 0.0
  %2793 = vmatprep.subr.mxu0 0.0
  %2794 = vmatpush1.msra.mxu0 0.0
  %2795 = vmatprep.subr.mxu0 0.0
  %2796 = vmatpush1.msra.mxu0 0.0
  %2797 = vmatprep.subr.mxu0 0.0
  %2798 = vmatpush1.msra.mxu0 0.0
  %2799 = vmatprep.subr.mxu0 0.0
  %2800 = vmatpush1.msra.mxu0 0.0
  %2801 = vmatprep.subr.mxu0 0.0
  %2802 = vmatpush1.msra.mxu0 0.0
  %2803 = vmatprep.subr.mxu0 0.0
  %2804 = vmatpush1.msra.mxu0 0.0
  %2805 = vmatprep.subr.mxu0 0.0
  %2806 = vmatpush1.msra.mxu0 0.0
  %2807 = vmatprep.subr.mxu0 0.0
  %2808 = vmatpush1.msra.mxu0 0.0
  %2809 = vmatprep.subr.mxu0 0.0
  %2810 = vmatpush1.msra.mxu0 0.0
  %2811 = vmatprep.subr.mxu0 0.0
  %2812 = vmatpush1.msra.mxu0 0.0
  %2813 = vmatprep.subr.mxu0 0.0
  %2814 = vmatpush1.msra.mxu0 0.0
  %2815 = vmatprep.subr.mxu0 0.0
  %2816 = vmatpush1.msra.mxu0 0.0
  %2817 = vmatprep.subr.mxu0 0.0
  %2818 = vmatpush1.msra.mxu0 0.0
  %2819 = vmatprep.subr.mxu0 0.0
  %2820 = vmatpush1.msra.mxu0 0.0
  %2821 = vmatprep.subr.mxu0 0.0
  %2822 = vmatpush1.msra.mxu0 0.0
  %2823 = vmatprep.subr.mxu0 0.0
  %2824 = vmatpush1.msra.mxu0 0.0
  %2825 = vmatprep.subr.mxu0 0.0
  %2826 = vmatpush1.msra.mxu0 0.0
  %2827 = vmatprep.subr.mxu0 0.0
  %2828 = vmatpush1.msra.mxu0 0.0
  %2829 = vmatprep.subr.mxu0 0.0
  %2830 = vmatpush1.msra.mxu0 0.0
  %2831 = vmatprep.subr.mxu0 0.0
  %2832 = vmatpush1.msra.mxu0 0.0
  %2833 = vmatprep.subr.mxu0 0.0
  %2834 = vmatpush1.msra.mxu0 0.0
  %2835 = vmatprep.subr.mxu0 0.0
  %2836 = vmatpush1.msra.mxu0 0.0
  %2837 = vmatprep.subr.mxu0 0.0
  %2838 = vmatpush1.msra.mxu0 0.0
  %2839 = vmatprep.subr.mxu0 0.0
  %2840 = vmatpush1.msra.mxu0 0.0
  %2841 = vmatprep.subr.mxu0 0.0
  %2842 = vmatpush1.msra.mxu0 0.0
  %2843 = vmatprep.subr.mxu0 0.0
  %2844 = vmatpush1.msra.mxu0 0.0
  %2845 = vmatprep.mubr.f32.mxu0 0.0
  %2846 = vmatmul.mubr.f32.gmra.mrb[0].mxu0 %v2779
  %v2847 = vpop.f32.mrb[0].mxu0
  %v2848 = vadd.f32 %v24, %v2847
  %v2849 = vpop.f32.mrb[0].mxu0
  %2850 = vdwg.mxu0
  %v2851 = vadd.f32 %v2778, %v2848
  %v2852 = vsub.f32 0.0, %v2851
  %v2853 = vmul.f32 %v2852, 1.442695
  %v2854 = vpow.pop %v2853
  %v2855 = vadd.f32 %v2854, 1.0
  %v2856 = vrcp.pop %v2855
  %2858 = vrot.lane.b32.xlu0 %v2848, 64
  %v2859 = vpop.permute.xlu0 %2858
  %v2861 = vmul.f32 %v2856, %v2859
  %2863 = vrot.lane.b32.xlu0 %v2861, 64
  %v2864 = vpop.permute.xlu0 %2863
  %v2866 = vadd.f32 %v2778, %v2864
  %v2867 = vtanh.pop %v2866
  %v2868 = vsub.f32 1.0, %v2856
  %2870 = vrot.lane.b32.xlu0 %v2867, 96
  %v2871 = vpop.permute.xlu0 %2870
  %v2873 = vmul.f32 %v2868, %v2871
  %v2874 = vmul.f32 %v2856, %v2770
  %v2875 = vadd.f32 %v2873, %v2874
  %2877 = vrot.lane.b32.xlu0 %v2875, 96
  %v2878 = vpop.permute.xlu0 %2877
  %2880 = vst.msk [vmem:[%s1503] sm:$0xf] %vm537, %v2878
  %2881 = vst.msk [vmem:[%s1501] sm:$0xf] %vm540, %v2878
  %s2882 = scalar_lea.vmem %s0, 108
  %v2883 = vld [vmem:[%s2882] sm:$0xf]
  %v2884 = vsel %vm26, %v2878, 0
  %2886 = vmatprep.subr.mxu0 0.0
  %2887 = vmatpush1.msra.mxu0 %v14
  %2888 = vmatprep.subr.mxu0 0.0
  %2889 = vmatpush1.msra.mxu0 %v15
  %2890 = vmatprep.subr.mxu0 0.0
  %2891 = vmatpush1.msra.mxu0 %v16
  %2892 = vmatprep.subr.mxu0 0.0
  %2893 = vmatpush1.msra.mxu0 %v17
  %2894 = vmatprep.subr.mxu0 0.0
  %2895 = vmatpush1.msra.mxu0 0.0
  %2896 = vmatprep.subr.mxu0 0.0
  %2897 = vmatpush1.msra.mxu0 0.0
  %2898 = vmatprep.subr.mxu0 0.0
  %2899 = vmatpush1.msra.mxu0 0.0
  %2900 = vmatprep.subr.mxu0 0.0
  %2901 = vmatpush1.msra.mxu0 0.0
  %2902 = vmatprep.subr.mxu0 0.0
  %2903 = vmatpush1.msra.mxu0 0.0
  %2904 = vmatprep.subr.mxu0 0.0
  %2905 = vmatpush1.msra.mxu0 0.0
  %2906 = vmatprep.subr.mxu0 0.0
  %2907 = vmatpush1.msra.mxu0 0.0
  %2908 = vmatprep.subr.mxu0 0.0
  %2909 = vmatpush1.msra.mxu0 0.0
  %2910 = vmatprep.subr.mxu0 0.0
  %2911 = vmatpush1.msra.mxu0 0.0
  %2912 = vmatprep.subr.mxu0 0.0
  %2913 = vmatpush1.msra.mxu0 0.0
  %2914 = vmatprep.subr.mxu0 0.0
  %2915 = vmatpush1.msra.mxu0 0.0
  %2916 = vmatprep.subr.mxu0 0.0
  %2917 = vmatpush1.msra.mxu0 0.0
  %2918 = vmatprep.subr.mxu0 0.0
  %2919 = vmatpush1.msra.mxu0 0.0
  %2920 = vmatprep.subr.mxu0 0.0
  %2921 = vmatpush1.msra.mxu0 0.0
  %2922 = vmatprep.subr.mxu0 0.0
  %2923 = vmatpush1.msra.mxu0 0.0
  %2924 = vmatprep.subr.mxu0 0.0
  %2925 = vmatpush1.msra.mxu0 0.0
  %2926 = vmatprep.subr.mxu0 0.0
  %2927 = vmatpush1.msra.mxu0 0.0
  %2928 = vmatprep.subr.mxu0 0.0
  %2929 = vmatpush1.msra.mxu0 0.0
  %2930 = vmatprep.subr.mxu0 0.0
  %2931 = vmatpush1.msra.mxu0 0.0
  %2932 = vmatprep.subr.mxu0 0.0
  %2933 = vmatpush1.msra.mxu0 0.0
  %2934 = vmatprep.subr.mxu0 0.0
  %2935 = vmatpush1.msra.mxu0 0.0
  %2936 = vmatprep.subr.mxu0 0.0
  %2937 = vmatpush1.msra.mxu0 0.0
  %2938 = vmatprep.subr.mxu0 0.0
  %2939 = vmatpush1.msra.mxu0 0.0
  %2940 = vmatprep.subr.mxu0 0.0
  %2941 = vmatpush1.msra.mxu0 0.0
  %2942 = vmatprep.subr.mxu0 0.0
  %2943 = vmatpush1.msra.mxu0 0.0
  %2944 = vmatprep.subr.mxu0 0.0
  %2945 = vmatpush1.msra.mxu0 0.0
  %2946 = vmatprep.subr.mxu0 0.0
  %2947 = vmatpush1.msra.mxu0 0.0
  %2948 = vmatprep.subr.mxu0 0.0
  %2949 = vmatpush1.msra.mxu0 0.0
  %2950 = vmatprep.mubr.f32.mxu0 0.0
  %2951 = vmatmul.mubr.f32.gmra.mrb[0].mxu0 %v2884
  %v2952 = vpop.f32.mrb[0].mxu0
  %v2953 = vadd.f32 %v24, %v2952
  %v2954 = vpop.f32.mrb[0].mxu0
  %2955 = vdwg.mxu0
  %v2956 = vadd.f32 %v2883, %v2953
  %v2957 = vsub.f32 0.0, %v2956
  %v2958 = vmul.f32 %v2957, 1.442695
  %v2959 = vpow.pop %v2958
  %v2960 = vadd.f32 %v2959, 1.0
  %v2961 = vrcp.pop %v2960
  %2963 = vrot.lane.b32.xlu0 %v2953, 64
  %v2964 = vpop.permute.xlu0 %2963
  %v2966 = vmul.f32 %v2961, %v2964
  %2968 = vrot.lane.b32.xlu0 %v2966, 64
  %v2969 = vpop.permute.xlu0 %2968
  %v2971 = vadd.f32 %v2883, %v2969
  %v2972 = vtanh.pop %v2971
  %v2973 = vsub.f32 1.0, %v2961
  %2975 = vrot.lane.b32.xlu0 %v2972, 96
  %v2976 = vpop.permute.xlu0 %2975
  %v2978 = vmul.f32 %v2973, %v2976
  %v2979 = vmul.f32 %v2961, %v2875
  %v2980 = vadd.f32 %v2978, %v2979
  %2982 = vrot.lane.b32.xlu0 %v2980, 96
  %v2983 = vpop.permute.xlu0 %2982
  %2985 = vst.msk [vmem:[%s1396] sm:$0xf] %vm537, %v2983
  %2986 = vst.msk [vmem:[%s1394] sm:$0xf] %vm540, %v2983
  %s2987 = scalar_lea.vmem %s0, 112
  %v2988 = vld [vmem:[%s2987] sm:$0xf]
  %v2989 = vsel %vm26, %v2983, 0
  %2991 = vmatprep.subr.mxu0 0.0
  %2992 = vmatpush1.msra.mxu0 %v14
  %2993 = vmatprep.subr.mxu0 0.0
  %2994 = vmatpush1.msra.mxu0 %v15
  %2995 = vmatprep.subr.mxu0 0.0
  %2996 = vmatpush1.msra.mxu0 %v16
  %2997 = vmatprep.subr.mxu0 0.0
  %2998 = vmatpush1.msra.mxu0 %v17
  %2999 = vmatprep.subr.mxu0 0.0
  %3000 = vmatpush1.msra.mxu0 0.0
  %3001 = vmatprep.subr.mxu0 0.0
  %3002 = vmatpush1.msra.mxu0 0.0
  %3003 = vmatprep.subr.mxu0 0.0
  %3004 = vmatpush1.msra.mxu0 0.0
  %3005 = vmatprep.subr.mxu0 0.0
  %3006 = vmatpush1.msra.mxu0 0.0
  %3007 = vmatprep.subr.mxu0 0.0
  %3008 = vmatpush1.msra.mxu0 0.0
  %3009 = vmatprep.subr.mxu0 0.0
  %3010 = vmatpush1.msra.mxu0 0.0
  %3011 = vmatprep.subr.mxu0 0.0
  %3012 = vmatpush1.msra.mxu0 0.0
  %3013 = vmatprep.subr.mxu0 0.0
  %3014 = vmatpush1.msra.mxu0 0.0
  %3015 = vmatprep.subr.mxu0 0.0
  %3016 = vmatpush1.msra.mxu0 0.0
  %3017 = vmatprep.subr.mxu0 0.0
  %3018 = vmatpush1.msra.mxu0 0.0
  %3019 = vmatprep.subr.mxu0 0.0
  %3020 = vmatpush1.msra.mxu0 0.0
  %3021 = vmatprep.subr.mxu0 0.0
  %3022 = vmatpush1.msra.mxu0 0.0
  %3023 = vmatprep.subr.mxu0 0.0
  %3024 = vmatpush1.msra.mxu0 0.0
  %3025 = vmatprep.subr.mxu0 0.0
  %3026 = vmatpush1.msra.mxu0 0.0
  %3027 = vmatprep.subr.mxu0 0.0
  %3028 = vmatpush1.msra.mxu0 0.0
  %3029 = vmatprep.subr.mxu0 0.0
  %3030 = vmatpush1.msra.mxu0 0.0
  %3031 = vmatprep.subr.mxu0 0.0
  %3032 = vmatpush1.msra.mxu0 0.0
  %3033 = vmatprep.subr.mxu0 0.0
  %3034 = vmatpush1.msra.mxu0 0.0
  %3035 = vmatprep.subr.mxu0 0.0
  %3036 = vmatpush1.msra.mxu0 0.0
  %3037 = vmatprep.subr.mxu0 0.0
  %3038 = vmatpush1.msra.mxu0 0.0
  %3039 = vmatprep.subr.mxu0 0.0
  %3040 = vmatpush1.msra.mxu0 0.0
  %3041 = vmatprep.subr.mxu0 0.0
  %3042 = vmatpush1.msra.mxu0 0.0
  %3043 = vmatprep.subr.mxu0 0.0
  %3044 = vmatpush1.msra.mxu0 0.0
  %3045 = vmatprep.subr.mxu0 0.0
  %3046 = vmatpush1.msra.mxu0 0.0
  %3047 = vmatprep.subr.mxu0 0.0
  %3048 = vmatpush1.msra.mxu0 0.0
  %3049 = vmatprep.subr.mxu0 0.0
  %3050 = vmatpush1.msra.mxu0 0.0
  %3051 = vmatprep.subr.mxu0 0.0
  %3052 = vmatpush1.msra.mxu0 0.0
  %3053 = vmatprep.subr.mxu0 0.0
  %3054 = vmatpush1.msra.mxu0 0.0
  %3055 = vmatprep.mubr.f32.mxu0 0.0
  %3056 = vmatmul.mubr.f32.gmra.mrb[0].mxu0 %v2989
  %v3057 = vpop.f32.mrb[0].mxu0
  %v3058 = vadd.f32 %v24, %v3057
  %v3059 = vpop.f32.mrb[0].mxu0
  %3060 = vdwg.mxu0
  %v3061 = vadd.f32 %v2988, %v3058
  %v3062 = vsub.f32 0.0, %v3061
  %v3063 = vmul.f32 %v3062, 1.442695
  %v3064 = vpow.pop %v3063
  %v3065 = vadd.f32 %v3064, 1.0
  %v3066 = vrcp.pop %v3065
  %3068 = vrot.lane.b32.xlu0 %v3058, 64
  %v3069 = vpop.permute.xlu0 %3068
  %v3071 = vmul.f32 %v3066, %v3069
  %3073 = vrot.lane.b32.xlu0 %v3071, 64
  %v3074 = vpop.permute.xlu0 %3073
  %v3076 = vadd.f32 %v2988, %v3074
  %v3077 = vtanh.pop %v3076
  %v3078 = vsub.f32 1.0, %v3066
  %3080 = vrot.lane.b32.xlu0 %v3077, 96
  %v3081 = vpop.permute.xlu0 %3080
  %v3083 = vmul.f32 %v3078, %v3081
  %v3084 = vmul.f32 %v3066, %v2980
  %v3085 = vadd.f32 %v3083, %v3084
  %3087 = vrot.lane.b32.xlu0 %v3085, 96
  %v3088 = vpop.permute.xlu0 %3087
  %3090 = vst.msk [vmem:[%s1289] sm:$0xf] %vm537, %v3088
  %3091 = vst.msk [vmem:[%s1287] sm:$0xf] %vm540, %v3088
  %s3092 = scalar_lea.vmem %s0, 116
  %v3093 = vld [vmem:[%s3092] sm:$0xf]
  %v3094 = vsel %vm26, %v3088, 0
  %3096 = vmatprep.subr.mxu0 0.0
  %3097 = vmatpush1.msra.mxu0 %v14
  %3098 = vmatprep.subr.mxu0 0.0
  %3099 = vmatpush1.msra.mxu0 %v15
  %3100 = vmatprep.subr.mxu0 0.0
  %3101 = vmatpush1.msra.mxu0 %v16
  %3102 = vmatprep.subr.mxu0 0.0
  %3103 = vmatpush1.msra.mxu0 %v17
  %3104 = vmatprep.subr.mxu0 0.0
  %3105 = vmatpush1.msra.mxu0 0.0
  %3106 = vmatprep.subr.mxu0 0.0
  %3107 = vmatpush1.msra.mxu0 0.0
  %3108 = vmatprep.subr.mxu0 0.0
  %3109 = vmatpush1.msra.mxu0 0.0
  %3110 = vmatprep.subr.mxu0 0.0
  %3111 = vmatpush1.msra.mxu0 0.0
  %3112 = vmatprep.subr.mxu0 0.0
  %3113 = vmatpush1.msra.mxu0 0.0
  %3114 = vmatprep.subr.mxu0 0.0
  %3115 = vmatpush1.msra.mxu0 0.0
  %3116 = vmatprep.subr.mxu0 0.0
  %3117 = vmatpush1.msra.mxu0 0.0
  %3118 = vmatprep.subr.mxu0 0.0
  %3119 = vmatpush1.msra.mxu0 0.0
  %3120 = vmatprep.subr.mxu0 0.0
  %3121 = vmatpush1.msra.mxu0 0.0
  %3122 = vmatprep.subr.mxu0 0.0
  %3123 = vmatpush1.msra.mxu0 0.0
  %3124 = vmatprep.subr.mxu0 0.0
  %3125 = vmatpush1.msra.mxu0 0.0
  %3126 = vmatprep.subr.mxu0 0.0
  %3127 = vmatpush1.msra.mxu0 0.0
  %3128 = vmatprep.subr.mxu0 0.0
  %3129 = vmatpush1.msra.mxu0 0.0
  %3130 = vmatprep.subr.mxu0 0.0
  %3131 = vmatpush1.msra.mxu0 0.0
  %3132 = vmatprep.subr.mxu0 0.0
  %3133 = vmatpush1.msra.mxu0 0.0
  %3134 = vmatprep.subr.mxu0 0.0
  %3135 = vmatpush1.msra.mxu0 0.0
  %3136 = vmatprep.subr.mxu0 0.0
  %3137 = vmatpush1.msra.mxu0 0.0
  %3138 = vmatprep.subr.mxu0 0.0
  %3139 = vmatpush1.msra.mxu0 0.0
  %3140 = vmatprep.subr.mxu0 0.0
  %3141 = vmatpush1.msra.mxu0 0.0
  %3142 = vmatprep.subr.mxu0 0.0
  %3143 = vmatpush1.msra.mxu0 0.0
  %3144 = vmatprep.subr.mxu0 0.0
  %3145 = vmatpush1.msra.mxu0 0.0
  %3146 = vmatprep.subr.mxu0 0.0
  %3147 = vmatpush1.msra.mxu0 0.0
  %3148 = vmatprep.subr.mxu0 0.0
  %3149 = vmatpush1.msra.mxu0 0.0
  %3150 = vmatprep.subr.mxu0 0.0
  %3151 = vmatpush1.msra.mxu0 0.0
  %3152 = vmatprep.subr.mxu0 0.0
  %3153 = vmatpush1.msra.mxu0 0.0
  %3154 = vmatprep.subr.mxu0 0.0
  %3155 = vmatpush1.msra.mxu0 0.0
  %3156 = vmatprep.subr.mxu0 0.0
  %3157 = vmatpush1.msra.mxu0 0.0
  %3158 = vmatprep.subr.mxu0 0.0
  %3159 = vmatpush1.msra.mxu0 0.0
  %3160 = vmatprep.mubr.f32.mxu0 0.0
  %3161 = vmatmul.mubr.f32.gmra.mrb[0].mxu0 %v3094
  %v3162 = vpop.f32.mrb[0].mxu0
  %v3163 = vadd.f32 %v24, %v3162
  %v3164 = vpop.f32.mrb[0].mxu0
  %3165 = vdwg.mxu0
  %v3166 = vadd.f32 %v3093, %v3163
  %v3167 = vsub.f32 0.0, %v3166
  %v3168 = vmul.f32 %v3167, 1.442695
  %v3169 = vpow.pop %v3168
  %v3170 = vadd.f32 %v3169, 1.0
  %v3171 = vrcp.pop %v3170
  %3173 = vrot.lane.b32.xlu0 %v3163, 64
  %v3174 = vpop.permute.xlu0 %3173
  %v3176 = vmul.f32 %v3171, %v3174
  %3178 = vrot.lane.b32.xlu0 %v3176, 64
  %v3179 = vpop.permute.xlu0 %3178
  %v3181 = vadd.f32 %v3093, %v3179
  %v3182 = vtanh.pop %v3181
  %v3183 = vsub.f32 1.0, %v3171
  %3185 = vrot.lane.b32.xlu0 %v3182, 96
  %v3186 = vpop.permute.xlu0 %3185
  %v3188 = vmul.f32 %v3183, %v3186
  %v3189 = vmul.f32 %v3171, %v3085
  %v3190 = vadd.f32 %v3188, %v3189
  %3192 = vrot.lane.b32.xlu0 %v3190, 96
  %v3193 = vpop.permute.xlu0 %3192
  %3195 = vst.msk [vmem:[%s1182] sm:$0xf] %vm537, %v3193
  %3196 = vst.msk [vmem:[%s1180] sm:$0xf] %vm540, %v3193
  %s3197 = scalar_lea.vmem %s0, 120
  %v3198 = vld [vmem:[%s3197] sm:$0xf]
  %v3199 = vsel %vm26, %v3193, 0
  %3201 = vmatprep.subr.mxu0 0.0
  %3202 = vmatpush1.msra.mxu0 %v14
  %3203 = vmatprep.subr.mxu0 0.0
  %3204 = vmatpush1.msra.mxu0 %v15
  %3205 = vmatprep.subr.mxu0 0.0
  %3206 = vmatpush1.msra.mxu0 %v16
  %3207 = vmatprep.subr.mxu0 0.0
  %3208 = vmatpush1.msra.mxu0 %v17
  %3209 = vmatprep.subr.mxu0 0.0
  %3210 = vmatpush1.msra.mxu0 0.0
  %3211 = vmatprep.subr.mxu0 0.0
  %3212 = vmatpush1.msra.mxu0 0.0
  %3213 = vmatprep.subr.mxu0 0.0
  %3214 = vmatpush1.msra.mxu0 0.0
  %3215 = vmatprep.subr.mxu0 0.0
  %3216 = vmatpush1.msra.mxu0 0.0
  %3217 = vmatprep.subr.mxu0 0.0
  %3218 = vmatpush1.msra.mxu0 0.0
  %3219 = vmatprep.subr.mxu0 0.0
  %3220 = vmatpush1.msra.mxu0 0.0
  %3221 = vmatprep.subr.mxu0 0.0
  %3222 = vmatpush1.msra.mxu0 0.0
  %3223 = vmatprep.subr.mxu0 0.0
  %3224 = vmatpush1.msra.mxu0 0.0
  %3225 = vmatprep.subr.mxu0 0.0
  %3226 = vmatpush1.msra.mxu0 0.0
  %3227 = vmatprep.subr.mxu0 0.0
  %3228 = vmatpush1.msra.mxu0 0.0
  %3229 = vmatprep.subr.mxu0 0.0
  %3230 = vmatpush1.msra.mxu0 0.0
  %3231 = vmatprep.subr.mxu0 0.0
  %3232 = vmatpush1.msra.mxu0 0.0
  %3233 = vmatprep.subr.mxu0 0.0
  %3234 = vmatpush1.msra.mxu0 0.0
  %3235 = vmatprep.subr.mxu0 0.0
  %3236 = vmatpush1.msra.mxu0 0.0
  %3237 = vmatprep.subr.mxu0 0.0
  %3238 = vmatpush1.msra.mxu0 0.0
  %3239 = vmatprep.subr.mxu0 0.0
  %3240 = vmatpush1.msra.mxu0 0.0
  %3241 = vmatprep.subr.mxu0 0.0
  %3242 = vmatpush1.msra.mxu0 0.0
  %3243 = vmatprep.subr.mxu0 0.0
  %3244 = vmatpush1.msra.mxu0 0.0
  %3245 = vmatprep.subr.mxu0 0.0
  %3246 = vmatpush1.msra.mxu0 0.0
  %3247 = vmatprep.subr.mxu0 0.0
  %3248 = vmatpush1.msra.mxu0 0.0
  %3249 = vmatprep.subr.mxu0 0.0
  %3250 = vmatpush1.msra.mxu0 0.0
  %3251 = vmatprep.subr.mxu0 0.0
  %3252 = vmatpush1.msra.mxu0 0.0
  %3253 = vmatprep.subr.mxu0 0.0
  %3254 = vmatpush1.msra.mxu0 0.0
  %3255 = vmatprep.subr.mxu0 0.0
  %3256 = vmatpush1.msra.mxu0 0.0
  %3257 = vmatprep.subr.mxu0 0.0
  %3258 = vmatpush1.msra.mxu0 0.0
  %3259 = vmatprep.subr.mxu0 0.0
  %3260 = vmatpush1.msra.mxu0 0.0
  %3261 = vmatprep.subr.mxu0 0.0
  %3262 = vmatpush1.msra.mxu0 0.0
  %3263 = vmatprep.subr.mxu0 0.0
  %3264 = vmatpush1.msra.mxu0 0.0
  %3265 = vmatprep.mubr.f32.mxu0 0.0
  %3266 = vmatmul.mubr.f32.gmra.mrb[0].mxu0 %v3199
  %v3267 = vpop.f32.mrb[0].mxu0
  %v3268 = vadd.f32 %v24, %v3267
  %v3269 = vpop.f32.mrb[0].mxu0
  %3270 = vdwg.mxu0
  %v3271 = vadd.f32 %v3198, %v3268
  %v3272 = vsub.f32 0.0, %v3271
  %v3273 = vmul.f32 %v3272, 1.442695
  %v3274 = vpow.pop %v3273
  %v3275 = vadd.f32 %v3274, 1.0
  %v3276 = vrcp.pop %v3275
  %3278 = vrot.lane.b32.xlu0 %v3268, 64
  %v3279 = vpop.permute.xlu0 %3278
  %v3281 = vmul.f32 %v3276, %v3279
  %3283 = vrot.lane.b32.xlu0 %v3281, 64
  %v3284 = vpop.permute.xlu0 %3283
  %v3286 = vadd.f32 %v3198, %v3284
  %v3287 = vtanh.pop %v3286
  %v3288 = vsub.f32 1.0, %v3276
  %3290 = vrot.lane.b32.xlu0 %v3287, 96
  %v3291 = vpop.permute.xlu0 %3290
  %v3293 = vmul.f32 %v3288, %v3291
  %v3294 = vmul.f32 %v3276, %v3190
  %v3295 = vadd.f32 %v3293, %v3294
  %3297 = vrot.lane.b32.xlu0 %v3295, 96
  %v3298 = vpop.permute.xlu0 %3297
  %3300 = vst.msk [vmem:[%s1075] sm:$0xf] %vm537, %v3298
  %3301 = vst.msk [vmem:[%s1073] sm:$0xf] %vm540, %v3298
  %s3302 = scalar_lea.vmem %s0, 124
  %v3303 = vld [vmem:[%s3302] sm:$0xf]
  %v3304 = vsel %vm26, %v3298, 0
  %3306 = vmatprep.subr.mxu0 0.0
  %3307 = vmatpush1.msra.mxu0 %v14
  %3308 = vmatprep.subr.mxu0 0.0
  %3309 = vmatpush1.msra.mxu0 %v15
  %3310 = vmatprep.subr.mxu0 0.0
  %3311 = vmatpush1.msra.mxu0 %v16
  %3312 = vmatprep.subr.mxu0 0.0
  %3313 = vmatpush1.msra.mxu0 %v17
  %3314 = vmatprep.subr.mxu0 0.0
  %3315 = vmatpush1.msra.mxu0 0.0
  %3316 = vmatprep.subr.mxu0 0.0
  %3317 = vmatpush1.msra.mxu0 0.0
  %3318 = vmatprep.subr.mxu0 0.0
  %3319 = vmatpush1.msra.mxu0 0.0
  %3320 = vmatprep.subr.mxu0 0.0
  %3321 = vmatpush1.msra.mxu0 0.0
  %3322 = vmatprep.subr.mxu0 0.0
  %3323 = vmatpush1.msra.mxu0 0.0
  %3324 = vmatprep.subr.mxu0 0.0
  %3325 = vmatpush1.msra.mxu0 0.0
  %3326 = vmatprep.subr.mxu0 0.0
  %3327 = vmatpush1.msra.mxu0 0.0
  %3328 = vmatprep.subr.mxu0 0.0
  %3329 = vmatpush1.msra.mxu0 0.0
  %3330 = vmatprep.subr.mxu0 0.0
  %3331 = vmatpush1.msra.mxu0 0.0
  %3332 = vmatprep.subr.mxu0 0.0
  %3333 = vmatpush1.msra.mxu0 0.0
  %3334 = vmatprep.subr.mxu0 0.0
  %3335 = vmatpush1.msra.mxu0 0.0
  %3336 = vmatprep.subr.mxu0 0.0
  %3337 = vmatpush1.msra.mxu0 0.0
  %3338 = vmatprep.subr.mxu0 0.0
  %3339 = vmatpush1.msra.mxu0 0.0
  %3340 = vmatprep.subr.mxu0 0.0
  %3341 = vmatpush1.msra.mxu0 0.0
  %3342 = vmatprep.subr.mxu0 0.0
  %3343 = vmatpush1.msra.mxu0 0.0
  %3344 = vmatprep.subr.mxu0 0.0
  %3345 = vmatpush1.msra.mxu0 0.0
  %3346 = vmatprep.subr.mxu0 0.0
  %3347 = vmatpush1.msra.mxu0 0.0
  %3348 = vmatprep.subr.mxu0 0.0
  %3349 = vmatpush1.msra.mxu0 0.0
  %3350 = vmatprep.subr.mxu0 0.0
  %3351 = vmatpush1.msra.mxu0 0.0
  %3352 = vmatprep.subr.mxu0 0.0
  %3353 = vmatpush1.msra.mxu0 0.0
  %3354 = vmatprep.subr.mxu0 0.0
  %3355 = vmatpush1.msra.mxu0 0.0
  %3356 = vmatprep.subr.mxu0 0.0
  %3357 = vmatpush1.msra.mxu0 0.0
  %3358 = vmatprep.subr.mxu0 0.0
  %3359 = vmatpush1.msra.mxu0 0.0
  %3360 = vmatprep.subr.mxu0 0.0
  %3361 = vmatpush1.msra.mxu0 0.0
  %3362 = vmatprep.subr.mxu0 0.0
  %3363 = vmatpush1.msra.mxu0 0.0
  %3364 = vmatprep.subr.mxu0 0.0
  %3365 = vmatpush1.msra.mxu0 0.0
  %3366 = vmatprep.subr.mxu0 0.0
  %3367 = vmatpush1.msra.mxu0 0.0
  %3368 = vmatprep.subr.mxu0 0.0
  %3369 = vmatpush1.msra.mxu0 0.0
  %3370 = vmatprep.mubr.f32.mxu0 0.0
  %3371 = vmatmul.mubr.f32.gmra.mrb[0].mxu0 %v3304
  %v3372 = vpop.f32.mrb[0].mxu0
  %v3373 = vadd.f32 %v24, %v3372
  %v3374 = vpop.f32.mrb[0].mxu0
  %3375 = vdwg.mxu0
  %v3376 = vadd.f32 %v3303, %v3373
  %v3377 = vsub.f32 0.0, %v3376
  %v3378 = vmul.f32 %v3377, 1.442695
  %v3379 = vpow.pop %v3378
  %v3380 = vadd.f32 %v3379, 1.0
  %v3381 = vrcp.pop %v3380
  %3383 = vrot.lane.b32.xlu0 %v3373, 64
  %v3384 = vpop.permute.xlu0 %3383
  %v3386 = vmul.f32 %v3381, %v3384
  %3388 = vrot.lane.b32.xlu0 %v3386, 64
  %v3389 = vpop.permute.xlu0 %3388
  %v3391 = vadd.f32 %v3303, %v3389
  %v3392 = vtanh.pop %v3391
  %v3393 = vsub.f32 1.0, %v3381
  %3395 = vrot.lane.b32.xlu0 %v3392, 96
  %v3396 = vpop.permute.xlu0 %3395
  %v3398 = vmul.f32 %v3393, %v3396
  %v3399 = vmul.f32 %v3381, %v3295
  %v3400 = vadd.f32 %v3398, %v3399
  %3402 = vrot.lane.b32.xlu0 %v3400, 96
  %v3403 = vpop.permute.xlu0 %3402
  %3405 = vst.msk [vmem:[%s968] sm:$0xf] %vm537, %v3403
  %3406 = vst.msk [vmem:[%s966] sm:$0xf] %vm540, %v3403
  %s3407 = scalar_lea.vmem %s0, 128
  %v3408 = vld [vmem:[%s3407] sm:$0xf]
  %v3409 = vsel %vm26, %v3403, 0
  %3411 = vmatprep.subr.mxu0 0.0
  %3412 = vmatpush1.msra.mxu0 %v14
  %3413 = vmatprep.subr.mxu0 0.0
  %3414 = vmatpush1.msra.mxu0 %v15
  %3415 = vmatprep.subr.mxu0 0.0
  %3416 = vmatpush1.msra.mxu0 %v16
  %3417 = vmatprep.subr.mxu0 0.0
  %3418 = vmatpush1.msra.mxu0 %v17
  %3419 = vmatprep.subr.mxu0 0.0
  %3420 = vmatpush1.msra.mxu0 0.0
  %3421 = vmatprep.subr.mxu0 0.0
  %3422 = vmatpush1.msra.mxu0 0.0
  %3423 = vmatprep.subr.mxu0 0.0
  %3424 = vmatpush1.msra.mxu0 0.0
  %3425 = vmatprep.subr.mxu0 0.0
  %3426 = vmatpush1.msra.mxu0 0.0
  %3427 = vmatprep.subr.mxu0 0.0
  %3428 = vmatpush1.msra.mxu0 0.0
  %3429 = vmatprep.subr.mxu0 0.0
  %3430 = vmatpush1.msra.mxu0 0.0
  %3431 = vmatprep.subr.mxu0 0.0
  %3432 = vmatpush1.msra.mxu0 0.0
  %3433 = vmatprep.subr.mxu0 0.0
  %3434 = vmatpush1.msra.mxu0 0.0
  %3435 = vmatprep.subr.mxu0 0.0
  %3436 = vmatpush1.msra.mxu0 0.0
  %3437 = vmatprep.subr.mxu0 0.0
  %3438 = vmatpush1.msra.mxu0 0.0
  %3439 = vmatprep.subr.mxu0 0.0
  %3440 = vmatpush1.msra.mxu0 0.0
  %3441 = vmatprep.subr.mxu0 0.0
  %3442 = vmatpush1.msra.mxu0 0.0
  %3443 = vmatprep.subr.mxu0 0.0
  %3444 = vmatpush1.msra.mxu0 0.0
  %3445 = vmatprep.subr.mxu0 0.0
  %3446 = vmatpush1.msra.mxu0 0.0
  %3447 = vmatprep.subr.mxu0 0.0
  %3448 = vmatpush1.msra.mxu0 0.0
  %3449 = vmatprep.subr.mxu0 0.0
  %3450 = vmatpush1.msra.mxu0 0.0
  %3451 = vmatprep.subr.mxu0 0.0
  %3452 = vmatpush1.msra.mxu0 0.0
  %3453 = vmatprep.subr.mxu0 0.0
  %3454 = vmatpush1.msra.mxu0 0.0
  %3455 = vmatprep.subr.mxu0 0.0
  %3456 = vmatpush1.msra.mxu0 0.0
  %3457 = vmatprep.subr.mxu0 0.0
  %3458 = vmatpush1.msra.mxu0 0.0
  %3459 = vmatprep.subr.mxu0 0.0
  %3460 = vmatpush1.msra.mxu0 0.0
  %3461 = vmatprep.subr.mxu0 0.0
  %3462 = vmatpush1.msra.mxu0 0.0
  %3463 = vmatprep.subr.mxu0 0.0
  %3464 = vmatpush1.msra.mxu0 0.0
  %3465 = vmatprep.subr.mxu0 0.0
  %3466 = vmatpush1.msra.mxu0 0.0
  %3467 = vmatprep.subr.mxu0 0.0
  %3468 = vmatpush1.msra.mxu0 0.0
  %3469 = vmatprep.subr.mxu0 0.0
  %3470 = vmatpush1.msra.mxu0 0.0
  %3471 = vmatprep.subr.mxu0 0.0
  %3472 = vmatpush1.msra.mxu0 0.0
  %3473 = vmatprep.subr.mxu0 0.0
  %3474 = vmatpush1.msra.mxu0 0.0
  %3475 = vmatprep.mubr.f32.mxu0 0.0
  %3476 = vmatmul.mubr.f32.gmra.mrb[0].mxu0 %v3409
  %v3477 = vpop.f32.mrb[0].mxu0
  %v3478 = vadd.f32 %v24, %v3477
  %v3479 = vpop.f32.mrb[0].mxu0
  %3480 = vdwg.mxu0
  %v3481 = vadd.f32 %v3408, %v3478
  %v3482 = vsub.f32 0.0, %v3481
  %v3483 = vmul.f32 %v3482, 1.442695
  %v3484 = vpow.pop %v3483
  %v3485 = vadd.f32 %v3484, 1.0
  %v3486 = vrcp.pop %v3485
  %3488 = vrot.lane.b32.xlu0 %v3478, 64
  %v3489 = vpop.permute.xlu0 %3488
  %v3491 = vmul.f32 %v3486, %v3489
  %3493 = vrot.lane.b32.xlu0 %v3491, 64
  %v3494 = vpop.permute.xlu0 %3493
  %v3496 = vadd.f32 %v3408, %v3494
  %v3497 = vtanh.pop %v3496
  %v3498 = vsub.f32 1.0, %v3486
  %3500 = vrot.lane.b32.xlu0 %v3497, 96
  %v3501 = vpop.permute.xlu0 %3500
  %v3503 = vmul.f32 %v3498, %v3501
  %v3504 = vmul.f32 %v3486, %v3400
  %v3505 = vadd.f32 %v3503, %v3504
  %3507 = vrot.lane.b32.xlu0 %v3505, 96
  %v3508 = vpop.permute.xlu0 %3507
  %3510 = vst.msk [vmem:[%s861] sm:$0xf] %vm537, %v3508
  %3511 = vst.msk [vmem:[%s859] sm:$0xf] %vm540, %v3508
  %s3512 = scalar_lea.vmem %s0, 132
  %v3513 = vld [vmem:[%s3512] sm:$0xf]
  %v3514 = vsel %vm26, %v3508, 0
  %3516 = vmatprep.subr.mxu0 0.0
  %3517 = vmatpush1.msra.mxu0 %v14
  %3518 = vmatprep.subr.mxu0 0.0
  %3519 = vmatpush1.msra.mxu0 %v15
  %3520 = vmatprep.subr.mxu0 0.0
  %3521 = vmatpush1.msra.mxu0 %v16
  %3522 = vmatprep.subr.mxu0 0.0
  %3523 = vmatpush1.msra.mxu0 %v17
  %3524 = vmatprep.subr.mxu0 0.0
  %3525 = vmatpush1.msra.mxu0 0.0
  %3526 = vmatprep.subr.mxu0 0.0
  %3527 = vmatpush1.msra.mxu0 0.0
  %3528 = vmatprep.subr.mxu0 0.0
  %3529 = vmatpush1.msra.mxu0 0.0
  %3530 = vmatprep.subr.mxu0 0.0
  %3531 = vmatpush1.msra.mxu0 0.0
  %3532 = vmatprep.subr.mxu0 0.0
  %3533 = vmatpush1.msra.mxu0 0.0
  %3534 = vmatprep.subr.mxu0 0.0
  %3535 = vmatpush1.msra.mxu0 0.0
  %3536 = vmatprep.subr.mxu0 0.0
  %3537 = vmatpush1.msra.mxu0 0.0
  %3538 = vmatprep.subr.mxu0 0.0
  %3539 = vmatpush1.msra.mxu0 0.0
  %3540 = vmatprep.subr.mxu0 0.0
  %3541 = vmatpush1.msra.mxu0 0.0
  %3542 = vmatprep.subr.mxu0 0.0
  %3543 = vmatpush1.msra.mxu0 0.0
  %3544 = vmatprep.subr.mxu0 0.0
  %3545 = vmatpush1.msra.mxu0 0.0
  %3546 = vmatprep.subr.mxu0 0.0
  %3547 = vmatpush1.msra.mxu0 0.0
  %3548 = vmatprep.subr.mxu0 0.0
  %3549 = vmatpush1.msra.mxu0 0.0
  %3550 = vmatprep.subr.mxu0 0.0
  %3551 = vmatpush1.msra.mxu0 0.0
  %3552 = vmatprep.subr.mxu0 0.0
  %3553 = vmatpush1.msra.mxu0 0.0
  %3554 = vmatprep.subr.mxu0 0.0
  %3555 = vmatpush1.msra.mxu0 0.0
  %3556 = vmatprep.subr.mxu0 0.0
  %3557 = vmatpush1.msra.mxu0 0.0
  %3558 = vmatprep.subr.mxu0 0.0
  %3559 = vmatpush1.msra.mxu0 0.0
  %3560 = vmatprep.subr.mxu0 0.0
  %3561 = vmatpush1.msra.mxu0 0.0
  %3562 = vmatprep.subr.mxu0 0.0
  %3563 = vmatpush1.msra.mxu0 0.0
  %3564 = vmatprep.subr.mxu0 0.0
  %3565 = vmatpush1.msra.mxu0 0.0
  %3566 = vmatprep.subr.mxu0 0.0
  %3567 = vmatpush1.msra.mxu0 0.0
  %3568 = vmatprep.subr.mxu0 0.0
  %3569 = vmatpush1.msra.mxu0 0.0
  %3570 = vmatprep.subr.mxu0 0.0
  %3571 = vmatpush1.msra.mxu0 0.0
  %3572 = vmatprep.subr.mxu0 0.0
  %3573 = vmatpush1.msra.mxu0 0.0
  %3574 = vmatprep.subr.mxu0 0.0
  %3575 = vmatpush1.msra.mxu0 0.0
  %3576 = vmatprep.subr.mxu0 0.0
  %3577 = vmatpush1.msra.mxu0 0.0
  %3578 = vmatprep.subr.mxu0 0.0
  %3579 = vmatpush1.msra.mxu0 0.0
  %3580 = vmatprep.mubr.f32.mxu0 0.0
  %3581 = vmatmul.mubr.f32.gmra.mrb[0].mxu0 %v3514
  %v3582 = vpop.f32.mrb[0].mxu0
  %v3583 = vadd.f32 %v24, %v3582
  %v3584 = vpop.f32.mrb[0].mxu0
  %3585 = vdwg.mxu0
  %v3586 = vadd.f32 %v3513, %v3583
  %v3587 = vsub.f32 0.0, %v3586
  %v3588 = vmul.f32 %v3587, 1.442695
  %v3589 = vpow.pop %v3588
  %v3590 = vadd.f32 %v3589, 1.0
  %v3591 = vrcp.pop %v3590
  %3593 = vrot.lane.b32.xlu0 %v3583, 64
  %v3594 = vpop.permute.xlu0 %3593
  %v3596 = vmul.f32 %v3591, %v3594
  %3598 = vrot.lane.b32.xlu0 %v3596, 64
  %v3599 = vpop.permute.xlu0 %3598
  %v3601 = vadd.f32 %v3513, %v3599
  %v3602 = vtanh.pop %v3601
  %v3603 = vsub.f32 1.0, %v3591
  %3605 = vrot.lane.b32.xlu0 %v3602, 96
  %v3606 = vpop.permute.xlu0 %3605
  %v3608 = vmul.f32 %v3603, %v3606
  %v3609 = vmul.f32 %v3591, %v3505
  %v3610 = vadd.f32 %v3608, %v3609
  %3612 = vrot.lane.b32.xlu0 %v3610, 96
  %v3613 = vpop.permute.xlu0 %3612
  %3615 = vst.msk [vmem:[%s754] sm:$0xf] %vm537, %v3613
  %3616 = vst.msk [vmem:[%s752] sm:$0xf] %vm540, %v3613
  %s3617 = scalar_lea.vmem %s0, 136
  %v3618 = vld [vmem:[%s3617] sm:$0xf]
  %v3619 = vsel %vm26, %v3613, 0
  %3621 = vmatprep.subr.mxu0 0.0
  %3622 = vmatpush1.msra.mxu0 %v14
  %3623 = vmatprep.subr.mxu0 0.0
  %3624 = vmatpush1.msra.mxu0 %v15
  %3625 = vmatprep.subr.mxu0 0.0
  %3626 = vmatpush1.msra.mxu0 %v16
  %3627 = vmatprep.subr.mxu0 0.0
  %3628 = vmatpush1.msra.mxu0 %v17
  %3629 = vmatprep.subr.mxu0 0.0
  %3630 = vmatpush1.msra.mxu0 0.0
  %3631 = vmatprep.subr.mxu0 0.0
  %3632 = vmatpush1.msra.mxu0 0.0
  %3633 = vmatprep.subr.mxu0 0.0
  %3634 = vmatpush1.msra.mxu0 0.0
  %3635 = vmatprep.subr.mxu0 0.0
  %3636 = vmatpush1.msra.mxu0 0.0
  %3637 = vmatprep.subr.mxu0 0.0
  %3638 = vmatpush1.msra.mxu0 0.0
  %3639 = vmatprep.subr.mxu0 0.0
  %3640 = vmatpush1.msra.mxu0 0.0
  %3641 = vmatprep.subr.mxu0 0.0
  %3642 = vmatpush1.msra.mxu0 0.0
  %3643 = vmatprep.subr.mxu0 0.0
  %3644 = vmatpush1.msra.mxu0 0.0
  %3645 = vmatprep.subr.mxu0 0.0
  %3646 = vmatpush1.msra.mxu0 0.0
  %3647 = vmatprep.subr.mxu0 0.0
  %3648 = vmatpush1.msra.mxu0 0.0
  %3649 = vmatprep.subr.mxu0 0.0
  %3650 = vmatpush1.msra.mxu0 0.0
  %3651 = vmatprep.subr.mxu0 0.0
  %3652 = vmatpush1.msra.mxu0 0.0
  %3653 = vmatprep.subr.mxu0 0.0
  %3654 = vmatpush1.msra.mxu0 0.0
  %3655 = vmatprep.subr.mxu0 0.0
  %3656 = vmatpush1.msra.mxu0 0.0
  %3657 = vmatprep.subr.mxu0 0.0
  %3658 = vmatpush1.msra.mxu0 0.0
  %3659 = vmatprep.subr.mxu0 0.0
  %3660 = vmatpush1.msra.mxu0 0.0
  %3661 = vmatprep.subr.mxu0 0.0
  %3662 = vmatpush1.msra.mxu0 0.0
  %3663 = vmatprep.subr.mxu0 0.0
  %3664 = vmatpush1.msra.mxu0 0.0
  %3665 = vmatprep.subr.mxu0 0.0
  %3666 = vmatpush1.msra.mxu0 0.0
  %3667 = vmatprep.subr.mxu0 0.0
  %3668 = vmatpush1.msra.mxu0 0.0
  %3669 = vmatprep.subr.mxu0 0.0
  %3670 = vmatpush1.msra.mxu0 0.0
  %3671 = vmatprep.subr.mxu0 0.0
  %3672 = vmatpush1.msra.mxu0 0.0
  %3673 = vmatprep.subr.mxu0 0.0
  %3674 = vmatpush1.msra.mxu0 0.0
  %3675 = vmatprep.subr.mxu0 0.0
  %3676 = vmatpush1.msra.mxu0 0.0
  %3677 = vmatprep.subr.mxu0 0.0
  %3678 = vmatpush1.msra.mxu0 0.0
  %3679 = vmatprep.subr.mxu0 0.0
  %3680 = vmatpush1.msra.mxu0 0.0
  %3681 = vmatprep.subr.mxu0 0.0
  %3682 = vmatpush1.msra.mxu0 0.0
  %3683 = vmatprep.subr.mxu0 0.0
  %3684 = vmatpush1.msra.mxu0 0.0
  %3685 = vmatprep.mubr.f32.mxu0 0.0
  %3686 = vmatmul.mubr.f32.gmra.mrb[0].mxu0 %v3619
  %v3687 = vpop.f32.mrb[0].mxu0
  %v3688 = vadd.f32 %v24, %v3687
  %v3689 = vpop.f32.mrb[0].mxu0
  %3690 = vdwg.mxu0
  %v3691 = vadd.f32 %v3618, %v3688
  %v3692 = vsub.f32 0.0, %v3691
  %v3693 = vmul.f32 %v3692, 1.442695
  %v3694 = vpow.pop %v3693
  %v3695 = vadd.f32 %v3694, 1.0
  %v3696 = vrcp.pop %v3695
  %3698 = vrot.lane.b32.xlu0 %v3688, 64
  %v3699 = vpop.permute.xlu0 %3698
  %v3701 = vmul.f32 %v3696, %v3699
  %3703 = vrot.lane.b32.xlu0 %v3701, 64
  %v3704 = vpop.permute.xlu0 %3703
  %v3706 = vadd.f32 %v3618, %v3704
  %v3707 = vtanh.pop %v3706
  %v3708 = vsub.f32 1.0, %v3696
  %3710 = vrot.lane.b32.xlu0 %v3707, 96
  %v3711 = vpop.permute.xlu0 %3710
  %v3713 = vmul.f32 %v3708, %v3711
  %v3714 = vmul.f32 %v3696, %v3610
  %v3715 = vadd.f32 %v3713, %v3714
  %3717 = vrot.lane.b32.xlu0 %v3715, 96
  %v3718 = vpop.permute.xlu0 %3717
  %3720 = vst.msk [vmem:[%s647] sm:$0xf] %vm537, %v3718
  %3721 = vst.msk [vmem:[%s645] sm:$0xf] %vm540, %v3718
  %s3722 = scalar_lea.vmem %s0, 140
  %v3723 = vld [vmem:[%s3722] sm:$0xf]
  %v3724 = vsel %vm26, %v3718, 0
  %3726 = vmatprep.subr.mxu0 0.0
  %3727 = vmatpush1.msra.mxu0 %v14
  %3728 = vmatprep.subr.mxu0 0.0
  %3729 = vmatpush1.msra.mxu0 %v15
  %3730 = vmatprep.subr.mxu0 0.0
  %3731 = vmatpush1.msra.mxu0 %v16
  %3732 = vmatprep.subr.mxu0 0.0
  %3733 = vmatpush1.msra.mxu0 %v17
  %3734 = vmatprep.subr.mxu0 0.0
  %3735 = vmatpush1.msra.mxu0 0.0
  %3736 = vmatprep.subr.mxu0 0.0
  %3737 = vmatpush1.msra.mxu0 0.0
  %3738 = vmatprep.subr.mxu0 0.0
  %3739 = vmatpush1.msra.mxu0 0.0
  %3740 = vmatprep.subr.mxu0 0.0
  %3741 = vmatpush1.msra.mxu0 0.0
  %3742 = vmatprep.subr.mxu0 0.0
  %3743 = vmatpush1.msra.mxu0 0.0
  %3744 = vmatprep.subr.mxu0 0.0
  %3745 = vmatpush1.msra.mxu0 0.0
  %3746 = vmatprep.subr.mxu0 0.0
  %3747 = vmatpush1.msra.mxu0 0.0
  %3748 = vmatprep.subr.mxu0 0.0
  %3749 = vmatpush1.msra.mxu0 0.0
  %3750 = vmatprep.subr.mxu0 0.0
  %3751 = vmatpush1.msra.mxu0 0.0
  %3752 = vmatprep.subr.mxu0 0.0
  %3753 = vmatpush1.msra.mxu0 0.0
  %3754 = vmatprep.subr.mxu0 0.0
  %3755 = vmatpush1.msra.mxu0 0.0
  %3756 = vmatprep.subr.mxu0 0.0
  %3757 = vmatpush1.msra.mxu0 0.0
  %3758 = vmatprep.subr.mxu0 0.0
  %3759 = vmatpush1.msra.mxu0 0.0
  %3760 = vmatprep.subr.mxu0 0.0
  %3761 = vmatpush1.msra.mxu0 0.0
  %3762 = vmatprep.subr.mxu0 0.0
  %3763 = vmatpush1.msra.mxu0 0.0
  %3764 = vmatprep.subr.mxu0 0.0
  %3765 = vmatpush1.msra.mxu0 0.0
  %3766 = vmatprep.subr.mxu0 0.0
  %3767 = vmatpush1.msra.mxu0 0.0
  %3768 = vmatprep.subr.mxu0 0.0
  %3769 = vmatpush1.msra.mxu0 0.0
  %3770 = vmatprep.subr.mxu0 0.0
  %3771 = vmatpush1.msra.mxu0 0.0
  %3772 = vmatprep.subr.mxu0 0.0
  %3773 = vmatpush1.msra.mxu0 0.0
  %3774 = vmatprep.subr.mxu0 0.0
  %3775 = vmatpush1.msra.mxu0 0.0
  %3776 = vmatprep.subr.mxu0 0.0
  %3777 = vmatpush1.msra.mxu0 0.0
  %3778 = vmatprep.subr.mxu0 0.0
  %3779 = vmatpush1.msra.mxu0 0.0
  %3780 = vmatprep.subr.mxu0 0.0
  %3781 = vmatpush1.msra.mxu0 0.0
  %3782 = vmatprep.subr.mxu0 0.0
  %3783 = vmatpush1.msra.mxu0 0.0
  %3784 = vmatprep.subr.mxu0 0.0
  %3785 = vmatpush1.msra.mxu0 0.0
  %3786 = vmatprep.subr.mxu0 0.0
  %3787 = vmatpush1.msra.mxu0 0.0
  %3788 = vmatprep.subr.mxu0 0.0
  %3789 = vmatpush1.msra.mxu0 0.0
  %3790 = vmatprep.mubr.f32.mxu0 0.0
  %3791 = vmatmul.mubr.f32.gmra.mrb[0].mxu0 %v3724
  %v3792 = vpop.f32.mrb[0].mxu0
  %v3793 = vadd.f32 %v24, %v3792
  %v3794 = vpop.f32.mrb[0].mxu0
  %3795 = vdwg.mxu0
  %v3796 = vadd.f32 %v3723, %v3793
  %v3797 = vsub.f32 0.0, %v3796
  %v3798 = vmul.f32 %v3797, 1.442695
  %v3799 = vpow.pop %v3798
  %v3800 = vadd.f32 %v3799, 1.0
  %v3801 = vrcp.pop %v3800
  %3803 = vrot.lane.b32.xlu0 %v3793, 64
  %v3804 = vpop.permute.xlu0 %3803
  %v3806 = vmul.f32 %v3801, %v3804
  %3808 = vrot.lane.b32.xlu0 %v3806, 64
  %v3809 = vpop.permute.xlu0 %3808
  %v3811 = vadd.f32 %v3723, %v3809
  %v3812 = vtanh.pop %v3811
  %v3813 = vsub.f32 1.0, %v3801
  %3815 = vrot.lane.b32.xlu0 %v3812, 96
  %v3816 = vpop.permute.xlu0 %3815
  %v3818 = vmul.f32 %v3813, %v3816
  %v3819 = vmul.f32 %v3801, %v3715
  %v3820 = vadd.f32 %v3818, %v3819
  %3822 = vrot.lane.b32.xlu0 %v3820, 96
  %v3823 = vpop.permute.xlu0 %3822
  %3825 = vst.msk [vmem:[%s539] sm:$0xf] %vm537, %v3823
  %3826 = vst.msk [vmem:[%s3] sm:$0xf] %vm540, %v3823
  // Predicated region
  $region14: #{regressor_forward.2} parent=0 // pred_check
    _
  $region15: #{regressor_forward.2} parent=0 // pred_check_branch
    %3828 = sbr.rel (0) target = $region17
  $region16: #{regressor_forward.2} parent=0 // pred_region
    _
  $region17: #{regressor_forward.2} parent=0 // pred_fallthru
    _
  // Predicated region
  $region18: #{regressor_forward.2} parent=0 // pred_check
    _
  $region19: #{regressor_forward.2} parent=0 // pred_check_branch
    %3830 = sbr.rel (0) target = $region21
  $region20: #{regressor_forward.2} parent=0 // pred_region
    _
  $region21: #{regressor_forward.2} parent=0 // pred_fallthru
    _

</llo_original>
